<compile_context>
chip_gen: v7x
topology: tpu7x:2x2x1
jax: 0.10.0
libtpu: 0.0.40
codegen_flags: <defaults>
</compile_context>

<pallas_src>
import jax
import jax.numpy as jnp
from jax.experimental import pallas as pl
from jax.experimental.pallas import tpu as pltpu

NUM_CLASSES = 53
NASNET_OUT_FEATURES = 4032   # nasnetalarge last_linear.in_features
STEM_CHANNELS = 96           # nasnetalarge conv0 output channels
HIDDEN = 1024                # custom head hidden width
KH = KW = 3
STRIDE = 2

# lane-dense padded sizes (zero-padded; sliced back at the public boundary)
K_PAD = 32          # 27 im2col columns  -> 32
STEM_PAD = 128      # 96 stem channels   -> 128
FEAT_PAD = 4096     # 4032 features      -> 4096
FC2_PAD = 128       # 53 logits          -> 128
TN_FC1 = 512        # fc1 N tile (int8 tile = 2 MB); grid = HIDDEN // TN_FC1


# ---------------------------------------------------------------------------
# Fused forward kernel: every grid step computes the stem/proj feature
# (cheap, M=2) and one fc1 N-tile -> fc2 partial; steps are independent.
# ---------------------------------------------------------------------------
def _fused_forward_kernel(patches_ref, pool_ref, cw_ref, bns_ref, bnb_ref,
                          pw_ref, ps_ref, pb_ref,
                          w1_ref, s1_ref, b1_ref, w2_ref,
                          o_ref):
    # ---- surrogate backbone (recomputed per step; tiny vs. the weight DMA) --
    # Stem conv as one tall im2col matmul over the whole batch (bf16 x bf16,
    # f32 accumulation), folded BatchNorm affine, ReLU.
    y = jnp.dot(patches_ref[...], cw_ref[...],
                preferred_element_type=jnp.float32)
    y = jnp.maximum(y * bns_ref[...] + bnb_ref[...], 0.0)

    # Global average pool per image as a tiny matmul with a 0/1 selection
    # matrix (exact in bf16); the 1/howo scale is applied once in f32.
    inv_hw = 1.0 / float(pool_ref.shape[1] // pool_ref.shape[0])
    pooled = jnp.dot(pool_ref[...], y.astype(jnp.bfloat16),
                     preferred_element_type=jnp.float32) * inv_hw

    # Projection to the 4032(->4096 padded) NASNet feature: int8 weights,
    # dequantized by applying the per-column scale to the f32 result, ReLU.
    pw_bf16 = pw_ref[...].astype(jnp.float32).astype(jnp.bfloat16)
    f = jnp.dot(pooled.astype(jnp.bfloat16), pw_bf16,
                preferred_element_type=jnp.float32)
    f = jnp.maximum(f * ps_ref[...] + pb_ref[...], 0.0)

    # ---- custom head (exact math) -------------------------------------------
    # fc1 N-tile (int8 weights) -> ReLU -> (Dropout(0.3) = identity in eval)
    w1_bf16 = w1_ref[...].astype(jnp.float32).astype(jnp.bfloat16)
    h = jnp.dot(f.astype(jnp.bfloat16), w1_bf16,
                preferred_element_type=jnp.float32)
    h = jnp.maximum(h * s1_ref[...] + b1_ref[...], 0.0)

    # fc2 partial product for this K-slice; partial slots are summed in XLA.
    res = jnp.dot(h.astype(jnp.bfloat16), w2_ref[...],
                  preferred_element_type=jnp.float32)
    o_ref[...] = res[None]


# ---------------------------------------------------------------------------
# Parameters (deterministic, synthetic) — stored pre-padded / pre-quantized so
# there is no per-call packing cost.
# ---------------------------------------------------------------------------
def _quantize_cols_int8(w):
    """Symmetric per-output-column int8 quantization: w ~= q * scale."""
    amax = jnp.max(jnp.abs(w), axis=0, keepdims=True)
    scale = jnp.where(amax > 0.0, amax / 127.0, 1.0)
    q = jnp.clip(jnp.round(w / scale), -127.0, 127.0).astype(jnp.int8)
    return q, scale.astype(jnp.float32)


def init_params(key):
    ks = jax.random.split(key, 4)

    def nrm(k, shape, std):
        return jax.random.normal(k, shape, jnp.float32) * std

    cin = 3
    k_raw = KH * KW * cin  # 27

    # nasnetalarge conv0 (3->96, 3x3, stride 2) with folded BatchNorm.
    # NOTE: im2col column order is (kh, kw, cin); real PyTorch conv weights
    # (Cout, Cin, KH, KW) must be permuted to (KH, KW, Cin, Cout) before use.
    conv_w = nrm(ks[0], (k_raw, STEM_CHANNELS), 0.05)
    conv_w_p = (jnp.zeros((K_PAD, STEM_PAD), jnp.float32)
                .at[:k_raw, :STEM_CHANNELS].set(conv_w)).astype(jnp.bfloat16)
    bn_scale_p = (jnp.zeros((1, STEM_PAD), jnp.float32)
                  .at[:, :STEM_CHANNELS].set(1.0))
    bn_bias_p = jnp.zeros((1, STEM_PAD), jnp.float32)

    # TODO(synk): surrogate projection standing in for the NASNet-A Large
    # normal/reduction cell stack; produces the 4032-dim feature vector.
    proj_w = nrm(ks[1], (STEM_CHANNELS, NASNET_OUT_FEATURES), 0.05)
    proj_w_p = (jnp.zeros((STEM_PAD, FEAT_PAD), jnp.float32)
                .at[:STEM_CHANNELS, :NASNET_OUT_FEATURES].set(proj_w))
    proj_w_q, proj_w_s = _quantize_cols_int8(proj_w_p)
    proj_b_p = jnp.zeros((1, FEAT_PAD), jnp.float32)

    # Exact custom head: Linear(4032,1024) -> ReLU -> Dropout(0.3) -> Linear(1024,53)
    fc1_w = nrm(ks[2], (NASNET_OUT_FEATURES, HIDDEN), 0.02)
    fc1_w_p = (jnp.zeros((FEAT_PAD, HIDDEN), jnp.float32)
               .at[:NASNET_OUT_FEATURES, :].set(fc1_w))
    fc1_w_q, fc1_w_s = _quantize_cols_int8(fc1_w_p)
    fc1_b_p = jnp.zeros((1, HIDDEN), jnp.float32)

    fc2_w = nrm(ks[3], (HIDDEN, NUM_CLASSES), 0.02)
    fc2_w_p = (jnp.zeros((HIDDEN, FC2_PAD), jnp.float32)
               .at[:, :NUM_CLASSES].set(fc2_w)).astype(jnp.bfloat16)
    fc2_b_p = jnp.zeros((1, FC2_PAD), jnp.float32)

    return {
        "conv_w": conv_w_p, "bn_scale": bn_scale_p, "bn_bias": bn_bias_p,
        "proj_w": proj_w_q, "proj_scale": proj_w_s, "proj_b": proj_b_p,
        "fc1_w": fc1_w_q, "fc1_scale": fc1_w_s, "fc1_b": fc1_b_p,
        "fc2_w": fc2_w_p, "fc2_b": fc2_b_p,
    }


# ---------------------------------------------------------------------------
# Public forward pass (accepts NCHW like PyTorch)
# ---------------------------------------------------------------------------
def nasnet_a_card_classifier(params, x_nchw):
    # NCHW (PyTorch) -> NHWC (kernel layout)
    x = jnp.transpose(x_nchw, (0, 2, 3, 1)).astype(jnp.float32)
    B, H, W, Cin = x.shape
    Ho = (H - KH) // STRIDE + 1
    Wo = (W - KW) // STRIDE + 1
    howo = Ho * Wo
    k_raw = KH * KW * Cin

    # im2col (pure data-movement glue); whole batch flattened into one matmul.
    cols = []
    for kh in range(KH):
        for kw in range(KW):
            cols.append(x[:, kh:kh + STRIDE * (Ho - 1) + 1:STRIDE,
                          kw:kw + STRIDE * (Wo - 1) + 1:STRIDE, :])
    patches = jnp.stack(cols, axis=3).reshape(B * howo, k_raw)
    patches = jnp.pad(patches, ((0, 0), (0, K_PAD - k_raw))).astype(jnp.bfloat16)

    # Per-image 0/1 selection matrix (B, B*howo); exact in bf16 (the 1/howo
    # scale is applied inside the kernel in f32).
    pool_mat = jnp.repeat(jnp.eye(B, dtype=jnp.float32), howo, axis=1
                          ).astype(jnp.bfloat16)

    n_tiles = HIDDEN // TN_FC1
    partials = pl.pallas_call(
        _fused_forward_kernel,
        out_shape=jax.ShapeDtypeStruct((n_tiles, B, FC2_PAD), jnp.float32),
        grid_spec=pltpu.PrefetchScalarGridSpec(
            num_scalar_prefetch=0,
            grid=(n_tiles,),
            in_specs=[
                pl.BlockSpec((B * howo, K_PAD), lambda j: (0, 0)),     # patches
                pl.BlockSpec((B, B * howo), lambda j: (0, 0)),         # pool_mat
                pl.BlockSpec((K_PAD, STEM_PAD), lambda j: (0, 0)),     # conv_w
                pl.BlockSpec((1, STEM_PAD), lambda j: (0, 0)),         # bn_scale
                pl.BlockSpec((1, STEM_PAD), lambda j: (0, 0)),         # bn_bias
                pl.BlockSpec((STEM_PAD, FEAT_PAD), lambda j: (0, 0)),  # proj_w (int8)
                pl.BlockSpec((1, FEAT_PAD), lambda j: (0, 0)),         # proj_scale
                pl.BlockSpec((1, FEAT_PAD), lambda j: (0, 0)),         # proj_b
                pl.BlockSpec((FEAT_PAD, TN_FC1), lambda j: (0, j)),    # fc1_w tile (int8)
                pl.BlockSpec((1, TN_FC1), lambda j: (0, j)),           # fc1_scale tile
                pl.BlockSpec((1, TN_FC1), lambda j: (0, j)),           # fc1_b tile
                pl.BlockSpec((TN_FC1, FC2_PAD), lambda j: (j, 0)),     # fc2_w tile (bf16)
            ],
            out_specs=pl.BlockSpec((1, B, FC2_PAD), lambda j: (j, 0, 0)),
        ),
        compiler_params=pltpu.CompilerParams(
            # steps are fully independent -> v7x can shard across both TCs
            dimension_semantics=("parallel",),
            vmem_limit_bytes=32 * 1024 * 1024),
    )(patches, pool_mat,
      params["conv_w"], params["bn_scale"], params["bn_bias"],
      params["proj_w"], params["proj_scale"], params["proj_b"],
      params["fc1_w"], params["fc1_scale"], params["fc1_b"],
      params["fc2_w"])

    # Sum the per-tile fc2 partials, add fc2 bias, slice away the padding.
    logits_padded = jnp.sum(partials, axis=0) + params["fc2_b"]
    return logits_padded[:, :NUM_CLASSES]


if __name__ == "__main__":
    key = jax.random.PRNGKey(0)
    pkey, xkey = jax.random.split(key)
    params = init_params(pkey)
    x = jax.random.normal(xkey, (2, 3, 32, 32), jnp.float32)  # NCHW, like PyTorch
    logits = jax.jit(nasnet_a_card_classifier)(params, x)
    logits = jax.block_until_ready(logits)
    assert logits.shape == (2, NUM_CLASSES), logits.shape
    assert bool(jnp.all(jnp.isfinite(logits)))
    print("KERNEL_OK")
</pallas_src>

<mosaic_0001>
module attributes {stable_mosaic.version = 11 : i64} {
  func.func @_fused_forward_kernel(%arg0: i32, %arg1: memref<450x32xbf16, #tpu.memory_space<vmem>>, %arg2: memref<2x450xbf16, #tpu.memory_space<vmem>>, %arg3: memref<32x128xbf16, #tpu.memory_space<vmem>>, %arg4: memref<1x128xf32, #tpu.memory_space<vmem>>, %arg5: memref<1x128xf32, #tpu.memory_space<vmem>>, %arg6: memref<128x4096xi8, #tpu.memory_space<vmem>>, %arg7: memref<1x4096xf32, #tpu.memory_space<vmem>>, %arg8: memref<1x4096xf32, #tpu.memory_space<vmem>>, %arg9: memref<4096x512xi8, #tpu.memory_space<vmem>>, %arg10: memref<1x512xf32, #tpu.memory_space<vmem>>, %arg11: memref<1x512xf32, #tpu.memory_space<vmem>>, %arg12: memref<512x128xbf16, #tpu.memory_space<vmem>>, %arg13: memref<1x2x128xf32, #tpu.memory_space<vmem>>) attributes {dimension_semantics = [#tpu.dimension_semantics<parallel>], iteration_bounds = array<i64: 2>, scalar_prefetch = 0 : i64, scratch_operands = 0 : i64, tpu.core_type = #tpu.core_type<tc>, window_params = [{pipeline_mode = #tpu.pipeline_mode<synchronous>, transform_indices = @transform_0, window_bounds = array<i64: 450, 32>}, {pipeline_mode = #tpu.pipeline_mode<synchronous>, transform_indices = @transform_1, window_bounds = array<i64: 2, 450>}, {pipeline_mode = #tpu.pipeline_mode<synchronous>, transform_indices = @transform_2, window_bounds = array<i64: 32, 128>}, {pipeline_mode = #tpu.pipeline_mode<synchronous>, transform_indices = @transform_3, window_bounds = array<i64: 1, 128>}, {pipeline_mode = #tpu.pipeline_mode<synchronous>, transform_indices = @transform_4, window_bounds = array<i64: 1, 128>}, {pipeline_mode = #tpu.pipeline_mode<synchronous>, transform_indices = @transform_5, window_bounds = array<i64: 128, 4096>}, {pipeline_mode = #tpu.pipeline_mode<synchronous>, transform_indices = @transform_6, window_bounds = array<i64: 1, 4096>}, {pipeline_mode = #tpu.pipeline_mode<synchronous>, transform_indices = @transform_7, window_bounds = array<i64: 1, 4096>}, {transform_indices = @transform_8, window_bounds = array<i64: 4096, 512>}, {transform_indices = @transform_9, window_bounds = array<i64: 1, 512>}, {transform_indices = @transform_10, window_bounds = array<i64: 1, 512>}, {transform_indices = @transform_11, window_bounds = array<i64: 512, 128>}, {transform_indices = @transform_12, window_bounds = array<i64: 1, 2, 128>}]} {
    %c0 = arith.constant 0 : index
    %c0_0 = arith.constant 0 : index
    %0 = vector.load %arg1[%c0, %c0_0] : memref<450x32xbf16, #tpu.memory_space<vmem>>, vector<450x32xbf16>
    %c0_1 = arith.constant 0 : index
    %c0_2 = arith.constant 0 : index
    %1 = vector.load %arg3[%c0_1, %c0_2] : memref<32x128xbf16, #tpu.memory_space<vmem>>, vector<32x128xbf16>
    %cst = arith.constant dense<0.000000e+00> : vector<450x128xf32>
    %2 = tpu.matmul %0, %1, %cst {dimension_numbers = #tpu.dot_dimension_numbers<[1], [0], [0], [1], [0, 0, 1, 1], [], []>} : vector<450x32xbf16>, vector<32x128xbf16>, vector<450x128xf32> -> vector<450x128xf32>
    %c0_3 = arith.constant 0 : index
    %c0_4 = arith.constant 0 : index
    %3 = vector.load %arg4[%c0_3, %c0_4] : memref<1x128xf32, #tpu.memory_space<vmem>>, vector<1x128xf32>
    %4 = vector.broadcast %3 : vector<1x128xf32> to vector<450x128xf32>
    %5 = arith.mulf %2, %4 : vector<450x128xf32>
    %c0_5 = arith.constant 0 : index
    %c0_6 = arith.constant 0 : index
    %6 = vector.load %arg5[%c0_5, %c0_6] : memref<1x128xf32, #tpu.memory_space<vmem>>, vector<1x128xf32>
    %7 = vector.broadcast %6 : vector<1x128xf32> to vector<450x128xf32>
    %8 = arith.addf %5, %7 : vector<450x128xf32>
    %cst_7 = arith.constant 0.000000e+00 : f32
    %9 = vector.broadcast %cst_7 : f32 to vector<450x128xf32>
    %10 = arith.maximumf %8, %9 : vector<450x128xf32>
    %c0_8 = arith.constant 0 : index
    %c0_9 = arith.constant 0 : index
    %11 = vector.load %arg2[%c0_8, %c0_9] : memref<2x450xbf16, #tpu.memory_space<vmem>>, vector<2x450xbf16>
    %12 = arith.truncf %10 : vector<450x128xf32> to vector<450x128xbf16>
    %cst_10 = arith.constant dense<0.000000e+00> : vector<2x128xf32>
    %13 = tpu.matmul %11, %12, %cst_10 {dimension_numbers = #tpu.dot_dimension_numbers<[1], [0], [0], [1], [0, 0, 1, 1], [], []>} : vector<2x450xbf16>, vector<450x128xbf16>, vector<2x128xf32> -> vector<2x128xf32>
    %cst_11 = arith.constant 0.00444444455 : f32
    %14 = vector.broadcast %cst_11 : f32 to vector<2x128xf32>
    %15 = arith.mulf %13, %14 : vector<2x128xf32>
    %c0_12 = arith.constant 0 : index
    %c0_13 = arith.constant 0 : index
    %16 = vector.load %arg6[%c0_12, %c0_13] : memref<128x4096xi8, #tpu.memory_space<vmem>>, vector<128x4096xi8>
    %17 = arith.sitofp %16 : vector<128x4096xi8> to vector<128x4096xf32>
    %18 = arith.truncf %17 : vector<128x4096xf32> to vector<128x4096xbf16>
    %19 = arith.truncf %15 : vector<2x128xf32> to vector<2x128xbf16>
    %cst_14 = arith.constant dense<0.000000e+00> : vector<2x4096xf32>
    %20 = tpu.matmul %19, %18, %cst_14 {dimension_numbers = #tpu.dot_dimension_numbers<[1], [0], [0], [1], [0, 0, 1, 1], [], []>} : vector<2x128xbf16>, vector<128x4096xbf16>, vector<2x4096xf32> -> vector<2x4096xf32>
    %c0_15 = arith.constant 0 : index
    %c0_16 = arith.constant 0 : index
    %21 = vector.load %arg7[%c0_15, %c0_16] : memref<1x4096xf32, #tpu.memory_space<vmem>>, vector<1x4096xf32>
    %22 = vector.broadcast %21 : vector<1x4096xf32> to vector<2x4096xf32>
    %23 = arith.mulf %20, %22 : vector<2x4096xf32>
    %c0_17 = arith.constant 0 : index
    %c0_18 = arith.constant 0 : index
    %24 = vector.load %arg8[%c0_17, %c0_18] : memref<1x4096xf32, #tpu.memory_space<vmem>>, vector<1x4096xf32>
    %25 = vector.broadcast %24 : vector<1x4096xf32> to vector<2x4096xf32>
    %26 = arith.addf %23, %25 : vector<2x4096xf32>
    %cst_19 = arith.constant 0.000000e+00 : f32
    %27 = vector.broadcast %cst_19 : f32 to vector<2x4096xf32>
    %28 = arith.maximumf %26, %27 : vector<2x4096xf32>
    %c0_20 = arith.constant 0 : index
    %c0_21 = arith.constant 0 : index
    %29 = vector.load %arg9[%c0_20, %c0_21] : memref<4096x512xi8, #tpu.memory_space<vmem>>, vector<4096x512xi8>
    %30 = arith.sitofp %29 : vector<4096x512xi8> to vector<4096x512xf32>
    %31 = arith.truncf %30 : vector<4096x512xf32> to vector<4096x512xbf16>
    %32 = arith.truncf %28 : vector<2x4096xf32> to vector<2x4096xbf16>
    %cst_22 = arith.constant dense<0.000000e+00> : vector<2x512xf32>
    %33 = tpu.matmul %32, %31, %cst_22 {dimension_numbers = #tpu.dot_dimension_numbers<[1], [0], [0], [1], [0, 0, 1, 1], [], []>} : vector<2x4096xbf16>, vector<4096x512xbf16>, vector<2x512xf32> -> vector<2x512xf32>
    %c0_23 = arith.constant 0 : index
    %c0_24 = arith.constant 0 : index
    %34 = vector.load %arg10[%c0_23, %c0_24] : memref<1x512xf32, #tpu.memory_space<vmem>>, vector<1x512xf32>
    %35 = vector.broadcast %34 : vector<1x512xf32> to vector<2x512xf32>
    %36 = arith.mulf %33, %35 : vector<2x512xf32>
    %c0_25 = arith.constant 0 : index
    %c0_26 = arith.constant 0 : index
    %37 = vector.load %arg11[%c0_25, %c0_26] : memref<1x512xf32, #tpu.memory_space<vmem>>, vector<1x512xf32>
    %38 = vector.broadcast %37 : vector<1x512xf32> to vector<2x512xf32>
    %39 = arith.addf %36, %38 : vector<2x512xf32>
    %cst_27 = arith.constant 0.000000e+00 : f32
    %40 = vector.broadcast %cst_27 : f32 to vector<2x512xf32>
    %41 = arith.maximumf %39, %40 : vector<2x512xf32>
    %42 = arith.truncf %41 : vector<2x512xf32> to vector<2x512xbf16>
    %c0_28 = arith.constant 0 : index
    %c0_29 = arith.constant 0 : index
    %43 = vector.load %arg12[%c0_28, %c0_29] : memref<512x128xbf16, #tpu.memory_space<vmem>>, vector<512x128xbf16>
    %cst_30 = arith.constant dense<0.000000e+00> : vector<2x128xf32>
    %44 = tpu.matmul %42, %43, %cst_30 {dimension_numbers = #tpu.dot_dimension_numbers<[1], [0], [0], [1], [0, 0, 1, 1], [], []>} : vector<2x512xbf16>, vector<512x128xbf16>, vector<2x128xf32> -> vector<2x128xf32>
    %45 = vector.shape_cast %44 : vector<2x128xf32> to vector<1x2x128xf32>
    %c0_31 = arith.constant 0 : index
    %c0_32 = arith.constant 0 : index
    %c0_33 = arith.constant 0 : index
    %46 = vector.load %arg13[%c0_31, %c0_32, %c0_33] : memref<1x2x128xf32, #tpu.memory_space<vmem>>, vector<1x2x128xf32>
    tpu.vector_store %arg13[%c0_31, %c0_32, %c0_33], %45 {strides = array<i32>} : memref<1x2x128xf32, #tpu.memory_space<vmem>>, vector<1x2x128xf32>,
    return
  }
  func.func @transform_0(%arg0: i32) -> (i32, i32) {
    %c0_i32 = arith.constant 0 : i32
    %c0_i32_0 = arith.constant 0 : i32
    %c0_i32_1 = arith.constant 0 : i32
    return %c0_i32, %c0_i32_0 : i32, i32
  }
  func.func @transform_1(%arg0: i32) -> (i32, i32) {
    %c0_i32 = arith.constant 0 : i32
    %c0_i32_0 = arith.constant 0 : i32
    %c0_i32_1 = arith.constant 0 : i32
    return %c0_i32, %c0_i32_0 : i32, i32
  }
  func.func @transform_2(%arg0: i32) -> (i32, i32) {
    %c0_i32 = arith.constant 0 : i32
    %c0_i32_0 = arith.constant 0 : i32
    %c0_i32_1 = arith.constant 0 : i32
    return %c0_i32, %c0_i32_0 : i32, i32
  }
  func.func @transform_3(%arg0: i32) -> (i32, i32) {
    %c0_i32 = arith.constant 0 : i32
    %c0_i32_0 = arith.constant 0 : i32
    %c0_i32_1 = arith.constant 0 : i32
    return %c0_i32, %c0_i32_0 : i32, i32
  }
  func.func @transform_4(%arg0: i32) -> (i32, i32) {
    %c0_i32 = arith.constant 0 : i32
    %c0_i32_0 = arith.constant 0 : i32
    %c0_i32_1 = arith.constant 0 : i32
    return %c0_i32, %c0_i32_0 : i32, i32
  }
  func.func @transform_5(%arg0: i32) -> (i32, i32) {
    %c0_i32 = arith.constant 0 : i32
    %c0_i32_0 = arith.constant 0 : i32
    %c0_i32_1 = arith.constant 0 : i32
    return %c0_i32, %c0_i32_0 : i32, i32
  }
  func.func @transform_6(%arg0: i32) -> (i32, i32) {
    %c0_i32 = arith.constant 0 : i32
    %c0_i32_0 = arith.constant 0 : i32
    %c0_i32_1 = arith.constant 0 : i32
    return %c0_i32, %c0_i32_0 : i32, i32
  }
  func.func @transform_7(%arg0: i32) -> (i32, i32) {
    %c0_i32 = arith.constant 0 : i32
    %c0_i32_0 = arith.constant 0 : i32
    %c0_i32_1 = arith.constant 0 : i32
    return %c0_i32, %c0_i32_0 : i32, i32
  }
  func.func @transform_8(%arg0: i32) -> (i32, i32) {
    %c0_i32 = arith.constant 0 : i32
    %c0_i32_0 = arith.constant 0 : i32
    return %c0_i32, %arg0 : i32, i32
  }
  func.func @transform_9(%arg0: i32) -> (i32, i32) {
    %c0_i32 = arith.constant 0 : i32
    %c0_i32_0 = arith.constant 0 : i32
    return %c0_i32, %arg0 : i32, i32
  }
  func.func @transform_10(%arg0: i32) -> (i32, i32) {
    %c0_i32 = arith.constant 0 : i32
    %c0_i32_0 = arith.constant 0 : i32
    return %c0_i32, %arg0 : i32, i32
  }
  func.func @transform_11(%arg0: i32) -> (i32, i32) {
    %c0_i32 = arith.constant 0 : i32
    %c0_i32_0 = arith.constant 0 : i32
    return %arg0, %c0_i32 : i32, i32
  }
  func.func @transform_12(%arg0: i32) -> (i32, i32, i32) {
    %c0_i32 = arith.constant 0 : i32
    %c0_i32_0 = arith.constant 0 : i32
    %c0_i32_1 = arith.constant 0 : i32
    return %arg0, %c0_i32, %c0_i32_0 : i32, i32, i32
  }
}

</mosaic_0001>

<llo_original>
// kernel: nasnet_a_card_classifier.1
$region0: #{nasnet_a_card_classifier.1}
  #allocation0 [shape = 'u32[]', space=smem, size = 0x4, offset = 0x4, fixed_abs, tag = 'smem constant byte address 0x4 - core index']
  #allocation1 [shape = 'u32[144,128]{1,0:T(1,128)}', space=vmem, size = 0x12000, scoped, tag = 'internal scratch']
  %s0 = inlined_call_operand.vmem [shape: bf16[450,32], index: 0, kind: input, shape index: {}]
  %s1 = inlined_call_operand.vmem [shape: bf16[2,450], index: 1, kind: input, shape index: {}]
  %s2 = inlined_call_operand.hbm [shape: bf16[32,128], index: 2, kind: input, shape index: {}]
  %s3 = inlined_call_operand.hbm [shape: f32[1,128], index: 3, kind: input, shape index: {}]
  %s4 = inlined_call_operand.hbm [shape: f32[1,128], index: 4, kind: input, shape index: {}]
  %s5 = inlined_call_operand.hbm [shape: s8[128,4096], index: 5, kind: input, shape index: {}]
  %s6 = inlined_call_operand.hbm [shape: f32[1,4096], index: 6, kind: input, shape index: {}]
  %s7 = inlined_call_operand.hbm [shape: f32[1,4096], index: 7, kind: input, shape index: {}]
  %s8 = inlined_call_operand.hbm [shape: s8[4096,1024], index: 8, kind: input, shape index: {}]
  %s9 = inlined_call_operand.hbm [shape: f32[1,1024], index: 9, kind: input, shape index: {}]
  %s10 = inlined_call_operand.hbm [shape: f32[1,1024], index: 10, kind: input, shape index: {}]
  %s11 = inlined_call_operand.hbm [shape: bf16[1024,128], index: 11, kind: input, shape index: {}]
  %s12 = inlined_call_operand.vmem [shape: f32[2,2,128], index: 12, kind: output, shape index: {}]
  %s13 = sld [smem:[#allocation0]]
  $region121: #{nasnet_a_card_classifier.1} parent=0
    _
  %s15 = ssub.s32 1, %s13
  %s16 = scalar_select 0, %s15, %s13
  $region1: #{nasnet_a_card_classifier.1} parent=0
    #allocation2 [shape = 'u8[8192]{0}', space=vmem, size = 0x2000, scoped, tag = 'input window, operand 2, single buffered']
    #allocation3 [shape = 's32[2]{0}', space=sflag, size = 0x8, scoped, tag = 'scoped memory for nasnet_a_card_classifier.1']
    #allocation4 [shape = 'u8[512]{0}', space=vmem, size = 0x400, scoped, tag = 'input window, operand 3, single buffered']
    #allocation5 [shape = 's32[1]{0}', space=sflag, size = 0x4, scoped, tag = 'scoped memory for nasnet_a_card_classifier.1']
    #allocation6 [shape = 'u8[512]{0}', space=vmem, size = 0x400, scoped, tag = 'input window, operand 4, single buffered']
    #allocation7 [shape = 'u8[524288]{0}', space=vmem, size = 0x80000, scoped, tag = 'input window, operand 5, single buffered']
    #allocation8 [shape = 's32[1]{0}', space=sflag, size = 0x4, scoped, tag = 'scoped memory for nasnet_a_card_classifier.1']
    #allocation9 [shape = 'u8[16384]{0}', space=vmem, size = 0x4000, scoped, tag = 'input window, operand 6, single buffered']
    #allocation10 [shape = 'u8[16384]{0}', space=vmem, size = 0x4000, scoped, tag = 'input window, operand 7, single buffered']
    #allocation11 [shape = 's32[1]{0}', space=sflag, size = 0x4, scoped, tag = 'scoped memory for nasnet_a_card_classifier.1']
    #allocation12 [shape = 'u8[4194304]{0}', space=vmem, size = 0x400000, scoped, tag = 'input window, operand 8']
    #allocation13 [shape = 'u8[4096]{0}', space=vmem, size = 0x1000, scoped, tag = 'input window, operand 9']
    #allocation14 [shape = 'u8[4096]{0}', space=vmem, size = 0x1000, scoped, tag = 'input window, operand 10']
    #allocation15 [shape = 'u8[262144]{0}', space=vmem, size = 0x40000, scoped, tag = 'input window, operand 11']
    %17 = vsyncpa [#allocation3], 0
    %18 = vsyncpa [#allocation5], 0
    %19 = vsyncpa [#allocation8], 0
    %20 = vsyncpa [#allocation11], 0
    loop: start=0, step=1, limit=4
    $region2: #{nasnet_a_card_classifier.1} parent=1 // loop_pre_header
      _
    $region3: #{nasnet_a_card_classifier.1} parent=1 // loop_header
      %s22 = sphi 0, %s26
      %p23 = scmp.ge.s32.totalorder %s22, 4
      %s30 = sphi 0, %s30
      %s32 = sphi 0, %s30
      %s33 = sphi 0, %s32
      %s47 = sphi 0, %s33
      %s51 = sphi 0, %s51
      %s53 = sphi 0, %s51
      %s54 = sphi 0, %s53
      %s68 = sphi 0, %s54
      %s72 = sphi 0, %s72
      %s74 = sphi 0, %s72
      %s75 = sphi 0, %s74
      %s89 = sphi 0, %s75
      %s93 = sphi 0, %s93
      %s95 = sphi 0, %s93
      %s96 = sphi 0, %s95
      %s110 = sphi 0, %s96
      %s114 = sphi 0, %s114
      %s116 = sphi 0, %s114
      %s117 = sphi 0, %s116
      %s131 = sphi 0, %s117
      %s135 = sphi 0, %s135
      %s137 = sphi 0, %s135
      %s138 = sphi 0, %s137
      %s152 = sphi 0, %s138
      %s156 = sphi 0, %s156
      %s158 = sphi 0, %s156
      %s159 = sphi 0, %s158
      %s173 = sphi 0, %s159
      %s177 = sphi 0, %s177
      %s179 = sphi 0, %s177
      %s180 = sphi 0, %s179
      %s194 = sphi 0, %s180
      %s200 = sphi 0, %s202
      %s203 = sphi 0, %s200
      %s204 = sphi 0, %s203
      %s220 = sphi 0, %s204
      %s226 = sphi 0, %s228
      %s229 = sphi 0, %s226
      %s230 = sphi 0, %s229
      %s246 = sphi 0, %s230
      %s252 = sphi 0, %s254
      %s255 = sphi 0, %s252
      %s256 = sphi 0, %s255
      %s272 = sphi 0, %s256
      %s278 = sphi 0, %s280
      %s281 = sphi 0, %s278
      %s282 = sphi 0, %s281
      %s298 = sphi 0, %s282
      %s304 = sphi 0, %s306
      %s307 = sphi 0, %s304
      %s308 = sphi 0, %s307
      %s324 = sphi 0, %s308
    $region4: #{nasnet_a_card_classifier.1} parent=1 // loop_header_branch
      %25 = sbr.rel (%p23) target = $region8
    $region5: #{nasnet_a_card_classifier.1} parent=1 // loop_body
      %s27 = ssub.s32 %s22, 1
      %s28 = ssub.s32 %s22, 2
      %s29 = sadd.s32 %s22, 1
      %s31 = sadd.s32 %s30, 1
      %p34 = scmp.eq.s32.totalorder %s22, 1
      %p35 = scmp.ne.s32.totalorder %s30, %s32
      %p36 = scmp.eq.s32.totalorder %s22, 0
      %p37 = por %p35, %p36
      %p38 = scmp.ne.s32.totalorder %s30, %s32
      %p39 = scmp.eq.s32.totalorder %s27, 1
      %p40 = por %p38, %p39
      %p41 = scmp.ne.s32.totalorder %s32, %s33
      %p42 = scmp.eq.s32.totalorder %s27, 0
      %p43 = por %p41, %p42
      %p44 = scmp.ne.s32.totalorder %s32, %s33
      %p45 = scmp.eq.s32.totalorder %s28, 1
      %p46 = por %p44, %p45
      %p48 = scmp.ne.s32.totalorder %s33, %s47
      %p49 = scmp.eq.s32.totalorder %s28, 0
      %p50 = por %p48, %p49
      %s52 = sadd.s32 %s51, 1
      %p55 = scmp.eq.s32.totalorder %s22, 1
      %p56 = scmp.ne.s32.totalorder %s51, %s53
      %p57 = scmp.eq.s32.totalorder %s22, 0
      %p58 = por %p56, %p57
      %p59 = scmp.ne.s32.totalorder %s51, %s53
      %p60 = scmp.eq.s32.totalorder %s27, 1
      %p61 = por %p59, %p60
      %p62 = scmp.ne.s32.totalorder %s53, %s54
      %p63 = scmp.eq.s32.totalorder %s27, 0
      %p64 = por %p62, %p63
      %p65 = scmp.ne.s32.totalorder %s53, %s54
      %p66 = scmp.eq.s32.totalorder %s28, 1
      %p67 = por %p65, %p66
      %p69 = scmp.ne.s32.totalorder %s54, %s68
      %p70 = scmp.eq.s32.totalorder %s28, 0
      %p71 = por %p69, %p70
      %s73 = sadd.s32 %s72, 1
      %p76 = scmp.eq.s32.totalorder %s22, 1
      %p77 = scmp.ne.s32.totalorder %s72, %s74
      %p78 = scmp.eq.s32.totalorder %s22, 0
      %p79 = por %p77, %p78
      %p80 = scmp.ne.s32.totalorder %s72, %s74
      %p81 = scmp.eq.s32.totalorder %s27, 1
      %p82 = por %p80, %p81
      %p83 = scmp.ne.s32.totalorder %s74, %s75
      %p84 = scmp.eq.s32.totalorder %s27, 0
      %p85 = por %p83, %p84
      %p86 = scmp.ne.s32.totalorder %s74, %s75
      %p87 = scmp.eq.s32.totalorder %s28, 1
      %p88 = por %p86, %p87
      %p90 = scmp.ne.s32.totalorder %s75, %s89
      %p91 = scmp.eq.s32.totalorder %s28, 0
      %p92 = por %p90, %p91
      %s94 = sadd.s32 %s93, 1
      %p97 = scmp.eq.s32.totalorder %s22, 1
      %p98 = scmp.ne.s32.totalorder %s93, %s95
      %p99 = scmp.eq.s32.totalorder %s22, 0
      %p100 = por %p98, %p99
      %p101 = scmp.ne.s32.totalorder %s93, %s95
      %p102 = scmp.eq.s32.totalorder %s27, 1
      %p103 = por %p101, %p102
      %p104 = scmp.ne.s32.totalorder %s95, %s96
      %p105 = scmp.eq.s32.totalorder %s27, 0
      %p106 = por %p104, %p105
      %p107 = scmp.ne.s32.totalorder %s95, %s96
      %p108 = scmp.eq.s32.totalorder %s28, 1
      %p109 = por %p107, %p108
      %p111 = scmp.ne.s32.totalorder %s96, %s110
      %p112 = scmp.eq.s32.totalorder %s28, 0
      %p113 = por %p111, %p112
      %s115 = sadd.s32 %s114, 1
      %p118 = scmp.eq.s32.totalorder %s22, 1
      %p119 = scmp.ne.s32.totalorder %s114, %s116
      %p120 = scmp.eq.s32.totalorder %s22, 0
      %p121 = por %p119, %p120
      %p122 = scmp.ne.s32.totalorder %s114, %s116
      %p123 = scmp.eq.s32.totalorder %s27, 1
      %p124 = por %p122, %p123
      %p125 = scmp.ne.s32.totalorder %s116, %s117
      %p126 = scmp.eq.s32.totalorder %s27, 0
      %p127 = por %p125, %p126
      %p128 = scmp.ne.s32.totalorder %s116, %s117
      %p129 = scmp.eq.s32.totalorder %s28, 1
      %p130 = por %p128, %p129
      %p132 = scmp.ne.s32.totalorder %s117, %s131
      %p133 = scmp.eq.s32.totalorder %s28, 0
      %p134 = por %p132, %p133
      %s136 = sadd.s32 %s135, 1
      %p139 = scmp.eq.s32.totalorder %s22, 1
      %p140 = scmp.ne.s32.totalorder %s135, %s137
      %p141 = scmp.eq.s32.totalorder %s22, 0
      %p142 = por %p140, %p141
      %p143 = scmp.ne.s32.totalorder %s135, %s137
      %p144 = scmp.eq.s32.totalorder %s27, 1
      %p145 = por %p143, %p144
      %p146 = scmp.ne.s32.totalorder %s137, %s138
      %p147 = scmp.eq.s32.totalorder %s27, 0
      %p148 = por %p146, %p147
      %p149 = scmp.ne.s32.totalorder %s137, %s138
      %p150 = scmp.eq.s32.totalorder %s28, 1
      %p151 = por %p149, %p150
      %p153 = scmp.ne.s32.totalorder %s138, %s152
      %p154 = scmp.eq.s32.totalorder %s28, 0
      %p155 = por %p153, %p154
      %s157 = sadd.s32 %s156, 1
      %p160 = scmp.eq.s32.totalorder %s22, 1
      %p161 = scmp.ne.s32.totalorder %s156, %s158
      %p162 = scmp.eq.s32.totalorder %s22, 0
      %p163 = por %p161, %p162
      %p164 = scmp.ne.s32.totalorder %s156, %s158
      %p165 = scmp.eq.s32.totalorder %s27, 1
      %p166 = por %p164, %p165
      %p167 = scmp.ne.s32.totalorder %s158, %s159
      %p168 = scmp.eq.s32.totalorder %s27, 0
      %p169 = por %p167, %p168
      %p170 = scmp.ne.s32.totalorder %s158, %s159
      %p171 = scmp.eq.s32.totalorder %s28, 1
      %p172 = por %p170, %p171
      %p174 = scmp.ne.s32.totalorder %s159, %s173
      %p175 = scmp.eq.s32.totalorder %s28, 0
      %p176 = por %p174, %p175
      %s178 = sadd.s32 %s177, 1
      %p181 = scmp.eq.s32.totalorder %s22, 1
      %p182 = scmp.ne.s32.totalorder %s177, %s179
      %p183 = scmp.eq.s32.totalorder %s22, 0
      %p184 = por %p182, %p183
      %p185 = scmp.ne.s32.totalorder %s177, %s179
      %p186 = scmp.eq.s32.totalorder %s27, 1
      %p187 = por %p185, %p186
      %p188 = scmp.ne.s32.totalorder %s179, %s180
      %p189 = scmp.eq.s32.totalorder %s27, 0
      %p190 = por %p188, %p189
      %p191 = scmp.ne.s32.totalorder %s179, %s180
      %p192 = scmp.eq.s32.totalorder %s28, 1
      %p193 = por %p191, %p192
      %p195 = scmp.ne.s32.totalorder %s180, %s194
      %p196 = scmp.eq.s32.totalorder %s28, 0
      %p197 = por %p195, %p196
      %s198 = ssub.s32 %s22, %s29
      %p199 = scmp.eq.s32.totalorder %s198, 0
      %s201 = sadd.s32 %s200, 1
      %s202 = scalar_select %p199, %s200, %s201
      %p205 = pneg %p199
      %p206 = scmp.eq.s32.totalorder %s22, 1
      %p207 = por %p205, %p206
      %p208 = scmp.ne.s32.totalorder %s200, %s203
      %p209 = scmp.eq.s32.totalorder %s22, 0
      %p210 = por %p208, %p209
      %p211 = scmp.ne.s32.totalorder %s200, %s203
      %p212 = scmp.eq.s32.totalorder %s27, 1
      %p213 = por %p211, %p212
      %p214 = scmp.ne.s32.totalorder %s203, %s204
      %p215 = scmp.eq.s32.totalorder %s27, 0
      %p216 = por %p214, %p215
      %p217 = scmp.ne.s32.totalorder %s203, %s204
      %p218 = scmp.eq.s32.totalorder %s28, 1
      %p219 = por %p217, %p218
      %p221 = scmp.ne.s32.totalorder %s204, %s220
      %p222 = scmp.eq.s32.totalorder %s28, 0
      %p223 = por %p221, %p222
      %s224 = ssub.s32 %s22, %s29
      %p225 = scmp.eq.s32.totalorder %s224, 0
      %s227 = sadd.s32 %s226, 1
      %s228 = scalar_select %p225, %s226, %s227
      %p231 = pneg %p225
      %p232 = scmp.eq.s32.totalorder %s22, 1
      %p233 = por %p231, %p232
      %p234 = scmp.ne.s32.totalorder %s226, %s229
      %p235 = scmp.eq.s32.totalorder %s22, 0
      %p236 = por %p234, %p235
      %p237 = scmp.ne.s32.totalorder %s226, %s229
      %p238 = scmp.eq.s32.totalorder %s27, 1
      %p239 = por %p237, %p238
      %p240 = scmp.ne.s32.totalorder %s229, %s230
      %p241 = scmp.eq.s32.totalorder %s27, 0
      %p242 = por %p240, %p241
      %p243 = scmp.ne.s32.totalorder %s229, %s230
      %p244 = scmp.eq.s32.totalorder %s28, 1
      %p245 = por %p243, %p244
      %p247 = scmp.ne.s32.totalorder %s230, %s246
      %p248 = scmp.eq.s32.totalorder %s28, 0
      %p249 = por %p247, %p248
      %s250 = ssub.s32 %s22, %s29
      %p251 = scmp.eq.s32.totalorder %s250, 0
      %s253 = sadd.s32 %s252, 1
      %s254 = scalar_select %p251, %s252, %s253
      %p257 = pneg %p251
      %p258 = scmp.eq.s32.totalorder %s22, 1
      %p259 = por %p257, %p258
      %p260 = scmp.ne.s32.totalorder %s252, %s255
      %p261 = scmp.eq.s32.totalorder %s22, 0
      %p262 = por %p260, %p261
      %p263 = scmp.ne.s32.totalorder %s252, %s255
      %p264 = scmp.eq.s32.totalorder %s27, 1
      %p265 = por %p263, %p264
      %p266 = scmp.ne.s32.totalorder %s255, %s256
      %p267 = scmp.eq.s32.totalorder %s27, 0
      %p268 = por %p266, %p267
      %p269 = scmp.ne.s32.totalorder %s255, %s256
      %p270 = scmp.eq.s32.totalorder %s28, 1
      %p271 = por %p269, %p270
      %p273 = scmp.ne.s32.totalorder %s256, %s272
      %p274 = scmp.eq.s32.totalorder %s28, 0
      %p275 = por %p273, %p274
      %s276 = ssub.s32 %s22, %s29
      %p277 = scmp.eq.s32.totalorder %s276, 0
      %s279 = sadd.s32 %s278, 1
      %s280 = scalar_select %p277, %s278, %s279
      %p283 = pneg %p277
      %p284 = scmp.eq.s32.totalorder %s22, 1
      %p285 = por %p283, %p284
      %p286 = scmp.ne.s32.totalorder %s278, %s281
      %p287 = scmp.eq.s32.totalorder %s22, 0
      %p288 = por %p286, %p287
      %p289 = scmp.ne.s32.totalorder %s278, %s281
      %p290 = scmp.eq.s32.totalorder %s27, 1
      %p291 = por %p289, %p290
      %p292 = scmp.ne.s32.totalorder %s281, %s282
      %p293 = scmp.eq.s32.totalorder %s27, 0
      %p294 = por %p292, %p293
      %p295 = scmp.ne.s32.totalorder %s281, %s282
      %p296 = scmp.eq.s32.totalorder %s28, 1
      %p297 = por %p295, %p296
      %p299 = scmp.ne.s32.totalorder %s282, %s298
      %p300 = scmp.eq.s32.totalorder %s28, 0
      %p301 = por %p299, %p300
      %s302 = ssub.s32 %s22, %s29
      %p303 = scmp.eq.s32.totalorder %s302, 0
      %s305 = sadd.s32 %s304, 1
      %s306 = scalar_select %p303, %s304, %s305
      %p309 = pneg %p303
      %p310 = scmp.eq.s32.totalorder %s22, 1
      %p311 = por %p309, %p310
      %p312 = scmp.ne.s32.totalorder %s304, %s307
      %p313 = scmp.eq.s32.totalorder %s22, 0
      %p314 = por %p312, %p313
      %p315 = scmp.ne.s32.totalorder %s304, %s307
      %p316 = scmp.eq.s32.totalorder %s27, 1
      %p317 = por %p315, %p316
      %p318 = scmp.ne.s32.totalorder %s307, %s308
      %p319 = scmp.eq.s32.totalorder %s27, 0
      %p320 = por %p318, %p319
      %p321 = scmp.ne.s32.totalorder %s307, %s308
      %p322 = scmp.eq.s32.totalorder %s28, 1
      %p323 = por %p321, %p322
      %p325 = scmp.ne.s32.totalorder %s308, %s324
      %p326 = scmp.eq.s32.totalorder %s28, 0
      %p327 = por %p325, %p326
      %p328 = scmp.le.s32.totalorder 1, %s22
      %p329 = scmp.lt.s32.totalorder %s22, 3
      %p330 = pnand %p328, %p329
      %p331 = pneg %p330
      // Predicated region
      $region9: #{nasnet_a_card_classifier.1} parent=5 // pred_check
        _
      $region10: #{nasnet_a_card_classifier.1} parent=5 // pred_check_branch
        %333 = sbr.rel (%p330) target = $region12
      $region11: #{nasnet_a_card_classifier.1} parent=5 // pred_region
        %s334 = ssub.s32 %s22, 1
        // Predicated region
        $region13: #{nasnet_a_card_classifier.1} parent=11 // pred_check
          %p335 = pneg %p43
        $region14: #{nasnet_a_card_classifier.1} parent=11 // pred_check_branch
          %337 = sbr.rel (%p335) target = $region16
        $region15: #{nasnet_a_card_classifier.1} parent=11 // pred_region
          _
        $region16: #{nasnet_a_card_classifier.1} parent=11 // pred_fallthru
          _
        // Predicated region
        $region17: #{nasnet_a_card_classifier.1} parent=11 // pred_check
          %p338 = pneg %p64
        $region18: #{nasnet_a_card_classifier.1} parent=11 // pred_check_branch
          %340 = sbr.rel (%p338) target = $region20
        $region19: #{nasnet_a_card_classifier.1} parent=11 // pred_region
          _
        $region20: #{nasnet_a_card_classifier.1} parent=11 // pred_fallthru
          _
        // Predicated region
        $region21: #{nasnet_a_card_classifier.1} parent=11 // pred_check
          %p341 = pneg %p85
        $region22: #{nasnet_a_card_classifier.1} parent=11 // pred_check_branch
          %343 = sbr.rel (%p341) target = $region24
        $region23: #{nasnet_a_card_classifier.1} parent=11 // pred_region
          %s345 = ssub.s32 256, 256
          %346 = vsyncadd [#allocation3], %s345
          %s347 = sshll.u32 [#allocation2], 4
          %s348 = int_to_ptr.vmem [resolvable:$true] %s347
          %353 = dma.hbm_to_vmem [thread:$0]  %s2, 256, %s348, [#allocation3], 64, 64, 4
        $region24: #{nasnet_a_card_classifier.1} parent=11 // pred_fallthru
          _
        // Predicated region
        $region25: #{nasnet_a_card_classifier.1} parent=11 // pred_check
          %p354 = pneg %p106
        $region26: #{nasnet_a_card_classifier.1} parent=11 // pred_check_branch
          %356 = sbr.rel (%p354) target = $region28
        $region27: #{nasnet_a_card_classifier.1} parent=11 // pred_region
          %s358 = ssub.s32 16, 16
          %359 = vsyncadd [#allocation5], %s358
          %s361 = sshll.u32 [#allocation4], 4
          %s362 = int_to_ptr.vmem [resolvable:$true] %s361
          %364 = dma.hbm_to_vmem [thread:$0]  %s3, 16, %s362, [#allocation5]
        $region28: #{nasnet_a_card_classifier.1} parent=11 // pred_fallthru
          _
        // Predicated region
        $region29: #{nasnet_a_card_classifier.1} parent=11 // pred_check
          %p365 = pneg %p127
        $region30: #{nasnet_a_card_classifier.1} parent=11 // pred_check_branch
          %367 = sbr.rel (%p365) target = $region32
        $region31: #{nasnet_a_card_classifier.1} parent=11 // pred_region
          %s369 = ssub.s32 16, 16
          %370 = vsyncadd [#allocation5], %s369
          %s372 = sshll.u32 [#allocation6], 4
          %s373 = int_to_ptr.vmem [resolvable:$true] %s372
          %375 = dma.hbm_to_vmem [thread:$0]  %s4, 16, %s373, [#allocation5]
        $region32: #{nasnet_a_card_classifier.1} parent=11 // pred_fallthru
          _
        // Predicated region
        $region33: #{nasnet_a_card_classifier.1} parent=11 // pred_check
          %p376 = pneg %p148
        $region34: #{nasnet_a_card_classifier.1} parent=11 // pred_check_branch
          %378 = sbr.rel (%p376) target = $region36
        $region35: #{nasnet_a_card_classifier.1} parent=11 // pred_region
          %s380 = ssub.s32 16384, 16384
          %381 = vsyncadd [#allocation8], %s380
          %s382 = sshll.u32 [#allocation7], 4
          %s383 = int_to_ptr.vmem [resolvable:$true] %s382
          %388 = dma.hbm_to_vmem [thread:$0]  %s5, 16384, %s383, [#allocation8], 4096, 4096, 256
        $region36: #{nasnet_a_card_classifier.1} parent=11 // pred_fallthru
          _
        // Predicated region
        $region37: #{nasnet_a_card_classifier.1} parent=11 // pred_check
          %p389 = pneg %p169
        $region38: #{nasnet_a_card_classifier.1} parent=11 // pred_check_branch
          %391 = sbr.rel (%p389) target = $region40
        $region39: #{nasnet_a_card_classifier.1} parent=11 // pred_region
          %s393 = ssub.s32 512, 512
          %394 = vsyncadd [#allocation8], %s393
          %s396 = sshll.u32 [#allocation9], 4
          %s397 = int_to_ptr.vmem [resolvable:$true] %s396
          %399 = dma.hbm_to_vmem [thread:$0]  %s6, 512, %s397, [#allocation8]
        $region40: #{nasnet_a_card_classifier.1} parent=11 // pred_fallthru
          _
        // Predicated region
        $region41: #{nasnet_a_card_classifier.1} parent=11 // pred_check
          %p400 = pneg %p190
        $region42: #{nasnet_a_card_classifier.1} parent=11 // pred_check_branch
          %402 = sbr.rel (%p400) target = $region44
        $region43: #{nasnet_a_card_classifier.1} parent=11 // pred_region
          %s404 = ssub.s32 512, 512
          %405 = vsyncadd [#allocation11], %s404
          %s407 = sshll.u32 [#allocation10], 4
          %s408 = int_to_ptr.vmem [resolvable:$true] %s407
          %410 = dma.hbm_to_vmem [thread:$0]  %s7, 512, %s408, [#allocation11]
        $region44: #{nasnet_a_card_classifier.1} parent=11 // pred_fallthru
          _
      $region12: #{nasnet_a_card_classifier.1} parent=5 // pred_fallthru
        _
      %p411 = scmp.lt.s32.totalorder %s22, 2
      // Predicated region
      $region45: #{nasnet_a_card_classifier.1} parent=5 // pred_check
        %p412 = pneg %p411
      $region46: #{nasnet_a_card_classifier.1} parent=5 // pred_check_branch
        %414 = sbr.rel (%p412) target = $region48
      $region47: #{nasnet_a_card_classifier.1} parent=5 // pred_region
        // Predicated region
        $region49: #{nasnet_a_card_classifier.1} parent=47 // pred_check
          %p415 = pneg %p210
        $region50: #{nasnet_a_card_classifier.1} parent=47 // pred_check_branch
          %417 = sbr.rel (%p415) target = $region52
        $region51: #{nasnet_a_card_classifier.1} parent=47 // pred_region
          %s418 = sand.u32 %s22, 1
          %s419 = scalar_lea.sflag [#allocation3], %s418
          %s420 = sand.u32 %s200, 1
          %s421 = smul.addr %s420, 4096
          %s422 = scalar_lea.vmem [#allocation12], %s421
          %s423 = smul.u32 4, %s22
          %s425 = ssub.s32 65536, 65536
          %426 = vsyncadd %s419, %s425
          %s427 = smul.addr %s423, 128
          %s428 = scalar_lea.hbm %s8, %s427
          %s429 = sshll.u32 %s422, 4
          %s430 = int_to_ptr.vmem [resolvable:$true] %s429
          %435 = dma.hbm_to_vmem [thread:$0]  %s428, 65536, %s430, %s419, 1024, 512, 32
        $region52: #{nasnet_a_card_classifier.1} parent=47 // pred_fallthru
          _
        // Predicated region
        $region53: #{nasnet_a_card_classifier.1} parent=47 // pred_check
          %p436 = pneg %p236
        $region54: #{nasnet_a_card_classifier.1} parent=47 // pred_check_branch
          %438 = sbr.rel (%p436) target = $region56
        $region55: #{nasnet_a_card_classifier.1} parent=47 // pred_region
          %s439 = sand.u32 %s22, 1
          %s440 = scalar_lea.sflag [#allocation3], %s439
          %s441 = sand.u32 %s226, 1
          %s442 = smul.addr %s441, 4
          %s443 = scalar_lea.vmem [#allocation13], %s442
          %s444 = smul.u32 4, %s22
          %s446 = ssub.s32 64, 64
          %447 = vsyncadd %s440, %s446
          %s448 = smul.addr %s444, 16
          %s449 = scalar_lea.hbm %s9, %s448
          %s451 = sshll.u32 %s443, 4
          %s452 = int_to_ptr.vmem [resolvable:$true] %s451
          %454 = dma.hbm_to_vmem [thread:$0]  %s449, 64, %s452, %s440
        $region56: #{nasnet_a_card_classifier.1} parent=47 // pred_fallthru
          _
        // Predicated region
        $region57: #{nasnet_a_card_classifier.1} parent=47 // pred_check
          %p455 = pneg %p262
        $region58: #{nasnet_a_card_classifier.1} parent=47 // pred_check_branch
          %457 = sbr.rel (%p455) target = $region60
        $region59: #{nasnet_a_card_classifier.1} parent=47 // pred_region
          %s458 = sand.u32 %s22, 1
          %s459 = scalar_lea.sflag [#allocation3], %s458
          %s460 = sand.u32 %s252, 1
          %s461 = smul.addr %s460, 4
          %s462 = scalar_lea.vmem [#allocation14], %s461
          %s463 = smul.u32 4, %s22
          %s465 = ssub.s32 64, 64
          %466 = vsyncadd %s459, %s465
          %s467 = smul.addr %s463, 16
          %s468 = scalar_lea.hbm %s10, %s467
          %s470 = sshll.u32 %s462, 4
          %s471 = int_to_ptr.vmem [resolvable:$true] %s470
          %473 = dma.hbm_to_vmem [thread:$0]  %s468, 64, %s471, %s459
        $region60: #{nasnet_a_card_classifier.1} parent=47 // pred_fallthru
          _
        // Predicated region
        $region61: #{nasnet_a_card_classifier.1} parent=47 // pred_check
          %p474 = pneg %p288
        $region62: #{nasnet_a_card_classifier.1} parent=47 // pred_check_branch
          %476 = sbr.rel (%p474) target = $region64
        $region63: #{nasnet_a_card_classifier.1} parent=47 // pred_region
          %s477 = sand.u32 %s22, 1
          %s478 = scalar_lea.sflag [#allocation3], %s477
          %s479 = sand.u32 %s278, 1
          %s480 = smul.addr %s479, 256
          %s481 = scalar_lea.vmem [#allocation15], %s480
          %s482 = smul.u32 64, %s22
          %s484 = ssub.s32 4096, 4096
          %485 = vsyncadd %s478, %s484
          %s486 = smul.addr %s482, 64
          %s487 = scalar_lea.hbm %s11, %s486
          %s488 = sshll.u32 %s481, 4
          %s489 = int_to_ptr.vmem [resolvable:$true] %s488
          %494 = dma.hbm_to_vmem [thread:$0]  %s487, 4096, %s489, %s478, 64, 64, 4
        $region64: #{nasnet_a_card_classifier.1} parent=47 // pred_fallthru
          _
      $region48: #{nasnet_a_card_classifier.1} parent=5 // pred_fallthru
        _
      %p495 = scmp.le.s32.totalorder 1, %s22
      %p496 = scmp.lt.s32.totalorder %s22, 3
      %p497 = pnand %p495, %p496
      %p498 = pneg %p497
      // Predicated region
      $region65: #{nasnet_a_card_classifier.1} parent=5 // pred_check
        _
      $region66: #{nasnet_a_card_classifier.1} parent=5 // pred_check_branch
        %500 = sbr.rel (%p497) target = $region68
      $region67: #{nasnet_a_card_classifier.1} parent=5 // pred_region
        %s501 = ssub.s32 %s22, 1
        // Predicated region
        $region69: #{nasnet_a_card_classifier.1} parent=67 // pred_check
          %p502 = pneg %p85
        $region70: #{nasnet_a_card_classifier.1} parent=67 // pred_check_branch
          %504 = sbr.rel (%p502) target = $region72
        $region71: #{nasnet_a_card_classifier.1} parent=67 // pred_region
          %505 = dma.done [#allocation3], 256
        $region72: #{nasnet_a_card_classifier.1} parent=67 // pred_fallthru
          _
        // Predicated region
        $region73: #{nasnet_a_card_classifier.1} parent=67 // pred_check
          %p506 = pneg %p106
        $region74: #{nasnet_a_card_classifier.1} parent=67 // pred_check_branch
          %508 = sbr.rel (%p506) target = $region76
        $region75: #{nasnet_a_card_classifier.1} parent=67 // pred_region
          %509 = dma.done [#allocation5], 16
        $region76: #{nasnet_a_card_classifier.1} parent=67 // pred_fallthru
          _
        // Predicated region
        $region77: #{nasnet_a_card_classifier.1} parent=67 // pred_check
          %p510 = pneg %p127
        $region78: #{nasnet_a_card_classifier.1} parent=67 // pred_check_branch
          %512 = sbr.rel (%p510) target = $region80
        $region79: #{nasnet_a_card_classifier.1} parent=67 // pred_region
          %513 = dma.done [#allocation5], 16
        $region80: #{nasnet_a_card_classifier.1} parent=67 // pred_fallthru
          _
        // Predicated region
        $region81: #{nasnet_a_card_classifier.1} parent=67 // pred_check
          %p514 = pneg %p148
        $region82: #{nasnet_a_card_classifier.1} parent=67 // pred_check_branch
          %516 = sbr.rel (%p514) target = $region84
        $region83: #{nasnet_a_card_classifier.1} parent=67 // pred_region
          %517 = dma.done [#allocation8], 16384
        $region84: #{nasnet_a_card_classifier.1} parent=67 // pred_fallthru
          _
        // Predicated region
        $region85: #{nasnet_a_card_classifier.1} parent=67 // pred_check
          %p518 = pneg %p169
        $region86: #{nasnet_a_card_classifier.1} parent=67 // pred_check_branch
          %520 = sbr.rel (%p518) target = $region88
        $region87: #{nasnet_a_card_classifier.1} parent=67 // pred_region
          %521 = dma.done [#allocation8], 512
        $region88: #{nasnet_a_card_classifier.1} parent=67 // pred_fallthru
          _
        // Predicated region
        $region89: #{nasnet_a_card_classifier.1} parent=67 // pred_check
          %p522 = pneg %p190
        $region90: #{nasnet_a_card_classifier.1} parent=67 // pred_check_branch
          %524 = sbr.rel (%p522) target = $region92
        $region91: #{nasnet_a_card_classifier.1} parent=67 // pred_region
          %525 = dma.done [#allocation11], 512
        $region92: #{nasnet_a_card_classifier.1} parent=67 // pred_fallthru
          _
        %s526 = sand.u32 %s27, 1
        %s527 = scalar_lea.sflag [#allocation3], %s526
        %s528 = sand.u32 %s203, 1
        %s529 = smul.addr %s528, 4096
        %s530 = scalar_lea.vmem [#allocation12], %s529
        // Predicated region
        $region93: #{nasnet_a_card_classifier.1} parent=67 // pred_check
          %p531 = pneg %p216
        $region94: #{nasnet_a_card_classifier.1} parent=67 // pred_check_branch
          %533 = sbr.rel (%p531) target = $region96
        $region95: #{nasnet_a_card_classifier.1} parent=67 // pred_region
          %534 = dma.done %s527, 65536
        $region96: #{nasnet_a_card_classifier.1} parent=67 // pred_fallthru
          _
        %s535 = sand.u32 %s27, 1
        %s536 = scalar_lea.sflag [#allocation3], %s535
        %s537 = sand.u32 %s229, 1
        %s538 = smul.addr %s537, 4
        %s539 = scalar_lea.vmem [#allocation13], %s538
        // Predicated region
        $region97: #{nasnet_a_card_classifier.1} parent=67 // pred_check
          %p540 = pneg %p242
        $region98: #{nasnet_a_card_classifier.1} parent=67 // pred_check_branch
          %542 = sbr.rel (%p540) target = $region100
        $region99: #{nasnet_a_card_classifier.1} parent=67 // pred_region
          %543 = dma.done %s536, 64
        $region100: #{nasnet_a_card_classifier.1} parent=67 // pred_fallthru
          _
        %s544 = sand.u32 %s27, 1
        %s545 = scalar_lea.sflag [#allocation3], %s544
        %s546 = sand.u32 %s255, 1
        %s547 = smul.addr %s546, 4
        %s548 = scalar_lea.vmem [#allocation14], %s547
        // Predicated region
        $region101: #{nasnet_a_card_classifier.1} parent=67 // pred_check
          %p549 = pneg %p268
        $region102: #{nasnet_a_card_classifier.1} parent=67 // pred_check_branch
          %551 = sbr.rel (%p549) target = $region104
        $region103: #{nasnet_a_card_classifier.1} parent=67 // pred_region
          %552 = dma.done %s545, 64
        $region104: #{nasnet_a_card_classifier.1} parent=67 // pred_fallthru
          _
        %s553 = sand.u32 %s27, 1
        %s554 = scalar_lea.sflag [#allocation3], %s553
        %s555 = sand.u32 %s281, 1
        %s556 = smul.addr %s555, 256
        %s557 = scalar_lea.vmem [#allocation15], %s556
        // Predicated region
        $region105: #{nasnet_a_card_classifier.1} parent=67 // pred_check
          %p558 = pneg %p294
        $region106: #{nasnet_a_card_classifier.1} parent=67 // pred_check_branch
          %560 = sbr.rel (%p558) target = $region108
        $region107: #{nasnet_a_card_classifier.1} parent=67 // pred_region
          %561 = dma.done %s554, 4096
        $region108: #{nasnet_a_card_classifier.1} parent=67 // pred_fallthru
          _
        %p562 = pneg %p43
        %p563 = pneg %p40
        %p564 = pneg %p64
        %p565 = pneg %p61
        %p566 = pneg %p85
        %p567 = pneg %p82
        %p568 = pneg %p106
        %p569 = pneg %p103
        %p570 = pneg %p127
        %p571 = pneg %p124
        %p572 = pneg %p148
        %p573 = pneg %p145
        %p574 = pneg %p169
        %p575 = pneg %p166
        %p576 = pneg %p190
        %p577 = pneg %p187
        %s578 = sand.u32 %s27, 1
        %s579 = scalar_lea.sflag [#allocation3], %s578
        %s580 = sand.u32 %s203, 1
        %s581 = smul.addr %s580, 4096
        %s582 = scalar_lea.vmem [#allocation12], %s581
        %p583 = pneg %p216
        %p584 = pneg %p213
        %s585 = sand.u32 %s27, 1
        %s586 = scalar_lea.sflag [#allocation3], %s585
        %s587 = sand.u32 %s229, 1
        %s588 = smul.addr %s587, 4
        %s589 = scalar_lea.vmem [#allocation13], %s588
        %p590 = pneg %p242
        %p591 = pneg %p239
        %s592 = sand.u32 %s27, 1
        %s593 = scalar_lea.sflag [#allocation3], %s592
        %s594 = sand.u32 %s255, 1
        %s595 = smul.addr %s594, 4
        %s596 = scalar_lea.vmem [#allocation14], %s595
        %p597 = pneg %p268
        %p598 = pneg %p265
        %s599 = sand.u32 %s27, 1
        %s600 = scalar_lea.sflag [#allocation3], %s599
        %s601 = sand.u32 %s281, 1
        %s602 = smul.addr %s601, 256
        %s603 = scalar_lea.vmem [#allocation15], %s602
        %p604 = pneg %p294
        %p605 = pneg %p291
        %p606 = pneg %p320
        %p607 = pneg %p317
        %p608 = scmp.lt.s32.totalorder %s27, 1
        %s609 = scalar_select %p608, %s27, 1
        %s610 = smul.addr %s609, 2
        %s611 = scalar_lea.vmem %s12, %s610
        %s612 = smul.u32 4, %s27
        %s613 = smul.u32 4, %s27
        %s614 = smul.u32 4, %s27
        %s615 = smul.u32 64, %s27
        %p616 = scmp.lt.s32.totalorder %s27, 1
        %s617 = scalar_select %p616, %s27, 1
        %s618 = smul.addr %s617, 2
        %s619 = scalar_lea.vmem %s12, %s618
        %v621 = vld [vmem:[%s0] sm:$0xf]
        %v622 = vld [vmem:[%s0 + $0x4] sm:$0xf]
        %v623 = vld [vmem:[%s0 + $0x8] sm:$0xf]
        %v624 = vld [vmem:[%s0 + $0xc] sm:$0xf]
        %v625 = vld [vmem:[%s0 + $0x10] sm:$0xf]
        %v626 = vld [vmem:[%s0 + $0x14] sm:$0xf]
        %v627 = vld [vmem:[%s0 + $0x18] sm:$0xf]
        %v628 = vld [vmem:[%s0 + $0x1c] sm:$0xf]
        %v629 = vld [vmem:[%s0 + $0x20] sm:$0xf]
        %v630 = vld [vmem:[%s0 + $0x24] sm:$0xf]
        %v631 = vld [vmem:[%s0 + $0x28] sm:$0xf]
        %v632 = vld [vmem:[%s0 + $0x2c] sm:$0xf]
        %v633 = vld [vmem:[%s0 + $0x30] sm:$0xf]
        %v634 = vld [vmem:[%s0 + $0x34] sm:$0xf]
        %v635 = vld [vmem:[%s0 + $0x38] sm:$0xf]
        %v636 = vld [vmem:[%s0 + $0x3c] sm:$0xf]
        %v637 = vld [vmem:[%s0 + $0x40] sm:$0xf]
        %v638 = vld [vmem:[%s0 + $0x44] sm:$0xf]
        %v639 = vld [vmem:[%s0 + $0x48] sm:$0xf]
        %v640 = vld [vmem:[%s0 + $0x4c] sm:$0xf]
        %v641 = vld [vmem:[%s0 + $0x50] sm:$0xf]
        %v642 = vld [vmem:[%s0 + $0x54] sm:$0xf]
        %v643 = vld [vmem:[%s0 + $0x58] sm:$0xf]
        %v644 = vld [vmem:[%s0 + $0x5c] sm:$0xf]
        %v645 = vld [vmem:[%s0 + $0x60] sm:$0xf]
        %v646 = vld [vmem:[%s0 + $0x64] sm:$0xf]
        %v647 = vld [vmem:[%s0 + $0x68] sm:$0xf]
        %v648 = vld [vmem:[%s0 + $0x6c] sm:$0xf]
        %v649 = vld [vmem:[%s0 + $0x70] sm:$0xf]
        %v650 = vld [vmem:[%s0 + $0x74] sm:$0xf]
        %v651 = vld [vmem:[%s0 + $0x78] sm:$0xf]
        %v652 = vld [vmem:[%s0 + $0x7c] sm:$0xf]
        %v653 = vld [vmem:[%s0 + $0x80] sm:$0xf]
        %v654 = vld [vmem:[%s0 + $0x84] sm:$0xf]
        %v655 = vld [vmem:[%s0 + $0x88] sm:$0xf]
        %v656 = vld [vmem:[%s0 + $0x8c] sm:$0xf]
        %v657 = vld [vmem:[%s0 + $0x90] sm:$0xf]
        %v658 = vld [vmem:[%s0 + $0x94] sm:$0xf]
        %v659 = vld [vmem:[%s0 + $0x98] sm:$0xf]
        %v660 = vld [vmem:[%s0 + $0x9c] sm:$0xf]
        %v661 = vld [vmem:[%s0 + $0xa0] sm:$0xf]
        %v662 = vld [vmem:[%s0 + $0xa4] sm:$0xf]
        %v663 = vld [vmem:[%s0 + $0xa8] sm:$0xf]
        %v664 = vld [vmem:[%s0 + $0xac] sm:$0xf]
        %v665 = vld [vmem:[%s0 + $0xb0] sm:$0xf]
        %v666 = vld [vmem:[%s0 + $0xb4] sm:$0xf]
        %v667 = vld [vmem:[%s0 + $0xb8] sm:$0xf]
        %v668 = vld [vmem:[%s0 + $0xbc] sm:$0xf]
        %v669 = vld [vmem:[%s0 + $0xc0] sm:$0xf]
        %v670 = vld [vmem:[%s0 + $0xc4] sm:$0xf]
        %v671 = vld [vmem:[%s0 + $0xc8] sm:$0xf]
        %v672 = vld [vmem:[%s0 + $0xcc] sm:$0xf]
        %v673 = vld [vmem:[%s0 + $0xd0] sm:$0xf]
        %v674 = vld [vmem:[%s0 + $0xd4] sm:$0xf]
        %v675 = vld [vmem:[%s0 + $0xd8] sm:$0xf]
        %v676 = vld [vmem:[%s0 + $0xdc] sm:$0xf]
        %v677 = vld [vmem:[%s0 + $0xe0] sm:$0x1]
        %v678 = vld [vmem:[#allocation2] sm:$0xf]
        %v679 = vld [vmem:[#allocation2 + $0x4] sm:$0xf]
        %v680 = vld [vmem:[#allocation2 + $0x8] sm:$0xf]
        %v681 = vld [vmem:[#allocation2 + $0xc] sm:$0xf]
        %v739 = vunpack.c.l.b16 %v621
        %v740 = vunpack.c.l.b16 %v622
        %v741 = vunpack.c.l.b16 %v623
        %v742 = vunpack.c.l.b16 %v624
        %v743 = vunpack.c.l.b16 %v625
        %v744 = vunpack.c.l.b16 %v626
        %v745 = vunpack.c.l.b16 %v627
        %v746 = vunpack.c.l.b16 %v628
        %v747 = vunpack.c.l.b16 %v629
        %v748 = vunpack.c.l.b16 %v630
        %v749 = vunpack.c.l.b16 %v631
        %v750 = vunpack.c.l.b16 %v632
        %v751 = vunpack.c.l.b16 %v633
        %v752 = vunpack.c.l.b16 %v634
        %v753 = vunpack.c.l.b16 %v635
        %v754 = vunpack.c.l.b16 %v636
        %v755 = vunpack.c.l.b16 %v637
        %v756 = vunpack.c.l.b16 %v638
        %v757 = vunpack.c.l.b16 %v639
        %v758 = vunpack.c.l.b16 %v640
        %v759 = vunpack.c.l.b16 %v641
        %v760 = vunpack.c.l.b16 %v642
        %v761 = vunpack.c.l.b16 %v643
        %v762 = vunpack.c.l.b16 %v644
        %v763 = vunpack.c.l.b16 %v645
        %v764 = vunpack.c.l.b16 %v646
        %v765 = vunpack.c.l.b16 %v647
        %v766 = vunpack.c.l.b16 %v648
        %v767 = vunpack.c.l.b16 %v649
        %v768 = vunpack.c.l.b16 %v650
        %v769 = vunpack.c.l.b16 %v651
        %v770 = vunpack.c.l.b16 %v652
        %v771 = vunpack.c.l.b16 %v653
        %v772 = vunpack.c.l.b16 %v654
        %v773 = vunpack.c.l.b16 %v655
        %v774 = vunpack.c.l.b16 %v656
        %v775 = vunpack.c.l.b16 %v657
        %v776 = vunpack.c.l.b16 %v658
        %v777 = vunpack.c.l.b16 %v659
        %v778 = vunpack.c.l.b16 %v660
        %v779 = vunpack.c.l.b16 %v661
        %v780 = vunpack.c.l.b16 %v662
        %v781 = vunpack.c.l.b16 %v663
        %v782 = vunpack.c.l.b16 %v664
        %v783 = vunpack.c.l.b16 %v665
        %v784 = vunpack.c.l.b16 %v666
        %v785 = vunpack.c.l.b16 %v667
        %v786 = vunpack.c.l.b16 %v668
        %v787 = vunpack.c.l.b16 %v669
        %v788 = vunpack.c.l.b16 %v670
        %v789 = vunpack.c.l.b16 %v671
        %v790 = vunpack.c.l.b16 %v672
        %v791 = vunpack.c.l.b16 %v673
        %v792 = vunpack.c.l.b16 %v674
        %v793 = vunpack.c.l.b16 %v675
        %v794 = vunpack.c.l.b16 %v676
        %v795 = vunpack.c.l.b16 %v677
        %v796 = vpack.c.b16 %v740, %v739
        %v797 = vpack.c.b16 %v742, %v741
        %v798 = vpack.c.b16 %v744, %v743
        %v799 = vpack.c.b16 %v746, %v745
        %v800 = vpack.c.b16 %v748, %v747
        %v801 = vpack.c.b16 %v750, %v749
        %v802 = vpack.c.b16 %v752, %v751
        %v803 = vpack.c.b16 %v754, %v753
        %v804 = vpack.c.b16 %v756, %v755
        %v805 = vpack.c.b16 %v758, %v757
        %v806 = vpack.c.b16 %v760, %v759
        %v807 = vpack.c.b16 %v762, %v761
        %v808 = vpack.c.b16 %v764, %v763
        %v809 = vpack.c.b16 %v766, %v765
        %v810 = vpack.c.b16 %v768, %v767
        %v811 = vpack.c.b16 %v770, %v769
        %v812 = vpack.c.b16 %v772, %v771
        %v813 = vpack.c.b16 %v774, %v773
        %v814 = vpack.c.b16 %v776, %v775
        %v815 = vpack.c.b16 %v778, %v777
        %v816 = vpack.c.b16 %v780, %v779
        %v817 = vpack.c.b16 %v782, %v781
        %v818 = vpack.c.b16 %v784, %v783
        %v819 = vpack.c.b16 %v786, %v785
        %v820 = vpack.c.b16 %v788, %v787
        %v821 = vpack.c.b16 %v790, %v789
        %v822 = vpack.c.b16 %v792, %v791
        %v823 = vpack.c.b16 %v794, %v793
        %v824 = vpack.c.b16 %v795, %v795
        %v829 = vunpack.c.l.b16 %v678
        %v830 = vunpack.c.l.b16 %v679
        %v831 = vunpack.c.l.b16 %v680
        %v832 = vunpack.c.l.b16 %v681
        %v833 = vpack.c.b16 %v830, %v829
        %v834 = vpack.c.b16 %v832, %v831
        %vm837 = vcmask 261120
        %v839 = vsel %vm837, %v796, 0
        %v842 = vsel %vm837, %v797, 0
        %v845 = vsel %vm837, %v798, 0
        %v848 = vsel %vm837, %v799, 0
        %v851 = vsel %vm837, %v800, 0
        %v854 = vsel %vm837, %v801, 0
        %v857 = vsel %vm837, %v802, 0
        %v860 = vsel %vm837, %v803, 0
        %v863 = vsel %vm837, %v804, 0
        %v866 = vsel %vm837, %v805, 0
        %v869 = vsel %vm837, %v806, 0
        %v872 = vsel %vm837, %v807, 0
        %v875 = vsel %vm837, %v808, 0
        %v878 = vsel %vm837, %v809, 0
        %v881 = vsel %vm837, %v810, 0
        %v884 = vsel %vm837, %v811, 0
        %v887 = vsel %vm837, %v812, 0
        %v890 = vsel %vm837, %v813, 0
        %v893 = vsel %vm837, %v814, 0
        %v896 = vsel %vm837, %v815, 0
        %v899 = vsel %vm837, %v816, 0
        %v902 = vsel %vm837, %v817, 0
        %v905 = vsel %vm837, %v818, 0
        %v908 = vsel %vm837, %v819, 0
        %v911 = vsel %vm837, %v820, 0
        %v914 = vsel %vm837, %v821, 0
        %v917 = vsel %vm837, %v822, 0
        %v920 = vsel %vm837, %v823, 0
        %v923 = vsel %vm837, %v824, 0
        %925 = vmatprep.subr.bf16.mxu0 0
        %926 = vmatpush1.bf16.msra.mxu0 %v833
        %927 = vmatprep.subr.bf16.mxu0 0
        %928 = vmatpush1.bf16.msra.mxu0 %v834
        %929 = vmatprep.subr.bf16.mxu0 0
        %930 = vmatpush1.bf16.msra.mxu0 0
        %931 = vmatprep.subr.bf16.mxu0 0
        %932 = vmatpush1.bf16.msra.mxu0 0
        %933 = vmatprep.subr.bf16.mxu0 0
        %934 = vmatpush1.bf16.msra.mxu0 0
        %935 = vmatprep.subr.bf16.mxu0 0
        %936 = vmatpush1.bf16.msra.mxu0 0
        %937 = vmatprep.subr.bf16.mxu0 0
        %938 = vmatpush1.bf16.msra.mxu0 0
        %939 = vmatprep.subr.bf16.mxu0 0
        %940 = vmatpush1.bf16.msra.mxu0 0
        %941 = vmatprep.subr.bf16.mxu0 0
        %942 = vmatpush1.bf16.msra.mxu0 0
        %943 = vmatprep.subr.bf16.mxu0 0
        %944 = vmatpush1.bf16.msra.mxu0 0
        %945 = vmatprep.subr.bf16.mxu0 0
        %946 = vmatpush1.bf16.msra.mxu0 0
        %947 = vmatprep.subr.bf16.mxu0 0
        %948 = vmatpush1.bf16.msra.mxu0 0
        %949 = vmatprep.subr.bf16.mxu0 0
        %950 = vmatpush1.bf16.msra.mxu0 0
        %951 = vmatprep.subr.bf16.mxu0 0
        %952 = vmatpush1.bf16.msra.mxu0 0
        %953 = vmatprep.subr.bf16.mxu0 0
        %954 = vmatpush1.bf16.msra.mxu0 0
        %955 = vmatprep.subr.bf16.mxu0 0
        %956 = vmatpush1.bf16.msra.mxu0 0
        %957 = vmatprep.mubr.bf16.mxu0 0
        %958 = vmatmul.mubr.bf16.gmra.mrb[0].mxu0 %v839
        %v959 = vpop.f32.mrb[0].mxu0
        %v960 = vadd.f32 0.0, %v959
        %v961 = vpop.f32.mrb[0].mxu0
        %v962 = vpop.f32.mrb[0].mxu0
        %v963 = vadd.f32 0.0, %v962
        %v964 = vpop.f32.mrb[0].mxu0
        %965 = vmatprep.mubr.bf16.mxu0 0
        %966 = vmatmul.mubr.bf16.gmra.mrb[0].mxu0 %v842
        %v967 = vpop.f32.mrb[0].mxu0
        %v968 = vadd.f32 0.0, %v967
        %v969 = vpop.f32.mrb[0].mxu0
        %v970 = vpop.f32.mrb[0].mxu0
        %v971 = vadd.f32 0.0, %v970
        %v972 = vpop.f32.mrb[0].mxu0
        %973 = vmatprep.mubr.bf16.mxu0 0
        %974 = vmatmul.mubr.bf16.gmra.mrb[0].mxu0 %v845
        %v975 = vpop.f32.mrb[0].mxu0
        %v976 = vadd.f32 0.0, %v975
        %v977 = vpop.f32.mrb[0].mxu0
        %v978 = vpop.f32.mrb[0].mxu0
        %v979 = vadd.f32 0.0, %v978
        %v980 = vpop.f32.mrb[0].mxu0
        %981 = vmatprep.mubr.bf16.mxu0 0
        %982 = vmatmul.mubr.bf16.gmra.mrb[0].mxu0 %v848
        %v983 = vpop.f32.mrb[0].mxu0
        %v984 = vadd.f32 0.0, %v983
        %v985 = vpop.f32.mrb[0].mxu0
        %v986 = vpop.f32.mrb[0].mxu0
        %v987 = vadd.f32 0.0, %v986
        %v988 = vpop.f32.mrb[0].mxu0
        %989 = vmatprep.mubr.bf16.mxu0 0
        %990 = vmatmul.mubr.bf16.gmra.mrb[0].mxu0 %v851
        %v991 = vpop.f32.mrb[0].mxu0
        %v992 = vadd.f32 0.0, %v991
        %v993 = vpop.f32.mrb[0].mxu0
        %v994 = vpop.f32.mrb[0].mxu0
        %v995 = vadd.f32 0.0, %v994
        %v996 = vpop.f32.mrb[0].mxu0
        %997 = vmatprep.mubr.bf16.mxu0 0
        %998 = vmatmul.mubr.bf16.gmra.mrb[0].mxu0 %v854
        %v999 = vpop.f32.mrb[0].mxu0
        %v1000 = vadd.f32 0.0, %v999
        %v1001 = vpop.f32.mrb[0].mxu0
        %v1002 = vpop.f32.mrb[0].mxu0
        %v1003 = vadd.f32 0.0, %v1002
        %v1004 = vpop.f32.mrb[0].mxu0
        %1005 = vmatprep.mubr.bf16.mxu0 0
        %1006 = vmatmul.mubr.bf16.gmra.mrb[0].mxu0 %v857
        %v1007 = vpop.f32.mrb[0].mxu0
        %v1008 = vadd.f32 0.0, %v1007
        %v1009 = vpop.f32.mrb[0].mxu0
        %v1010 = vpop.f32.mrb[0].mxu0
        %v1011 = vadd.f32 0.0, %v1010
        %v1012 = vpop.f32.mrb[0].mxu0
        %1013 = vmatprep.mubr.bf16.mxu0 0
        %1014 = vmatmul.mubr.bf16.gmra.mrb[0].mxu0 %v860
        %v1015 = vpop.f32.mrb[0].mxu0
        %v1016 = vadd.f32 0.0, %v1015
        %v1017 = vpop.f32.mrb[0].mxu0
        %v1018 = vpop.f32.mrb[0].mxu0
        %v1019 = vadd.f32 0.0, %v1018
        %v1020 = vpop.f32.mrb[0].mxu0
        %1021 = vmatprep.mubr.bf16.mxu0 0
        %1022 = vmatmul.mubr.bf16.gmra.mrb[0].mxu0 %v863
        %v1023 = vpop.f32.mrb[0].mxu0
        %v1024 = vadd.f32 0.0, %v1023
        %v1025 = vpop.f32.mrb[0].mxu0
        %v1026 = vpop.f32.mrb[0].mxu0
        %v1027 = vadd.f32 0.0, %v1026
        %v1028 = vpop.f32.mrb[0].mxu0
        %1029 = vmatprep.mubr.bf16.mxu0 0
        %1030 = vmatmul.mubr.bf16.gmra.mrb[0].mxu0 %v866
        %v1031 = vpop.f32.mrb[0].mxu0
        %v1032 = vadd.f32 0.0, %v1031
        %v1033 = vpop.f32.mrb[0].mxu0
        %v1034 = vpop.f32.mrb[0].mxu0
        %v1035 = vadd.f32 0.0, %v1034
        %v1036 = vpop.f32.mrb[0].mxu0
        %1037 = vmatprep.mubr.bf16.mxu0 0
        %1038 = vmatmul.mubr.bf16.gmra.mrb[0].mxu0 %v869
        %v1039 = vpop.f32.mrb[0].mxu0
        %v1040 = vadd.f32 0.0, %v1039
        %v1041 = vpop.f32.mrb[0].mxu0
        %v1042 = vpop.f32.mrb[0].mxu0
        %v1043 = vadd.f32 0.0, %v1042
        %v1044 = vpop.f32.mrb[0].mxu0
        %1045 = vmatprep.mubr.bf16.mxu0 0
        %1046 = vmatmul.mubr.bf16.gmra.mrb[0].mxu0 %v872
        %v1047 = vpop.f32.mrb[0].mxu0
        %v1048 = vadd.f32 0.0, %v1047
        %v1049 = vpop.f32.mrb[0].mxu0
        %v1050 = vpop.f32.mrb[0].mxu0
        %v1051 = vadd.f32 0.0, %v1050
        %v1052 = vpop.f32.mrb[0].mxu0
        %1053 = vmatprep.mubr.bf16.mxu0 0
        %1054 = vmatmul.mubr.bf16.gmra.mrb[0].mxu0 %v875
        %v1055 = vpop.f32.mrb[0].mxu0
        %v1056 = vadd.f32 0.0, %v1055
        %v1057 = vpop.f32.mrb[0].mxu0
        %v1058 = vpop.f32.mrb[0].mxu0
        %v1059 = vadd.f32 0.0, %v1058
        %v1060 = vpop.f32.mrb[0].mxu0
        %1061 = vmatprep.mubr.bf16.mxu0 0
        %1062 = vmatmul.mubr.bf16.gmra.mrb[0].mxu0 %v878
        %v1063 = vpop.f32.mrb[0].mxu0
        %v1064 = vadd.f32 0.0, %v1063
        %v1065 = vpop.f32.mrb[0].mxu0
        %v1066 = vpop.f32.mrb[0].mxu0
        %v1067 = vadd.f32 0.0, %v1066
        %v1068 = vpop.f32.mrb[0].mxu0
        %1069 = vmatprep.mubr.bf16.mxu0 0
        %1070 = vmatmul.mubr.bf16.gmra.mrb[0].mxu0 %v881
        %v1071 = vpop.f32.mrb[0].mxu0
        %v1072 = vadd.f32 0.0, %v1071
        %v1073 = vpop.f32.mrb[0].mxu0
        %v1074 = vpop.f32.mrb[0].mxu0
        %v1075 = vadd.f32 0.0, %v1074
        %v1076 = vpop.f32.mrb[0].mxu0
        %1077 = vmatprep.mubr.bf16.mxu0 0
        %1078 = vmatmul.mubr.bf16.gmra.mrb[0].mxu0 %v884
        %v1079 = vpop.f32.mrb[0].mxu0
        %v1080 = vadd.f32 0.0, %v1079
        %v1081 = vpop.f32.mrb[0].mxu0
        %v1082 = vpop.f32.mrb[0].mxu0
        %v1083 = vadd.f32 0.0, %v1082
        %v1084 = vpop.f32.mrb[0].mxu0
        %1085 = vmatprep.mubr.bf16.mxu0 0
        %1086 = vmatmul.mubr.bf16.gmra.mrb[0].mxu0 %v887
        %v1087 = vpop.f32.mrb[0].mxu0
        %v1088 = vadd.f32 0.0, %v1087
        %v1089 = vpop.f32.mrb[0].mxu0
        %v1090 = vpop.f32.mrb[0].mxu0
        %v1091 = vadd.f32 0.0, %v1090
        %v1092 = vpop.f32.mrb[0].mxu0
        %1093 = vmatprep.mubr.bf16.mxu0 0
        %1094 = vmatmul.mubr.bf16.gmra.mrb[0].mxu0 %v890
        %v1095 = vpop.f32.mrb[0].mxu0
        %v1096 = vadd.f32 0.0, %v1095
        %v1097 = vpop.f32.mrb[0].mxu0
        %v1098 = vpop.f32.mrb[0].mxu0
        %v1099 = vadd.f32 0.0, %v1098
        %v1100 = vpop.f32.mrb[0].mxu0
        %1101 = vmatprep.mubr.bf16.mxu0 0
        %1102 = vmatmul.mubr.bf16.gmra.mrb[0].mxu0 %v893
        %v1103 = vpop.f32.mrb[0].mxu0
        %v1104 = vadd.f32 0.0, %v1103
        %v1105 = vpop.f32.mrb[0].mxu0
        %v1106 = vpop.f32.mrb[0].mxu0
        %v1107 = vadd.f32 0.0, %v1106
        %v1108 = vpop.f32.mrb[0].mxu0
        %1109 = vmatprep.mubr.bf16.mxu0 0
        %1110 = vmatmul.mubr.bf16.gmra.mrb[0].mxu0 %v896
        %v1111 = vpop.f32.mrb[0].mxu0
        %v1112 = vadd.f32 0.0, %v1111
        %v1113 = vpop.f32.mrb[0].mxu0
        %v1114 = vpop.f32.mrb[0].mxu0
        %v1115 = vadd.f32 0.0, %v1114
        %v1116 = vpop.f32.mrb[0].mxu0
        %1117 = vmatprep.mubr.bf16.mxu0 0
        %1118 = vmatmul.mubr.bf16.gmra.mrb[0].mxu0 %v899
        %v1119 = vpop.f32.mrb[0].mxu0
        %v1120 = vadd.f32 0.0, %v1119
        %v1121 = vpop.f32.mrb[0].mxu0
        %v1122 = vpop.f32.mrb[0].mxu0
        %v1123 = vadd.f32 0.0, %v1122
        %v1124 = vpop.f32.mrb[0].mxu0
        %1125 = vmatprep.mubr.bf16.mxu0 0
        %1126 = vmatmul.mubr.bf16.gmra.mrb[0].mxu0 %v902
        %v1127 = vpop.f32.mrb[0].mxu0
        %v1128 = vadd.f32 0.0, %v1127
        %v1129 = vpop.f32.mrb[0].mxu0
        %v1130 = vpop.f32.mrb[0].mxu0
        %v1131 = vadd.f32 0.0, %v1130
        %v1132 = vpop.f32.mrb[0].mxu0
        %1133 = vmatprep.mubr.bf16.mxu0 0
        %1134 = vmatmul.mubr.bf16.gmra.mrb[0].mxu0 %v905
        %v1135 = vpop.f32.mrb[0].mxu0
        %v1136 = vadd.f32 0.0, %v1135
        %v1137 = vpop.f32.mrb[0].mxu0
        %v1138 = vpop.f32.mrb[0].mxu0
        %v1139 = vadd.f32 0.0, %v1138
        %v1140 = vpop.f32.mrb[0].mxu0
        %1141 = vmatprep.mubr.bf16.mxu0 0
        %1142 = vmatmul.mubr.bf16.gmra.mrb[0].mxu0 %v908
        %v1143 = vpop.f32.mrb[0].mxu0
        %v1144 = vadd.f32 0.0, %v1143
        %v1145 = vpop.f32.mrb[0].mxu0
        %v1146 = vpop.f32.mrb[0].mxu0
        %v1147 = vadd.f32 0.0, %v1146
        %v1148 = vpop.f32.mrb[0].mxu0
        %1149 = vmatprep.mubr.bf16.mxu0 0
        %1150 = vmatmul.mubr.bf16.gmra.mrb[0].mxu0 %v911
        %v1151 = vpop.f32.mrb[0].mxu0
        %v1152 = vadd.f32 0.0, %v1151
        %v1153 = vpop.f32.mrb[0].mxu0
        %v1154 = vpop.f32.mrb[0].mxu0
        %v1155 = vadd.f32 0.0, %v1154
        %v1156 = vpop.f32.mrb[0].mxu0
        %1157 = vmatprep.mubr.bf16.mxu0 0
        %1158 = vmatmul.mubr.bf16.gmra.mrb[0].mxu0 %v914
        %v1159 = vpop.f32.mrb[0].mxu0
        %v1160 = vadd.f32 0.0, %v1159
        %v1161 = vpop.f32.mrb[0].mxu0
        %v1162 = vpop.f32.mrb[0].mxu0
        %v1163 = vadd.f32 0.0, %v1162
        %v1164 = vpop.f32.mrb[0].mxu0
        %1165 = vmatprep.mubr.bf16.mxu0 0
        %1166 = vmatmul.mubr.bf16.gmra.mrb[0].mxu0 %v917
        %v1167 = vpop.f32.mrb[0].mxu0
        %v1168 = vadd.f32 0.0, %v1167
        %v1169 = vpop.f32.mrb[0].mxu0
        %v1170 = vpop.f32.mrb[0].mxu0
        %v1171 = vadd.f32 0.0, %v1170
        %v1172 = vpop.f32.mrb[0].mxu0
        %1173 = vmatprep.mubr.bf16.mxu0 0
        %1174 = vmatmul.mubr.bf16.gmra.mrb[0].mxu0 %v920
        %v1175 = vpop.f32.mrb[0].mxu0
        %v1176 = vadd.f32 0.0, %v1175
        %v1177 = vpop.f32.mrb[0].mxu0
        %v1178 = vpop.f32.mrb[0].mxu0
        %v1179 = vadd.f32 0.0, %v1178
        %v1180 = vpop.f32.mrb[0].mxu0
        %1181 = vmatprep.mubr.bf16.mxu0 0
        %1182 = vmatmul.mubr.bf16.gmra.mrb[0].mxu0 %v923
        %v1183 = vpop.f32.mrb[0].mxu0
        %v1184 = vadd.f32 0.0, %v1183
        %v1185 = vpop.f32.mrb[0].mxu0
        %v1186 = vpop.f32.mrb[0].mxu0
        %v1187 = vpop.f32.mrb[0].mxu0
        %1188 = vdwg.mxu0
        %v1189 = vld [vmem:[#allocation4] sm:$0x1]
        %v1191 = vlaneseq
        %v1192 = vshrl.u32 %v1191, 7
        %v1193 = vsub.s32 0, %v1192
        %v1194 = vrot.slane %v1189, %v1193
        %v1196 = vmul.f32 %v960, %v1194
        %v1197 = vmul.f32 %v963, %v1194
        %v1198 = vmul.f32 %v968, %v1194
        %v1199 = vmul.f32 %v971, %v1194
        %v1200 = vmul.f32 %v976, %v1194
        %v1201 = vmul.f32 %v979, %v1194
        %v1202 = vmul.f32 %v984, %v1194
        %v1203 = vmul.f32 %v987, %v1194
        %v1204 = vmul.f32 %v992, %v1194
        %v1205 = vmul.f32 %v995, %v1194
        %v1206 = vmul.f32 %v1000, %v1194
        %v1207 = vmul.f32 %v1003, %v1194
        %v1208 = vmul.f32 %v1008, %v1194
        %v1209 = vmul.f32 %v1011, %v1194
        %v1210 = vmul.f32 %v1016, %v1194
        %v1211 = vmul.f32 %v1019, %v1194
        %v1212 = vmul.f32 %v1024, %v1194
        %v1213 = vmul.f32 %v1027, %v1194
        %v1214 = vmul.f32 %v1032, %v1194
        %v1215 = vmul.f32 %v1035, %v1194
        %v1216 = vmul.f32 %v1040, %v1194
        %v1217 = vmul.f32 %v1043, %v1194
        %v1218 = vmul.f32 %v1048, %v1194
        %v1219 = vmul.f32 %v1051, %v1194
        %v1220 = vmul.f32 %v1056, %v1194
        %v1221 = vmul.f32 %v1059, %v1194
        %v1222 = vmul.f32 %v1064, %v1194
        %v1223 = vmul.f32 %v1067, %v1194
        %v1224 = vmul.f32 %v1072, %v1194
        %v1225 = vmul.f32 %v1075, %v1194
        %v1226 = vmul.f32 %v1080, %v1194
        %v1227 = vmul.f32 %v1083, %v1194
        %v1228 = vmul.f32 %v1088, %v1194
        %v1229 = vmul.f32 %v1091, %v1194
        %v1230 = vmul.f32 %v1096, %v1194
        %v1231 = vmul.f32 %v1099, %v1194
        %v1232 = vmul.f32 %v1104, %v1194
        %v1233 = vmul.f32 %v1107, %v1194
        %v1234 = vmul.f32 %v1112, %v1194
        %v1235 = vmul.f32 %v1115, %v1194
        %v1236 = vmul.f32 %v1120, %v1194
        %v1237 = vmul.f32 %v1123, %v1194
        %v1238 = vmul.f32 %v1128, %v1194
        %v1239 = vmul.f32 %v1131, %v1194
        %v1240 = vmul.f32 %v1136, %v1194
        %v1241 = vmul.f32 %v1139, %v1194
        %v1242 = vmul.f32 %v1144, %v1194
        %v1243 = vmul.f32 %v1147, %v1194
        %v1244 = vmul.f32 %v1152, %v1194
        %v1245 = vmul.f32 %v1155, %v1194
        %v1246 = vmul.f32 %v1160, %v1194
        %v1247 = vmul.f32 %v1163, %v1194
        %v1248 = vmul.f32 %v1168, %v1194
        %v1249 = vmul.f32 %v1171, %v1194
        %v1250 = vmul.f32 %v1176, %v1194
        %v1251 = vmul.f32 %v1179, %v1194
        %v1252 = vmul.f32 %v1184, %v1194
        %v1253 = vld [vmem:[#allocation6] sm:$0x1]
        %v1255 = vlaneseq
        %v1256 = vshrl.u32 %v1255, 7
        %v1257 = vsub.s32 0, %v1256
        %v1258 = vrot.slane %v1253, %v1257
        %v1260 = vadd.f32 %v1196, %v1258
        %v1261 = vadd.f32 %v1197, %v1258
        %v1262 = vadd.f32 %v1198, %v1258
        %v1263 = vadd.f32 %v1199, %v1258
        %v1264 = vadd.f32 %v1200, %v1258
        %v1265 = vadd.f32 %v1201, %v1258
        %v1266 = vadd.f32 %v1202, %v1258
        %v1267 = vadd.f32 %v1203, %v1258
        %v1268 = vadd.f32 %v1204, %v1258
        %v1269 = vadd.f32 %v1205, %v1258
        %v1270 = vadd.f32 %v1206, %v1258
        %v1271 = vadd.f32 %v1207, %v1258
        %v1272 = vadd.f32 %v1208, %v1258
        %v1273 = vadd.f32 %v1209, %v1258
        %v1274 = vadd.f32 %v1210, %v1258
        %v1275 = vadd.f32 %v1211, %v1258
        %v1276 = vadd.f32 %v1212, %v1258
        %v1277 = vadd.f32 %v1213, %v1258
        %v1278 = vadd.f32 %v1214, %v1258
        %v1279 = vadd.f32 %v1215, %v1258
        %v1280 = vadd.f32 %v1216, %v1258
        %v1281 = vadd.f32 %v1217, %v1258
        %v1282 = vadd.f32 %v1218, %v1258
        %v1283 = vadd.f32 %v1219, %v1258
        %v1284 = vadd.f32 %v1220, %v1258
        %v1285 = vadd.f32 %v1221, %v1258
        %v1286 = vadd.f32 %v1222, %v1258
        %v1287 = vadd.f32 %v1223, %v1258
        %v1288 = vadd.f32 %v1224, %v1258
        %v1289 = vadd.f32 %v1225, %v1258
        %v1290 = vadd.f32 %v1226, %v1258
        %v1291 = vadd.f32 %v1227, %v1258
        %v1292 = vadd.f32 %v1228, %v1258
        %v1293 = vadd.f32 %v1229, %v1258
        %v1294 = vadd.f32 %v1230, %v1258
        %v1295 = vadd.f32 %v1231, %v1258
        %v1296 = vadd.f32 %v1232, %v1258
        %v1297 = vadd.f32 %v1233, %v1258
        %v1298 = vadd.f32 %v1234, %v1258
        %v1299 = vadd.f32 %v1235, %v1258
        %v1300 = vadd.f32 %v1236, %v1258
        %v1301 = vadd.f32 %v1237, %v1258
        %v1302 = vadd.f32 %v1238, %v1258
        %v1303 = vadd.f32 %v1239, %v1258
        %v1304 = vadd.f32 %v1240, %v1258
        %v1305 = vadd.f32 %v1241, %v1258
        %v1306 = vadd.f32 %v1242, %v1258
        %v1307 = vadd.f32 %v1243, %v1258
        %v1308 = vadd.f32 %v1244, %v1258
        %v1309 = vadd.f32 %v1245, %v1258
        %v1310 = vadd.f32 %v1246, %v1258
        %v1311 = vadd.f32 %v1247, %v1258
        %v1312 = vadd.f32 %v1248, %v1258
        %v1313 = vadd.f32 %v1249, %v1258
        %v1314 = vadd.f32 %v1250, %v1258
        %v1315 = vadd.f32 %v1251, %v1258
        %v1316 = vadd.f32 %v1252, %v1258
        %v1317 = vmax.f32 %v1260, 0.0
        %v1318 = vmax.f32 %v1261, 0.0
        %v1319 = vmax.f32 %v1262, 0.0
        %v1320 = vmax.f32 %v1263, 0.0
        %v1321 = vmax.f32 %v1264, 0.0
        %v1322 = vmax.f32 %v1265, 0.0
        %v1323 = vmax.f32 %v1266, 0.0
        %v1324 = vmax.f32 %v1267, 0.0
        %v1325 = vmax.f32 %v1268, 0.0
        %v1326 = vmax.f32 %v1269, 0.0
        %v1327 = vmax.f32 %v1270, 0.0
        %v1328 = vmax.f32 %v1271, 0.0
        %v1329 = vmax.f32 %v1272, 0.0
        %v1330 = vmax.f32 %v1273, 0.0
        %v1331 = vmax.f32 %v1274, 0.0
        %v1332 = vmax.f32 %v1275, 0.0
        %v1333 = vmax.f32 %v1276, 0.0
        %v1334 = vmax.f32 %v1277, 0.0
        %v1335 = vmax.f32 %v1278, 0.0
        %v1336 = vmax.f32 %v1279, 0.0
        %v1337 = vmax.f32 %v1280, 0.0
        %v1338 = vmax.f32 %v1281, 0.0
        %v1339 = vmax.f32 %v1282, 0.0
        %v1340 = vmax.f32 %v1283, 0.0
        %v1341 = vmax.f32 %v1284, 0.0
        %v1342 = vmax.f32 %v1285, 0.0
        %v1343 = vmax.f32 %v1286, 0.0
        %v1344 = vmax.f32 %v1287, 0.0
        %v1345 = vmax.f32 %v1288, 0.0
        %v1346 = vmax.f32 %v1289, 0.0
        %v1347 = vmax.f32 %v1290, 0.0
        %v1348 = vmax.f32 %v1291, 0.0
        %v1349 = vmax.f32 %v1292, 0.0
        %v1350 = vmax.f32 %v1293, 0.0
        %v1351 = vmax.f32 %v1294, 0.0
        %v1352 = vmax.f32 %v1295, 0.0
        %v1353 = vmax.f32 %v1296, 0.0
        %v1354 = vmax.f32 %v1297, 0.0
        %v1355 = vmax.f32 %v1298, 0.0
        %v1356 = vmax.f32 %v1299, 0.0
        %v1357 = vmax.f32 %v1300, 0.0
        %v1358 = vmax.f32 %v1301, 0.0
        %v1359 = vmax.f32 %v1302, 0.0
        %v1360 = vmax.f32 %v1303, 0.0
        %v1361 = vmax.f32 %v1304, 0.0
        %v1362 = vmax.f32 %v1305, 0.0
        %v1363 = vmax.f32 %v1306, 0.0
        %v1364 = vmax.f32 %v1307, 0.0
        %v1365 = vmax.f32 %v1308, 0.0
        %v1366 = vmax.f32 %v1309, 0.0
        %v1367 = vmax.f32 %v1310, 0.0
        %v1368 = vmax.f32 %v1311, 0.0
        %v1369 = vmax.f32 %v1312, 0.0
        %v1370 = vmax.f32 %v1313, 0.0
        %v1371 = vmax.f32 %v1314, 0.0
        %v1372 = vmax.f32 %v1315, 0.0
        %v1373 = vmax.f32 %v1316, 0.0
        %v1374 = vld [vmem:[%s1] sm:$0xf]
        %v1375 = vpack.c.bf16 %v1318, %v1317
        %v1376 = vpack.c.bf16 %v1320, %v1319
        %v1377 = vpack.c.bf16 %v1322, %v1321
        %v1378 = vpack.c.bf16 %v1324, %v1323
        %v1379 = vpack.c.bf16 %v1326, %v1325
        %v1380 = vpack.c.bf16 %v1328, %v1327
        %v1381 = vpack.c.bf16 %v1330, %v1329
        %v1382 = vpack.c.bf16 %v1332, %v1331
        %v1383 = vpack.c.bf16 %v1334, %v1333
        %v1384 = vpack.c.bf16 %v1336, %v1335
        %v1385 = vpack.c.bf16 %v1338, %v1337
        %v1386 = vpack.c.bf16 %v1340, %v1339
        %v1387 = vpack.c.bf16 %v1342, %v1341
        %v1388 = vpack.c.bf16 %v1344, %v1343
        %v1389 = vpack.c.bf16 %v1346, %v1345
        %v1390 = vpack.c.bf16 %v1348, %v1347
        %v1391 = vpack.c.bf16 %v1350, %v1349
        %v1392 = vpack.c.bf16 %v1352, %v1351
        %v1393 = vpack.c.bf16 %v1354, %v1353
        %v1394 = vpack.c.bf16 %v1356, %v1355
        %v1395 = vpack.c.bf16 %v1358, %v1357
        %v1396 = vpack.c.bf16 %v1360, %v1359
        %v1397 = vpack.c.bf16 %v1362, %v1361
        %v1398 = vpack.c.bf16 %v1364, %v1363
        %v1399 = vpack.c.bf16 %v1366, %v1365
        %v1400 = vpack.c.bf16 %v1368, %v1367
        %v1401 = vpack.c.bf16 %v1370, %v1369
        %v1402 = vpack.c.bf16 %v1372, %v1371
        %v1403 = vpack.c.bf16 %v1373, %v1373
        %v1406 = vunpack.c.l.s4 1966171168
        %v1407 = vunpack.c.0.s8 %v1406
        %v1408 = vlaneseq
        %v1409 = vshrl.u32 %v1408, 7
        %v1410 = vsub.s32 %v1407, %v1409
        %v1411 = vrot.slane %v1374, %v1410
        %v1412 = vcombine.high %v1411, %v1411
        %v1414 = vunpack.c.l.s4 1966171168
        %v1415 = vunpack.c.0.s8 %v1414
        %v1416 = vlaneseq
        %v1417 = vshrl.u32 %v1416, 7
        %v1418 = vsub.s32 %v1415, %v1417
        %v1419 = vrot.slane %v1411, %v1418
        %v1421 = vunpack.c.l.s4 1966171168
        %v1422 = vunpack.c.0.s8 %v1421
        %v1423 = vlaneseq
        %v1424 = vshrl.u32 %v1423, 7
        %v1425 = vsub.s32 %v1422, %v1424
        %v1426 = vrot.slane %v1412, %v1425
        %v1427 = vcombine.high %v1419, %v1419
        %v1428 = vcombine.high %v1426, %v1426
        %vm1432 = vcmask 539648
        %v1434 = vsel %vm1432, %v1428, 0
        %vm1436 = vcmask 1040384
        %v1438 = vsel %vm1436, %v1403, 0
        %1440 = vmatprep.subr.bf16.mxu0 0
        %1441 = vmatpush1.bf16.msra.mxu0 %v1375
        %1442 = vmatprep.subr.bf16.mxu0 0
        %1443 = vmatpush1.bf16.msra.mxu0 %v1376
        %1444 = vmatprep.subr.bf16.mxu0 0
        %1445 = vmatpush1.bf16.msra.mxu0 %v1377
        %1446 = vmatprep.subr.bf16.mxu0 0
        %1447 = vmatpush1.bf16.msra.mxu0 %v1378
        %1448 = vmatprep.subr.bf16.mxu0 0
        %1449 = vmatpush1.bf16.msra.mxu0 %v1379
        %1450 = vmatprep.subr.bf16.mxu0 0
        %1451 = vmatpush1.bf16.msra.mxu0 %v1380
        %1452 = vmatprep.subr.bf16.mxu0 0
        %1453 = vmatpush1.bf16.msra.mxu0 %v1381
        %1454 = vmatprep.subr.bf16.mxu0 0
        %1455 = vmatpush1.bf16.msra.mxu0 %v1382
        %1456 = vmatprep.subr.bf16.mxu0 0
        %1457 = vmatpush1.bf16.msra.mxu0 %v1383
        %1458 = vmatprep.subr.bf16.mxu0 0
        %1459 = vmatpush1.bf16.msra.mxu0 %v1384
        %1460 = vmatprep.subr.bf16.mxu0 0
        %1461 = vmatpush1.bf16.msra.mxu0 %v1385
        %1462 = vmatprep.subr.bf16.mxu0 0
        %1463 = vmatpush1.bf16.msra.mxu0 %v1386
        %1464 = vmatprep.subr.bf16.mxu0 0
        %1465 = vmatpush1.bf16.msra.mxu0 %v1387
        %1466 = vmatprep.subr.bf16.mxu0 0
        %1467 = vmatpush1.bf16.msra.mxu0 %v1388
        %1468 = vmatprep.subr.bf16.mxu0 0
        %1469 = vmatpush1.bf16.msra.mxu0 %v1389
        %1470 = vmatprep.subr.bf16.mxu0 0
        %1471 = vmatpush1.bf16.msra.mxu0 %v1390
        %1472 = vmatprep.mubr.bf16.mxu0 %v1426
        %1473 = vmatmul.mubr.bf16.gmra.mrb[0].mxu0 %v1419
        %v1474 = vpop.f32.mrb[0].mxu0
        %v1475 = vadd.f32 0.0, %v1474
        %v1476 = vpop.f32.mrb[0].mxu0
        %v1477 = vpop.f32.mrb[0].mxu0
        %v1478 = vpop.f32.mrb[0].mxu0
        %1479 = vdwg.mxu0
        %1480 = vmatprep.subr.bf16.mxu0 0
        %1481 = vmatpush1.bf16.msra.mxu0 %v1391
        %1482 = vmatprep.subr.bf16.mxu0 0
        %1483 = vmatpush1.bf16.msra.mxu0 %v1392
        %1484 = vmatprep.subr.bf16.mxu0 0
        %1485 = vmatpush1.bf16.msra.mxu0 %v1393
        %1486 = vmatprep.subr.bf16.mxu0 0
        %1487 = vmatpush1.bf16.msra.mxu0 %v1394
        %1488 = vmatprep.subr.bf16.mxu0 0
        %1489 = vmatpush1.bf16.msra.mxu0 %v1395
        %1490 = vmatprep.subr.bf16.mxu0 0
        %1491 = vmatpush1.bf16.msra.mxu0 %v1396
        %1492 = vmatprep.subr.bf16.mxu0 0
        %1493 = vmatpush1.bf16.msra.mxu0 %v1397
        %1494 = vmatprep.subr.bf16.mxu0 0
        %1495 = vmatpush1.bf16.msra.mxu0 %v1398
        %1496 = vmatprep.subr.bf16.mxu0 0
        %1497 = vmatpush1.bf16.msra.mxu0 %v1399
        %1498 = vmatprep.subr.bf16.mxu0 0
        %1499 = vmatpush1.bf16.msra.mxu0 %v1400
        %1500 = vmatprep.subr.bf16.mxu0 0
        %1501 = vmatpush1.bf16.msra.mxu0 %v1401
        %1502 = vmatprep.subr.bf16.mxu0 0
        %1503 = vmatpush1.bf16.msra.mxu0 %v1402
        %1504 = vmatprep.subr.bf16.mxu0 0
        %1505 = vmatpush1.bf16.msra.mxu0 %v1438
        %1506 = vmatprep.subr.bf16.mxu0 0
        %1507 = vmatpush1.bf16.msra.mxu0 0
        %1508 = vmatprep.subr.bf16.mxu0 0
        %1509 = vmatpush1.bf16.msra.mxu0 0
        %1510 = vmatprep.subr.bf16.mxu0 0
        %1511 = vmatpush1.bf16.msra.mxu0 0
        %1512 = vmatprep.mubr.bf16.mxu0 %v1434
        %1513 = vmatmul.mubr.bf16.gmra.mrb[0].mxu0 %v1427
        %v1514 = vpop.f32.mrb[0].mxu0
        %v1515 = vadd.f32 %v1475, %v1514
        %v1516 = vpop.f32.mrb[0].mxu0
        %v1517 = vpop.f32.mrb[0].mxu0
        %v1518 = vpop.f32.mrb[0].mxu0
        %1519 = vdwg.mxu0
        %v1520 = vmul.f32 %v1515, 0.0044444446
        %v1521 = vld [vmem:[#allocation7] sm:$0xff]
        %v1522 = vld [vmem:[#allocation7 + $0x8] sm:$0xff]
        %v1523 = vld [vmem:[#allocation7 + $0x10] sm:$0xff]
        %v1524 = vld [vmem:[#allocation7 + $0x18] sm:$0xff]
        %v1525 = vld [vmem:[#allocation7 + $0x20] sm:$0xff]
        %v1526 = vld [vmem:[#allocation7 + $0x28] sm:$0xff]
        %v1527 = vld [vmem:[#allocation7 + $0x30] sm:$0xff]
        %v1528 = vld [vmem:[#allocation7 + $0x38] sm:$0xff]
        %v1529 = vld [vmem:[#allocation7 + $0x40] sm:$0xff]
        %v1530 = vld [vmem:[#allocation7 + $0x48] sm:$0xff]
        %v1531 = vld [vmem:[#allocation7 + $0x50] sm:$0xff]
        %v1532 = vld [vmem:[#allocation7 + $0x58] sm:$0xff]
        %v1533 = vld [vmem:[#allocation7 + $0x60] sm:$0xff]
        %v1534 = vld [vmem:[#allocation7 + $0x68] sm:$0xff]
        %v1535 = vld [vmem:[#allocation7 + $0x70] sm:$0xff]
        %v1536 = vld [vmem:[#allocation7 + $0x78] sm:$0xff]
        %v1537 = vld [vmem:[#allocation7 + $0x80] sm:$0xff]
        %v1538 = vld [vmem:[#allocation7 + $0x88] sm:$0xff]
        %v1539 = vld [vmem:[#allocation7 + $0x90] sm:$0xff]
        %v1540 = vld [vmem:[#allocation7 + $0x98] sm:$0xff]
        %v1541 = vld [vmem:[#allocation7 + $0xa0] sm:$0xff]
        %v1542 = vld [vmem:[#allocation7 + $0xa8] sm:$0xff]
        %v1543 = vld [vmem:[#allocation7 + $0xb0] sm:$0xff]
        %v1544 = vld [vmem:[#allocation7 + $0xb8] sm:$0xff]
        %v1545 = vld [vmem:[#allocation7 + $0xc0] sm:$0xff]
        %v1546 = vld [vmem:[#allocation7 + $0xc8] sm:$0xff]
        %v1547 = vld [vmem:[#allocation7 + $0xd0] sm:$0xff]
        %v1548 = vld [vmem:[#allocation7 + $0xd8] sm:$0xff]
        %v1549 = vld [vmem:[#allocation7 + $0xe0] sm:$0xff]
        %v1550 = vld [vmem:[#allocation7 + $0xe8] sm:$0xff]
        %v1551 = vld [vmem:[#allocation7 + $0xf0] sm:$0xff]
        %v1552 = vld [vmem:[#allocation7 + $0xf8] sm:$0xff]
        %v1553 = vld [vmem:[#allocation7 + $0x100] sm:$0xff]
        %v1554 = vld [vmem:[#allocation7 + $0x108] sm:$0xff]
        %v1555 = vld [vmem:[#allocation7 + $0x110] sm:$0xff]
        %v1556 = vld [vmem:[#allocation7 + $0x118] sm:$0xff]
        %v1557 = vld [vmem:[#allocation7 + $0x120] sm:$0xff]
        %v1558 = vld [vmem:[#allocation7 + $0x128] sm:$0xff]
        %v1559 = vld [vmem:[#allocation7 + $0x130] sm:$0xff]
        %v1560 = vld [vmem:[#allocation7 + $0x138] sm:$0xff]
        %v1561 = vld [vmem:[#allocation7 + $0x140] sm:$0xff]
        %v1562 = vld [vmem:[#allocation7 + $0x148] sm:$0xff]
        %v1563 = vld [vmem:[#allocation7 + $0x150] sm:$0xff]
        %v1564 = vld [vmem:[#allocation7 + $0x158] sm:$0xff]
        %v1565 = vld [vmem:[#allocation7 + $0x160] sm:$0xff]
        %v1566 = vld [vmem:[#allocation7 + $0x168] sm:$0xff]
        %v1567 = vld [vmem:[#allocation7 + $0x170] sm:$0xff]
        %v1568 = vld [vmem:[#allocation7 + $0x178] sm:$0xff]
        %v1569 = vld [vmem:[#allocation7 + $0x180] sm:$0xff]
        %v1570 = vld [vmem:[#allocation7 + $0x188] sm:$0xff]
        %v1571 = vld [vmem:[#allocation7 + $0x190] sm:$0xff]
        %v1572 = vld [vmem:[#allocation7 + $0x198] sm:$0xff]
        %v1573 = vld [vmem:[#allocation7 + $0x1a0] sm:$0xff]
        %v1574 = vld [vmem:[#allocation7 + $0x1a8] sm:$0xff]
        %v1575 = vld [vmem:[#allocation7 + $0x1b0] sm:$0xff]
        %v1576 = vld [vmem:[#allocation7 + $0x1b8] sm:$0xff]
        %v1577 = vld [vmem:[#allocation7 + $0x1c0] sm:$0xff]
        %v1578 = vld [vmem:[#allocation7 + $0x1c8] sm:$0xff]
        %v1579 = vld [vmem:[#allocation7 + $0x1d0] sm:$0xff]
        %v1580 = vld [vmem:[#allocation7 + $0x1d8] sm:$0xff]
        %v1581 = vld [vmem:[#allocation7 + $0x1e0] sm:$0xff]
        %v1582 = vld [vmem:[#allocation7 + $0x1e8] sm:$0xff]
        %v1583 = vld [vmem:[#allocation7 + $0x1f0] sm:$0xff]
        %v1584 = vld [vmem:[#allocation7 + $0x1f8] sm:$0xff]
        %v1585 = vld [vmem:[#allocation7 + $0x200] sm:$0xff]
        %v1586 = vld [vmem:[#allocation7 + $0x208] sm:$0xff]
        %v1587 = vld [vmem:[#allocation7 + $0x210] sm:$0xff]
        %v1588 = vld [vmem:[#allocation7 + $0x218] sm:$0xff]
        %v1589 = vld [vmem:[#allocation7 + $0x220] sm:$0xff]
        %v1590 = vld [vmem:[#allocation7 + $0x228] sm:$0xff]
        %v1591 = vld [vmem:[#allocation7 + $0x230] sm:$0xff]
        %v1592 = vld [vmem:[#allocation7 + $0x238] sm:$0xff]
        %v1593 = vld [vmem:[#allocation7 + $0x240] sm:$0xff]
        %v1594 = vld [vmem:[#allocation7 + $0x248] sm:$0xff]
        %v1595 = vld [vmem:[#allocation7 + $0x250] sm:$0xff]
        %v1596 = vld [vmem:[#allocation7 + $0x258] sm:$0xff]
        %v1597 = vld [vmem:[#allocation7 + $0x260] sm:$0xff]
        %v1598 = vld [vmem:[#allocation7 + $0x268] sm:$0xff]
        %v1599 = vld [vmem:[#allocation7 + $0x270] sm:$0xff]
        %v1600 = vld [vmem:[#allocation7 + $0x278] sm:$0xff]
        %v1601 = vld [vmem:[#allocation7 + $0x280] sm:$0xff]
        %v1602 = vld [vmem:[#allocation7 + $0x288] sm:$0xff]
        %v1603 = vld [vmem:[#allocation7 + $0x290] sm:$0xff]
        %v1604 = vld [vmem:[#allocation7 + $0x298] sm:$0xff]
        %v1605 = vld [vmem:[#allocation7 + $0x2a0] sm:$0xff]
        %v1606 = vld [vmem:[#allocation7 + $0x2a8] sm:$0xff]
        %v1607 = vld [vmem:[#allocation7 + $0x2b0] sm:$0xff]
        %v1608 = vld [vmem:[#allocation7 + $0x2b8] sm:$0xff]
        %v1609 = vld [vmem:[#allocation7 + $0x2c0] sm:$0xff]
        %v1610 = vld [vmem:[#allocation7 + $0x2c8] sm:$0xff]
        %v1611 = vld [vmem:[#allocation7 + $0x2d0] sm:$0xff]
        %v1612 = vld [vmem:[#allocation7 + $0x2d8] sm:$0xff]
        %v1613 = vld [vmem:[#allocation7 + $0x2e0] sm:$0xff]
        %v1614 = vld [vmem:[#allocation7 + $0x2e8] sm:$0xff]
        %v1615 = vld [vmem:[#allocation7 + $0x2f0] sm:$0xff]
        %v1616 = vld [vmem:[#allocation7 + $0x2f8] sm:$0xff]
        %v1617 = vld [vmem:[#allocation7 + $0x300] sm:$0xff]
        %v1618 = vld [vmem:[#allocation7 + $0x308] sm:$0xff]
        %v1619 = vld [vmem:[#allocation7 + $0x310] sm:$0xff]
        %v1620 = vld [vmem:[#allocation7 + $0x318] sm:$0xff]
        %v1621 = vld [vmem:[#allocation7 + $0x320] sm:$0xff]
        %v1622 = vld [vmem:[#allocation7 + $0x328] sm:$0xff]
        %v1623 = vld [vmem:[#allocation7 + $0x330] sm:$0xff]
        %v1624 = vld [vmem:[#allocation7 + $0x338] sm:$0xff]
        %v1625 = vld [vmem:[#allocation7 + $0x340] sm:$0xff]
        %v1626 = vld [vmem:[#allocation7 + $0x348] sm:$0xff]
        %v1627 = vld [vmem:[#allocation7 + $0x350] sm:$0xff]
        %v1628 = vld [vmem:[#allocation7 + $0x358] sm:$0xff]
        %v1629 = vld [vmem:[#allocation7 + $0x360] sm:$0xff]
        %v1630 = vld [vmem:[#allocation7 + $0x368] sm:$0xff]
        %v1631 = vld [vmem:[#allocation7 + $0x370] sm:$0xff]
        %v1632 = vld [vmem:[#allocation7 + $0x378] sm:$0xff]
        %v1633 = vld [vmem:[#allocation7 + $0x380] sm:$0xff]
        %v1634 = vld [vmem:[#allocation7 + $0x388] sm:$0xff]
        %v1635 = vld [vmem:[#allocation7 + $0x390] sm:$0xff]
        %v1636 = vld [vmem:[#allocation7 + $0x398] sm:$0xff]
        %v1637 = vld [vmem:[#allocation7 + $0x3a0] sm:$0xff]
        %v1638 = vld [vmem:[#allocation7 + $0x3a8] sm:$0xff]
        %v1639 = vld [vmem:[#allocation7 + $0x3b0] sm:$0xff]
        %v1640 = vld [vmem:[#allocation7 + $0x3b8] sm:$0xff]
        %v1641 = vld [vmem:[#allocation7 + $0x3c0] sm:$0xff]
        %v1642 = vld [vmem:[#allocation7 + $0x3c8] sm:$0xff]
        %v1643 = vld [vmem:[#allocation7 + $0x3d0] sm:$0xff]
        %v1644 = vld [vmem:[#allocation7 + $0x3d8] sm:$0xff]
        %v1645 = vld [vmem:[#allocation7 + $0x3e0] sm:$0xff]
        %v1646 = vld [vmem:[#allocation7 + $0x3e8] sm:$0xff]
        %v1647 = vld [vmem:[#allocation7 + $0x3f0] sm:$0xff]
        %v1648 = vld [vmem:[#allocation7 + $0x3f8] sm:$0xff]
        %v1649 = vunpack.c.l.s8.bf16 %v1521
        %v1650 = vunpack.c.l.s8.bf16 %v1522
        %v1651 = vunpack.c.l.s8.bf16 %v1523
        %v1652 = vunpack.c.l.s8.bf16 %v1524
        %v1653 = vunpack.c.l.s8.bf16 %v1525
        %v1654 = vunpack.c.l.s8.bf16 %v1526
        %v1655 = vunpack.c.l.s8.bf16 %v1527
        %v1656 = vunpack.c.l.s8.bf16 %v1528
        %v1657 = vunpack.c.l.s8.bf16 %v1529
        %v1658 = vunpack.c.l.s8.bf16 %v1530
        %v1659 = vunpack.c.l.s8.bf16 %v1531
        %v1660 = vunpack.c.l.s8.bf16 %v1532
        %v1661 = vunpack.c.l.s8.bf16 %v1533
        %v1662 = vunpack.c.l.s8.bf16 %v1534
        %v1663 = vunpack.c.l.s8.bf16 %v1535
        %v1664 = vunpack.c.l.s8.bf16 %v1536
        %v1665 = vunpack.c.l.s8.bf16 %v1537
        %v1666 = vunpack.c.l.s8.bf16 %v1538
        %v1667 = vunpack.c.l.s8.bf16 %v1539
        %v1668 = vunpack.c.l.s8.bf16 %v1540
        %v1669 = vunpack.c.l.s8.bf16 %v1541
        %v1670 = vunpack.c.l.s8.bf16 %v1542
        %v1671 = vunpack.c.l.s8.bf16 %v1543
        %v1672 = vunpack.c.l.s8.bf16 %v1544
        %v1673 = vunpack.c.l.s8.bf16 %v1545
        %v1674 = vunpack.c.l.s8.bf16 %v1546
        %v1675 = vunpack.c.l.s8.bf16 %v1547
        %v1676 = vunpack.c.l.s8.bf16 %v1548
        %v1677 = vunpack.c.l.s8.bf16 %v1549
        %v1678 = vunpack.c.l.s8.bf16 %v1550
        %v1679 = vunpack.c.l.s8.bf16 %v1551
        %v1680 = vunpack.c.l.s8.bf16 %v1552
        %v1681 = vunpack.c.h.s8.bf16 %v1521
        %v1682 = vunpack.c.h.s8.bf16 %v1522
        %v1683 = vunpack.c.h.s8.bf16 %v1523
        %v1684 = vunpack.c.h.s8.bf16 %v1524
        %v1685 = vunpack.c.h.s8.bf16 %v1525
        %v1686 = vunpack.c.h.s8.bf16 %v1526
        %v1687 = vunpack.c.h.s8.bf16 %v1527
        %v1688 = vunpack.c.h.s8.bf16 %v1528
        %v1689 = vunpack.c.h.s8.bf16 %v1529
        %v1690 = vunpack.c.h.s8.bf16 %v1530
        %v1691 = vunpack.c.h.s8.bf16 %v1531
        %v1692 = vunpack.c.h.s8.bf16 %v1532
        %v1693 = vunpack.c.h.s8.bf16 %v1533
        %v1694 = vunpack.c.h.s8.bf16 %v1534
        %v1695 = vunpack.c.h.s8.bf16 %v1535
        %v1696 = vunpack.c.h.s8.bf16 %v1536
        %v1697 = vunpack.c.h.s8.bf16 %v1537
        %v1698 = vunpack.c.h.s8.bf16 %v1538
        %v1699 = vunpack.c.h.s8.bf16 %v1539
        %v1700 = vunpack.c.h.s8.bf16 %v1540
        %v1701 = vunpack.c.h.s8.bf16 %v1541
        %v1702 = vunpack.c.h.s8.bf16 %v1542
        %v1703 = vunpack.c.h.s8.bf16 %v1543
        %v1704 = vunpack.c.h.s8.bf16 %v1544
        %v1705 = vunpack.c.h.s8.bf16 %v1545
        %v1706 = vunpack.c.h.s8.bf16 %v1546
        %v1707 = vunpack.c.h.s8.bf16 %v1547
        %v1708 = vunpack.c.h.s8.bf16 %v1548
        %v1709 = vunpack.c.h.s8.bf16 %v1549
        %v1710 = vunpack.c.h.s8.bf16 %v1550
        %v1711 = vunpack.c.h.s8.bf16 %v1551
        %v1712 = vunpack.c.h.s8.bf16 %v1552
        %v1713 = vunpack.c.l.s8.bf16 %v1553
        %v1714 = vunpack.c.l.s8.bf16 %v1554
        %v1715 = vunpack.c.l.s8.bf16 %v1555
        %v1716 = vunpack.c.l.s8.bf16 %v1556
        %v1717 = vunpack.c.l.s8.bf16 %v1557
        %v1718 = vunpack.c.l.s8.bf16 %v1558
        %v1719 = vunpack.c.l.s8.bf16 %v1559
        %v1720 = vunpack.c.l.s8.bf16 %v1560
        %v1721 = vunpack.c.l.s8.bf16 %v1561
        %v1722 = vunpack.c.l.s8.bf16 %v1562
        %v1723 = vunpack.c.l.s8.bf16 %v1563
        %v1724 = vunpack.c.l.s8.bf16 %v1564
        %v1725 = vunpack.c.l.s8.bf16 %v1565
        %v1726 = vunpack.c.l.s8.bf16 %v1566
        %v1727 = vunpack.c.l.s8.bf16 %v1567
        %v1728 = vunpack.c.l.s8.bf16 %v1568
        %v1729 = vunpack.c.l.s8.bf16 %v1569
        %v1730 = vunpack.c.l.s8.bf16 %v1570
        %v1731 = vunpack.c.l.s8.bf16 %v1571
        %v1732 = vunpack.c.l.s8.bf16 %v1572
        %v1733 = vunpack.c.l.s8.bf16 %v1573
        %v1734 = vunpack.c.l.s8.bf16 %v1574
        %v1735 = vunpack.c.l.s8.bf16 %v1575
        %v1736 = vunpack.c.l.s8.bf16 %v1576
        %v1737 = vunpack.c.l.s8.bf16 %v1577
        %v1738 = vunpack.c.l.s8.bf16 %v1578
        %v1739 = vunpack.c.l.s8.bf16 %v1579
        %v1740 = vunpack.c.l.s8.bf16 %v1580
        %v1741 = vunpack.c.l.s8.bf16 %v1581
        %v1742 = vunpack.c.l.s8.bf16 %v1582
        %v1743 = vunpack.c.l.s8.bf16 %v1583
        %v1744 = vunpack.c.l.s8.bf16 %v1584
        %v1745 = vunpack.c.h.s8.bf16 %v1553
        %v1746 = vunpack.c.h.s8.bf16 %v1554
        %v1747 = vunpack.c.h.s8.bf16 %v1555
        %v1748 = vunpack.c.h.s8.bf16 %v1556
        %v1749 = vunpack.c.h.s8.bf16 %v1557
        %v1750 = vunpack.c.h.s8.bf16 %v1558
        %v1751 = vunpack.c.h.s8.bf16 %v1559
        %v1752 = vunpack.c.h.s8.bf16 %v1560
        %v1753 = vunpack.c.h.s8.bf16 %v1561
        %v1754 = vunpack.c.h.s8.bf16 %v1562
        %v1755 = vunpack.c.h.s8.bf16 %v1563
        %v1756 = vunpack.c.h.s8.bf16 %v1564
        %v1757 = vunpack.c.h.s8.bf16 %v1565
        %v1758 = vunpack.c.h.s8.bf16 %v1566
        %v1759 = vunpack.c.h.s8.bf16 %v1567
        %v1760 = vunpack.c.h.s8.bf16 %v1568
        %v1761 = vunpack.c.h.s8.bf16 %v1569
        %v1762 = vunpack.c.h.s8.bf16 %v1570
        %v1763 = vunpack.c.h.s8.bf16 %v1571
        %v1764 = vunpack.c.h.s8.bf16 %v1572
        %v1765 = vunpack.c.h.s8.bf16 %v1573
        %v1766 = vunpack.c.h.s8.bf16 %v1574
        %v1767 = vunpack.c.h.s8.bf16 %v1575
        %v1768 = vunpack.c.h.s8.bf16 %v1576
        %v1769 = vunpack.c.h.s8.bf16 %v1577
        %v1770 = vunpack.c.h.s8.bf16 %v1578
        %v1771 = vunpack.c.h.s8.bf16 %v1579
        %v1772 = vunpack.c.h.s8.bf16 %v1580
        %v1773 = vunpack.c.h.s8.bf16 %v1581
        %v1774 = vunpack.c.h.s8.bf16 %v1582
        %v1775 = vunpack.c.h.s8.bf16 %v1583
        %v1776 = vunpack.c.h.s8.bf16 %v1584
        %v1777 = vunpack.c.l.s8.bf16 %v1585
        %v1778 = vunpack.c.l.s8.bf16 %v1586
        %v1779 = vunpack.c.l.s8.bf16 %v1587
        %v1780 = vunpack.c.l.s8.bf16 %v1588
        %v1781 = vunpack.c.l.s8.bf16 %v1589
        %v1782 = vunpack.c.l.s8.bf16 %v1590
        %v1783 = vunpack.c.l.s8.bf16 %v1591
        %v1784 = vunpack.c.l.s8.bf16 %v1592
        %v1785 = vunpack.c.l.s8.bf16 %v1593
        %v1786 = vunpack.c.l.s8.bf16 %v1594
        %v1787 = vunpack.c.l.s8.bf16 %v1595
        %v1788 = vunpack.c.l.s8.bf16 %v1596
        %v1789 = vunpack.c.l.s8.bf16 %v1597
        %v1790 = vunpack.c.l.s8.bf16 %v1598
        %v1791 = vunpack.c.l.s8.bf16 %v1599
        %v1792 = vunpack.c.l.s8.bf16 %v1600
        %v1793 = vunpack.c.l.s8.bf16 %v1601
        %v1794 = vunpack.c.l.s8.bf16 %v1602
        %v1795 = vunpack.c.l.s8.bf16 %v1603
        %v1796 = vunpack.c.l.s8.bf16 %v1604
        %v1797 = vunpack.c.l.s8.bf16 %v1605
        %v1798 = vunpack.c.l.s8.bf16 %v1606
        %v1799 = vunpack.c.l.s8.bf16 %v1607
        %v1800 = vunpack.c.l.s8.bf16 %v1608
        %v1801 = vunpack.c.l.s8.bf16 %v1609
        %v1802 = vunpack.c.l.s8.bf16 %v1610
        %v1803 = vunpack.c.l.s8.bf16 %v1611
        %v1804 = vunpack.c.l.s8.bf16 %v1612
        %v1805 = vunpack.c.l.s8.bf16 %v1613
        %v1806 = vunpack.c.l.s8.bf16 %v1614
        %v1807 = vunpack.c.l.s8.bf16 %v1615
        %v1808 = vunpack.c.l.s8.bf16 %v1616
        %v1809 = vunpack.c.h.s8.bf16 %v1585
        %v1810 = vunpack.c.h.s8.bf16 %v1586
        %v1811 = vunpack.c.h.s8.bf16 %v1587
        %v1812 = vunpack.c.h.s8.bf16 %v1588
        %v1813 = vunpack.c.h.s8.bf16 %v1589
        %v1814 = vunpack.c.h.s8.bf16 %v1590
        %v1815 = vunpack.c.h.s8.bf16 %v1591
        %v1816 = vunpack.c.h.s8.bf16 %v1592
        %v1817 = vunpack.c.h.s8.bf16 %v1593
        %v1818 = vunpack.c.h.s8.bf16 %v1594
        %v1819 = vunpack.c.h.s8.bf16 %v1595
        %v1820 = vunpack.c.h.s8.bf16 %v1596
        %v1821 = vunpack.c.h.s8.bf16 %v1597
        %v1822 = vunpack.c.h.s8.bf16 %v1598
        %v1823 = vunpack.c.h.s8.bf16 %v1599
        %v1824 = vunpack.c.h.s8.bf16 %v1600
        %v1825 = vunpack.c.h.s8.bf16 %v1601
        %v1826 = vunpack.c.h.s8.bf16 %v1602
        %v1827 = vunpack.c.h.s8.bf16 %v1603
        %v1828 = vunpack.c.h.s8.bf16 %v1604
        %v1829 = vunpack.c.h.s8.bf16 %v1605
        %v1830 = vunpack.c.h.s8.bf16 %v1606
        %v1831 = vunpack.c.h.s8.bf16 %v1607
        %v1832 = vunpack.c.h.s8.bf16 %v1608
        %v1833 = vunpack.c.h.s8.bf16 %v1609
        %v1834 = vunpack.c.h.s8.bf16 %v1610
        %v1835 = vunpack.c.h.s8.bf16 %v1611
        %v1836 = vunpack.c.h.s8.bf16 %v1612
        %v1837 = vunpack.c.h.s8.bf16 %v1613
        %v1838 = vunpack.c.h.s8.bf16 %v1614
        %v1839 = vunpack.c.h.s8.bf16 %v1615
        %v1840 = vunpack.c.h.s8.bf16 %v1616
        %v1841 = vunpack.c.l.s8.bf16 %v1617
        %v1842 = vunpack.c.l.s8.bf16 %v1618
        %v1843 = vunpack.c.l.s8.bf16 %v1619
        %v1844 = vunpack.c.l.s8.bf16 %v1620
        %v1845 = vunpack.c.l.s8.bf16 %v1621
        %v1846 = vunpack.c.l.s8.bf16 %v1622
        %v1847 = vunpack.c.l.s8.bf16 %v1623
        %v1848 = vunpack.c.l.s8.bf16 %v1624
        %v1849 = vunpack.c.l.s8.bf16 %v1625
        %v1850 = vunpack.c.l.s8.bf16 %v1626
        %v1851 = vunpack.c.l.s8.bf16 %v1627
        %v1852 = vunpack.c.l.s8.bf16 %v1628
        %v1853 = vunpack.c.l.s8.bf16 %v1629
        %v1854 = vunpack.c.l.s8.bf16 %v1630
        %v1855 = vunpack.c.l.s8.bf16 %v1631
        %v1856 = vunpack.c.l.s8.bf16 %v1632
        %v1857 = vunpack.c.l.s8.bf16 %v1633
        %v1858 = vunpack.c.l.s8.bf16 %v1634
        %v1859 = vunpack.c.l.s8.bf16 %v1635
        %v1860 = vunpack.c.l.s8.bf16 %v1636
        %v1861 = vunpack.c.l.s8.bf16 %v1637
        %v1862 = vunpack.c.l.s8.bf16 %v1638
        %v1863 = vunpack.c.l.s8.bf16 %v1639
        %v1864 = vunpack.c.l.s8.bf16 %v1640
        %v1865 = vunpack.c.l.s8.bf16 %v1641
        %v1866 = vunpack.c.l.s8.bf16 %v1642
        %v1867 = vunpack.c.l.s8.bf16 %v1643
        %v1868 = vunpack.c.l.s8.bf16 %v1644
        %v1869 = vunpack.c.l.s8.bf16 %v1645
        %v1870 = vunpack.c.l.s8.bf16 %v1646
        %v1871 = vunpack.c.l.s8.bf16 %v1647
        %v1872 = vunpack.c.l.s8.bf16 %v1648
        %v1873 = vunpack.c.h.s8.bf16 %v1617
        %v1874 = vunpack.c.h.s8.bf16 %v1618
        %v1875 = vunpack.c.h.s8.bf16 %v1619
        %v1876 = vunpack.c.h.s8.bf16 %v1620
        %v1877 = vunpack.c.h.s8.bf16 %v1621
        %v1878 = vunpack.c.h.s8.bf16 %v1622
        %v1879 = vunpack.c.h.s8.bf16 %v1623
        %v1880 = vunpack.c.h.s8.bf16 %v1624
        %v1881 = vunpack.c.h.s8.bf16 %v1625
        %v1882 = vunpack.c.h.s8.bf16 %v1626
        %v1883 = vunpack.c.h.s8.bf16 %v1627
        %v1884 = vunpack.c.h.s8.bf16 %v1628
        %v1885 = vunpack.c.h.s8.bf16 %v1629
        %v1886 = vunpack.c.h.s8.bf16 %v1630
        %v1887 = vunpack.c.h.s8.bf16 %v1631
        %v1888 = vunpack.c.h.s8.bf16 %v1632
        %v1889 = vunpack.c.h.s8.bf16 %v1633
        %v1890 = vunpack.c.h.s8.bf16 %v1634
        %v1891 = vunpack.c.h.s8.bf16 %v1635
        %v1892 = vunpack.c.h.s8.bf16 %v1636
        %v1893 = vunpack.c.h.s8.bf16 %v1637
        %v1894 = vunpack.c.h.s8.bf16 %v1638
        %v1895 = vunpack.c.h.s8.bf16 %v1639
        %v1896 = vunpack.c.h.s8.bf16 %v1640
        %v1897 = vunpack.c.h.s8.bf16 %v1641
        %v1898 = vunpack.c.h.s8.bf16 %v1642
        %v1899 = vunpack.c.h.s8.bf16 %v1643
        %v1900 = vunpack.c.h.s8.bf16 %v1644
        %v1901 = vunpack.c.h.s8.bf16 %v1645
        %v1902 = vunpack.c.h.s8.bf16 %v1646
        %v1903 = vunpack.c.h.s8.bf16 %v1647
        %v1904 = vunpack.c.h.s8.bf16 %v1648
        %v1905 = vpack.c.bf16 %v1520, %v1520
        %1906 = vmatprep.subr.bf16.mxu0 %v1650
        %1907 = vmatpush1.bf16.msra.mxu0 %v1649
        %1908 = vmatprep.subr.bf16.mxu0 %v1682
        %1909 = vmatpush1.bf16.msra.mxu0 %v1681
        %1910 = vmatprep.subr.bf16.mxu0 %v1714
        %1911 = vmatpush1.bf16.msra.mxu0 %v1713
        %1912 = vmatprep.subr.bf16.mxu0 %v1746
        %1913 = vmatpush1.bf16.msra.mxu0 %v1745
        %1914 = vmatprep.subr.bf16.mxu0 %v1778
        %1915 = vmatpush1.bf16.msra.mxu0 %v1777
        %1916 = vmatprep.subr.bf16.mxu0 %v1810
        %1917 = vmatpush1.bf16.msra.mxu0 %v1809
        %1918 = vmatprep.subr.bf16.mxu0 %v1842
        %1919 = vmatpush1.bf16.msra.mxu0 %v1841
        %1920 = vmatprep.subr.bf16.mxu0 %v1874
        %1921 = vmatpush1.bf16.msra.mxu0 %v1873
        %1922 = vmatprep.subr.bf16.mxu0 0
        %1923 = vmatpush1.bf16.msra.mxu0 0
        %1924 = vmatprep.subr.bf16.mxu0 0
        %1925 = vmatpush1.bf16.msra.mxu0 0
        %1926 = vmatprep.subr.bf16.mxu0 0
        %1927 = vmatpush1.bf16.msra.mxu0 0
        %1928 = vmatprep.subr.bf16.mxu0 0
        %1929 = vmatpush1.bf16.msra.mxu0 0
        %1930 = vmatprep.subr.bf16.mxu0 0
        %1931 = vmatpush1.bf16.msra.mxu0 0
        %1932 = vmatprep.subr.bf16.mxu0 0
        %1933 = vmatpush1.bf16.msra.mxu0 0
        %1934 = vmatprep.subr.bf16.mxu0 0
        %1935 = vmatpush1.bf16.msra.mxu0 0
        %1936 = vmatprep.subr.bf16.mxu0 0
        %1937 = vmatpush1.bf16.msra.mxu0 0
        %1938 = vmatprep.mubr.bf16.mxu0 0
        %1939 = vmatmul.mubr.bf16.gmra.mrb[0].mxu0 %v1905
        %v1940 = vpop.f32.mrb[0].mxu0
        %v1941 = vadd.f32 0.0, %v1940
        %v1942 = vpop.f32.mrb[0].mxu0
        %v1943 = vadd.f32 0.0, %v1942
        %v1944 = vpop.f32.mrb[0].mxu0
        %v1945 = vpop.f32.mrb[0].mxu0
        %1946 = vdwg.mxu0
        %1947 = vmatprep.subr.bf16.mxu0 %v1652
        %1948 = vmatpush1.bf16.msra.mxu0 %v1651
        %1949 = vmatprep.subr.bf16.mxu0 %v1684
        %1950 = vmatpush1.bf16.msra.mxu0 %v1683
        %1951 = vmatprep.subr.bf16.mxu0 %v1716
        %1952 = vmatpush1.bf16.msra.mxu0 %v1715
        %1953 = vmatprep.subr.bf16.mxu0 %v1748
        %1954 = vmatpush1.bf16.msra.mxu0 %v1747
        %1955 = vmatprep.subr.bf16.mxu0 %v1780
        %1956 = vmatpush1.bf16.msra.mxu0 %v1779
        %1957 = vmatprep.subr.bf16.mxu0 %v1812
        %1958 = vmatpush1.bf16.msra.mxu0 %v1811
        %1959 = vmatprep.subr.bf16.mxu0 %v1844
        %1960 = vmatpush1.bf16.msra.mxu0 %v1843
        %1961 = vmatprep.subr.bf16.mxu0 %v1876
        %1962 = vmatpush1.bf16.msra.mxu0 %v1875
        %1963 = vmatprep.subr.bf16.mxu0 0
        %1964 = vmatpush1.bf16.msra.mxu0 0
        %1965 = vmatprep.subr.bf16.mxu0 0
        %1966 = vmatpush1.bf16.msra.mxu0 0
        %1967 = vmatprep.subr.bf16.mxu0 0
        %1968 = vmatpush1.bf16.msra.mxu0 0
        %1969 = vmatprep.subr.bf16.mxu0 0
        %1970 = vmatpush1.bf16.msra.mxu0 0
        %1971 = vmatprep.subr.bf16.mxu0 0
        %1972 = vmatpush1.bf16.msra.mxu0 0
        %1973 = vmatprep.subr.bf16.mxu0 0
        %1974 = vmatpush1.bf16.msra.mxu0 0
        %1975 = vmatprep.subr.bf16.mxu0 0
        %1976 = vmatpush1.bf16.msra.mxu0 0
        %1977 = vmatprep.subr.bf16.mxu0 0
        %1978 = vmatpush1.bf16.msra.mxu0 0
        %1979 = vmatprep.mubr.bf16.mxu0 0
        %1980 = vmatmul.mubr.bf16.gmra.mrb[0].mxu0 %v1905
        %v1981 = vpop.f32.mrb[0].mxu0
        %v1982 = vadd.f32 0.0, %v1981
        %v1983 = vpop.f32.mrb[0].mxu0
        %v1984 = vadd.f32 0.0, %v1983
        %v1985 = vpop.f32.mrb[0].mxu0
        %v1986 = vpop.f32.mrb[0].mxu0
        %1987 = vdwg.mxu0
        %1988 = vmatprep.subr.bf16.mxu0 %v1654
        %1989 = vmatpush1.bf16.msra.mxu0 %v1653
        %1990 = vmatprep.subr.bf16.mxu0 %v1686
        %1991 = vmatpush1.bf16.msra.mxu0 %v1685
        %1992 = vmatprep.subr.bf16.mxu0 %v1718
        %1993 = vmatpush1.bf16.msra.mxu0 %v1717
        %1994 = vmatprep.subr.bf16.mxu0 %v1750
        %1995 = vmatpush1.bf16.msra.mxu0 %v1749
        %1996 = vmatprep.subr.bf16.mxu0 %v1782
        %1997 = vmatpush1.bf16.msra.mxu0 %v1781
        %1998 = vmatprep.subr.bf16.mxu0 %v1814
        %1999 = vmatpush1.bf16.msra.mxu0 %v1813
        %2000 = vmatprep.subr.bf16.mxu0 %v1846
        %2001 = vmatpush1.bf16.msra.mxu0 %v1845
        %2002 = vmatprep.subr.bf16.mxu0 %v1878
        %2003 = vmatpush1.bf16.msra.mxu0 %v1877
        %2004 = vmatprep.subr.bf16.mxu0 0
        %2005 = vmatpush1.bf16.msra.mxu0 0
        %2006 = vmatprep.subr.bf16.mxu0 0
        %2007 = vmatpush1.bf16.msra.mxu0 0
        %2008 = vmatprep.subr.bf16.mxu0 0
        %2009 = vmatpush1.bf16.msra.mxu0 0
        %2010 = vmatprep.subr.bf16.mxu0 0
        %2011 = vmatpush1.bf16.msra.mxu0 0
        %2012 = vmatprep.subr.bf16.mxu0 0
        %2013 = vmatpush1.bf16.msra.mxu0 0
        %2014 = vmatprep.subr.bf16.mxu0 0
        %2015 = vmatpush1.bf16.msra.mxu0 0
        %2016 = vmatprep.subr.bf16.mxu0 0
        %2017 = vmatpush1.bf16.msra.mxu0 0
        %2018 = vmatprep.subr.bf16.mxu0 0
        %2019 = vmatpush1.bf16.msra.mxu0 0
        %2020 = vmatprep.mubr.bf16.mxu0 0
        %2021 = vmatmul.mubr.bf16.gmra.mrb[0].mxu0 %v1905
        %v2022 = vpop.f32.mrb[0].mxu0
        %v2023 = vadd.f32 0.0, %v2022
        %v2024 = vpop.f32.mrb[0].mxu0
        %v2025 = vadd.f32 0.0, %v2024
        %v2026 = vpop.f32.mrb[0].mxu0
        %v2027 = vpop.f32.mrb[0].mxu0
        %2028 = vdwg.mxu0
        %2029 = vmatprep.subr.bf16.mxu0 %v1656
        %2030 = vmatpush1.bf16.msra.mxu0 %v1655
        %2031 = vmatprep.subr.bf16.mxu0 %v1688
        %2032 = vmatpush1.bf16.msra.mxu0 %v1687
        %2033 = vmatprep.subr.bf16.mxu0 %v1720
        %2034 = vmatpush1.bf16.msra.mxu0 %v1719
        %2035 = vmatprep.subr.bf16.mxu0 %v1752
        %2036 = vmatpush1.bf16.msra.mxu0 %v1751
        %2037 = vmatprep.subr.bf16.mxu0 %v1784
        %2038 = vmatpush1.bf16.msra.mxu0 %v1783
        %2039 = vmatprep.subr.bf16.mxu0 %v1816
        %2040 = vmatpush1.bf16.msra.mxu0 %v1815
        %2041 = vmatprep.subr.bf16.mxu0 %v1848
        %2042 = vmatpush1.bf16.msra.mxu0 %v1847
        %2043 = vmatprep.subr.bf16.mxu0 %v1880
        %2044 = vmatpush1.bf16.msra.mxu0 %v1879
        %2045 = vmatprep.subr.bf16.mxu0 0
        %2046 = vmatpush1.bf16.msra.mxu0 0
        %2047 = vmatprep.subr.bf16.mxu0 0
        %2048 = vmatpush1.bf16.msra.mxu0 0
        %2049 = vmatprep.subr.bf16.mxu0 0
        %2050 = vmatpush1.bf16.msra.mxu0 0
        %2051 = vmatprep.subr.bf16.mxu0 0
        %2052 = vmatpush1.bf16.msra.mxu0 0
        %2053 = vmatprep.subr.bf16.mxu0 0
        %2054 = vmatpush1.bf16.msra.mxu0 0
        %2055 = vmatprep.subr.bf16.mxu0 0
        %2056 = vmatpush1.bf16.msra.mxu0 0
        %2057 = vmatprep.subr.bf16.mxu0 0
        %2058 = vmatpush1.bf16.msra.mxu0 0
        %2059 = vmatprep.subr.bf16.mxu0 0
        %2060 = vmatpush1.bf16.msra.mxu0 0
        %2061 = vmatprep.mubr.bf16.mxu0 0
        %2062 = vmatmul.mubr.bf16.gmra.mrb[0].mxu0 %v1905
        %v2063 = vpop.f32.mrb[0].mxu0
        %v2064 = vadd.f32 0.0, %v2063
        %v2065 = vpop.f32.mrb[0].mxu0
        %v2066 = vadd.f32 0.0, %v2065
        %v2067 = vpop.f32.mrb[0].mxu0
        %v2068 = vpop.f32.mrb[0].mxu0
        %2069 = vdwg.mxu0
        %2070 = vmatprep.subr.bf16.mxu0 %v1658
        %2071 = vmatpush1.bf16.msra.mxu0 %v1657
        %2072 = vmatprep.subr.bf16.mxu0 %v1690
        %2073 = vmatpush1.bf16.msra.mxu0 %v1689
        %2074 = vmatprep.subr.bf16.mxu0 %v1722
        %2075 = vmatpush1.bf16.msra.mxu0 %v1721
        %2076 = vmatprep.subr.bf16.mxu0 %v1754
        %2077 = vmatpush1.bf16.msra.mxu0 %v1753
        %2078 = vmatprep.subr.bf16.mxu0 %v1786
        %2079 = vmatpush1.bf16.msra.mxu0 %v1785
        %2080 = vmatprep.subr.bf16.mxu0 %v1818
        %2081 = vmatpush1.bf16.msra.mxu0 %v1817
        %2082 = vmatprep.subr.bf16.mxu0 %v1850
        %2083 = vmatpush1.bf16.msra.mxu0 %v1849
        %2084 = vmatprep.subr.bf16.mxu0 %v1882
        %2085 = vmatpush1.bf16.msra.mxu0 %v1881
        %2086 = vmatprep.subr.bf16.mxu0 0
        %2087 = vmatpush1.bf16.msra.mxu0 0
        %2088 = vmatprep.subr.bf16.mxu0 0
        %2089 = vmatpush1.bf16.msra.mxu0 0
        %2090 = vmatprep.subr.bf16.mxu0 0
        %2091 = vmatpush1.bf16.msra.mxu0 0
        %2092 = vmatprep.subr.bf16.mxu0 0
        %2093 = vmatpush1.bf16.msra.mxu0 0
        %2094 = vmatprep.subr.bf16.mxu0 0
        %2095 = vmatpush1.bf16.msra.mxu0 0
        %2096 = vmatprep.subr.bf16.mxu0 0
        %2097 = vmatpush1.bf16.msra.mxu0 0
        %2098 = vmatprep.subr.bf16.mxu0 0
        %2099 = vmatpush1.bf16.msra.mxu0 0
        %2100 = vmatprep.subr.bf16.mxu0 0
        %2101 = vmatpush1.bf16.msra.mxu0 0
        %2102 = vmatprep.mubr.bf16.mxu0 0
        %2103 = vmatmul.mubr.bf16.gmra.mrb[0].mxu0 %v1905
        %v2104 = vpop.f32.mrb[0].mxu0
        %v2105 = vadd.f32 0.0, %v2104
        %v2106 = vpop.f32.mrb[0].mxu0
        %v2107 = vadd.f32 0.0, %v2106
        %v2108 = vpop.f32.mrb[0].mxu0
        %v2109 = vpop.f32.mrb[0].mxu0
        %2110 = vdwg.mxu0
        %2111 = vmatprep.subr.bf16.mxu0 %v1660
        %2112 = vmatpush1.bf16.msra.mxu0 %v1659
        %2113 = vmatprep.subr.bf16.mxu0 %v1692
        %2114 = vmatpush1.bf16.msra.mxu0 %v1691
        %2115 = vmatprep.subr.bf16.mxu0 %v1724
        %2116 = vmatpush1.bf16.msra.mxu0 %v1723
        %2117 = vmatprep.subr.bf16.mxu0 %v1756
        %2118 = vmatpush1.bf16.msra.mxu0 %v1755
        %2119 = vmatprep.subr.bf16.mxu0 %v1788
        %2120 = vmatpush1.bf16.msra.mxu0 %v1787
        %2121 = vmatprep.subr.bf16.mxu0 %v1820
        %2122 = vmatpush1.bf16.msra.mxu0 %v1819
        %2123 = vmatprep.subr.bf16.mxu0 %v1852
        %2124 = vmatpush1.bf16.msra.mxu0 %v1851
        %2125 = vmatprep.subr.bf16.mxu0 %v1884
        %2126 = vmatpush1.bf16.msra.mxu0 %v1883
        %2127 = vmatprep.subr.bf16.mxu0 0
        %2128 = vmatpush1.bf16.msra.mxu0 0
        %2129 = vmatprep.subr.bf16.mxu0 0
        %2130 = vmatpush1.bf16.msra.mxu0 0
        %2131 = vmatprep.subr.bf16.mxu0 0
        %2132 = vmatpush1.bf16.msra.mxu0 0
        %2133 = vmatprep.subr.bf16.mxu0 0
        %2134 = vmatpush1.bf16.msra.mxu0 0
        %2135 = vmatprep.subr.bf16.mxu0 0
        %2136 = vmatpush1.bf16.msra.mxu0 0
        %2137 = vmatprep.subr.bf16.mxu0 0
        %2138 = vmatpush1.bf16.msra.mxu0 0
        %2139 = vmatprep.subr.bf16.mxu0 0
        %2140 = vmatpush1.bf16.msra.mxu0 0
        %2141 = vmatprep.subr.bf16.mxu0 0
        %2142 = vmatpush1.bf16.msra.mxu0 0
        %2143 = vmatprep.mubr.bf16.mxu0 0
        %2144 = vmatmul.mubr.bf16.gmra.mrb[0].mxu0 %v1905
        %v2145 = vpop.f32.mrb[0].mxu0
        %v2146 = vadd.f32 0.0, %v2145
        %v2147 = vpop.f32.mrb[0].mxu0
        %v2148 = vadd.f32 0.0, %v2147
        %v2149 = vpop.f32.mrb[0].mxu0
        %v2150 = vpop.f32.mrb[0].mxu0
        %2151 = vdwg.mxu0
        %2152 = vmatprep.subr.bf16.mxu0 %v1662
        %2153 = vmatpush1.bf16.msra.mxu0 %v1661
        %2154 = vmatprep.subr.bf16.mxu0 %v1694
        %2155 = vmatpush1.bf16.msra.mxu0 %v1693
        %2156 = vmatprep.subr.bf16.mxu0 %v1726
        %2157 = vmatpush1.bf16.msra.mxu0 %v1725
        %2158 = vmatprep.subr.bf16.mxu0 %v1758
        %2159 = vmatpush1.bf16.msra.mxu0 %v1757
        %2160 = vmatprep.subr.bf16.mxu0 %v1790
        %2161 = vmatpush1.bf16.msra.mxu0 %v1789
        %2162 = vmatprep.subr.bf16.mxu0 %v1822
        %2163 = vmatpush1.bf16.msra.mxu0 %v1821
        %2164 = vmatprep.subr.bf16.mxu0 %v1854
        %2165 = vmatpush1.bf16.msra.mxu0 %v1853
        %2166 = vmatprep.subr.bf16.mxu0 %v1886
        %2167 = vmatpush1.bf16.msra.mxu0 %v1885
        %2168 = vmatprep.subr.bf16.mxu0 0
        %2169 = vmatpush1.bf16.msra.mxu0 0
        %2170 = vmatprep.subr.bf16.mxu0 0
        %2171 = vmatpush1.bf16.msra.mxu0 0
        %2172 = vmatprep.subr.bf16.mxu0 0
        %2173 = vmatpush1.bf16.msra.mxu0 0
        %2174 = vmatprep.subr.bf16.mxu0 0
        %2175 = vmatpush1.bf16.msra.mxu0 0
        %2176 = vmatprep.subr.bf16.mxu0 0
        %2177 = vmatpush1.bf16.msra.mxu0 0
        %2178 = vmatprep.subr.bf16.mxu0 0
        %2179 = vmatpush1.bf16.msra.mxu0 0
        %2180 = vmatprep.subr.bf16.mxu0 0
        %2181 = vmatpush1.bf16.msra.mxu0 0
        %2182 = vmatprep.subr.bf16.mxu0 0
        %2183 = vmatpush1.bf16.msra.mxu0 0
        %2184 = vmatprep.mubr.bf16.mxu0 0
        %2185 = vmatmul.mubr.bf16.gmra.mrb[0].mxu0 %v1905
        %v2186 = vpop.f32.mrb[0].mxu0
        %v2187 = vadd.f32 0.0, %v2186
        %v2188 = vpop.f32.mrb[0].mxu0
        %v2189 = vadd.f32 0.0, %v2188
        %v2190 = vpop.f32.mrb[0].mxu0
        %v2191 = vpop.f32.mrb[0].mxu0
        %2192 = vdwg.mxu0
        %2193 = vmatprep.subr.bf16.mxu0 %v1664
        %2194 = vmatpush1.bf16.msra.mxu0 %v1663
        %2195 = vmatprep.subr.bf16.mxu0 %v1696
        %2196 = vmatpush1.bf16.msra.mxu0 %v1695
        %2197 = vmatprep.subr.bf16.mxu0 %v1728
        %2198 = vmatpush1.bf16.msra.mxu0 %v1727
        %2199 = vmatprep.subr.bf16.mxu0 %v1760
        %2200 = vmatpush1.bf16.msra.mxu0 %v1759
        %2201 = vmatprep.subr.bf16.mxu0 %v1792
        %2202 = vmatpush1.bf16.msra.mxu0 %v1791
        %2203 = vmatprep.subr.bf16.mxu0 %v1824
        %2204 = vmatpush1.bf16.msra.mxu0 %v1823
        %2205 = vmatprep.subr.bf16.mxu0 %v1856
        %2206 = vmatpush1.bf16.msra.mxu0 %v1855
        %2207 = vmatprep.subr.bf16.mxu0 %v1888
        %2208 = vmatpush1.bf16.msra.mxu0 %v1887
        %2209 = vmatprep.subr.bf16.mxu0 0
        %2210 = vmatpush1.bf16.msra.mxu0 0
        %2211 = vmatprep.subr.bf16.mxu0 0
        %2212 = vmatpush1.bf16.msra.mxu0 0
        %2213 = vmatprep.subr.bf16.mxu0 0
        %2214 = vmatpush1.bf16.msra.mxu0 0
        %2215 = vmatprep.subr.bf16.mxu0 0
        %2216 = vmatpush1.bf16.msra.mxu0 0
        %2217 = vmatprep.subr.bf16.mxu0 0
        %2218 = vmatpush1.bf16.msra.mxu0 0
        %2219 = vmatprep.subr.bf16.mxu0 0
        %2220 = vmatpush1.bf16.msra.mxu0 0
        %2221 = vmatprep.subr.bf16.mxu0 0
        %2222 = vmatpush1.bf16.msra.mxu0 0
        %2223 = vmatprep.subr.bf16.mxu0 0
        %2224 = vmatpush1.bf16.msra.mxu0 0
        %2225 = vmatprep.mubr.bf16.mxu0 0
        %2226 = vmatmul.mubr.bf16.gmra.mrb[0].mxu0 %v1905
        %v2227 = vpop.f32.mrb[0].mxu0
        %v2228 = vadd.f32 0.0, %v2227
        %v2229 = vpop.f32.mrb[0].mxu0
        %v2230 = vadd.f32 0.0, %v2229
        %v2231 = vpop.f32.mrb[0].mxu0
        %v2232 = vpop.f32.mrb[0].mxu0
        %2233 = vdwg.mxu0
        %2234 = vmatprep.subr.bf16.mxu0 %v1666
        %2235 = vmatpush1.bf16.msra.mxu0 %v1665
        %2236 = vmatprep.subr.bf16.mxu0 %v1698
        %2237 = vmatpush1.bf16.msra.mxu0 %v1697
        %2238 = vmatprep.subr.bf16.mxu0 %v1730
        %2239 = vmatpush1.bf16.msra.mxu0 %v1729
        %2240 = vmatprep.subr.bf16.mxu0 %v1762
        %2241 = vmatpush1.bf16.msra.mxu0 %v1761
        %2242 = vmatprep.subr.bf16.mxu0 %v1794
        %2243 = vmatpush1.bf16.msra.mxu0 %v1793
        %2244 = vmatprep.subr.bf16.mxu0 %v1826
        %2245 = vmatpush1.bf16.msra.mxu0 %v1825
        %2246 = vmatprep.subr.bf16.mxu0 %v1858
        %2247 = vmatpush1.bf16.msra.mxu0 %v1857
        %2248 = vmatprep.subr.bf16.mxu0 %v1890
        %2249 = vmatpush1.bf16.msra.mxu0 %v1889
        %2250 = vmatprep.subr.bf16.mxu0 0
        %2251 = vmatpush1.bf16.msra.mxu0 0
        %2252 = vmatprep.subr.bf16.mxu0 0
        %2253 = vmatpush1.bf16.msra.mxu0 0
        %2254 = vmatprep.subr.bf16.mxu0 0
        %2255 = vmatpush1.bf16.msra.mxu0 0
        %2256 = vmatprep.subr.bf16.mxu0 0
        %2257 = vmatpush1.bf16.msra.mxu0 0
        %2258 = vmatprep.subr.bf16.mxu0 0
        %2259 = vmatpush1.bf16.msra.mxu0 0
        %2260 = vmatprep.subr.bf16.mxu0 0
        %2261 = vmatpush1.bf16.msra.mxu0 0
        %2262 = vmatprep.subr.bf16.mxu0 0
        %2263 = vmatpush1.bf16.msra.mxu0 0
        %2264 = vmatprep.subr.bf16.mxu0 0
        %2265 = vmatpush1.bf16.msra.mxu0 0
        %2266 = vmatprep.mubr.bf16.mxu0 0
        %2267 = vmatmul.mubr.bf16.gmra.mrb[0].mxu0 %v1905
        %v2268 = vpop.f32.mrb[0].mxu0
        %v2269 = vadd.f32 0.0, %v2268
        %v2270 = vpop.f32.mrb[0].mxu0
        %v2271 = vadd.f32 0.0, %v2270
        %v2272 = vpop.f32.mrb[0].mxu0
        %v2273 = vpop.f32.mrb[0].mxu0
        %2274 = vdwg.mxu0
        %2275 = vmatprep.subr.bf16.mxu0 %v1668
        %2276 = vmatpush1.bf16.msra.mxu0 %v1667
        %2277 = vmatprep.subr.bf16.mxu0 %v1700
        %2278 = vmatpush1.bf16.msra.mxu0 %v1699
        %2279 = vmatprep.subr.bf16.mxu0 %v1732
        %2280 = vmatpush1.bf16.msra.mxu0 %v1731
        %2281 = vmatprep.subr.bf16.mxu0 %v1764
        %2282 = vmatpush1.bf16.msra.mxu0 %v1763
        %2283 = vmatprep.subr.bf16.mxu0 %v1796
        %2284 = vmatpush1.bf16.msra.mxu0 %v1795
        %2285 = vmatprep.subr.bf16.mxu0 %v1828
        %2286 = vmatpush1.bf16.msra.mxu0 %v1827
        %2287 = vmatprep.subr.bf16.mxu0 %v1860
        %2288 = vmatpush1.bf16.msra.mxu0 %v1859
        %2289 = vmatprep.subr.bf16.mxu0 %v1892
        %2290 = vmatpush1.bf16.msra.mxu0 %v1891
        %2291 = vmatprep.subr.bf16.mxu0 0
        %2292 = vmatpush1.bf16.msra.mxu0 0
        %2293 = vmatprep.subr.bf16.mxu0 0
        %2294 = vmatpush1.bf16.msra.mxu0 0
        %2295 = vmatprep.subr.bf16.mxu0 0
        %2296 = vmatpush1.bf16.msra.mxu0 0
        %2297 = vmatprep.subr.bf16.mxu0 0
        %2298 = vmatpush1.bf16.msra.mxu0 0
        %2299 = vmatprep.subr.bf16.mxu0 0
        %2300 = vmatpush1.bf16.msra.mxu0 0
        %2301 = vmatprep.subr.bf16.mxu0 0
        %2302 = vmatpush1.bf16.msra.mxu0 0
        %2303 = vmatprep.subr.bf16.mxu0 0
        %2304 = vmatpush1.bf16.msra.mxu0 0
        %2305 = vmatprep.subr.bf16.mxu0 0
        %2306 = vmatpush1.bf16.msra.mxu0 0
        %2307 = vmatprep.mubr.bf16.mxu0 0
        %2308 = vmatmul.mubr.bf16.gmra.mrb[0].mxu0 %v1905
        %v2309 = vpop.f32.mrb[0].mxu0
        %v2310 = vadd.f32 0.0, %v2309
        %v2311 = vpop.f32.mrb[0].mxu0
        %v2312 = vadd.f32 0.0, %v2311
        %v2313 = vpop.f32.mrb[0].mxu0
        %v2314 = vpop.f32.mrb[0].mxu0
        %2315 = vdwg.mxu0
        %2316 = vmatprep.subr.bf16.mxu0 %v1670
        %2317 = vmatpush1.bf16.msra.mxu0 %v1669
        %2318 = vmatprep.subr.bf16.mxu0 %v1702
        %2319 = vmatpush1.bf16.msra.mxu0 %v1701
        %2320 = vmatprep.subr.bf16.mxu0 %v1734
        %2321 = vmatpush1.bf16.msra.mxu0 %v1733
        %2322 = vmatprep.subr.bf16.mxu0 %v1766
        %2323 = vmatpush1.bf16.msra.mxu0 %v1765
        %2324 = vmatprep.subr.bf16.mxu0 %v1798
        %2325 = vmatpush1.bf16.msra.mxu0 %v1797
        %2326 = vmatprep.subr.bf16.mxu0 %v1830
        %2327 = vmatpush1.bf16.msra.mxu0 %v1829
        %2328 = vmatprep.subr.bf16.mxu0 %v1862
        %2329 = vmatpush1.bf16.msra.mxu0 %v1861
        %2330 = vmatprep.subr.bf16.mxu0 %v1894
        %2331 = vmatpush1.bf16.msra.mxu0 %v1893
        %2332 = vmatprep.subr.bf16.mxu0 0
        %2333 = vmatpush1.bf16.msra.mxu0 0
        %2334 = vmatprep.subr.bf16.mxu0 0
        %2335 = vmatpush1.bf16.msra.mxu0 0
        %2336 = vmatprep.subr.bf16.mxu0 0
        %2337 = vmatpush1.bf16.msra.mxu0 0
        %2338 = vmatprep.subr.bf16.mxu0 0
        %2339 = vmatpush1.bf16.msra.mxu0 0
        %2340 = vmatprep.subr.bf16.mxu0 0
        %2341 = vmatpush1.bf16.msra.mxu0 0
        %2342 = vmatprep.subr.bf16.mxu0 0
        %2343 = vmatpush1.bf16.msra.mxu0 0
        %2344 = vmatprep.subr.bf16.mxu0 0
        %2345 = vmatpush1.bf16.msra.mxu0 0
        %2346 = vmatprep.subr.bf16.mxu0 0
        %2347 = vmatpush1.bf16.msra.mxu0 0
        %2348 = vmatprep.mubr.bf16.mxu0 0
        %2349 = vmatmul.mubr.bf16.gmra.mrb[0].mxu0 %v1905
        %v2350 = vpop.f32.mrb[0].mxu0
        %v2351 = vadd.f32 0.0, %v2350
        %v2352 = vpop.f32.mrb[0].mxu0
        %v2353 = vadd.f32 0.0, %v2352
        %v2354 = vpop.f32.mrb[0].mxu0
        %v2355 = vpop.f32.mrb[0].mxu0
        %2356 = vdwg.mxu0
        %2357 = vmatprep.subr.bf16.mxu0 %v1672
        %2358 = vmatpush1.bf16.msra.mxu0 %v1671
        %2359 = vmatprep.subr.bf16.mxu0 %v1704
        %2360 = vmatpush1.bf16.msra.mxu0 %v1703
        %2361 = vmatprep.subr.bf16.mxu0 %v1736
        %2362 = vmatpush1.bf16.msra.mxu0 %v1735
        %2363 = vmatprep.subr.bf16.mxu0 %v1768
        %2364 = vmatpush1.bf16.msra.mxu0 %v1767
        %2365 = vmatprep.subr.bf16.mxu0 %v1800
        %2366 = vmatpush1.bf16.msra.mxu0 %v1799
        %2367 = vmatprep.subr.bf16.mxu0 %v1832
        %2368 = vmatpush1.bf16.msra.mxu0 %v1831
        %2369 = vmatprep.subr.bf16.mxu0 %v1864
        %2370 = vmatpush1.bf16.msra.mxu0 %v1863
        %2371 = vmatprep.subr.bf16.mxu0 %v1896
        %2372 = vmatpush1.bf16.msra.mxu0 %v1895
        %2373 = vmatprep.subr.bf16.mxu0 0
        %2374 = vmatpush1.bf16.msra.mxu0 0
        %2375 = vmatprep.subr.bf16.mxu0 0
        %2376 = vmatpush1.bf16.msra.mxu0 0
        %2377 = vmatprep.subr.bf16.mxu0 0
        %2378 = vmatpush1.bf16.msra.mxu0 0
        %2379 = vmatprep.subr.bf16.mxu0 0
        %2380 = vmatpush1.bf16.msra.mxu0 0
        %2381 = vmatprep.subr.bf16.mxu0 0
        %2382 = vmatpush1.bf16.msra.mxu0 0
        %2383 = vmatprep.subr.bf16.mxu0 0
        %2384 = vmatpush1.bf16.msra.mxu0 0
        %2385 = vmatprep.subr.bf16.mxu0 0
        %2386 = vmatpush1.bf16.msra.mxu0 0
        %2387 = vmatprep.subr.bf16.mxu0 0
        %2388 = vmatpush1.bf16.msra.mxu0 0
        %2389 = vmatprep.mubr.bf16.mxu0 0
        %2390 = vmatmul.mubr.bf16.gmra.mrb[0].mxu0 %v1905
        %v2391 = vpop.f32.mrb[0].mxu0
        %v2392 = vadd.f32 0.0, %v2391
        %v2393 = vpop.f32.mrb[0].mxu0
        %v2394 = vadd.f32 0.0, %v2393
        %v2395 = vpop.f32.mrb[0].mxu0
        %v2396 = vpop.f32.mrb[0].mxu0
        %2397 = vdwg.mxu0
        %2398 = vmatprep.subr.bf16.mxu0 %v1674
        %2399 = vmatpush1.bf16.msra.mxu0 %v1673
        %2400 = vmatprep.subr.bf16.mxu0 %v1706
        %2401 = vmatpush1.bf16.msra.mxu0 %v1705
        %2402 = vmatprep.subr.bf16.mxu0 %v1738
        %2403 = vmatpush1.bf16.msra.mxu0 %v1737
        %2404 = vmatprep.subr.bf16.mxu0 %v1770
        %2405 = vmatpush1.bf16.msra.mxu0 %v1769
        %2406 = vmatprep.subr.bf16.mxu0 %v1802
        %2407 = vmatpush1.bf16.msra.mxu0 %v1801
        %2408 = vmatprep.subr.bf16.mxu0 %v1834
        %2409 = vmatpush1.bf16.msra.mxu0 %v1833
        %2410 = vmatprep.subr.bf16.mxu0 %v1866
        %2411 = vmatpush1.bf16.msra.mxu0 %v1865
        %2412 = vmatprep.subr.bf16.mxu0 %v1898
        %2413 = vmatpush1.bf16.msra.mxu0 %v1897
        %2414 = vmatprep.subr.bf16.mxu0 0
        %2415 = vmatpush1.bf16.msra.mxu0 0
        %2416 = vmatprep.subr.bf16.mxu0 0
        %2417 = vmatpush1.bf16.msra.mxu0 0
        %2418 = vmatprep.subr.bf16.mxu0 0
        %2419 = vmatpush1.bf16.msra.mxu0 0
        %2420 = vmatprep.subr.bf16.mxu0 0
        %2421 = vmatpush1.bf16.msra.mxu0 0
        %2422 = vmatprep.subr.bf16.mxu0 0
        %2423 = vmatpush1.bf16.msra.mxu0 0
        %2424 = vmatprep.subr.bf16.mxu0 0
        %2425 = vmatpush1.bf16.msra.mxu0 0
        %2426 = vmatprep.subr.bf16.mxu0 0
        %2427 = vmatpush1.bf16.msra.mxu0 0
        %2428 = vmatprep.subr.bf16.mxu0 0
        %2429 = vmatpush1.bf16.msra.mxu0 0
        %2430 = vmatprep.mubr.bf16.mxu0 0
        %2431 = vmatmul.mubr.bf16.gmra.mrb[0].mxu0 %v1905
        %v2432 = vpop.f32.mrb[0].mxu0
        %v2433 = vadd.f32 0.0, %v2432
        %v2434 = vpop.f32.mrb[0].mxu0
        %v2435 = vadd.f32 0.0, %v2434
        %v2436 = vpop.f32.mrb[0].mxu0
        %v2437 = vpop.f32.mrb[0].mxu0
        %2438 = vdwg.mxu0
        %2439 = vmatprep.subr.bf16.mxu0 %v1676
        %2440 = vmatpush1.bf16.msra.mxu0 %v1675
        %2441 = vmatprep.subr.bf16.mxu0 %v1708
        %2442 = vmatpush1.bf16.msra.mxu0 %v1707
        %2443 = vmatprep.subr.bf16.mxu0 %v1740
        %2444 = vmatpush1.bf16.msra.mxu0 %v1739
        %2445 = vmatprep.subr.bf16.mxu0 %v1772
        %2446 = vmatpush1.bf16.msra.mxu0 %v1771
        %2447 = vmatprep.subr.bf16.mxu0 %v1804
        %2448 = vmatpush1.bf16.msra.mxu0 %v1803
        %2449 = vmatprep.subr.bf16.mxu0 %v1836
        %2450 = vmatpush1.bf16.msra.mxu0 %v1835
        %2451 = vmatprep.subr.bf16.mxu0 %v1868
        %2452 = vmatpush1.bf16.msra.mxu0 %v1867
        %2453 = vmatprep.subr.bf16.mxu0 %v1900
        %2454 = vmatpush1.bf16.msra.mxu0 %v1899
        %2455 = vmatprep.subr.bf16.mxu0 0
        %2456 = vmatpush1.bf16.msra.mxu0 0
        %2457 = vmatprep.subr.bf16.mxu0 0
        %2458 = vmatpush1.bf16.msra.mxu0 0
        %2459 = vmatprep.subr.bf16.mxu0 0
        %2460 = vmatpush1.bf16.msra.mxu0 0
        %2461 = vmatprep.subr.bf16.mxu0 0
        %2462 = vmatpush1.bf16.msra.mxu0 0
        %2463 = vmatprep.subr.bf16.mxu0 0
        %2464 = vmatpush1.bf16.msra.mxu0 0
        %2465 = vmatprep.subr.bf16.mxu0 0
        %2466 = vmatpush1.bf16.msra.mxu0 0
        %2467 = vmatprep.subr.bf16.mxu0 0
        %2468 = vmatpush1.bf16.msra.mxu0 0
        %2469 = vmatprep.subr.bf16.mxu0 0
        %2470 = vmatpush1.bf16.msra.mxu0 0
        %2471 = vmatprep.mubr.bf16.mxu0 0
        %2472 = vmatmul.mubr.bf16.gmra.mrb[0].mxu0 %v1905
        %v2473 = vpop.f32.mrb[0].mxu0
        %v2474 = vadd.f32 0.0, %v2473
        %v2475 = vpop.f32.mrb[0].mxu0
        %v2476 = vadd.f32 0.0, %v2475
        %v2477 = vpop.f32.mrb[0].mxu0
        %v2478 = vpop.f32.mrb[0].mxu0
        %2479 = vdwg.mxu0
        %2480 = vmatprep.subr.bf16.mxu0 %v1678
        %2481 = vmatpush1.bf16.msra.mxu0 %v1677
        %2482 = vmatprep.subr.bf16.mxu0 %v1710
        %2483 = vmatpush1.bf16.msra.mxu0 %v1709
        %2484 = vmatprep.subr.bf16.mxu0 %v1742
        %2485 = vmatpush1.bf16.msra.mxu0 %v1741
        %2486 = vmatprep.subr.bf16.mxu0 %v1774
        %2487 = vmatpush1.bf16.msra.mxu0 %v1773
        %2488 = vmatprep.subr.bf16.mxu0 %v1806
        %2489 = vmatpush1.bf16.msra.mxu0 %v1805
        %2490 = vmatprep.subr.bf16.mxu0 %v1838
        %2491 = vmatpush1.bf16.msra.mxu0 %v1837
        %2492 = vmatprep.subr.bf16.mxu0 %v1870
        %2493 = vmatpush1.bf16.msra.mxu0 %v1869
        %2494 = vmatprep.subr.bf16.mxu0 %v1902
        %2495 = vmatpush1.bf16.msra.mxu0 %v1901
        %2496 = vmatprep.subr.bf16.mxu0 0
        %2497 = vmatpush1.bf16.msra.mxu0 0
        %2498 = vmatprep.subr.bf16.mxu0 0
        %2499 = vmatpush1.bf16.msra.mxu0 0
        %2500 = vmatprep.subr.bf16.mxu0 0
        %2501 = vmatpush1.bf16.msra.mxu0 0
        %2502 = vmatprep.subr.bf16.mxu0 0
        %2503 = vmatpush1.bf16.msra.mxu0 0
        %2504 = vmatprep.subr.bf16.mxu0 0
        %2505 = vmatpush1.bf16.msra.mxu0 0
        %2506 = vmatprep.subr.bf16.mxu0 0
        %2507 = vmatpush1.bf16.msra.mxu0 0
        %2508 = vmatprep.subr.bf16.mxu0 0
        %2509 = vmatpush1.bf16.msra.mxu0 0
        %2510 = vmatprep.subr.bf16.mxu0 0
        %2511 = vmatpush1.bf16.msra.mxu0 0
        %2512 = vmatprep.mubr.bf16.mxu0 0
        %2513 = vmatmul.mubr.bf16.gmra.mrb[0].mxu0 %v1905
        %v2514 = vpop.f32.mrb[0].mxu0
        %v2515 = vadd.f32 0.0, %v2514
        %v2516 = vpop.f32.mrb[0].mxu0
        %v2517 = vadd.f32 0.0, %v2516
        %v2518 = vpop.f32.mrb[0].mxu0
        %v2519 = vpop.f32.mrb[0].mxu0
        %2520 = vdwg.mxu0
        %2521 = vmatprep.subr.bf16.mxu0 %v1680
        %2522 = vmatpush1.bf16.msra.mxu0 %v1679
        %2523 = vmatprep.subr.bf16.mxu0 %v1712
        %2524 = vmatpush1.bf16.msra.mxu0 %v1711
        %2525 = vmatprep.subr.bf16.mxu0 %v1744
        %2526 = vmatpush1.bf16.msra.mxu0 %v1743
        %2527 = vmatprep.subr.bf16.mxu0 %v1776
        %2528 = vmatpush1.bf16.msra.mxu0 %v1775
        %2529 = vmatprep.subr.bf16.mxu0 %v1808
        %2530 = vmatpush1.bf16.msra.mxu0 %v1807
        %2531 = vmatprep.subr.bf16.mxu0 %v1840
        %2532 = vmatpush1.bf16.msra.mxu0 %v1839
        %2533 = vmatprep.subr.bf16.mxu0 %v1872
        %2534 = vmatpush1.bf16.msra.mxu0 %v1871
        %2535 = vmatprep.subr.bf16.mxu0 %v1904
        %2536 = vmatpush1.bf16.msra.mxu0 %v1903
        %2537 = vmatprep.subr.bf16.mxu0 0
        %2538 = vmatpush1.bf16.msra.mxu0 0
        %2539 = vmatprep.subr.bf16.mxu0 0
        %2540 = vmatpush1.bf16.msra.mxu0 0
        %2541 = vmatprep.subr.bf16.mxu0 0
        %2542 = vmatpush1.bf16.msra.mxu0 0
        %2543 = vmatprep.subr.bf16.mxu0 0
        %2544 = vmatpush1.bf16.msra.mxu0 0
        %2545 = vmatprep.subr.bf16.mxu0 0
        %2546 = vmatpush1.bf16.msra.mxu0 0
        %2547 = vmatprep.subr.bf16.mxu0 0
        %2548 = vmatpush1.bf16.msra.mxu0 0
        %2549 = vmatprep.subr.bf16.mxu0 0
        %2550 = vmatpush1.bf16.msra.mxu0 0
        %2551 = vmatprep.subr.bf16.mxu0 0
        %2552 = vmatpush1.bf16.msra.mxu0 0
        %2553 = vmatprep.mubr.bf16.mxu0 0
        %2554 = vmatmul.mubr.bf16.gmra.mrb[0].mxu0 %v1905
        %v2555 = vpop.f32.mrb[0].mxu0
        %v2556 = vadd.f32 0.0, %v2555
        %v2557 = vpop.f32.mrb[0].mxu0
        %v2558 = vadd.f32 0.0, %v2557
        %v2559 = vpop.f32.mrb[0].mxu0
        %v2560 = vpop.f32.mrb[0].mxu0
        %2561 = vdwg.mxu0
        %v2562 = vld [vmem:[#allocation9] sm:$0xff]
        %v2563 = vld [vmem:[#allocation9 + $0x8] sm:$0xff]
        %v2564 = vld [vmem:[#allocation9 + $0x10] sm:$0xff]
        %v2565 = vld [vmem:[#allocation9 + $0x18] sm:$0xff]
        %v2570 = vlaneseq
        %v2571 = vshrl.u32 %v2570, 7
        %v2572 = vsub.s32 0, %v2571
        %v2573 = vrot.slane %v2562, %v2572
        %v2574 = vlaneseq
        %v2575 = vshrl.u32 %v2574, 7
        %v2576 = vsub.s32 1, %v2575
        %v2577 = vrot.slane %v2562, %v2576
        %v2578 = vlaneseq
        %v2579 = vshrl.u32 %v2578, 7
        %v2580 = vsub.s32 2, %v2579
        %v2581 = vrot.slane %v2562, %v2580
        %v2582 = vlaneseq
        %v2583 = vshrl.u32 %v2582, 7
        %v2584 = vsub.s32 3, %v2583
        %v2585 = vrot.slane %v2562, %v2584
        %v2586 = vlaneseq
        %v2587 = vshrl.u32 %v2586, 7
        %v2588 = vsub.s32 4, %v2587
        %v2589 = vrot.slane %v2562, %v2588
        %v2590 = vlaneseq
        %v2591 = vshrl.u32 %v2590, 7
        %v2592 = vsub.s32 5, %v2591
        %v2593 = vrot.slane %v2562, %v2592
        %v2594 = vlaneseq
        %v2595 = vshrl.u32 %v2594, 7
        %v2596 = vsub.s32 6, %v2595
        %v2597 = vrot.slane %v2562, %v2596
        %v2598 = vlaneseq
        %v2599 = vshrl.u32 %v2598, 7
        %v2600 = vsub.s32 7, %v2599
        %v2601 = vrot.slane %v2562, %v2600
        %v2602 = vlaneseq
        %v2603 = vshrl.u32 %v2602, 7
        %v2604 = vsub.s32 0, %v2603
        %v2605 = vrot.slane %v2563, %v2604
        %v2606 = vlaneseq
        %v2607 = vshrl.u32 %v2606, 7
        %v2608 = vsub.s32 1, %v2607
        %v2609 = vrot.slane %v2563, %v2608
        %v2610 = vlaneseq
        %v2611 = vshrl.u32 %v2610, 7
        %v2612 = vsub.s32 2, %v2611
        %v2613 = vrot.slane %v2563, %v2612
        %v2614 = vlaneseq
        %v2615 = vshrl.u32 %v2614, 7
        %v2616 = vsub.s32 3, %v2615
        %v2617 = vrot.slane %v2563, %v2616
        %v2618 = vlaneseq
        %v2619 = vshrl.u32 %v2618, 7
        %v2620 = vsub.s32 4, %v2619
        %v2621 = vrot.slane %v2563, %v2620
        %v2622 = vlaneseq
        %v2623 = vshrl.u32 %v2622, 7
        %v2624 = vsub.s32 5, %v2623
        %v2625 = vrot.slane %v2563, %v2624
        %v2626 = vlaneseq
        %v2627 = vshrl.u32 %v2626, 7
        %v2628 = vsub.s32 6, %v2627
        %v2629 = vrot.slane %v2563, %v2628
        %v2630 = vlaneseq
        %v2631 = vshrl.u32 %v2630, 7
        %v2632 = vsub.s32 7, %v2631
        %v2633 = vrot.slane %v2563, %v2632
        %v2634 = vlaneseq
        %v2635 = vshrl.u32 %v2634, 7
        %v2636 = vsub.s32 0, %v2635
        %v2637 = vrot.slane %v2564, %v2636
        %v2638 = vlaneseq
        %v2639 = vshrl.u32 %v2638, 7
        %v2640 = vsub.s32 1, %v2639
        %v2641 = vrot.slane %v2564, %v2640
        %v2642 = vlaneseq
        %v2643 = vshrl.u32 %v2642, 7
        %v2644 = vsub.s32 2, %v2643
        %v2645 = vrot.slane %v2564, %v2644
        %v2646 = vlaneseq
        %v2647 = vshrl.u32 %v2646, 7
        %v2648 = vsub.s32 3, %v2647
        %v2649 = vrot.slane %v2564, %v2648
        %v2650 = vlaneseq
        %v2651 = vshrl.u32 %v2650, 7
        %v2652 = vsub.s32 4, %v2651
        %v2653 = vrot.slane %v2564, %v2652
        %v2654 = vlaneseq
        %v2655 = vshrl.u32 %v2654, 7
        %v2656 = vsub.s32 5, %v2655
        %v2657 = vrot.slane %v2564, %v2656
        %v2658 = vlaneseq
        %v2659 = vshrl.u32 %v2658, 7
        %v2660 = vsub.s32 6, %v2659
        %v2661 = vrot.slane %v2564, %v2660
        %v2662 = vlaneseq
        %v2663 = vshrl.u32 %v2662, 7
        %v2664 = vsub.s32 7, %v2663
        %v2665 = vrot.slane %v2564, %v2664
        %v2666 = vlaneseq
        %v2667 = vshrl.u32 %v2666, 7
        %v2668 = vsub.s32 0, %v2667
        %v2669 = vrot.slane %v2565, %v2668
        %v2670 = vlaneseq
        %v2671 = vshrl.u32 %v2670, 7
        %v2672 = vsub.s32 1, %v2671
        %v2673 = vrot.slane %v2565, %v2672
        %v2674 = vlaneseq
        %v2675 = vshrl.u32 %v2674, 7
        %v2676 = vsub.s32 2, %v2675
        %v2677 = vrot.slane %v2565, %v2676
        %v2678 = vlaneseq
        %v2679 = vshrl.u32 %v2678, 7
        %v2680 = vsub.s32 3, %v2679
        %v2681 = vrot.slane %v2565, %v2680
        %v2682 = vlaneseq
        %v2683 = vshrl.u32 %v2682, 7
        %v2684 = vsub.s32 4, %v2683
        %v2685 = vrot.slane %v2565, %v2684
        %v2686 = vlaneseq
        %v2687 = vshrl.u32 %v2686, 7
        %v2688 = vsub.s32 5, %v2687
        %v2689 = vrot.slane %v2565, %v2688
        %v2690 = vlaneseq
        %v2691 = vshrl.u32 %v2690, 7
        %v2692 = vsub.s32 6, %v2691
        %v2693 = vrot.slane %v2565, %v2692
        %v2694 = vlaneseq
        %v2695 = vshrl.u32 %v2694, 7
        %v2696 = vsub.s32 7, %v2695
        %v2697 = vrot.slane %v2565, %v2696
        %v2730 = vmul.f32 %v1941, %v2573
        %v2731 = vmul.f32 %v1943, %v2577
        %v2732 = vmul.f32 %v1982, %v2581
        %v2733 = vmul.f32 %v1984, %v2585
        %v2734 = vmul.f32 %v2023, %v2589
        %v2735 = vmul.f32 %v2025, %v2593
        %v2736 = vmul.f32 %v2064, %v2597
        %v2737 = vmul.f32 %v2066, %v2601
        %v2738 = vmul.f32 %v2105, %v2605
        %v2739 = vmul.f32 %v2107, %v2609
        %v2740 = vmul.f32 %v2146, %v2613
        %v2741 = vmul.f32 %v2148, %v2617
        %v2742 = vmul.f32 %v2187, %v2621
        %v2743 = vmul.f32 %v2189, %v2625
        %v2744 = vmul.f32 %v2228, %v2629
        %v2745 = vmul.f32 %v2230, %v2633
        %v2746 = vmul.f32 %v2269, %v2637
        %v2747 = vmul.f32 %v2271, %v2641
        %v2748 = vmul.f32 %v2310, %v2645
        %v2749 = vmul.f32 %v2312, %v2649
        %v2750 = vmul.f32 %v2351, %v2653
        %v2751 = vmul.f32 %v2353, %v2657
        %v2752 = vmul.f32 %v2392, %v2661
        %v2753 = vmul.f32 %v2394, %v2665
        %v2754 = vmul.f32 %v2433, %v2669
        %v2755 = vmul.f32 %v2435, %v2673
        %v2756 = vmul.f32 %v2474, %v2677
        %v2757 = vmul.f32 %v2476, %v2681
        %v2758 = vmul.f32 %v2515, %v2685
        %v2759 = vmul.f32 %v2517, %v2689
        %v2760 = vmul.f32 %v2556, %v2693
        %v2761 = vmul.f32 %v2558, %v2697
        %v2762 = vld [vmem:[#allocation10] sm:$0xff]
        %v2763 = vld [vmem:[#allocation10 + $0x8] sm:$0xff]
        %v2764 = vld [vmem:[#allocation10 + $0x10] sm:$0xff]
        %v2765 = vld [vmem:[#allocation10 + $0x18] sm:$0xff]
        %v2770 = vlaneseq
        %v2771 = vshrl.u32 %v2770, 7
        %v2772 = vsub.s32 0, %v2771
        %v2773 = vrot.slane %v2762, %v2772
        %v2774 = vlaneseq
        %v2775 = vshrl.u32 %v2774, 7
        %v2776 = vsub.s32 1, %v2775
        %v2777 = vrot.slane %v2762, %v2776
        %v2778 = vlaneseq
        %v2779 = vshrl.u32 %v2778, 7
        %v2780 = vsub.s32 2, %v2779
        %v2781 = vrot.slane %v2762, %v2780
        %v2782 = vlaneseq
        %v2783 = vshrl.u32 %v2782, 7
        %v2784 = vsub.s32 3, %v2783
        %v2785 = vrot.slane %v2762, %v2784
        %v2786 = vlaneseq
        %v2787 = vshrl.u32 %v2786, 7
        %v2788 = vsub.s32 4, %v2787
        %v2789 = vrot.slane %v2762, %v2788
        %v2790 = vlaneseq
        %v2791 = vshrl.u32 %v2790, 7
        %v2792 = vsub.s32 5, %v2791
        %v2793 = vrot.slane %v2762, %v2792
        %v2794 = vlaneseq
        %v2795 = vshrl.u32 %v2794, 7
        %v2796 = vsub.s32 6, %v2795
        %v2797 = vrot.slane %v2762, %v2796
        %v2798 = vlaneseq
        %v2799 = vshrl.u32 %v2798, 7
        %v2800 = vsub.s32 7, %v2799
        %v2801 = vrot.slane %v2762, %v2800
        %v2802 = vlaneseq
        %v2803 = vshrl.u32 %v2802, 7
        %v2804 = vsub.s32 0, %v2803
        %v2805 = vrot.slane %v2763, %v2804
        %v2806 = vlaneseq
        %v2807 = vshrl.u32 %v2806, 7
        %v2808 = vsub.s32 1, %v2807
        %v2809 = vrot.slane %v2763, %v2808
        %v2810 = vlaneseq
        %v2811 = vshrl.u32 %v2810, 7
        %v2812 = vsub.s32 2, %v2811
        %v2813 = vrot.slane %v2763, %v2812
        %v2814 = vlaneseq
        %v2815 = vshrl.u32 %v2814, 7
        %v2816 = vsub.s32 3, %v2815
        %v2817 = vrot.slane %v2763, %v2816
        %v2818 = vlaneseq
        %v2819 = vshrl.u32 %v2818, 7
        %v2820 = vsub.s32 4, %v2819
        %v2821 = vrot.slane %v2763, %v2820
        %v2822 = vlaneseq
        %v2823 = vshrl.u32 %v2822, 7
        %v2824 = vsub.s32 5, %v2823
        %v2825 = vrot.slane %v2763, %v2824
        %v2826 = vlaneseq
        %v2827 = vshrl.u32 %v2826, 7
        %v2828 = vsub.s32 6, %v2827
        %v2829 = vrot.slane %v2763, %v2828
        %v2830 = vlaneseq
        %v2831 = vshrl.u32 %v2830, 7
        %v2832 = vsub.s32 7, %v2831
        %v2833 = vrot.slane %v2763, %v2832
        %v2834 = vlaneseq
        %v2835 = vshrl.u32 %v2834, 7
        %v2836 = vsub.s32 0, %v2835
        %v2837 = vrot.slane %v2764, %v2836
        %v2838 = vlaneseq
        %v2839 = vshrl.u32 %v2838, 7
        %v2840 = vsub.s32 1, %v2839
        %v2841 = vrot.slane %v2764, %v2840
        %v2842 = vlaneseq
        %v2843 = vshrl.u32 %v2842, 7
        %v2844 = vsub.s32 2, %v2843
        %v2845 = vrot.slane %v2764, %v2844
        %v2846 = vlaneseq
        %v2847 = vshrl.u32 %v2846, 7
        %v2848 = vsub.s32 3, %v2847
        %v2849 = vrot.slane %v2764, %v2848
        %v2850 = vlaneseq
        %v2851 = vshrl.u32 %v2850, 7
        %v2852 = vsub.s32 4, %v2851
        %v2853 = vrot.slane %v2764, %v2852
        %v2854 = vlaneseq
        %v2855 = vshrl.u32 %v2854, 7
        %v2856 = vsub.s32 5, %v2855
        %v2857 = vrot.slane %v2764, %v2856
        %v2858 = vlaneseq
        %v2859 = vshrl.u32 %v2858, 7
        %v2860 = vsub.s32 6, %v2859
        %v2861 = vrot.slane %v2764, %v2860
        %v2862 = vlaneseq
        %v2863 = vshrl.u32 %v2862, 7
        %v2864 = vsub.s32 7, %v2863
        %v2865 = vrot.slane %v2764, %v2864
        %v2866 = vlaneseq
        %v2867 = vshrl.u32 %v2866, 7
        %v2868 = vsub.s32 0, %v2867
        %v2869 = vrot.slane %v2765, %v2868
        %v2870 = vlaneseq
        %v2871 = vshrl.u32 %v2870, 7
        %v2872 = vsub.s32 1, %v2871
        %v2873 = vrot.slane %v2765, %v2872
        %v2874 = vlaneseq
        %v2875 = vshrl.u32 %v2874, 7
        %v2876 = vsub.s32 2, %v2875
        %v2877 = vrot.slane %v2765, %v2876
        %v2878 = vlaneseq
        %v2879 = vshrl.u32 %v2878, 7
        %v2880 = vsub.s32 3, %v2879
        %v2881 = vrot.slane %v2765, %v2880
        %v2882 = vlaneseq
        %v2883 = vshrl.u32 %v2882, 7
        %v2884 = vsub.s32 4, %v2883
        %v2885 = vrot.slane %v2765, %v2884
        %v2886 = vlaneseq
        %v2887 = vshrl.u32 %v2886, 7
        %v2888 = vsub.s32 5, %v2887
        %v2889 = vrot.slane %v2765, %v2888
        %v2890 = vlaneseq
        %v2891 = vshrl.u32 %v2890, 7
        %v2892 = vsub.s32 6, %v2891
        %v2893 = vrot.slane %v2765, %v2892
        %v2894 = vlaneseq
        %v2895 = vshrl.u32 %v2894, 7
        %v2896 = vsub.s32 7, %v2895
        %v2897 = vrot.slane %v2765, %v2896
        %v2930 = vadd.f32 %v2730, %v2773
        %v2931 = vadd.f32 %v2731, %v2777
        %v2932 = vadd.f32 %v2732, %v2781
        %v2933 = vadd.f32 %v2733, %v2785
        %v2934 = vadd.f32 %v2734, %v2789
        %v2935 = vadd.f32 %v2735, %v2793
        %v2936 = vadd.f32 %v2736, %v2797
        %v2937 = vadd.f32 %v2737, %v2801
        %v2938 = vadd.f32 %v2738, %v2805
        %v2939 = vadd.f32 %v2739, %v2809
        %v2940 = vadd.f32 %v2740, %v2813
        %v2941 = vadd.f32 %v2741, %v2817
        %v2942 = vadd.f32 %v2742, %v2821
        %v2943 = vadd.f32 %v2743, %v2825
        %v2944 = vadd.f32 %v2744, %v2829
        %v2945 = vadd.f32 %v2745, %v2833
        %v2946 = vadd.f32 %v2746, %v2837
        %v2947 = vadd.f32 %v2747, %v2841
        %v2948 = vadd.f32 %v2748, %v2845
        %v2949 = vadd.f32 %v2749, %v2849
        %v2950 = vadd.f32 %v2750, %v2853
        %v2951 = vadd.f32 %v2751, %v2857
        %v2952 = vadd.f32 %v2752, %v2861
        %v2953 = vadd.f32 %v2753, %v2865
        %v2954 = vadd.f32 %v2754, %v2869
        %v2955 = vadd.f32 %v2755, %v2873
        %v2956 = vadd.f32 %v2756, %v2877
        %v2957 = vadd.f32 %v2757, %v2881
        %v2958 = vadd.f32 %v2758, %v2885
        %v2959 = vadd.f32 %v2759, %v2889
        %v2960 = vadd.f32 %v2760, %v2893
        %v2961 = vadd.f32 %v2761, %v2897
        %v2962 = vmax.f32 %v2930, 0.0
        %v2963 = vmax.f32 %v2931, 0.0
        %v2964 = vmax.f32 %v2932, 0.0
        %v2965 = vmax.f32 %v2933, 0.0
        %v2966 = vmax.f32 %v2934, 0.0
        %v2967 = vmax.f32 %v2935, 0.0
        %v2968 = vmax.f32 %v2936, 0.0
        %v2969 = vmax.f32 %v2937, 0.0
        %v2970 = vmax.f32 %v2938, 0.0
        %v2971 = vmax.f32 %v2939, 0.0
        %v2972 = vmax.f32 %v2940, 0.0
        %v2973 = vmax.f32 %v2941, 0.0
        %v2974 = vmax.f32 %v2942, 0.0
        %v2975 = vmax.f32 %v2943, 0.0
        %v2976 = vmax.f32 %v2944, 0.0
        %v2977 = vmax.f32 %v2945, 0.0
        %v2978 = vmax.f32 %v2946, 0.0
        %v2979 = vmax.f32 %v2947, 0.0
        %v2980 = vmax.f32 %v2948, 0.0
        %v2981 = vmax.f32 %v2949, 0.0
        %v2982 = vmax.f32 %v2950, 0.0
        %v2983 = vmax.f32 %v2951, 0.0
        %v2984 = vmax.f32 %v2952, 0.0
        %v2985 = vmax.f32 %v2953, 0.0
        %v2986 = vmax.f32 %v2954, 0.0
        %v2987 = vmax.f32 %v2955, 0.0
        %v2988 = vmax.f32 %v2956, 0.0
        %v2989 = vmax.f32 %v2957, 0.0
        %v2990 = vmax.f32 %v2958, 0.0
        %v2991 = vmax.f32 %v2959, 0.0
        %v2992 = vmax.f32 %v2960, 0.0
        %v2993 = vmax.f32 %v2961, 0.0
        %v2994 = vld [vmem:[%s530] sm:$0xff]
        %v2995 = vld [vmem:[%s530 + $0x8] sm:$0xff]
        %v2996 = vld [vmem:[%s530 + $0x10] sm:$0xff]
        %v2997 = vld [vmem:[%s530 + $0x18] sm:$0xff]
        %v2998 = vld [vmem:[%s530 + $0x20] sm:$0xff]
        %v2999 = vld [vmem:[%s530 + $0x28] sm:$0xff]
        %v3000 = vld [vmem:[%s530 + $0x30] sm:$0xff]
        %v3001 = vld [vmem:[%s530 + $0x38] sm:$0xff]
        %v3002 = vld [vmem:[%s530 + $0x40] sm:$0xff]
        %v3003 = vld [vmem:[%s530 + $0x48] sm:$0xff]
        %v3004 = vld [vmem:[%s530 + $0x50] sm:$0xff]
        %v3005 = vld [vmem:[%s530 + $0x58] sm:$0xff]
        %v3006 = vld [vmem:[%s530 + $0x60] sm:$0xff]
        %v3007 = vld [vmem:[%s530 + $0x68] sm:$0xff]
        %v3008 = vld [vmem:[%s530 + $0x70] sm:$0xff]
        %v3009 = vld [vmem:[%s530 + $0x78] sm:$0xff]
        %v3010 = vld [vmem:[%s530 + $0x80] sm:$0xff]
        %v3011 = vld [vmem:[%s530 + $0x88] sm:$0xff]
        %v3012 = vld [vmem:[%s530 + $0x90] sm:$0xff]
        %v3013 = vld [vmem:[%s530 + $0x98] sm:$0xff]
        %v3014 = vld [vmem:[%s530 + $0xa0] sm:$0xff]
        %v3015 = vld [vmem:[%s530 + $0xa8] sm:$0xff]
        %v3016 = vld [vmem:[%s530 + $0xb0] sm:$0xff]
        %v3017 = vld [vmem:[%s530 + $0xb8] sm:$0xff]
        %v3018 = vld [vmem:[%s530 + $0xc0] sm:$0xff]
        %v3019 = vld [vmem:[%s530 + $0xc8] sm:$0xff]
        %v3020 = vld [vmem:[%s530 + $0xd0] sm:$0xff]
        %v3021 = vld [vmem:[%s530 + $0xd8] sm:$0xff]
        %v3022 = vld [vmem:[%s530 + $0xe0] sm:$0xff]
        %v3023 = vld [vmem:[%s530 + $0xe8] sm:$0xff]
        %v3024 = vld [vmem:[%s530 + $0xf0] sm:$0xff]
        %v3025 = vld [vmem:[%s530 + $0xf8] sm:$0xff]
        %v3026 = vld [vmem:[%s530 + $0x100] sm:$0xff]
        %v3027 = vld [vmem:[%s530 + $0x108] sm:$0xff]
        %v3028 = vld [vmem:[%s530 + $0x110] sm:$0xff]
        %v3029 = vld [vmem:[%s530 + $0x118] sm:$0xff]
        %v3030 = vld [vmem:[%s530 + $0x120] sm:$0xff]
        %v3031 = vld [vmem:[%s530 + $0x128] sm:$0xff]
        %v3032 = vld [vmem:[%s530 + $0x130] sm:$0xff]
        %v3033 = vld [vmem:[%s530 + $0x138] sm:$0xff]
        %v3034 = vld [vmem:[%s530 + $0x140] sm:$0xff]
        %v3035 = vld [vmem:[%s530 + $0x148] sm:$0xff]
        %v3036 = vld [vmem:[%s530 + $0x150] sm:$0xff]
        %v3037 = vld [vmem:[%s530 + $0x158] sm:$0xff]
        %v3038 = vld [vmem:[%s530 + $0x160] sm:$0xff]
        %v3039 = vld [vmem:[%s530 + $0x168] sm:$0xff]
        %v3040 = vld [vmem:[%s530 + $0x170] sm:$0xff]
        %v3041 = vld [vmem:[%s530 + $0x178] sm:$0xff]
        %v3042 = vld [vmem:[%s530 + $0x180] sm:$0xff]
        %v3043 = vld [vmem:[%s530 + $0x188] sm:$0xff]
        %v3044 = vld [vmem:[%s530 + $0x190] sm:$0xff]
        %v3045 = vld [vmem:[%s530 + $0x198] sm:$0xff]
        %v3046 = vld [vmem:[%s530 + $0x1a0] sm:$0xff]
        %v3047 = vld [vmem:[%s530 + $0x1a8] sm:$0xff]
        %v3048 = vld [vmem:[%s530 + $0x1b0] sm:$0xff]
        %v3049 = vld [vmem:[%s530 + $0x1b8] sm:$0xff]
        %v3050 = vld [vmem:[%s530 + $0x1c0] sm:$0xff]
        %v3051 = vld [vmem:[%s530 + $0x1c8] sm:$0xff]
        %v3052 = vld [vmem:[%s530 + $0x1d0] sm:$0xff]
        %v3053 = vld [vmem:[%s530 + $0x1d8] sm:$0xff]
        %v3054 = vld [vmem:[%s530 + $0x1e0] sm:$0xff]
        %v3055 = vld [vmem:[%s530 + $0x1e8] sm:$0xff]
        %v3056 = vld [vmem:[%s530 + $0x1f0] sm:$0xff]
        %v3057 = vld [vmem:[%s530 + $0x1f8] sm:$0xff]
        %v3058 = vld [vmem:[%s530 + $0x200] sm:$0xff]
        %v3059 = vld [vmem:[%s530 + $0x208] sm:$0xff]
        %v3060 = vld [vmem:[%s530 + $0x210] sm:$0xff]
        %v3061 = vld [vmem:[%s530 + $0x218] sm:$0xff]
        %v3062 = vld [vmem:[%s530 + $0x220] sm:$0xff]
        %v3063 = vld [vmem:[%s530 + $0x228] sm:$0xff]
        %v3064 = vld [vmem:[%s530 + $0x230] sm:$0xff]
        %v3065 = vld [vmem:[%s530 + $0x238] sm:$0xff]
        %v3066 = vld [vmem:[%s530 + $0x240] sm:$0xff]
        %v3067 = vld [vmem:[%s530 + $0x248] sm:$0xff]
        %v3068 = vld [vmem:[%s530 + $0x250] sm:$0xff]
        %v3069 = vld [vmem:[%s530 + $0x258] sm:$0xff]
        %v3070 = vld [vmem:[%s530 + $0x260] sm:$0xff]
        %v3071 = vld [vmem:[%s530 + $0x268] sm:$0xff]
        %v3072 = vld [vmem:[%s530 + $0x270] sm:$0xff]
        %v3073 = vld [vmem:[%s530 + $0x278] sm:$0xff]
        %v3074 = vld [vmem:[%s530 + $0x280] sm:$0xff]
        %v3075 = vld [vmem:[%s530 + $0x288] sm:$0xff]
        %v3076 = vld [vmem:[%s530 + $0x290] sm:$0xff]
        %v3077 = vld [vmem:[%s530 + $0x298] sm:$0xff]
        %v3078 = vld [vmem:[%s530 + $0x2a0] sm:$0xff]
        %v3079 = vld [vmem:[%s530 + $0x2a8] sm:$0xff]
        %v3080 = vld [vmem:[%s530 + $0x2b0] sm:$0xff]
        %v3081 = vld [vmem:[%s530 + $0x2b8] sm:$0xff]
        %v3082 = vld [vmem:[%s530 + $0x2c0] sm:$0xff]
        %v3083 = vld [vmem:[%s530 + $0x2c8] sm:$0xff]
        %v3084 = vld [vmem:[%s530 + $0x2d0] sm:$0xff]
        %v3085 = vld [vmem:[%s530 + $0x2d8] sm:$0xff]
        %v3086 = vld [vmem:[%s530 + $0x2e0] sm:$0xff]
        %v3087 = vld [vmem:[%s530 + $0x2e8] sm:$0xff]
        %v3088 = vld [vmem:[%s530 + $0x2f0] sm:$0xff]
        %v3089 = vld [vmem:[%s530 + $0x2f8] sm:$0xff]
        %v3090 = vld [vmem:[%s530 + $0x300] sm:$0xff]
        %v3091 = vld [vmem:[%s530 + $0x308] sm:$0xff]
        %v3092 = vld [vmem:[%s530 + $0x310] sm:$0xff]
        %v3093 = vld [vmem:[%s530 + $0x318] sm:$0xff]
        %v3094 = vld [vmem:[%s530 + $0x320] sm:$0xff]
        %v3095 = vld [vmem:[%s530 + $0x328] sm:$0xff]
        %v3096 = vld [vmem:[%s530 + $0x330] sm:$0xff]
        %v3097 = vld [vmem:[%s530 + $0x338] sm:$0xff]
        %v3098 = vld [vmem:[%s530 + $0x340] sm:$0xff]
        %v3099 = vld [vmem:[%s530 + $0x348] sm:$0xff]
        %v3100 = vld [vmem:[%s530 + $0x350] sm:$0xff]
        %v3101 = vld [vmem:[%s530 + $0x358] sm:$0xff]
        %v3102 = vld [vmem:[%s530 + $0x360] sm:$0xff]
        %v3103 = vld [vmem:[%s530 + $0x368] sm:$0xff]
        %v3104 = vld [vmem:[%s530 + $0x370] sm:$0xff]
        %v3105 = vld [vmem:[%s530 + $0x378] sm:$0xff]
        %v3106 = vld [vmem:[%s530 + $0x380] sm:$0xff]
        %v3107 = vld [vmem:[%s530 + $0x388] sm:$0xff]
        %v3108 = vld [vmem:[%s530 + $0x390] sm:$0xff]
        %v3109 = vld [vmem:[%s530 + $0x398] sm:$0xff]
        %v3110 = vld [vmem:[%s530 + $0x3a0] sm:$0xff]
        %v3111 = vld [vmem:[%s530 + $0x3a8] sm:$0xff]
        %v3112 = vld [vmem:[%s530 + $0x3b0] sm:$0xff]
        %v3113 = vld [vmem:[%s530 + $0x3b8] sm:$0xff]
        %v3114 = vld [vmem:[%s530 + $0x3c0] sm:$0xff]
        %v3115 = vld [vmem:[%s530 + $0x3c8] sm:$0xff]
        %v3116 = vld [vmem:[%s530 + $0x3d0] sm:$0xff]
        %v3117 = vld [vmem:[%s530 + $0x3d8] sm:$0xff]
        %v3118 = vld [vmem:[%s530 + $0x3e0] sm:$0xff]
        %v3119 = vld [vmem:[%s530 + $0x3e8] sm:$0xff]
        %v3120 = vld [vmem:[%s530 + $0x3f0] sm:$0xff]
        %v3121 = vld [vmem:[%s530 + $0x3f8] sm:$0xff]
        %v3122 = vld [vmem:[%s530 + $0x400] sm:$0xff]
        %v3123 = vld [vmem:[%s530 + $0x408] sm:$0xff]
        %v3124 = vld [vmem:[%s530 + $0x410] sm:$0xff]
        %v3125 = vld [vmem:[%s530 + $0x418] sm:$0xff]
        %v3126 = vld [vmem:[%s530 + $0x420] sm:$0xff]
        %v3127 = vld [vmem:[%s530 + $0x428] sm:$0xff]
        %v3128 = vld [vmem:[%s530 + $0x430] sm:$0xff]
        %v3129 = vld [vmem:[%s530 + $0x438] sm:$0xff]
        %v3130 = vld [vmem:[%s530 + $0x440] sm:$0xff]
        %v3131 = vld [vmem:[%s530 + $0x448] sm:$0xff]
        %v3132 = vld [vmem:[%s530 + $0x450] sm:$0xff]
        %v3133 = vld [vmem:[%s530 + $0x458] sm:$0xff]
        %v3134 = vld [vmem:[%s530 + $0x460] sm:$0xff]
        %v3135 = vld [vmem:[%s530 + $0x468] sm:$0xff]
        %v3136 = vld [vmem:[%s530 + $0x470] sm:$0xff]
        %v3137 = vld [vmem:[%s530 + $0x478] sm:$0xff]
        %v3138 = vld [vmem:[%s530 + $0x480] sm:$0xff]
        %v3139 = vld [vmem:[%s530 + $0x488] sm:$0xff]
        %v3140 = vld [vmem:[%s530 + $0x490] sm:$0xff]
        %v3141 = vld [vmem:[%s530 + $0x498] sm:$0xff]
        %v3142 = vld [vmem:[%s530 + $0x4a0] sm:$0xff]
        %v3143 = vld [vmem:[%s530 + $0x4a8] sm:$0xff]
        %v3144 = vld [vmem:[%s530 + $0x4b0] sm:$0xff]
        %v3145 = vld [vmem:[%s530 + $0x4b8] sm:$0xff]
        %v3146 = vld [vmem:[%s530 + $0x4c0] sm:$0xff]
        %v3147 = vld [vmem:[%s530 + $0x4c8] sm:$0xff]
        %v3148 = vld [vmem:[%s530 + $0x4d0] sm:$0xff]
        %v3149 = vld [vmem:[%s530 + $0x4d8] sm:$0xff]
        %v3150 = vld [vmem:[%s530 + $0x4e0] sm:$0xff]
        %v3151 = vld [vmem:[%s530 + $0x4e8] sm:$0xff]
        %v3152 = vld [vmem:[%s530 + $0x4f0] sm:$0xff]
        %v3153 = vld [vmem:[%s530 + $0x4f8] sm:$0xff]
        %v3154 = vld [vmem:[%s530 + $0x500] sm:$0xff]
        %v3155 = vld [vmem:[%s530 + $0x508] sm:$0xff]
        %v3156 = vld [vmem:[%s530 + $0x510] sm:$0xff]
        %v3157 = vld [vmem:[%s530 + $0x518] sm:$0xff]
        %v3158 = vld [vmem:[%s530 + $0x520] sm:$0xff]
        %v3159 = vld [vmem:[%s530 + $0x528] sm:$0xff]
        %v3160 = vld [vmem:[%s530 + $0x530] sm:$0xff]
        %v3161 = vld [vmem:[%s530 + $0x538] sm:$0xff]
        %v3162 = vld [vmem:[%s530 + $0x540] sm:$0xff]
        %v3163 = vld [vmem:[%s530 + $0x548] sm:$0xff]
        %v3164 = vld [vmem:[%s530 + $0x550] sm:$0xff]
        %v3165 = vld [vmem:[%s530 + $0x558] sm:$0xff]
        %v3166 = vld [vmem:[%s530 + $0x560] sm:$0xff]
        %v3167 = vld [vmem:[%s530 + $0x568] sm:$0xff]
        %v3168 = vld [vmem:[%s530 + $0x570] sm:$0xff]
        %v3169 = vld [vmem:[%s530 + $0x578] sm:$0xff]
        %v3170 = vld [vmem:[%s530 + $0x580] sm:$0xff]
        %v3171 = vld [vmem:[%s530 + $0x588] sm:$0xff]
        %v3172 = vld [vmem:[%s530 + $0x590] sm:$0xff]
        %v3173 = vld [vmem:[%s530 + $0x598] sm:$0xff]
        %v3174 = vld [vmem:[%s530 + $0x5a0] sm:$0xff]
        %v3175 = vld [vmem:[%s530 + $0x5a8] sm:$0xff]
        %v3176 = vld [vmem:[%s530 + $0x5b0] sm:$0xff]
        %v3177 = vld [vmem:[%s530 + $0x5b8] sm:$0xff]
        %v3178 = vld [vmem:[%s530 + $0x5c0] sm:$0xff]
        %v3179 = vld [vmem:[%s530 + $0x5c8] sm:$0xff]
        %v3180 = vld [vmem:[%s530 + $0x5d0] sm:$0xff]
        %v3181 = vld [vmem:[%s530 + $0x5d8] sm:$0xff]
        %v3182 = vld [vmem:[%s530 + $0x5e0] sm:$0xff]
        %v3183 = vld [vmem:[%s530 + $0x5e8] sm:$0xff]
        %v3184 = vld [vmem:[%s530 + $0x5f0] sm:$0xff]
        %v3185 = vld [vmem:[%s530 + $0x5f8] sm:$0xff]
        %v3186 = vld [vmem:[%s530 + $0x600] sm:$0xff]
        %v3187 = vld [vmem:[%s530 + $0x608] sm:$0xff]
        %v3188 = vld [vmem:[%s530 + $0x610] sm:$0xff]
        %v3189 = vld [vmem:[%s530 + $0x618] sm:$0xff]
        %v3190 = vld [vmem:[%s530 + $0x620] sm:$0xff]
        %v3191 = vld [vmem:[%s530 + $0x628] sm:$0xff]
        %v3192 = vld [vmem:[%s530 + $0x630] sm:$0xff]
        %v3193 = vld [vmem:[%s530 + $0x638] sm:$0xff]
        %v3194 = vld [vmem:[%s530 + $0x640] sm:$0xff]
        %v3195 = vld [vmem:[%s530 + $0x648] sm:$0xff]
        %v3196 = vld [vmem:[%s530 + $0x650] sm:$0xff]
        %v3197 = vld [vmem:[%s530 + $0x658] sm:$0xff]
        %v3198 = vld [vmem:[%s530 + $0x660] sm:$0xff]
        %v3199 = vld [vmem:[%s530 + $0x668] sm:$0xff]
        %v3200 = vld [vmem:[%s530 + $0x670] sm:$0xff]
        %v3201 = vld [vmem:[%s530 + $0x678] sm:$0xff]
        %v3202 = vld [vmem:[%s530 + $0x680] sm:$0xff]
        %v3203 = vld [vmem:[%s530 + $0x688] sm:$0xff]
        %v3204 = vld [vmem:[%s530 + $0x690] sm:$0xff]
        %v3205 = vld [vmem:[%s530 + $0x698] sm:$0xff]
        %v3206 = vld [vmem:[%s530 + $0x6a0] sm:$0xff]
        %v3207 = vld [vmem:[%s530 + $0x6a8] sm:$0xff]
        %v3208 = vld [vmem:[%s530 + $0x6b0] sm:$0xff]
        %v3209 = vld [vmem:[%s530 + $0x6b8] sm:$0xff]
        %v3210 = vld [vmem:[%s530 + $0x6c0] sm:$0xff]
        %v3211 = vld [vmem:[%s530 + $0x6c8] sm:$0xff]
        %v3212 = vld [vmem:[%s530 + $0x6d0] sm:$0xff]
        %v3213 = vld [vmem:[%s530 + $0x6d8] sm:$0xff]
        %v3214 = vld [vmem:[%s530 + $0x6e0] sm:$0xff]
        %v3215 = vld [vmem:[%s530 + $0x6e8] sm:$0xff]
        %v3216 = vld [vmem:[%s530 + $0x6f0] sm:$0xff]
        %v3217 = vld [vmem:[%s530 + $0x6f8] sm:$0xff]
        %v3218 = vld [vmem:[%s530 + $0x700] sm:$0xff]
        %v3219 = vld [vmem:[%s530 + $0x708] sm:$0xff]
        %v3220 = vld [vmem:[%s530 + $0x710] sm:$0xff]
        %v3221 = vld [vmem:[%s530 + $0x718] sm:$0xff]
        %v3222 = vld [vmem:[%s530 + $0x720] sm:$0xff]
        %v3223 = vld [vmem:[%s530 + $0x728] sm:$0xff]
        %v3224 = vld [vmem:[%s530 + $0x730] sm:$0xff]
        %v3225 = vld [vmem:[%s530 + $0x738] sm:$0xff]
        %v3226 = vld [vmem:[%s530 + $0x740] sm:$0xff]
        %v3227 = vld [vmem:[%s530 + $0x748] sm:$0xff]
        %v3228 = vld [vmem:[%s530 + $0x750] sm:$0xff]
        %v3229 = vld [vmem:[%s530 + $0x758] sm:$0xff]
        %v3230 = vld [vmem:[%s530 + $0x760] sm:$0xff]
        %v3231 = vld [vmem:[%s530 + $0x768] sm:$0xff]
        %v3232 = vld [vmem:[%s530 + $0x770] sm:$0xff]
        %v3233 = vld [vmem:[%s530 + $0x778] sm:$0xff]
        %v3234 = vld [vmem:[%s530 + $0x780] sm:$0xff]
        %v3235 = vld [vmem:[%s530 + $0x788] sm:$0xff]
        %v3236 = vld [vmem:[%s530 + $0x790] sm:$0xff]
        %v3237 = vld [vmem:[%s530 + $0x798] sm:$0xff]
        %v3238 = vld [vmem:[%s530 + $0x7a0] sm:$0xff]
        %v3239 = vld [vmem:[%s530 + $0x7a8] sm:$0xff]
        %v3240 = vld [vmem:[%s530 + $0x7b0] sm:$0xff]
        %v3241 = vld [vmem:[%s530 + $0x7b8] sm:$0xff]
        %v3242 = vld [vmem:[%s530 + $0x7c0] sm:$0xff]
        %v3243 = vld [vmem:[%s530 + $0x7c8] sm:$0xff]
        %v3244 = vld [vmem:[%s530 + $0x7d0] sm:$0xff]
        %v3245 = vld [vmem:[%s530 + $0x7d8] sm:$0xff]
        %v3246 = vld [vmem:[%s530 + $0x7e0] sm:$0xff]
        %v3247 = vld [vmem:[%s530 + $0x7e8] sm:$0xff]
        %v3248 = vld [vmem:[%s530 + $0x7f0] sm:$0xff]
        %v3249 = vld [vmem:[%s530 + $0x7f8] sm:$0xff]
        %v3250 = vld [vmem:[%s530 + $0x800] sm:$0xff]
        %v3251 = vld [vmem:[%s530 + $0x808] sm:$0xff]
        %v3252 = vld [vmem:[%s530 + $0x810] sm:$0xff]
        %v3253 = vld [vmem:[%s530 + $0x818] sm:$0xff]
        %v3254 = vld [vmem:[%s530 + $0x820] sm:$0xff]
        %v3255 = vld [vmem:[%s530 + $0x828] sm:$0xff]
        %v3256 = vld [vmem:[%s530 + $0x830] sm:$0xff]
        %v3257 = vld [vmem:[%s530 + $0x838] sm:$0xff]
        %v3258 = vld [vmem:[%s530 + $0x840] sm:$0xff]
        %v3259 = vld [vmem:[%s530 + $0x848] sm:$0xff]
        %v3260 = vld [vmem:[%s530 + $0x850] sm:$0xff]
        %v3261 = vld [vmem:[%s530 + $0x858] sm:$0xff]
        %v3262 = vld [vmem:[%s530 + $0x860] sm:$0xff]
        %v3263 = vld [vmem:[%s530 + $0x868] sm:$0xff]
        %v3264 = vld [vmem:[%s530 + $0x870] sm:$0xff]
        %v3265 = vld [vmem:[%s530 + $0x878] sm:$0xff]
        %v3266 = vld [vmem:[%s530 + $0x880] sm:$0xff]
        %v3267 = vld [vmem:[%s530 + $0x888] sm:$0xff]
        %v3268 = vld [vmem:[%s530 + $0x890] sm:$0xff]
        %v3269 = vld [vmem:[%s530 + $0x898] sm:$0xff]
        %v3270 = vld [vmem:[%s530 + $0x8a0] sm:$0xff]
        %v3271 = vld [vmem:[%s530 + $0x8a8] sm:$0xff]
        %v3272 = vld [vmem:[%s530 + $0x8b0] sm:$0xff]
        %v3273 = vld [vmem:[%s530 + $0x8b8] sm:$0xff]
        %v3274 = vld [vmem:[%s530 + $0x8c0] sm:$0xff]
        %v3275 = vld [vmem:[%s530 + $0x8c8] sm:$0xff]
        %v3276 = vld [vmem:[%s530 + $0x8d0] sm:$0xff]
        %v3277 = vld [vmem:[%s530 + $0x8d8] sm:$0xff]
        %v3278 = vld [vmem:[%s530 + $0x8e0] sm:$0xff]
        %v3279 = vld [vmem:[%s530 + $0x8e8] sm:$0xff]
        %v3280 = vld [vmem:[%s530 + $0x8f0] sm:$0xff]
        %v3281 = vld [vmem:[%s530 + $0x8f8] sm:$0xff]
        %v3282 = vld [vmem:[%s530 + $0x900] sm:$0xff]
        %v3283 = vld [vmem:[%s530 + $0x908] sm:$0xff]
        %v3284 = vld [vmem:[%s530 + $0x910] sm:$0xff]
        %v3285 = vld [vmem:[%s530 + $0x918] sm:$0xff]
        %v3286 = vld [vmem:[%s530 + $0x920] sm:$0xff]
        %v3287 = vld [vmem:[%s530 + $0x928] sm:$0xff]
        %v3288 = vld [vmem:[%s530 + $0x930] sm:$0xff]
        %v3289 = vld [vmem:[%s530 + $0x938] sm:$0xff]
        %v3290 = vld [vmem:[%s530 + $0x940] sm:$0xff]
        %v3291 = vld [vmem:[%s530 + $0x948] sm:$0xff]
        %v3292 = vld [vmem:[%s530 + $0x950] sm:$0xff]
        %v3293 = vld [vmem:[%s530 + $0x958] sm:$0xff]
        %v3294 = vld [vmem:[%s530 + $0x960] sm:$0xff]
        %v3295 = vld [vmem:[%s530 + $0x968] sm:$0xff]
        %v3296 = vld [vmem:[%s530 + $0x970] sm:$0xff]
        %v3297 = vld [vmem:[%s530 + $0x978] sm:$0xff]
        %v3298 = vld [vmem:[%s530 + $0x980] sm:$0xff]
        %v3299 = vld [vmem:[%s530 + $0x988] sm:$0xff]
        %v3300 = vld [vmem:[%s530 + $0x990] sm:$0xff]
        %v3301 = vld [vmem:[%s530 + $0x998] sm:$0xff]
        %v3302 = vld [vmem:[%s530 + $0x9a0] sm:$0xff]
        %v3303 = vld [vmem:[%s530 + $0x9a8] sm:$0xff]
        %v3304 = vld [vmem:[%s530 + $0x9b0] sm:$0xff]
        %v3305 = vld [vmem:[%s530 + $0x9b8] sm:$0xff]
        %v3306 = vld [vmem:[%s530 + $0x9c0] sm:$0xff]
        %v3307 = vld [vmem:[%s530 + $0x9c8] sm:$0xff]
        %v3308 = vld [vmem:[%s530 + $0x9d0] sm:$0xff]
        %v3309 = vld [vmem:[%s530 + $0x9d8] sm:$0xff]
        %v3310 = vld [vmem:[%s530 + $0x9e0] sm:$0xff]
        %v3311 = vld [vmem:[%s530 + $0x9e8] sm:$0xff]
        %v3312 = vld [vmem:[%s530 + $0x9f0] sm:$0xff]
        %v3313 = vld [vmem:[%s530 + $0x9f8] sm:$0xff]
        %v3314 = vld [vmem:[%s530 + $0xa00] sm:$0xff]
        %v3315 = vld [vmem:[%s530 + $0xa08] sm:$0xff]
        %v3316 = vld [vmem:[%s530 + $0xa10] sm:$0xff]
        %v3317 = vld [vmem:[%s530 + $0xa18] sm:$0xff]
        %v3318 = vld [vmem:[%s530 + $0xa20] sm:$0xff]
        %v3319 = vld [vmem:[%s530 + $0xa28] sm:$0xff]
        %v3320 = vld [vmem:[%s530 + $0xa30] sm:$0xff]
        %v3321 = vld [vmem:[%s530 + $0xa38] sm:$0xff]
        %v3322 = vld [vmem:[%s530 + $0xa40] sm:$0xff]
        %v3323 = vld [vmem:[%s530 + $0xa48] sm:$0xff]
        %v3324 = vld [vmem:[%s530 + $0xa50] sm:$0xff]
        %v3325 = vld [vmem:[%s530 + $0xa58] sm:$0xff]
        %v3326 = vld [vmem:[%s530 + $0xa60] sm:$0xff]
        %v3327 = vld [vmem:[%s530 + $0xa68] sm:$0xff]
        %v3328 = vld [vmem:[%s530 + $0xa70] sm:$0xff]
        %v3329 = vld [vmem:[%s530 + $0xa78] sm:$0xff]
        %v3330 = vld [vmem:[%s530 + $0xa80] sm:$0xff]
        %v3331 = vld [vmem:[%s530 + $0xa88] sm:$0xff]
        %v3332 = vld [vmem:[%s530 + $0xa90] sm:$0xff]
        %v3333 = vld [vmem:[%s530 + $0xa98] sm:$0xff]
        %v3334 = vld [vmem:[%s530 + $0xaa0] sm:$0xff]
        %v3335 = vld [vmem:[%s530 + $0xaa8] sm:$0xff]
        %v3336 = vld [vmem:[%s530 + $0xab0] sm:$0xff]
        %v3337 = vld [vmem:[%s530 + $0xab8] sm:$0xff]
        %v3338 = vld [vmem:[%s530 + $0xac0] sm:$0xff]
        %v3339 = vld [vmem:[%s530 + $0xac8] sm:$0xff]
        %v3340 = vld [vmem:[%s530 + $0xad0] sm:$0xff]
        %v3341 = vld [vmem:[%s530 + $0xad8] sm:$0xff]
        %v3342 = vld [vmem:[%s530 + $0xae0] sm:$0xff]
        %v3343 = vld [vmem:[%s530 + $0xae8] sm:$0xff]
        %v3344 = vld [vmem:[%s530 + $0xaf0] sm:$0xff]
        %v3345 = vld [vmem:[%s530 + $0xaf8] sm:$0xff]
        %v3346 = vld [vmem:[%s530 + $0xb00] sm:$0xff]
        %v3347 = vld [vmem:[%s530 + $0xb08] sm:$0xff]
        %v3348 = vld [vmem:[%s530 + $0xb10] sm:$0xff]
        %v3349 = vld [vmem:[%s530 + $0xb18] sm:$0xff]
        %v3350 = vld [vmem:[%s530 + $0xb20] sm:$0xff]
        %v3351 = vld [vmem:[%s530 + $0xb28] sm:$0xff]
        %v3352 = vld [vmem:[%s530 + $0xb30] sm:$0xff]
        %v3353 = vld [vmem:[%s530 + $0xb38] sm:$0xff]
        %v3354 = vld [vmem:[%s530 + $0xb40] sm:$0xff]
        %v3355 = vld [vmem:[%s530 + $0xb48] sm:$0xff]
        %v3356 = vld [vmem:[%s530 + $0xb50] sm:$0xff]
        %v3357 = vld [vmem:[%s530 + $0xb58] sm:$0xff]
        %v3358 = vld [vmem:[%s530 + $0xb60] sm:$0xff]
        %v3359 = vld [vmem:[%s530 + $0xb68] sm:$0xff]
        %v3360 = vld [vmem:[%s530 + $0xb70] sm:$0xff]
        %v3361 = vld [vmem:[%s530 + $0xb78] sm:$0xff]
        %v3362 = vld [vmem:[%s530 + $0xb80] sm:$0xff]
        %v3363 = vld [vmem:[%s530 + $0xb88] sm:$0xff]
        %v3364 = vld [vmem:[%s530 + $0xb90] sm:$0xff]
        %v3365 = vld [vmem:[%s530 + $0xb98] sm:$0xff]
        %v3366 = vld [vmem:[%s530 + $0xba0] sm:$0xff]
        %v3367 = vld [vmem:[%s530 + $0xba8] sm:$0xff]
        %v3368 = vld [vmem:[%s530 + $0xbb0] sm:$0xff]
        %v3369 = vld [vmem:[%s530 + $0xbb8] sm:$0xff]
        %v3370 = vld [vmem:[%s530 + $0xbc0] sm:$0xff]
        %v3371 = vld [vmem:[%s530 + $0xbc8] sm:$0xff]
        %v3372 = vld [vmem:[%s530 + $0xbd0] sm:$0xff]
        %v3373 = vld [vmem:[%s530 + $0xbd8] sm:$0xff]
        %v3374 = vld [vmem:[%s530 + $0xbe0] sm:$0xff]
        %v3375 = vld [vmem:[%s530 + $0xbe8] sm:$0xff]
        %v3376 = vld [vmem:[%s530 + $0xbf0] sm:$0xff]
        %v3377 = vld [vmem:[%s530 + $0xbf8] sm:$0xff]
        %v3378 = vld [vmem:[%s530 + $0xc00] sm:$0xff]
        %v3379 = vld [vmem:[%s530 + $0xc08] sm:$0xff]
        %v3380 = vld [vmem:[%s530 + $0xc10] sm:$0xff]
        %v3381 = vld [vmem:[%s530 + $0xc18] sm:$0xff]
        %v3382 = vld [vmem:[%s530 + $0xc20] sm:$0xff]
        %v3383 = vld [vmem:[%s530 + $0xc28] sm:$0xff]
        %v3384 = vld [vmem:[%s530 + $0xc30] sm:$0xff]
        %v3385 = vld [vmem:[%s530 + $0xc38] sm:$0xff]
        %v3386 = vld [vmem:[%s530 + $0xc40] sm:$0xff]
        %v3387 = vld [vmem:[%s530 + $0xc48] sm:$0xff]
        %v3388 = vld [vmem:[%s530 + $0xc50] sm:$0xff]
        %v3389 = vld [vmem:[%s530 + $0xc58] sm:$0xff]
        %v3390 = vld [vmem:[%s530 + $0xc60] sm:$0xff]
        %v3391 = vld [vmem:[%s530 + $0xc68] sm:$0xff]
        %v3392 = vld [vmem:[%s530 + $0xc70] sm:$0xff]
        %v3393 = vld [vmem:[%s530 + $0xc78] sm:$0xff]
        %v3394 = vld [vmem:[%s530 + $0xc80] sm:$0xff]
        %v3395 = vld [vmem:[%s530 + $0xc88] sm:$0xff]
        %v3396 = vld [vmem:[%s530 + $0xc90] sm:$0xff]
        %v3397 = vld [vmem:[%s530 + $0xc98] sm:$0xff]
        %v3398 = vld [vmem:[%s530 + $0xca0] sm:$0xff]
        %v3399 = vld [vmem:[%s530 + $0xca8] sm:$0xff]
        %v3400 = vld [vmem:[%s530 + $0xcb0] sm:$0xff]
        %v3401 = vld [vmem:[%s530 + $0xcb8] sm:$0xff]
        %v3402 = vld [vmem:[%s530 + $0xcc0] sm:$0xff]
        %v3403 = vld [vmem:[%s530 + $0xcc8] sm:$0xff]
        %v3404 = vld [vmem:[%s530 + $0xcd0] sm:$0xff]
        %v3405 = vld [vmem:[%s530 + $0xcd8] sm:$0xff]
        %v3406 = vld [vmem:[%s530 + $0xce0] sm:$0xff]
        %v3407 = vld [vmem:[%s530 + $0xce8] sm:$0xff]
        %v3408 = vld [vmem:[%s530 + $0xcf0] sm:$0xff]
        %v3409 = vld [vmem:[%s530 + $0xcf8] sm:$0xff]
        %v3410 = vld [vmem:[%s530 + $0xd00] sm:$0xff]
        %v3411 = vld [vmem:[%s530 + $0xd08] sm:$0xff]
        %v3412 = vld [vmem:[%s530 + $0xd10] sm:$0xff]
        %v3413 = vld [vmem:[%s530 + $0xd18] sm:$0xff]
        %v3414 = vld [vmem:[%s530 + $0xd20] sm:$0xff]
        %v3415 = vld [vmem:[%s530 + $0xd28] sm:$0xff]
        %v3416 = vld [vmem:[%s530 + $0xd30] sm:$0xff]
        %v3417 = vld [vmem:[%s530 + $0xd38] sm:$0xff]
        %v3418 = vld [vmem:[%s530 + $0xd40] sm:$0xff]
        %v3419 = vld [vmem:[%s530 + $0xd48] sm:$0xff]
        %v3420 = vld [vmem:[%s530 + $0xd50] sm:$0xff]
        %v3421 = vld [vmem:[%s530 + $0xd58] sm:$0xff]
        %v3422 = vld [vmem:[%s530 + $0xd60] sm:$0xff]
        %v3423 = vld [vmem:[%s530 + $0xd68] sm:$0xff]
        %v3424 = vld [vmem:[%s530 + $0xd70] sm:$0xff]
        %v3425 = vld [vmem:[%s530 + $0xd78] sm:$0xff]
        %v3426 = vld [vmem:[%s530 + $0xd80] sm:$0xff]
        %v3427 = vld [vmem:[%s530 + $0xd88] sm:$0xff]
        %v3428 = vld [vmem:[%s530 + $0xd90] sm:$0xff]
        %v3429 = vld [vmem:[%s530 + $0xd98] sm:$0xff]
        %v3430 = vld [vmem:[%s530 + $0xda0] sm:$0xff]
        %v3431 = vld [vmem:[%s530 + $0xda8] sm:$0xff]
        %v3432 = vld [vmem:[%s530 + $0xdb0] sm:$0xff]
        %v3433 = vld [vmem:[%s530 + $0xdb8] sm:$0xff]
        %v3434 = vld [vmem:[%s530 + $0xdc0] sm:$0xff]
        %v3435 = vld [vmem:[%s530 + $0xdc8] sm:$0xff]
        %v3436 = vld [vmem:[%s530 + $0xdd0] sm:$0xff]
        %v3437 = vld [vmem:[%s530 + $0xdd8] sm:$0xff]
        %v3438 = vld [vmem:[%s530 + $0xde0] sm:$0xff]
        %v3439 = vld [vmem:[%s530 + $0xde8] sm:$0xff]
        %v3440 = vld [vmem:[%s530 + $0xdf0] sm:$0xff]
        %v3441 = vld [vmem:[%s530 + $0xdf8] sm:$0xff]
        %v3442 = vld [vmem:[%s530 + $0xe00] sm:$0xff]
        %v3443 = vld [vmem:[%s530 + $0xe08] sm:$0xff]
        %v3444 = vld [vmem:[%s530 + $0xe10] sm:$0xff]
        %v3445 = vld [vmem:[%s530 + $0xe18] sm:$0xff]
        %v3446 = vld [vmem:[%s530 + $0xe20] sm:$0xff]
        %v3447 = vld [vmem:[%s530 + $0xe28] sm:$0xff]
        %v3448 = vld [vmem:[%s530 + $0xe30] sm:$0xff]
        %v3449 = vld [vmem:[%s530 + $0xe38] sm:$0xff]
        %v3450 = vld [vmem:[%s530 + $0xe40] sm:$0xff]
        %v3451 = vld [vmem:[%s530 + $0xe48] sm:$0xff]
        %v3452 = vld [vmem:[%s530 + $0xe50] sm:$0xff]
        %v3453 = vld [vmem:[%s530 + $0xe58] sm:$0xff]
        %v3454 = vld [vmem:[%s530 + $0xe60] sm:$0xff]
        %v3455 = vld [vmem:[%s530 + $0xe68] sm:$0xff]
        %v3456 = vld [vmem:[%s530 + $0xe70] sm:$0xff]
        %v3457 = vld [vmem:[%s530 + $0xe78] sm:$0xff]
        %v3458 = vld [vmem:[%s530 + $0xe80] sm:$0xff]
        %v3459 = vld [vmem:[%s530 + $0xe88] sm:$0xff]
        %v3460 = vld [vmem:[%s530 + $0xe90] sm:$0xff]
        %v3461 = vld [vmem:[%s530 + $0xe98] sm:$0xff]
        %v3462 = vld [vmem:[%s530 + $0xea0] sm:$0xff]
        %v3463 = vld [vmem:[%s530 + $0xea8] sm:$0xff]
        %v3464 = vld [vmem:[%s530 + $0xeb0] sm:$0xff]
        %v3465 = vld [vmem:[%s530 + $0xeb8] sm:$0xff]
        %v3466 = vld [vmem:[%s530 + $0xec0] sm:$0xff]
        %v3467 = vld [vmem:[%s530 + $0xec8] sm:$0xff]
        %v3468 = vld [vmem:[%s530 + $0xed0] sm:$0xff]
        %v3469 = vld [vmem:[%s530 + $0xed8] sm:$0xff]
        %v3470 = vld [vmem:[%s530 + $0xee0] sm:$0xff]
        %v3471 = vld [vmem:[%s530 + $0xee8] sm:$0xff]
        %v3472 = vld [vmem:[%s530 + $0xef0] sm:$0xff]
        %v3473 = vld [vmem:[%s530 + $0xef8] sm:$0xff]
        %v3474 = vld [vmem:[%s530 + $0xf00] sm:$0xff]
        %v3475 = vld [vmem:[%s530 + $0xf08] sm:$0xff]
        %v3476 = vld [vmem:[%s530 + $0xf10] sm:$0xff]
        %v3477 = vld [vmem:[%s530 + $0xf18] sm:$0xff]
        %v3478 = vld [vmem:[%s530 + $0xf20] sm:$0xff]
        %v3479 = vld [vmem:[%s530 + $0xf28] sm:$0xff]
        %v3480 = vld [vmem:[%s530 + $0xf30] sm:$0xff]
        %v3481 = vld [vmem:[%s530 + $0xf38] sm:$0xff]
        %v3482 = vld [vmem:[%s530 + $0xf40] sm:$0xff]
        %v3483 = vld [vmem:[%s530 + $0xf48] sm:$0xff]
        %v3484 = vld [vmem:[%s530 + $0xf50] sm:$0xff]
        %v3485 = vld [vmem:[%s530 + $0xf58] sm:$0xff]
        %v3486 = vld [vmem:[%s530 + $0xf60] sm:$0xff]
        %v3487 = vld [vmem:[%s530 + $0xf68] sm:$0xff]
        %v3488 = vld [vmem:[%s530 + $0xf70] sm:$0xff]
        %v3489 = vld [vmem:[%s530 + $0xf78] sm:$0xff]
        %v3490 = vld [vmem:[%s530 + $0xf80] sm:$0xff]
        %v3491 = vld [vmem:[%s530 + $0xf88] sm:$0xff]
        %v3492 = vld [vmem:[%s530 + $0xf90] sm:$0xff]
        %v3493 = vld [vmem:[%s530 + $0xf98] sm:$0xff]
        %v3494 = vld [vmem:[%s530 + $0xfa0] sm:$0xff]
        %v3495 = vld [vmem:[%s530 + $0xfa8] sm:$0xff]
        %v3496 = vld [vmem:[%s530 + $0xfb0] sm:$0xff]
        %v3497 = vld [vmem:[%s530 + $0xfb8] sm:$0xff]
        %v3498 = vld [vmem:[%s530 + $0xfc0] sm:$0xff]
        %v3499 = vld [vmem:[%s530 + $0xfc8] sm:$0xff]
        %v3500 = vld [vmem:[%s530 + $0xfd0] sm:$0xff]
        %v3501 = vld [vmem:[%s530 + $0xfd8] sm:$0xff]
        %v3502 = vld [vmem:[%s530 + $0xfe0] sm:$0xff]
        %v3503 = vld [vmem:[%s530 + $0xfe8] sm:$0xff]
        %v3504 = vld [vmem:[%s530 + $0xff0] sm:$0xff]
        %v3505 = vld [vmem:[%s530 + $0xff8] sm:$0xff]
        %v3506 = vunpack.c.l.s8.bf16 %v2994
        %v3507 = vunpack.c.l.s8.bf16 %v2995
        %v3508 = vunpack.c.l.s8.bf16 %v2996
        %v3509 = vunpack.c.l.s8.bf16 %v2997
        %v3510 = vunpack.c.h.s8.bf16 %v2994
        %v3511 = vunpack.c.h.s8.bf16 %v2995
        %v3512 = vunpack.c.h.s8.bf16 %v2996
        %v3513 = vunpack.c.h.s8.bf16 %v2997
        %v3514 = vunpack.c.l.s8.bf16 %v2998
        %v3515 = vunpack.c.l.s8.bf16 %v2999
        %v3516 = vunpack.c.l.s8.bf16 %v3000
        %v3517 = vunpack.c.l.s8.bf16 %v3001
        %v3518 = vunpack.c.h.s8.bf16 %v2998
        %v3519 = vunpack.c.h.s8.bf16 %v2999
        %v3520 = vunpack.c.h.s8.bf16 %v3000
        %v3521 = vunpack.c.h.s8.bf16 %v3001
        %v3522 = vunpack.c.l.s8.bf16 %v3002
        %v3523 = vunpack.c.l.s8.bf16 %v3003
        %v3524 = vunpack.c.l.s8.bf16 %v3004
        %v3525 = vunpack.c.l.s8.bf16 %v3005
        %v3526 = vunpack.c.h.s8.bf16 %v3002
        %v3527 = vunpack.c.h.s8.bf16 %v3003
        %v3528 = vunpack.c.h.s8.bf16 %v3004
        %v3529 = vunpack.c.h.s8.bf16 %v3005
        %v3530 = vunpack.c.l.s8.bf16 %v3006
        %v3531 = vunpack.c.l.s8.bf16 %v3007
        %v3532 = vunpack.c.l.s8.bf16 %v3008
        %v3533 = vunpack.c.l.s8.bf16 %v3009
        %v3534 = vunpack.c.h.s8.bf16 %v3006
        %v3535 = vunpack.c.h.s8.bf16 %v3007
        %v3536 = vunpack.c.h.s8.bf16 %v3008
        %v3537 = vunpack.c.h.s8.bf16 %v3009
        %v3538 = vunpack.c.l.s8.bf16 %v3010
        %v3539 = vunpack.c.l.s8.bf16 %v3011
        %v3540 = vunpack.c.l.s8.bf16 %v3012
        %v3541 = vunpack.c.l.s8.bf16 %v3013
        %v3542 = vunpack.c.h.s8.bf16 %v3010
        %v3543 = vunpack.c.h.s8.bf16 %v3011
        %v3544 = vunpack.c.h.s8.bf16 %v3012
        %v3545 = vunpack.c.h.s8.bf16 %v3013
        %v3546 = vunpack.c.l.s8.bf16 %v3014
        %v3547 = vunpack.c.l.s8.bf16 %v3015
        %v3548 = vunpack.c.l.s8.bf16 %v3016
        %v3549 = vunpack.c.l.s8.bf16 %v3017
        %v3550 = vunpack.c.h.s8.bf16 %v3014
        %v3551 = vunpack.c.h.s8.bf16 %v3015
        %v3552 = vunpack.c.h.s8.bf16 %v3016
        %v3553 = vunpack.c.h.s8.bf16 %v3017
        %v3554 = vunpack.c.l.s8.bf16 %v3018
        %v3555 = vunpack.c.l.s8.bf16 %v3019
        %v3556 = vunpack.c.l.s8.bf16 %v3020
        %v3557 = vunpack.c.l.s8.bf16 %v3021
        %v3558 = vunpack.c.h.s8.bf16 %v3018
        %v3559 = vunpack.c.h.s8.bf16 %v3019
        %v3560 = vunpack.c.h.s8.bf16 %v3020
        %v3561 = vunpack.c.h.s8.bf16 %v3021
        %v3562 = vunpack.c.l.s8.bf16 %v3022
        %v3563 = vunpack.c.l.s8.bf16 %v3023
        %v3564 = vunpack.c.l.s8.bf16 %v3024
        %v3565 = vunpack.c.l.s8.bf16 %v3025
        %v3566 = vunpack.c.h.s8.bf16 %v3022
        %v3567 = vunpack.c.h.s8.bf16 %v3023
        %v3568 = vunpack.c.h.s8.bf16 %v3024
        %v3569 = vunpack.c.h.s8.bf16 %v3025
        %v3570 = vunpack.c.l.s8.bf16 %v3026
        %v3571 = vunpack.c.l.s8.bf16 %v3027
        %v3572 = vunpack.c.l.s8.bf16 %v3028
        %v3573 = vunpack.c.l.s8.bf16 %v3029
        %v3574 = vunpack.c.h.s8.bf16 %v3026
        %v3575 = vunpack.c.h.s8.bf16 %v3027
        %v3576 = vunpack.c.h.s8.bf16 %v3028
        %v3577 = vunpack.c.h.s8.bf16 %v3029
        %v3578 = vunpack.c.l.s8.bf16 %v3030
        %v3579 = vunpack.c.l.s8.bf16 %v3031
        %v3580 = vunpack.c.l.s8.bf16 %v3032
        %v3581 = vunpack.c.l.s8.bf16 %v3033
        %v3582 = vunpack.c.h.s8.bf16 %v3030
        %v3583 = vunpack.c.h.s8.bf16 %v3031
        %v3584 = vunpack.c.h.s8.bf16 %v3032
        %v3585 = vunpack.c.h.s8.bf16 %v3033
        %v3586 = vunpack.c.l.s8.bf16 %v3034
        %v3587 = vunpack.c.l.s8.bf16 %v3035
        %v3588 = vunpack.c.l.s8.bf16 %v3036
        %v3589 = vunpack.c.l.s8.bf16 %v3037
        %v3590 = vunpack.c.h.s8.bf16 %v3034
        %v3591 = vunpack.c.h.s8.bf16 %v3035
        %v3592 = vunpack.c.h.s8.bf16 %v3036
        %v3593 = vunpack.c.h.s8.bf16 %v3037
        %v3594 = vunpack.c.l.s8.bf16 %v3038
        %v3595 = vunpack.c.l.s8.bf16 %v3039
        %v3596 = vunpack.c.l.s8.bf16 %v3040
        %v3597 = vunpack.c.l.s8.bf16 %v3041
        %v3598 = vunpack.c.h.s8.bf16 %v3038
        %v3599 = vunpack.c.h.s8.bf16 %v3039
        %v3600 = vunpack.c.h.s8.bf16 %v3040
        %v3601 = vunpack.c.h.s8.bf16 %v3041
        %v3602 = vunpack.c.l.s8.bf16 %v3042
        %v3603 = vunpack.c.l.s8.bf16 %v3043
        %v3604 = vunpack.c.l.s8.bf16 %v3044
        %v3605 = vunpack.c.l.s8.bf16 %v3045
        %v3606 = vunpack.c.h.s8.bf16 %v3042
        %v3607 = vunpack.c.h.s8.bf16 %v3043
        %v3608 = vunpack.c.h.s8.bf16 %v3044
        %v3609 = vunpack.c.h.s8.bf16 %v3045
        %v3610 = vunpack.c.l.s8.bf16 %v3046
        %v3611 = vunpack.c.l.s8.bf16 %v3047
        %v3612 = vunpack.c.l.s8.bf16 %v3048
        %v3613 = vunpack.c.l.s8.bf16 %v3049
        %v3614 = vunpack.c.h.s8.bf16 %v3046
        %v3615 = vunpack.c.h.s8.bf16 %v3047
        %v3616 = vunpack.c.h.s8.bf16 %v3048
        %v3617 = vunpack.c.h.s8.bf16 %v3049
        %v3618 = vunpack.c.l.s8.bf16 %v3050
        %v3619 = vunpack.c.l.s8.bf16 %v3051
        %v3620 = vunpack.c.l.s8.bf16 %v3052
        %v3621 = vunpack.c.l.s8.bf16 %v3053
        %v3622 = vunpack.c.h.s8.bf16 %v3050
        %v3623 = vunpack.c.h.s8.bf16 %v3051
        %v3624 = vunpack.c.h.s8.bf16 %v3052
        %v3625 = vunpack.c.h.s8.bf16 %v3053
        %v3626 = vunpack.c.l.s8.bf16 %v3054
        %v3627 = vunpack.c.l.s8.bf16 %v3055
        %v3628 = vunpack.c.l.s8.bf16 %v3056
        %v3629 = vunpack.c.l.s8.bf16 %v3057
        %v3630 = vunpack.c.h.s8.bf16 %v3054
        %v3631 = vunpack.c.h.s8.bf16 %v3055
        %v3632 = vunpack.c.h.s8.bf16 %v3056
        %v3633 = vunpack.c.h.s8.bf16 %v3057
        %v3634 = vunpack.c.l.s8.bf16 %v3058
        %v3635 = vunpack.c.l.s8.bf16 %v3059
        %v3636 = vunpack.c.l.s8.bf16 %v3060
        %v3637 = vunpack.c.l.s8.bf16 %v3061
        %v3638 = vunpack.c.h.s8.bf16 %v3058
        %v3639 = vunpack.c.h.s8.bf16 %v3059
        %v3640 = vunpack.c.h.s8.bf16 %v3060
        %v3641 = vunpack.c.h.s8.bf16 %v3061
        %v3642 = vunpack.c.l.s8.bf16 %v3062
        %v3643 = vunpack.c.l.s8.bf16 %v3063
        %v3644 = vunpack.c.l.s8.bf16 %v3064
        %v3645 = vunpack.c.l.s8.bf16 %v3065
        %v3646 = vunpack.c.h.s8.bf16 %v3062
        %v3647 = vunpack.c.h.s8.bf16 %v3063
        %v3648 = vunpack.c.h.s8.bf16 %v3064
        %v3649 = vunpack.c.h.s8.bf16 %v3065
        %v3650 = vunpack.c.l.s8.bf16 %v3066
        %v3651 = vunpack.c.l.s8.bf16 %v3067
        %v3652 = vunpack.c.l.s8.bf16 %v3068
        %v3653 = vunpack.c.l.s8.bf16 %v3069
        %v3654 = vunpack.c.h.s8.bf16 %v3066
        %v3655 = vunpack.c.h.s8.bf16 %v3067
        %v3656 = vunpack.c.h.s8.bf16 %v3068
        %v3657 = vunpack.c.h.s8.bf16 %v3069
        %v3658 = vunpack.c.l.s8.bf16 %v3070
        %v3659 = vunpack.c.l.s8.bf16 %v3071
        %v3660 = vunpack.c.l.s8.bf16 %v3072
        %v3661 = vunpack.c.l.s8.bf16 %v3073
        %v3662 = vunpack.c.h.s8.bf16 %v3070
        %v3663 = vunpack.c.h.s8.bf16 %v3071
        %v3664 = vunpack.c.h.s8.bf16 %v3072
        %v3665 = vunpack.c.h.s8.bf16 %v3073
        %v3666 = vunpack.c.l.s8.bf16 %v3074
        %v3667 = vunpack.c.l.s8.bf16 %v3075
        %v3668 = vunpack.c.l.s8.bf16 %v3076
        %v3669 = vunpack.c.l.s8.bf16 %v3077
        %v3670 = vunpack.c.h.s8.bf16 %v3074
        %v3671 = vunpack.c.h.s8.bf16 %v3075
        %v3672 = vunpack.c.h.s8.bf16 %v3076
        %v3673 = vunpack.c.h.s8.bf16 %v3077
        %v3674 = vunpack.c.l.s8.bf16 %v3078
        %v3675 = vunpack.c.l.s8.bf16 %v3079
        %v3676 = vunpack.c.l.s8.bf16 %v3080
        %v3677 = vunpack.c.l.s8.bf16 %v3081
        %v3678 = vunpack.c.h.s8.bf16 %v3078
        %v3679 = vunpack.c.h.s8.bf16 %v3079
        %v3680 = vunpack.c.h.s8.bf16 %v3080
        %v3681 = vunpack.c.h.s8.bf16 %v3081
        %v3682 = vunpack.c.l.s8.bf16 %v3082
        %v3683 = vunpack.c.l.s8.bf16 %v3083
        %v3684 = vunpack.c.l.s8.bf16 %v3084
        %v3685 = vunpack.c.l.s8.bf16 %v3085
        %v3686 = vunpack.c.h.s8.bf16 %v3082
        %v3687 = vunpack.c.h.s8.bf16 %v3083
        %v3688 = vunpack.c.h.s8.bf16 %v3084
        %v3689 = vunpack.c.h.s8.bf16 %v3085
        %v3690 = vunpack.c.l.s8.bf16 %v3086
        %v3691 = vunpack.c.l.s8.bf16 %v3087
        %v3692 = vunpack.c.l.s8.bf16 %v3088
        %v3693 = vunpack.c.l.s8.bf16 %v3089
        %v3694 = vunpack.c.h.s8.bf16 %v3086
        %v3695 = vunpack.c.h.s8.bf16 %v3087
        %v3696 = vunpack.c.h.s8.bf16 %v3088
        %v3697 = vunpack.c.h.s8.bf16 %v3089
        %v3698 = vunpack.c.l.s8.bf16 %v3090
        %v3699 = vunpack.c.l.s8.bf16 %v3091
        %v3700 = vunpack.c.l.s8.bf16 %v3092
        %v3701 = vunpack.c.l.s8.bf16 %v3093
        %v3702 = vunpack.c.h.s8.bf16 %v3090
        %v3703 = vunpack.c.h.s8.bf16 %v3091
        %v3704 = vunpack.c.h.s8.bf16 %v3092
        %v3705 = vunpack.c.h.s8.bf16 %v3093
        %v3706 = vunpack.c.l.s8.bf16 %v3094
        %v3707 = vunpack.c.l.s8.bf16 %v3095
        %v3708 = vunpack.c.l.s8.bf16 %v3096
        %v3709 = vunpack.c.l.s8.bf16 %v3097
        %v3710 = vunpack.c.h.s8.bf16 %v3094
        %v3711 = vunpack.c.h.s8.bf16 %v3095
        %v3712 = vunpack.c.h.s8.bf16 %v3096
        %v3713 = vunpack.c.h.s8.bf16 %v3097
        %v3714 = vunpack.c.l.s8.bf16 %v3098
        %v3715 = vunpack.c.l.s8.bf16 %v3099
        %v3716 = vunpack.c.l.s8.bf16 %v3100
        %v3717 = vunpack.c.l.s8.bf16 %v3101
        %v3718 = vunpack.c.h.s8.bf16 %v3098
        %v3719 = vunpack.c.h.s8.bf16 %v3099
        %v3720 = vunpack.c.h.s8.bf16 %v3100
        %v3721 = vunpack.c.h.s8.bf16 %v3101
        %v3722 = vunpack.c.l.s8.bf16 %v3102
        %v3723 = vunpack.c.l.s8.bf16 %v3103
        %v3724 = vunpack.c.l.s8.bf16 %v3104
        %v3725 = vunpack.c.l.s8.bf16 %v3105
        %v3726 = vunpack.c.h.s8.bf16 %v3102
        %v3727 = vunpack.c.h.s8.bf16 %v3103
        %v3728 = vunpack.c.h.s8.bf16 %v3104
        %v3729 = vunpack.c.h.s8.bf16 %v3105
        %v3730 = vunpack.c.l.s8.bf16 %v3106
        %v3731 = vunpack.c.l.s8.bf16 %v3107
        %v3732 = vunpack.c.l.s8.bf16 %v3108
        %v3733 = vunpack.c.l.s8.bf16 %v3109
        %v3734 = vunpack.c.h.s8.bf16 %v3106
        %v3735 = vunpack.c.h.s8.bf16 %v3107
        %v3736 = vunpack.c.h.s8.bf16 %v3108
        %v3737 = vunpack.c.h.s8.bf16 %v3109
        %v3738 = vunpack.c.l.s8.bf16 %v3110
        %v3739 = vunpack.c.l.s8.bf16 %v3111
        %v3740 = vunpack.c.l.s8.bf16 %v3112
        %v3741 = vunpack.c.l.s8.bf16 %v3113
        %v3742 = vunpack.c.h.s8.bf16 %v3110
        %v3743 = vunpack.c.h.s8.bf16 %v3111
        %v3744 = vunpack.c.h.s8.bf16 %v3112
        %v3745 = vunpack.c.h.s8.bf16 %v3113
        %v3746 = vunpack.c.l.s8.bf16 %v3114
        %v3747 = vunpack.c.l.s8.bf16 %v3115
        %v3748 = vunpack.c.l.s8.bf16 %v3116
        %v3749 = vunpack.c.l.s8.bf16 %v3117
        %v3750 = vunpack.c.h.s8.bf16 %v3114
        %v3751 = vunpack.c.h.s8.bf16 %v3115
        %v3752 = vunpack.c.h.s8.bf16 %v3116
        %v3753 = vunpack.c.h.s8.bf16 %v3117
        %v3754 = vunpack.c.l.s8.bf16 %v3118
        %v3755 = vunpack.c.l.s8.bf16 %v3119
        %v3756 = vunpack.c.l.s8.bf16 %v3120
        %v3757 = vunpack.c.l.s8.bf16 %v3121
        %v3758 = vunpack.c.h.s8.bf16 %v3118
        %v3759 = vunpack.c.h.s8.bf16 %v3119
        %v3760 = vunpack.c.h.s8.bf16 %v3120
        %v3761 = vunpack.c.h.s8.bf16 %v3121
        %v3762 = vunpack.c.l.s8.bf16 %v3122
        %v3763 = vunpack.c.l.s8.bf16 %v3123
        %v3764 = vunpack.c.l.s8.bf16 %v3124
        %v3765 = vunpack.c.l.s8.bf16 %v3125
        %v3766 = vunpack.c.h.s8.bf16 %v3122
        %v3767 = vunpack.c.h.s8.bf16 %v3123
        %v3768 = vunpack.c.h.s8.bf16 %v3124
        %v3769 = vunpack.c.h.s8.bf16 %v3125
        %v3770 = vunpack.c.l.s8.bf16 %v3126
        %v3771 = vunpack.c.l.s8.bf16 %v3127
        %v3772 = vunpack.c.l.s8.bf16 %v3128
        %v3773 = vunpack.c.l.s8.bf16 %v3129
        %v3774 = vunpack.c.h.s8.bf16 %v3126
        %v3775 = vunpack.c.h.s8.bf16 %v3127
        %v3776 = vunpack.c.h.s8.bf16 %v3128
        %v3777 = vunpack.c.h.s8.bf16 %v3129
        %v3778 = vunpack.c.l.s8.bf16 %v3130
        %v3779 = vunpack.c.l.s8.bf16 %v3131
        %v3780 = vunpack.c.l.s8.bf16 %v3132
        %v3781 = vunpack.c.l.s8.bf16 %v3133
        %v3782 = vunpack.c.h.s8.bf16 %v3130
        %v3783 = vunpack.c.h.s8.bf16 %v3131
        %v3784 = vunpack.c.h.s8.bf16 %v3132
        %v3785 = vunpack.c.h.s8.bf16 %v3133
        %v3786 = vunpack.c.l.s8.bf16 %v3134
        %v3787 = vunpack.c.l.s8.bf16 %v3135
        %v3788 = vunpack.c.l.s8.bf16 %v3136
        %v3789 = vunpack.c.l.s8.bf16 %v3137
        %v3790 = vunpack.c.h.s8.bf16 %v3134
        %v3791 = vunpack.c.h.s8.bf16 %v3135
        %v3792 = vunpack.c.h.s8.bf16 %v3136
        %v3793 = vunpack.c.h.s8.bf16 %v3137
        %v3794 = vunpack.c.l.s8.bf16 %v3138
        %v3795 = vunpack.c.l.s8.bf16 %v3139
        %v3796 = vunpack.c.l.s8.bf16 %v3140
        %v3797 = vunpack.c.l.s8.bf16 %v3141
        %v3798 = vunpack.c.h.s8.bf16 %v3138
        %v3799 = vunpack.c.h.s8.bf16 %v3139
        %v3800 = vunpack.c.h.s8.bf16 %v3140
        %v3801 = vunpack.c.h.s8.bf16 %v3141
        %v3802 = vunpack.c.l.s8.bf16 %v3142
        %v3803 = vunpack.c.l.s8.bf16 %v3143
        %v3804 = vunpack.c.l.s8.bf16 %v3144
        %v3805 = vunpack.c.l.s8.bf16 %v3145
        %v3806 = vunpack.c.h.s8.bf16 %v3142
        %v3807 = vunpack.c.h.s8.bf16 %v3143
        %v3808 = vunpack.c.h.s8.bf16 %v3144
        %v3809 = vunpack.c.h.s8.bf16 %v3145
        %v3810 = vunpack.c.l.s8.bf16 %v3146
        %v3811 = vunpack.c.l.s8.bf16 %v3147
        %v3812 = vunpack.c.l.s8.bf16 %v3148
        %v3813 = vunpack.c.l.s8.bf16 %v3149
        %v3814 = vunpack.c.h.s8.bf16 %v3146
        %v3815 = vunpack.c.h.s8.bf16 %v3147
        %v3816 = vunpack.c.h.s8.bf16 %v3148
        %v3817 = vunpack.c.h.s8.bf16 %v3149
        %v3818 = vunpack.c.l.s8.bf16 %v3150
        %v3819 = vunpack.c.l.s8.bf16 %v3151
        %v3820 = vunpack.c.l.s8.bf16 %v3152
        %v3821 = vunpack.c.l.s8.bf16 %v3153
        %v3822 = vunpack.c.h.s8.bf16 %v3150
        %v3823 = vunpack.c.h.s8.bf16 %v3151
        %v3824 = vunpack.c.h.s8.bf16 %v3152
        %v3825 = vunpack.c.h.s8.bf16 %v3153
        %v3826 = vunpack.c.l.s8.bf16 %v3154
        %v3827 = vunpack.c.l.s8.bf16 %v3155
        %v3828 = vunpack.c.l.s8.bf16 %v3156
        %v3829 = vunpack.c.l.s8.bf16 %v3157
        %v3830 = vunpack.c.h.s8.bf16 %v3154
        %v3831 = vunpack.c.h.s8.bf16 %v3155
        %v3832 = vunpack.c.h.s8.bf16 %v3156
        %v3833 = vunpack.c.h.s8.bf16 %v3157
        %v3834 = vunpack.c.l.s8.bf16 %v3158
        %v3835 = vunpack.c.l.s8.bf16 %v3159
        %v3836 = vunpack.c.l.s8.bf16 %v3160
        %v3837 = vunpack.c.l.s8.bf16 %v3161
        %v3838 = vunpack.c.h.s8.bf16 %v3158
        %v3839 = vunpack.c.h.s8.bf16 %v3159
        %v3840 = vunpack.c.h.s8.bf16 %v3160
        %v3841 = vunpack.c.h.s8.bf16 %v3161
        %v3842 = vunpack.c.l.s8.bf16 %v3162
        %v3843 = vunpack.c.l.s8.bf16 %v3163
        %v3844 = vunpack.c.l.s8.bf16 %v3164
        %v3845 = vunpack.c.l.s8.bf16 %v3165
        %v3846 = vunpack.c.h.s8.bf16 %v3162
        %v3847 = vunpack.c.h.s8.bf16 %v3163
        %v3848 = vunpack.c.h.s8.bf16 %v3164
        %v3849 = vunpack.c.h.s8.bf16 %v3165
        %v3850 = vunpack.c.l.s8.bf16 %v3166
        %v3851 = vunpack.c.l.s8.bf16 %v3167
        %v3852 = vunpack.c.l.s8.bf16 %v3168
        %v3853 = vunpack.c.l.s8.bf16 %v3169
        %v3854 = vunpack.c.h.s8.bf16 %v3166
        %v3855 = vunpack.c.h.s8.bf16 %v3167
        %v3856 = vunpack.c.h.s8.bf16 %v3168
        %v3857 = vunpack.c.h.s8.bf16 %v3169
        %v3858 = vunpack.c.l.s8.bf16 %v3170
        %v3859 = vunpack.c.l.s8.bf16 %v3171
        %v3860 = vunpack.c.l.s8.bf16 %v3172
        %v3861 = vunpack.c.l.s8.bf16 %v3173
        %v3862 = vunpack.c.h.s8.bf16 %v3170
        %v3863 = vunpack.c.h.s8.bf16 %v3171
        %v3864 = vunpack.c.h.s8.bf16 %v3172
        %v3865 = vunpack.c.h.s8.bf16 %v3173
        %v3866 = vunpack.c.l.s8.bf16 %v3174
        %v3867 = vunpack.c.l.s8.bf16 %v3175
        %v3868 = vunpack.c.l.s8.bf16 %v3176
        %v3869 = vunpack.c.l.s8.bf16 %v3177
        %v3870 = vunpack.c.h.s8.bf16 %v3174
        %v3871 = vunpack.c.h.s8.bf16 %v3175
        %v3872 = vunpack.c.h.s8.bf16 %v3176
        %v3873 = vunpack.c.h.s8.bf16 %v3177
        %v3874 = vunpack.c.l.s8.bf16 %v3178
        %v3875 = vunpack.c.l.s8.bf16 %v3179
        %v3876 = vunpack.c.l.s8.bf16 %v3180
        %v3877 = vunpack.c.l.s8.bf16 %v3181
        %v3878 = vunpack.c.h.s8.bf16 %v3178
        %v3879 = vunpack.c.h.s8.bf16 %v3179
        %v3880 = vunpack.c.h.s8.bf16 %v3180
        %v3881 = vunpack.c.h.s8.bf16 %v3181
        %v3882 = vunpack.c.l.s8.bf16 %v3182
        %v3883 = vunpack.c.l.s8.bf16 %v3183
        %v3884 = vunpack.c.l.s8.bf16 %v3184
        %v3885 = vunpack.c.l.s8.bf16 %v3185
        %v3886 = vunpack.c.h.s8.bf16 %v3182
        %v3887 = vunpack.c.h.s8.bf16 %v3183
        %v3888 = vunpack.c.h.s8.bf16 %v3184
        %v3889 = vunpack.c.h.s8.bf16 %v3185
        %v3890 = vunpack.c.l.s8.bf16 %v3186
        %v3891 = vunpack.c.l.s8.bf16 %v3187
        %v3892 = vunpack.c.l.s8.bf16 %v3188
        %v3893 = vunpack.c.l.s8.bf16 %v3189
        %v3894 = vunpack.c.h.s8.bf16 %v3186
        %v3895 = vunpack.c.h.s8.bf16 %v3187
        %v3896 = vunpack.c.h.s8.bf16 %v3188
        %v3897 = vunpack.c.h.s8.bf16 %v3189
        %v3898 = vunpack.c.l.s8.bf16 %v3190
        %v3899 = vunpack.c.l.s8.bf16 %v3191
        %v3900 = vunpack.c.l.s8.bf16 %v3192
        %v3901 = vunpack.c.l.s8.bf16 %v3193
        %v3902 = vunpack.c.h.s8.bf16 %v3190
        %v3903 = vunpack.c.h.s8.bf16 %v3191
        %v3904 = vunpack.c.h.s8.bf16 %v3192
        %v3905 = vunpack.c.h.s8.bf16 %v3193
        %v3906 = vunpack.c.l.s8.bf16 %v3194
        %v3907 = vunpack.c.l.s8.bf16 %v3195
        %v3908 = vunpack.c.l.s8.bf16 %v3196
        %v3909 = vunpack.c.l.s8.bf16 %v3197
        %v3910 = vunpack.c.h.s8.bf16 %v3194
        %v3911 = vunpack.c.h.s8.bf16 %v3195
        %v3912 = vunpack.c.h.s8.bf16 %v3196
        %v3913 = vunpack.c.h.s8.bf16 %v3197
        %v3914 = vunpack.c.l.s8.bf16 %v3198
        %v3915 = vunpack.c.l.s8.bf16 %v3199
        %v3916 = vunpack.c.l.s8.bf16 %v3200
        %v3917 = vunpack.c.l.s8.bf16 %v3201
        %v3918 = vunpack.c.h.s8.bf16 %v3198
        %v3919 = vunpack.c.h.s8.bf16 %v3199
        %v3920 = vunpack.c.h.s8.bf16 %v3200
        %v3921 = vunpack.c.h.s8.bf16 %v3201
        %v3922 = vunpack.c.l.s8.bf16 %v3202
        %v3923 = vunpack.c.l.s8.bf16 %v3203
        %v3924 = vunpack.c.l.s8.bf16 %v3204
        %v3925 = vunpack.c.l.s8.bf16 %v3205
        %v3926 = vunpack.c.h.s8.bf16 %v3202
        %v3927 = vunpack.c.h.s8.bf16 %v3203
        %v3928 = vunpack.c.h.s8.bf16 %v3204
        %v3929 = vunpack.c.h.s8.bf16 %v3205
        %v3930 = vunpack.c.l.s8.bf16 %v3206
        %v3931 = vunpack.c.l.s8.bf16 %v3207
        %v3932 = vunpack.c.l.s8.bf16 %v3208
        %v3933 = vunpack.c.l.s8.bf16 %v3209
        %v3934 = vunpack.c.h.s8.bf16 %v3206
        %v3935 = vunpack.c.h.s8.bf16 %v3207
        %v3936 = vunpack.c.h.s8.bf16 %v3208
        %v3937 = vunpack.c.h.s8.bf16 %v3209
        %v3938 = vunpack.c.l.s8.bf16 %v3210
        %v3939 = vunpack.c.l.s8.bf16 %v3211
        %v3940 = vunpack.c.l.s8.bf16 %v3212
        %v3941 = vunpack.c.l.s8.bf16 %v3213
        %v3942 = vunpack.c.h.s8.bf16 %v3210
        %v3943 = vunpack.c.h.s8.bf16 %v3211
        %v3944 = vunpack.c.h.s8.bf16 %v3212
        %v3945 = vunpack.c.h.s8.bf16 %v3213
        %v3946 = vunpack.c.l.s8.bf16 %v3214
        %v3947 = vunpack.c.l.s8.bf16 %v3215
        %v3948 = vunpack.c.l.s8.bf16 %v3216
        %v3949 = vunpack.c.l.s8.bf16 %v3217
        %v3950 = vunpack.c.h.s8.bf16 %v3214
        %v3951 = vunpack.c.h.s8.bf16 %v3215
        %v3952 = vunpack.c.h.s8.bf16 %v3216
        %v3953 = vunpack.c.h.s8.bf16 %v3217
        %v3954 = vunpack.c.l.s8.bf16 %v3218
        %v3955 = vunpack.c.l.s8.bf16 %v3219
        %v3956 = vunpack.c.l.s8.bf16 %v3220
        %v3957 = vunpack.c.l.s8.bf16 %v3221
        %v3958 = vunpack.c.h.s8.bf16 %v3218
        %v3959 = vunpack.c.h.s8.bf16 %v3219
        %v3960 = vunpack.c.h.s8.bf16 %v3220
        %v3961 = vunpack.c.h.s8.bf16 %v3221
        %v3962 = vunpack.c.l.s8.bf16 %v3222
        %v3963 = vunpack.c.l.s8.bf16 %v3223
        %v3964 = vunpack.c.l.s8.bf16 %v3224
        %v3965 = vunpack.c.l.s8.bf16 %v3225
        %v3966 = vunpack.c.h.s8.bf16 %v3222
        %v3967 = vunpack.c.h.s8.bf16 %v3223
        %v3968 = vunpack.c.h.s8.bf16 %v3224
        %v3969 = vunpack.c.h.s8.bf16 %v3225
        %v3970 = vunpack.c.l.s8.bf16 %v3226
        %v3971 = vunpack.c.l.s8.bf16 %v3227
        %v3972 = vunpack.c.l.s8.bf16 %v3228
        %v3973 = vunpack.c.l.s8.bf16 %v3229
        %v3974 = vunpack.c.h.s8.bf16 %v3226
        %v3975 = vunpack.c.h.s8.bf16 %v3227
        %v3976 = vunpack.c.h.s8.bf16 %v3228
        %v3977 = vunpack.c.h.s8.bf16 %v3229
        %v3978 = vunpack.c.l.s8.bf16 %v3230
        %v3979 = vunpack.c.l.s8.bf16 %v3231
        %v3980 = vunpack.c.l.s8.bf16 %v3232
        %v3981 = vunpack.c.l.s8.bf16 %v3233
        %v3982 = vunpack.c.h.s8.bf16 %v3230
        %v3983 = vunpack.c.h.s8.bf16 %v3231
        %v3984 = vunpack.c.h.s8.bf16 %v3232
        %v3985 = vunpack.c.h.s8.bf16 %v3233
        %v3986 = vunpack.c.l.s8.bf16 %v3234
        %v3987 = vunpack.c.l.s8.bf16 %v3235
        %v3988 = vunpack.c.l.s8.bf16 %v3236
        %v3989 = vunpack.c.l.s8.bf16 %v3237
        %v3990 = vunpack.c.h.s8.bf16 %v3234
        %v3991 = vunpack.c.h.s8.bf16 %v3235
        %v3992 = vunpack.c.h.s8.bf16 %v3236
        %v3993 = vunpack.c.h.s8.bf16 %v3237
        %v3994 = vunpack.c.l.s8.bf16 %v3238
        %v3995 = vunpack.c.l.s8.bf16 %v3239
        %v3996 = vunpack.c.l.s8.bf16 %v3240
        %v3997 = vunpack.c.l.s8.bf16 %v3241
        %v3998 = vunpack.c.h.s8.bf16 %v3238
        %v3999 = vunpack.c.h.s8.bf16 %v3239
        %v4000 = vunpack.c.h.s8.bf16 %v3240
        %v4001 = vunpack.c.h.s8.bf16 %v3241
        %v4002 = vunpack.c.l.s8.bf16 %v3242
        %v4003 = vunpack.c.l.s8.bf16 %v3243
        %v4004 = vunpack.c.l.s8.bf16 %v3244
        %v4005 = vunpack.c.l.s8.bf16 %v3245
        %v4006 = vunpack.c.h.s8.bf16 %v3242
        %v4007 = vunpack.c.h.s8.bf16 %v3243
        %v4008 = vunpack.c.h.s8.bf16 %v3244
        %v4009 = vunpack.c.h.s8.bf16 %v3245
        %v4010 = vunpack.c.l.s8.bf16 %v3246
        %v4011 = vunpack.c.l.s8.bf16 %v3247
        %v4012 = vunpack.c.l.s8.bf16 %v3248
        %v4013 = vunpack.c.l.s8.bf16 %v3249
        %v4014 = vunpack.c.h.s8.bf16 %v3246
        %v4015 = vunpack.c.h.s8.bf16 %v3247
        %v4016 = vunpack.c.h.s8.bf16 %v3248
        %v4017 = vunpack.c.h.s8.bf16 %v3249
        %v4018 = vunpack.c.l.s8.bf16 %v3250
        %v4019 = vunpack.c.l.s8.bf16 %v3251
        %v4020 = vunpack.c.l.s8.bf16 %v3252
        %v4021 = vunpack.c.l.s8.bf16 %v3253
        %v4022 = vunpack.c.h.s8.bf16 %v3250
        %v4023 = vunpack.c.h.s8.bf16 %v3251
        %v4024 = vunpack.c.h.s8.bf16 %v3252
        %v4025 = vunpack.c.h.s8.bf16 %v3253
        %v4026 = vunpack.c.l.s8.bf16 %v3254
        %v4027 = vunpack.c.l.s8.bf16 %v3255
        %v4028 = vunpack.c.l.s8.bf16 %v3256
        %v4029 = vunpack.c.l.s8.bf16 %v3257
        %v4030 = vunpack.c.h.s8.bf16 %v3254
        %v4031 = vunpack.c.h.s8.bf16 %v3255
        %v4032 = vunpack.c.h.s8.bf16 %v3256
        %v4033 = vunpack.c.h.s8.bf16 %v3257
        %v4034 = vunpack.c.l.s8.bf16 %v3258
        %v4035 = vunpack.c.l.s8.bf16 %v3259
        %v4036 = vunpack.c.l.s8.bf16 %v3260
        %v4037 = vunpack.c.l.s8.bf16 %v3261
        %v4038 = vunpack.c.h.s8.bf16 %v3258
        %v4039 = vunpack.c.h.s8.bf16 %v3259
        %v4040 = vunpack.c.h.s8.bf16 %v3260
        %v4041 = vunpack.c.h.s8.bf16 %v3261
        %v4042 = vunpack.c.l.s8.bf16 %v3262
        %v4043 = vunpack.c.l.s8.bf16 %v3263
        %v4044 = vunpack.c.l.s8.bf16 %v3264
        %v4045 = vunpack.c.l.s8.bf16 %v3265
        %v4046 = vunpack.c.h.s8.bf16 %v3262
        %v4047 = vunpack.c.h.s8.bf16 %v3263
        %v4048 = vunpack.c.h.s8.bf16 %v3264
        %v4049 = vunpack.c.h.s8.bf16 %v3265
        %v4050 = vunpack.c.l.s8.bf16 %v3266
        %v4051 = vunpack.c.l.s8.bf16 %v3267
        %v4052 = vunpack.c.l.s8.bf16 %v3268
        %v4053 = vunpack.c.l.s8.bf16 %v3269
        %v4054 = vunpack.c.h.s8.bf16 %v3266
        %v4055 = vunpack.c.h.s8.bf16 %v3267
        %v4056 = vunpack.c.h.s8.bf16 %v3268
        %v4057 = vunpack.c.h.s8.bf16 %v3269
        %v4058 = vunpack.c.l.s8.bf16 %v3270
        %v4059 = vunpack.c.l.s8.bf16 %v3271
        %v4060 = vunpack.c.l.s8.bf16 %v3272
        %v4061 = vunpack.c.l.s8.bf16 %v3273
        %v4062 = vunpack.c.h.s8.bf16 %v3270
        %v4063 = vunpack.c.h.s8.bf16 %v3271
        %v4064 = vunpack.c.h.s8.bf16 %v3272
        %v4065 = vunpack.c.h.s8.bf16 %v3273
        %v4066 = vunpack.c.l.s8.bf16 %v3274
        %v4067 = vunpack.c.l.s8.bf16 %v3275
        %v4068 = vunpack.c.l.s8.bf16 %v3276
        %v4069 = vunpack.c.l.s8.bf16 %v3277
        %v4070 = vunpack.c.h.s8.bf16 %v3274
        %v4071 = vunpack.c.h.s8.bf16 %v3275
        %v4072 = vunpack.c.h.s8.bf16 %v3276
        %v4073 = vunpack.c.h.s8.bf16 %v3277
        %v4074 = vunpack.c.l.s8.bf16 %v3278
        %v4075 = vunpack.c.l.s8.bf16 %v3279
        %v4076 = vunpack.c.l.s8.bf16 %v3280
        %v4077 = vunpack.c.l.s8.bf16 %v3281
        %v4078 = vunpack.c.h.s8.bf16 %v3278
        %v4079 = vunpack.c.h.s8.bf16 %v3279
        %v4080 = vunpack.c.h.s8.bf16 %v3280
        %v4081 = vunpack.c.h.s8.bf16 %v3281
        %v4082 = vunpack.c.l.s8.bf16 %v3282
        %v4083 = vunpack.c.l.s8.bf16 %v3283
        %v4084 = vunpack.c.l.s8.bf16 %v3284
        %v4085 = vunpack.c.l.s8.bf16 %v3285
        %v4086 = vunpack.c.h.s8.bf16 %v3282
        %v4087 = vunpack.c.h.s8.bf16 %v3283
        %v4088 = vunpack.c.h.s8.bf16 %v3284
        %v4089 = vunpack.c.h.s8.bf16 %v3285
        %v4090 = vunpack.c.l.s8.bf16 %v3286
        %v4091 = vunpack.c.l.s8.bf16 %v3287
        %v4092 = vunpack.c.l.s8.bf16 %v3288
        %v4093 = vunpack.c.l.s8.bf16 %v3289
        %v4094 = vunpack.c.h.s8.bf16 %v3286
        %v4095 = vunpack.c.h.s8.bf16 %v3287
        %v4096 = vunpack.c.h.s8.bf16 %v3288
        %v4097 = vunpack.c.h.s8.bf16 %v3289
        %v4098 = vunpack.c.l.s8.bf16 %v3290
        %v4099 = vunpack.c.l.s8.bf16 %v3291
        %v4100 = vunpack.c.l.s8.bf16 %v3292
        %v4101 = vunpack.c.l.s8.bf16 %v3293
        %v4102 = vunpack.c.h.s8.bf16 %v3290
        %v4103 = vunpack.c.h.s8.bf16 %v3291
        %v4104 = vunpack.c.h.s8.bf16 %v3292
        %v4105 = vunpack.c.h.s8.bf16 %v3293
        %v4106 = vunpack.c.l.s8.bf16 %v3294
        %v4107 = vunpack.c.l.s8.bf16 %v3295
        %v4108 = vunpack.c.l.s8.bf16 %v3296
        %v4109 = vunpack.c.l.s8.bf16 %v3297
        %v4110 = vunpack.c.h.s8.bf16 %v3294
        %v4111 = vunpack.c.h.s8.bf16 %v3295
        %v4112 = vunpack.c.h.s8.bf16 %v3296
        %v4113 = vunpack.c.h.s8.bf16 %v3297
        %v4114 = vunpack.c.l.s8.bf16 %v3298
        %v4115 = vunpack.c.l.s8.bf16 %v3299
        %v4116 = vunpack.c.l.s8.bf16 %v3300
        %v4117 = vunpack.c.l.s8.bf16 %v3301
        %v4118 = vunpack.c.h.s8.bf16 %v3298
        %v4119 = vunpack.c.h.s8.bf16 %v3299
        %v4120 = vunpack.c.h.s8.bf16 %v3300
        %v4121 = vunpack.c.h.s8.bf16 %v3301
        %v4122 = vunpack.c.l.s8.bf16 %v3302
        %v4123 = vunpack.c.l.s8.bf16 %v3303
        %v4124 = vunpack.c.l.s8.bf16 %v3304
        %v4125 = vunpack.c.l.s8.bf16 %v3305
        %v4126 = vunpack.c.h.s8.bf16 %v3302
        %v4127 = vunpack.c.h.s8.bf16 %v3303
        %v4128 = vunpack.c.h.s8.bf16 %v3304
        %v4129 = vunpack.c.h.s8.bf16 %v3305
        %v4130 = vunpack.c.l.s8.bf16 %v3306
        %v4131 = vunpack.c.l.s8.bf16 %v3307
        %v4132 = vunpack.c.l.s8.bf16 %v3308
        %v4133 = vunpack.c.l.s8.bf16 %v3309
        %v4134 = vunpack.c.h.s8.bf16 %v3306
        %v4135 = vunpack.c.h.s8.bf16 %v3307
        %v4136 = vunpack.c.h.s8.bf16 %v3308
        %v4137 = vunpack.c.h.s8.bf16 %v3309
        %v4138 = vunpack.c.l.s8.bf16 %v3310
        %v4139 = vunpack.c.l.s8.bf16 %v3311
        %v4140 = vunpack.c.l.s8.bf16 %v3312
        %v4141 = vunpack.c.l.s8.bf16 %v3313
        %v4142 = vunpack.c.h.s8.bf16 %v3310
        %v4143 = vunpack.c.h.s8.bf16 %v3311
        %v4144 = vunpack.c.h.s8.bf16 %v3312
        %v4145 = vunpack.c.h.s8.bf16 %v3313
        %v4146 = vunpack.c.l.s8.bf16 %v3314
        %v4147 = vunpack.c.l.s8.bf16 %v3315
        %v4148 = vunpack.c.l.s8.bf16 %v3316
        %v4149 = vunpack.c.l.s8.bf16 %v3317
        %v4150 = vunpack.c.h.s8.bf16 %v3314
        %v4151 = vunpack.c.h.s8.bf16 %v3315
        %v4152 = vunpack.c.h.s8.bf16 %v3316
        %v4153 = vunpack.c.h.s8.bf16 %v3317
        %v4154 = vunpack.c.l.s8.bf16 %v3318
        %v4155 = vunpack.c.l.s8.bf16 %v3319
        %v4156 = vunpack.c.l.s8.bf16 %v3320
        %v4157 = vunpack.c.l.s8.bf16 %v3321
        %v4158 = vunpack.c.h.s8.bf16 %v3318
        %v4159 = vunpack.c.h.s8.bf16 %v3319
        %v4160 = vunpack.c.h.s8.bf16 %v3320
        %v4161 = vunpack.c.h.s8.bf16 %v3321
        %v4162 = vunpack.c.l.s8.bf16 %v3322
        %v4163 = vunpack.c.l.s8.bf16 %v3323
        %v4164 = vunpack.c.l.s8.bf16 %v3324
        %v4165 = vunpack.c.l.s8.bf16 %v3325
        %v4166 = vunpack.c.h.s8.bf16 %v3322
        %v4167 = vunpack.c.h.s8.bf16 %v3323
        %v4168 = vunpack.c.h.s8.bf16 %v3324
        %v4169 = vunpack.c.h.s8.bf16 %v3325
        %v4170 = vunpack.c.l.s8.bf16 %v3326
        %v4171 = vunpack.c.l.s8.bf16 %v3327
        %v4172 = vunpack.c.l.s8.bf16 %v3328
        %v4173 = vunpack.c.l.s8.bf16 %v3329
        %v4174 = vunpack.c.h.s8.bf16 %v3326
        %v4175 = vunpack.c.h.s8.bf16 %v3327
        %v4176 = vunpack.c.h.s8.bf16 %v3328
        %v4177 = vunpack.c.h.s8.bf16 %v3329
        %v4178 = vunpack.c.l.s8.bf16 %v3330
        %v4179 = vunpack.c.l.s8.bf16 %v3331
        %v4180 = vunpack.c.l.s8.bf16 %v3332
        %v4181 = vunpack.c.l.s8.bf16 %v3333
        %v4182 = vunpack.c.h.s8.bf16 %v3330
        %v4183 = vunpack.c.h.s8.bf16 %v3331
        %v4184 = vunpack.c.h.s8.bf16 %v3332
        %v4185 = vunpack.c.h.s8.bf16 %v3333
        %v4186 = vunpack.c.l.s8.bf16 %v3334
        %v4187 = vunpack.c.l.s8.bf16 %v3335
        %v4188 = vunpack.c.l.s8.bf16 %v3336
        %v4189 = vunpack.c.l.s8.bf16 %v3337
        %v4190 = vunpack.c.h.s8.bf16 %v3334
        %v4191 = vunpack.c.h.s8.bf16 %v3335
        %v4192 = vunpack.c.h.s8.bf16 %v3336
        %v4193 = vunpack.c.h.s8.bf16 %v3337
        %v4194 = vunpack.c.l.s8.bf16 %v3338
        %v4195 = vunpack.c.l.s8.bf16 %v3339
        %v4196 = vunpack.c.l.s8.bf16 %v3340
        %v4197 = vunpack.c.l.s8.bf16 %v3341
        %v4198 = vunpack.c.h.s8.bf16 %v3338
        %v4199 = vunpack.c.h.s8.bf16 %v3339
        %v4200 = vunpack.c.h.s8.bf16 %v3340
        %v4201 = vunpack.c.h.s8.bf16 %v3341
        %v4202 = vunpack.c.l.s8.bf16 %v3342
        %v4203 = vunpack.c.l.s8.bf16 %v3343
        %v4204 = vunpack.c.l.s8.bf16 %v3344
        %v4205 = vunpack.c.l.s8.bf16 %v3345
        %v4206 = vunpack.c.h.s8.bf16 %v3342
        %v4207 = vunpack.c.h.s8.bf16 %v3343
        %v4208 = vunpack.c.h.s8.bf16 %v3344
        %v4209 = vunpack.c.h.s8.bf16 %v3345
        %v4210 = vunpack.c.l.s8.bf16 %v3346
        %v4211 = vunpack.c.l.s8.bf16 %v3347
        %v4212 = vunpack.c.l.s8.bf16 %v3348
        %v4213 = vunpack.c.l.s8.bf16 %v3349
        %v4214 = vunpack.c.h.s8.bf16 %v3346
        %v4215 = vunpack.c.h.s8.bf16 %v3347
        %v4216 = vunpack.c.h.s8.bf16 %v3348
        %v4217 = vunpack.c.h.s8.bf16 %v3349
        %v4218 = vunpack.c.l.s8.bf16 %v3350
        %v4219 = vunpack.c.l.s8.bf16 %v3351
        %v4220 = vunpack.c.l.s8.bf16 %v3352
        %v4221 = vunpack.c.l.s8.bf16 %v3353
        %v4222 = vunpack.c.h.s8.bf16 %v3350
        %v4223 = vunpack.c.h.s8.bf16 %v3351
        %v4224 = vunpack.c.h.s8.bf16 %v3352
        %v4225 = vunpack.c.h.s8.bf16 %v3353
        %v4226 = vunpack.c.l.s8.bf16 %v3354
        %v4227 = vunpack.c.l.s8.bf16 %v3355
        %v4228 = vunpack.c.l.s8.bf16 %v3356
        %v4229 = vunpack.c.l.s8.bf16 %v3357
        %v4230 = vunpack.c.h.s8.bf16 %v3354
        %v4231 = vunpack.c.h.s8.bf16 %v3355
        %v4232 = vunpack.c.h.s8.bf16 %v3356
        %v4233 = vunpack.c.h.s8.bf16 %v3357
        %v4234 = vunpack.c.l.s8.bf16 %v3358
        %v4235 = vunpack.c.l.s8.bf16 %v3359
        %v4236 = vunpack.c.l.s8.bf16 %v3360
        %v4237 = vunpack.c.l.s8.bf16 %v3361
        %v4238 = vunpack.c.h.s8.bf16 %v3358
        %v4239 = vunpack.c.h.s8.bf16 %v3359
        %v4240 = vunpack.c.h.s8.bf16 %v3360
        %v4241 = vunpack.c.h.s8.bf16 %v3361
        %v4242 = vunpack.c.l.s8.bf16 %v3362
        %v4243 = vunpack.c.l.s8.bf16 %v3363
        %v4244 = vunpack.c.l.s8.bf16 %v3364
        %v4245 = vunpack.c.l.s8.bf16 %v3365
        %v4246 = vunpack.c.h.s8.bf16 %v3362
        %v4247 = vunpack.c.h.s8.bf16 %v3363
        %v4248 = vunpack.c.h.s8.bf16 %v3364
        %v4249 = vunpack.c.h.s8.bf16 %v3365
        %v4250 = vunpack.c.l.s8.bf16 %v3366
        %v4251 = vunpack.c.l.s8.bf16 %v3367
        %v4252 = vunpack.c.l.s8.bf16 %v3368
        %v4253 = vunpack.c.l.s8.bf16 %v3369
        %v4254 = vunpack.c.h.s8.bf16 %v3366
        %v4255 = vunpack.c.h.s8.bf16 %v3367
        %v4256 = vunpack.c.h.s8.bf16 %v3368
        %v4257 = vunpack.c.h.s8.bf16 %v3369
        %v4258 = vunpack.c.l.s8.bf16 %v3370
        %v4259 = vunpack.c.l.s8.bf16 %v3371
        %v4260 = vunpack.c.l.s8.bf16 %v3372
        %v4261 = vunpack.c.l.s8.bf16 %v3373
        %v4262 = vunpack.c.h.s8.bf16 %v3370
        %v4263 = vunpack.c.h.s8.bf16 %v3371
        %v4264 = vunpack.c.h.s8.bf16 %v3372
        %v4265 = vunpack.c.h.s8.bf16 %v3373
        %v4266 = vunpack.c.l.s8.bf16 %v3374
        %v4267 = vunpack.c.l.s8.bf16 %v3375
        %v4268 = vunpack.c.l.s8.bf16 %v3376
        %v4269 = vunpack.c.l.s8.bf16 %v3377
        %v4270 = vunpack.c.h.s8.bf16 %v3374
        %v4271 = vunpack.c.h.s8.bf16 %v3375
        %v4272 = vunpack.c.h.s8.bf16 %v3376
        %v4273 = vunpack.c.h.s8.bf16 %v3377
        %v4274 = vunpack.c.l.s8.bf16 %v3378
        %v4275 = vunpack.c.l.s8.bf16 %v3379
        %v4276 = vunpack.c.l.s8.bf16 %v3380
        %v4277 = vunpack.c.l.s8.bf16 %v3381
        %v4278 = vunpack.c.h.s8.bf16 %v3378
        %v4279 = vunpack.c.h.s8.bf16 %v3379
        %v4280 = vunpack.c.h.s8.bf16 %v3380
        %v4281 = vunpack.c.h.s8.bf16 %v3381
        %v4282 = vunpack.c.l.s8.bf16 %v3382
        %v4283 = vunpack.c.l.s8.bf16 %v3383
        %v4284 = vunpack.c.l.s8.bf16 %v3384
        %v4285 = vunpack.c.l.s8.bf16 %v3385
        %v4286 = vunpack.c.h.s8.bf16 %v3382
        %v4287 = vunpack.c.h.s8.bf16 %v3383
        %v4288 = vunpack.c.h.s8.bf16 %v3384
        %v4289 = vunpack.c.h.s8.bf16 %v3385
        %v4290 = vunpack.c.l.s8.bf16 %v3386
        %v4291 = vunpack.c.l.s8.bf16 %v3387
        %v4292 = vunpack.c.l.s8.bf16 %v3388
        %v4293 = vunpack.c.l.s8.bf16 %v3389
        %v4294 = vunpack.c.h.s8.bf16 %v3386
        %v4295 = vunpack.c.h.s8.bf16 %v3387
        %v4296 = vunpack.c.h.s8.bf16 %v3388
        %v4297 = vunpack.c.h.s8.bf16 %v3389
        %v4298 = vunpack.c.l.s8.bf16 %v3390
        %v4299 = vunpack.c.l.s8.bf16 %v3391
        %v4300 = vunpack.c.l.s8.bf16 %v3392
        %v4301 = vunpack.c.l.s8.bf16 %v3393
        %v4302 = vunpack.c.h.s8.bf16 %v3390
        %v4303 = vunpack.c.h.s8.bf16 %v3391
        %v4304 = vunpack.c.h.s8.bf16 %v3392
        %v4305 = vunpack.c.h.s8.bf16 %v3393
        %v4306 = vunpack.c.l.s8.bf16 %v3394
        %v4307 = vunpack.c.l.s8.bf16 %v3395
        %v4308 = vunpack.c.l.s8.bf16 %v3396
        %v4309 = vunpack.c.l.s8.bf16 %v3397
        %v4310 = vunpack.c.h.s8.bf16 %v3394
        %v4311 = vunpack.c.h.s8.bf16 %v3395
        %v4312 = vunpack.c.h.s8.bf16 %v3396
        %v4313 = vunpack.c.h.s8.bf16 %v3397
        %v4314 = vunpack.c.l.s8.bf16 %v3398
        %v4315 = vunpack.c.l.s8.bf16 %v3399
        %v4316 = vunpack.c.l.s8.bf16 %v3400
        %v4317 = vunpack.c.l.s8.bf16 %v3401
        %v4318 = vunpack.c.h.s8.bf16 %v3398
        %v4319 = vunpack.c.h.s8.bf16 %v3399
        %v4320 = vunpack.c.h.s8.bf16 %v3400
        %v4321 = vunpack.c.h.s8.bf16 %v3401
        %v4322 = vunpack.c.l.s8.bf16 %v3402
        %v4323 = vunpack.c.l.s8.bf16 %v3403
        %v4324 = vunpack.c.l.s8.bf16 %v3404
        %v4325 = vunpack.c.l.s8.bf16 %v3405
        %v4326 = vunpack.c.h.s8.bf16 %v3402
        %v4327 = vunpack.c.h.s8.bf16 %v3403
        %v4328 = vunpack.c.h.s8.bf16 %v3404
        %v4329 = vunpack.c.h.s8.bf16 %v3405
        %v4330 = vunpack.c.l.s8.bf16 %v3406
        %v4331 = vunpack.c.l.s8.bf16 %v3407
        %v4332 = vunpack.c.l.s8.bf16 %v3408
        %v4333 = vunpack.c.l.s8.bf16 %v3409
        %v4334 = vunpack.c.h.s8.bf16 %v3406
        %v4335 = vunpack.c.h.s8.bf16 %v3407
        %v4336 = vunpack.c.h.s8.bf16 %v3408
        %v4337 = vunpack.c.h.s8.bf16 %v3409
        %v4338 = vunpack.c.l.s8.bf16 %v3410
        %v4339 = vunpack.c.l.s8.bf16 %v3411
        %v4340 = vunpack.c.l.s8.bf16 %v3412
        %v4341 = vunpack.c.l.s8.bf16 %v3413
        %v4342 = vunpack.c.h.s8.bf16 %v3410
        %v4343 = vunpack.c.h.s8.bf16 %v3411
        %v4344 = vunpack.c.h.s8.bf16 %v3412
        %v4345 = vunpack.c.h.s8.bf16 %v3413
        %v4346 = vunpack.c.l.s8.bf16 %v3414
        %v4347 = vunpack.c.l.s8.bf16 %v3415
        %v4348 = vunpack.c.l.s8.bf16 %v3416
        %v4349 = vunpack.c.l.s8.bf16 %v3417
        %v4350 = vunpack.c.h.s8.bf16 %v3414
        %v4351 = vunpack.c.h.s8.bf16 %v3415
        %v4352 = vunpack.c.h.s8.bf16 %v3416
        %v4353 = vunpack.c.h.s8.bf16 %v3417
        %v4354 = vunpack.c.l.s8.bf16 %v3418
        %v4355 = vunpack.c.l.s8.bf16 %v3419
        %v4356 = vunpack.c.l.s8.bf16 %v3420
        %v4357 = vunpack.c.l.s8.bf16 %v3421
        %v4358 = vunpack.c.h.s8.bf16 %v3418
        %v4359 = vunpack.c.h.s8.bf16 %v3419
        %v4360 = vunpack.c.h.s8.bf16 %v3420
        %v4361 = vunpack.c.h.s8.bf16 %v3421
        %v4362 = vunpack.c.l.s8.bf16 %v3422
        %v4363 = vunpack.c.l.s8.bf16 %v3423
        %v4364 = vunpack.c.l.s8.bf16 %v3424
        %v4365 = vunpack.c.l.s8.bf16 %v3425
        %v4366 = vunpack.c.h.s8.bf16 %v3422
        %v4367 = vunpack.c.h.s8.bf16 %v3423
        %v4368 = vunpack.c.h.s8.bf16 %v3424
        %v4369 = vunpack.c.h.s8.bf16 %v3425
        %v4370 = vunpack.c.l.s8.bf16 %v3426
        %v4371 = vunpack.c.l.s8.bf16 %v3427
        %v4372 = vunpack.c.l.s8.bf16 %v3428
        %v4373 = vunpack.c.l.s8.bf16 %v3429
        %v4374 = vunpack.c.h.s8.bf16 %v3426
        %v4375 = vunpack.c.h.s8.bf16 %v3427
        %v4376 = vunpack.c.h.s8.bf16 %v3428
        %v4377 = vunpack.c.h.s8.bf16 %v3429
        %v4378 = vunpack.c.l.s8.bf16 %v3430
        %v4379 = vunpack.c.l.s8.bf16 %v3431
        %v4380 = vunpack.c.l.s8.bf16 %v3432
        %v4381 = vunpack.c.l.s8.bf16 %v3433
        %v4382 = vunpack.c.h.s8.bf16 %v3430
        %v4383 = vunpack.c.h.s8.bf16 %v3431
        %v4384 = vunpack.c.h.s8.bf16 %v3432
        %v4385 = vunpack.c.h.s8.bf16 %v3433
        %v4386 = vunpack.c.l.s8.bf16 %v3434
        %v4387 = vunpack.c.l.s8.bf16 %v3435
        %v4388 = vunpack.c.l.s8.bf16 %v3436
        %v4389 = vunpack.c.l.s8.bf16 %v3437
        %v4390 = vunpack.c.h.s8.bf16 %v3434
        %v4391 = vunpack.c.h.s8.bf16 %v3435
        %v4392 = vunpack.c.h.s8.bf16 %v3436
        %v4393 = vunpack.c.h.s8.bf16 %v3437
        %v4394 = vunpack.c.l.s8.bf16 %v3438
        %v4395 = vunpack.c.l.s8.bf16 %v3439
        %v4396 = vunpack.c.l.s8.bf16 %v3440
        %v4397 = vunpack.c.l.s8.bf16 %v3441
        %v4398 = vunpack.c.h.s8.bf16 %v3438
        %v4399 = vunpack.c.h.s8.bf16 %v3439
        %v4400 = vunpack.c.h.s8.bf16 %v3440
        %v4401 = vunpack.c.h.s8.bf16 %v3441
        %v4402 = vunpack.c.l.s8.bf16 %v3442
        %v4403 = vunpack.c.l.s8.bf16 %v3443
        %v4404 = vunpack.c.l.s8.bf16 %v3444
        %v4405 = vunpack.c.l.s8.bf16 %v3445
        %v4406 = vunpack.c.h.s8.bf16 %v3442
        %v4407 = vunpack.c.h.s8.bf16 %v3443
        %v4408 = vunpack.c.h.s8.bf16 %v3444
        %v4409 = vunpack.c.h.s8.bf16 %v3445
        %v4410 = vunpack.c.l.s8.bf16 %v3446
        %v4411 = vunpack.c.l.s8.bf16 %v3447
        %v4412 = vunpack.c.l.s8.bf16 %v3448
        %v4413 = vunpack.c.l.s8.bf16 %v3449
        %v4414 = vunpack.c.h.s8.bf16 %v3446
        %v4415 = vunpack.c.h.s8.bf16 %v3447
        %v4416 = vunpack.c.h.s8.bf16 %v3448
        %v4417 = vunpack.c.h.s8.bf16 %v3449
        %v4418 = vunpack.c.l.s8.bf16 %v3450
        %v4419 = vunpack.c.l.s8.bf16 %v3451
        %v4420 = vunpack.c.l.s8.bf16 %v3452
        %v4421 = vunpack.c.l.s8.bf16 %v3453
        %v4422 = vunpack.c.h.s8.bf16 %v3450
        %v4423 = vunpack.c.h.s8.bf16 %v3451
        %v4424 = vunpack.c.h.s8.bf16 %v3452
        %v4425 = vunpack.c.h.s8.bf16 %v3453
        %v4426 = vunpack.c.l.s8.bf16 %v3454
        %v4427 = vunpack.c.l.s8.bf16 %v3455
        %v4428 = vunpack.c.l.s8.bf16 %v3456
        %v4429 = vunpack.c.l.s8.bf16 %v3457
        %v4430 = vunpack.c.h.s8.bf16 %v3454
        %v4431 = vunpack.c.h.s8.bf16 %v3455
        %v4432 = vunpack.c.h.s8.bf16 %v3456
        %v4433 = vunpack.c.h.s8.bf16 %v3457
        %v4434 = vunpack.c.l.s8.bf16 %v3458
        %v4435 = vunpack.c.l.s8.bf16 %v3459
        %v4436 = vunpack.c.l.s8.bf16 %v3460
        %v4437 = vunpack.c.l.s8.bf16 %v3461
        %v4438 = vunpack.c.h.s8.bf16 %v3458
        %v4439 = vunpack.c.h.s8.bf16 %v3459
        %v4440 = vunpack.c.h.s8.bf16 %v3460
        %v4441 = vunpack.c.h.s8.bf16 %v3461
        %v4442 = vunpack.c.l.s8.bf16 %v3462
        %v4443 = vunpack.c.l.s8.bf16 %v3463
        %v4444 = vunpack.c.l.s8.bf16 %v3464
        %v4445 = vunpack.c.l.s8.bf16 %v3465
        %v4446 = vunpack.c.h.s8.bf16 %v3462
        %v4447 = vunpack.c.h.s8.bf16 %v3463
        %v4448 = vunpack.c.h.s8.bf16 %v3464
        %v4449 = vunpack.c.h.s8.bf16 %v3465
        %v4450 = vunpack.c.l.s8.bf16 %v3466
        %v4451 = vunpack.c.l.s8.bf16 %v3467
        %v4452 = vunpack.c.l.s8.bf16 %v3468
        %v4453 = vunpack.c.l.s8.bf16 %v3469
        %v4454 = vunpack.c.h.s8.bf16 %v3466
        %v4455 = vunpack.c.h.s8.bf16 %v3467
        %v4456 = vunpack.c.h.s8.bf16 %v3468
        %v4457 = vunpack.c.h.s8.bf16 %v3469
        %v4458 = vunpack.c.l.s8.bf16 %v3470
        %v4459 = vunpack.c.l.s8.bf16 %v3471
        %v4460 = vunpack.c.l.s8.bf16 %v3472
        %v4461 = vunpack.c.l.s8.bf16 %v3473
        %v4462 = vunpack.c.h.s8.bf16 %v3470
        %v4463 = vunpack.c.h.s8.bf16 %v3471
        %v4464 = vunpack.c.h.s8.bf16 %v3472
        %v4465 = vunpack.c.h.s8.bf16 %v3473
        %v4466 = vunpack.c.l.s8.bf16 %v3474
        %v4467 = vunpack.c.l.s8.bf16 %v3475
        %v4468 = vunpack.c.l.s8.bf16 %v3476
        %v4469 = vunpack.c.l.s8.bf16 %v3477
        %v4470 = vunpack.c.h.s8.bf16 %v3474
        %v4471 = vunpack.c.h.s8.bf16 %v3475
        %v4472 = vunpack.c.h.s8.bf16 %v3476
        %v4473 = vunpack.c.h.s8.bf16 %v3477
        %v4474 = vunpack.c.l.s8.bf16 %v3478
        %v4475 = vunpack.c.l.s8.bf16 %v3479
        %v4476 = vunpack.c.l.s8.bf16 %v3480
        %v4477 = vunpack.c.l.s8.bf16 %v3481
        %v4478 = vunpack.c.h.s8.bf16 %v3478
        %v4479 = vunpack.c.h.s8.bf16 %v3479
        %v4480 = vunpack.c.h.s8.bf16 %v3480
        %v4481 = vunpack.c.h.s8.bf16 %v3481
        %v4482 = vunpack.c.l.s8.bf16 %v3482
        %v4483 = vunpack.c.l.s8.bf16 %v3483
        %v4484 = vunpack.c.l.s8.bf16 %v3484
        %v4485 = vunpack.c.l.s8.bf16 %v3485
        %v4486 = vunpack.c.h.s8.bf16 %v3482
        %v4487 = vunpack.c.h.s8.bf16 %v3483
        %v4488 = vunpack.c.h.s8.bf16 %v3484
        %v4489 = vunpack.c.h.s8.bf16 %v3485
        %v4490 = vunpack.c.l.s8.bf16 %v3486
        %v4491 = vunpack.c.l.s8.bf16 %v3487
        %v4492 = vunpack.c.l.s8.bf16 %v3488
        %v4493 = vunpack.c.l.s8.bf16 %v3489
        %v4494 = vunpack.c.h.s8.bf16 %v3486
        %v4495 = vunpack.c.h.s8.bf16 %v3487
        %v4496 = vunpack.c.h.s8.bf16 %v3488
        %v4497 = vunpack.c.h.s8.bf16 %v3489
        %v4498 = vunpack.c.l.s8.bf16 %v3490
        %v4499 = vunpack.c.l.s8.bf16 %v3491
        %v4500 = vunpack.c.l.s8.bf16 %v3492
        %v4501 = vunpack.c.l.s8.bf16 %v3493
        %v4502 = vunpack.c.h.s8.bf16 %v3490
        %v4503 = vunpack.c.h.s8.bf16 %v3491
        %v4504 = vunpack.c.h.s8.bf16 %v3492
        %v4505 = vunpack.c.h.s8.bf16 %v3493
        %v4506 = vunpack.c.l.s8.bf16 %v3494
        %v4507 = vunpack.c.l.s8.bf16 %v3495
        %v4508 = vunpack.c.l.s8.bf16 %v3496
        %v4509 = vunpack.c.l.s8.bf16 %v3497
        %v4510 = vunpack.c.h.s8.bf16 %v3494
        %v4511 = vunpack.c.h.s8.bf16 %v3495
        %v4512 = vunpack.c.h.s8.bf16 %v3496
        %v4513 = vunpack.c.h.s8.bf16 %v3497
        %v4514 = vunpack.c.l.s8.bf16 %v3498
        %v4515 = vunpack.c.l.s8.bf16 %v3499
        %v4516 = vunpack.c.l.s8.bf16 %v3500
        %v4517 = vunpack.c.l.s8.bf16 %v3501
        %v4518 = vunpack.c.h.s8.bf16 %v3498
        %v4519 = vunpack.c.h.s8.bf16 %v3499
        %v4520 = vunpack.c.h.s8.bf16 %v3500
        %v4521 = vunpack.c.h.s8.bf16 %v3501
        %v4522 = vunpack.c.l.s8.bf16 %v3502
        %v4523 = vunpack.c.l.s8.bf16 %v3503
        %v4524 = vunpack.c.l.s8.bf16 %v3504
        %v4525 = vunpack.c.l.s8.bf16 %v3505
        %v4526 = vunpack.c.h.s8.bf16 %v3502
        %v4527 = vunpack.c.h.s8.bf16 %v3503
        %v4528 = vunpack.c.h.s8.bf16 %v3504
        %v4529 = vunpack.c.h.s8.bf16 %v3505
        %v4530 = vpack.c.bf16 %v2962, %v2962
        %v4531 = vpack.c.bf16 %v2963, %v2963
        %v4532 = vpack.c.bf16 %v2964, %v2964
        %v4533 = vpack.c.bf16 %v2965, %v2965
        %v4534 = vpack.c.bf16 %v2966, %v2966
        %v4535 = vpack.c.bf16 %v2967, %v2967
        %v4536 = vpack.c.bf16 %v2968, %v2968
        %v4537 = vpack.c.bf16 %v2969, %v2969
        %v4538 = vpack.c.bf16 %v2970, %v2970
        %v4539 = vpack.c.bf16 %v2971, %v2971
        %v4540 = vpack.c.bf16 %v2972, %v2972
        %v4541 = vpack.c.bf16 %v2973, %v2973
        %v4542 = vpack.c.bf16 %v2974, %v2974
        %v4543 = vpack.c.bf16 %v2975, %v2975
        %v4544 = vpack.c.bf16 %v2976, %v2976
        %v4545 = vpack.c.bf16 %v2977, %v2977
        %v4546 = vpack.c.bf16 %v2978, %v2978
        %v4547 = vpack.c.bf16 %v2979, %v2979
        %v4548 = vpack.c.bf16 %v2980, %v2980
        %v4549 = vpack.c.bf16 %v2981, %v2981
        %v4550 = vpack.c.bf16 %v2982, %v2982
        %v4551 = vpack.c.bf16 %v2983, %v2983
        %v4552 = vpack.c.bf16 %v2984, %v2984
        %v4553 = vpack.c.bf16 %v2985, %v2985
        %v4554 = vpack.c.bf16 %v2986, %v2986
        %v4555 = vpack.c.bf16 %v2987, %v2987
        %v4556 = vpack.c.bf16 %v2988, %v2988
        %v4557 = vpack.c.bf16 %v2989, %v2989
        %v4558 = vpack.c.bf16 %v2990, %v2990
        %v4559 = vpack.c.bf16 %v2991, %v2991
        %v4560 = vpack.c.bf16 %v2992, %v2992
        %v4561 = vpack.c.bf16 %v2993, %v2993
        %4562 = vmatprep.subr.bf16.mxu0 %v3507
        %4563 = vmatpush1.bf16.msra.mxu0 %v3506
        %4564 = vmatprep.subr.bf16.mxu0 %v3511
        %4565 = vmatpush1.bf16.msra.mxu0 %v3510
        %4566 = vmatprep.subr.bf16.mxu0 %v3515
        %4567 = vmatpush1.bf16.msra.mxu0 %v3514
        %4568 = vmatprep.subr.bf16.mxu0 %v3519
        %4569 = vmatpush1.bf16.msra.mxu0 %v3518
        %4570 = vmatprep.subr.bf16.mxu0 %v3523
        %4571 = vmatpush1.bf16.msra.mxu0 %v3522
        %4572 = vmatprep.subr.bf16.mxu0 %v3527
        %4573 = vmatpush1.bf16.msra.mxu0 %v3526
        %4574 = vmatprep.subr.bf16.mxu0 %v3531
        %4575 = vmatpush1.bf16.msra.mxu0 %v3530
        %4576 = vmatprep.subr.bf16.mxu0 %v3535
        %4577 = vmatpush1.bf16.msra.mxu0 %v3534
        %4578 = vmatprep.subr.bf16.mxu0 %v3539
        %4579 = vmatpush1.bf16.msra.mxu0 %v3538
        %4580 = vmatprep.subr.bf16.mxu0 %v3543
        %4581 = vmatpush1.bf16.msra.mxu0 %v3542
        %4582 = vmatprep.subr.bf16.mxu0 %v3547
        %4583 = vmatpush1.bf16.msra.mxu0 %v3546
        %4584 = vmatprep.subr.bf16.mxu0 %v3551
        %4585 = vmatpush1.bf16.msra.mxu0 %v3550
        %4586 = vmatprep.subr.bf16.mxu0 %v3555
        %4587 = vmatpush1.bf16.msra.mxu0 %v3554
        %4588 = vmatprep.subr.bf16.mxu0 %v3559
        %4589 = vmatpush1.bf16.msra.mxu0 %v3558
        %4590 = vmatprep.subr.bf16.mxu0 %v3563
        %4591 = vmatpush1.bf16.msra.mxu0 %v3562
        %4592 = vmatprep.subr.bf16.mxu0 %v3567
        %4593 = vmatpush1.bf16.msra.mxu0 %v3566
        %4594 = vmatprep.mubr.bf16.mxu0 %v4531
        %4595 = vmatmul.mubr.bf16.gmra.mrb[0].mxu0 %v4530
        %v4596 = vpop.f32.mrb[0].mxu0
        %v4597 = vadd.f32 0.0, %v4596
        %v4598 = vpop.f32.mrb[0].mxu0
        %v4599 = vadd.f32 0.0, %v4598
        %v4600 = vpop.f32.mrb[0].mxu0
        %v4601 = vpop.f32.mrb[0].mxu0
        %4602 = vdwg.mxu0
        %4603 = vmatprep.subr.bf16.mxu0 %v3571
        %4604 = vmatpush1.bf16.msra.mxu0 %v3570
        %4605 = vmatprep.subr.bf16.mxu0 %v3575
        %4606 = vmatpush1.bf16.msra.mxu0 %v3574
        %4607 = vmatprep.subr.bf16.mxu0 %v3579
        %4608 = vmatpush1.bf16.msra.mxu0 %v3578
        %4609 = vmatprep.subr.bf16.mxu0 %v3583
        %4610 = vmatpush1.bf16.msra.mxu0 %v3582
        %4611 = vmatprep.subr.bf16.mxu0 %v3587
        %4612 = vmatpush1.bf16.msra.mxu0 %v3586
        %4613 = vmatprep.subr.bf16.mxu0 %v3591
        %4614 = vmatpush1.bf16.msra.mxu0 %v3590
        %4615 = vmatprep.subr.bf16.mxu0 %v3595
        %4616 = vmatpush1.bf16.msra.mxu0 %v3594
        %4617 = vmatprep.subr.bf16.mxu0 %v3599
        %4618 = vmatpush1.bf16.msra.mxu0 %v3598
        %4619 = vmatprep.subr.bf16.mxu0 %v3603
        %4620 = vmatpush1.bf16.msra.mxu0 %v3602
        %4621 = vmatprep.subr.bf16.mxu0 %v3607
        %4622 = vmatpush1.bf16.msra.mxu0 %v3606
        %4623 = vmatprep.subr.bf16.mxu0 %v3611
        %4624 = vmatpush1.bf16.msra.mxu0 %v3610
        %4625 = vmatprep.subr.bf16.mxu0 %v3615
        %4626 = vmatpush1.bf16.msra.mxu0 %v3614
        %4627 = vmatprep.subr.bf16.mxu0 %v3619
        %4628 = vmatpush1.bf16.msra.mxu0 %v3618
        %4629 = vmatprep.subr.bf16.mxu0 %v3623
        %4630 = vmatpush1.bf16.msra.mxu0 %v3622
        %4631 = vmatprep.subr.bf16.mxu0 %v3627
        %4632 = vmatpush1.bf16.msra.mxu0 %v3626
        %4633 = vmatprep.subr.bf16.mxu0 %v3631
        %4634 = vmatpush1.bf16.msra.mxu0 %v3630
        %4635 = vmatprep.mubr.bf16.mxu0 %v4533
        %4636 = vmatmul.mubr.bf16.gmra.mrb[0].mxu0 %v4532
        %v4637 = vpop.f32.mrb[0].mxu0
        %v4638 = vadd.f32 %v4597, %v4637
        %v4639 = vpop.f32.mrb[0].mxu0
        %v4640 = vadd.f32 %v4599, %v4639
        %v4641 = vpop.f32.mrb[0].mxu0
        %v4642 = vpop.f32.mrb[0].mxu0
        %4643 = vdwg.mxu0
        %4644 = vmatprep.subr.bf16.mxu0 %v3635
        %4645 = vmatpush1.bf16.msra.mxu0 %v3634
        %4646 = vmatprep.subr.bf16.mxu0 %v3639
        %4647 = vmatpush1.bf16.msra.mxu0 %v3638
        %4648 = vmatprep.subr.bf16.mxu0 %v3643
        %4649 = vmatpush1.bf16.msra.mxu0 %v3642
        %4650 = vmatprep.subr.bf16.mxu0 %v3647
        %4651 = vmatpush1.bf16.msra.mxu0 %v3646
        %4652 = vmatprep.subr.bf16.mxu0 %v3651
        %4653 = vmatpush1.bf16.msra.mxu0 %v3650
        %4654 = vmatprep.subr.bf16.mxu0 %v3655
        %4655 = vmatpush1.bf16.msra.mxu0 %v3654
        %4656 = vmatprep.subr.bf16.mxu0 %v3659
        %4657 = vmatpush1.bf16.msra.mxu0 %v3658
        %4658 = vmatprep.subr.bf16.mxu0 %v3663
        %4659 = vmatpush1.bf16.msra.mxu0 %v3662
        %4660 = vmatprep.subr.bf16.mxu0 %v3667
        %4661 = vmatpush1.bf16.msra.mxu0 %v3666
        %4662 = vmatprep.subr.bf16.mxu0 %v3671
        %4663 = vmatpush1.bf16.msra.mxu0 %v3670
        %4664 = vmatprep.subr.bf16.mxu0 %v3675
        %4665 = vmatpush1.bf16.msra.mxu0 %v3674
        %4666 = vmatprep.subr.bf16.mxu0 %v3679
        %4667 = vmatpush1.bf16.msra.mxu0 %v3678
        %4668 = vmatprep.subr.bf16.mxu0 %v3683
        %4669 = vmatpush1.bf16.msra.mxu0 %v3682
        %4670 = vmatprep.subr.bf16.mxu0 %v3687
        %4671 = vmatpush1.bf16.msra.mxu0 %v3686
        %4672 = vmatprep.subr.bf16.mxu0 %v3691
        %4673 = vmatpush1.bf16.msra.mxu0 %v3690
        %4674 = vmatprep.subr.bf16.mxu0 %v3695
        %4675 = vmatpush1.bf16.msra.mxu0 %v3694
        %4676 = vmatprep.mubr.bf16.mxu0 %v4535
        %4677 = vmatmul.mubr.bf16.gmra.mrb[0].mxu0 %v4534
        %v4678 = vpop.f32.mrb[0].mxu0
        %v4679 = vadd.f32 %v4638, %v4678
        %v4680 = vpop.f32.mrb[0].mxu0
        %v4681 = vadd.f32 %v4640, %v4680
        %v4682 = vpop.f32.mrb[0].mxu0
        %v4683 = vpop.f32.mrb[0].mxu0
        %4684 = vdwg.mxu0
        %4685 = vmatprep.subr.bf16.mxu0 %v3699
        %4686 = vmatpush1.bf16.msra.mxu0 %v3698
        %4687 = vmatprep.subr.bf16.mxu0 %v3703
        %4688 = vmatpush1.bf16.msra.mxu0 %v3702
        %4689 = vmatprep.subr.bf16.mxu0 %v3707
        %4690 = vmatpush1.bf16.msra.mxu0 %v3706
        %4691 = vmatprep.subr.bf16.mxu0 %v3711
        %4692 = vmatpush1.bf16.msra.mxu0 %v3710
        %4693 = vmatprep.subr.bf16.mxu0 %v3715
        %4694 = vmatpush1.bf16.msra.mxu0 %v3714
        %4695 = vmatprep.subr.bf16.mxu0 %v3719
        %4696 = vmatpush1.bf16.msra.mxu0 %v3718
        %4697 = vmatprep.subr.bf16.mxu0 %v3723
        %4698 = vmatpush1.bf16.msra.mxu0 %v3722
        %4699 = vmatprep.subr.bf16.mxu0 %v3727
        %4700 = vmatpush1.bf16.msra.mxu0 %v3726
        %4701 = vmatprep.subr.bf16.mxu0 %v3731
        %4702 = vmatpush1.bf16.msra.mxu0 %v3730
        %4703 = vmatprep.subr.bf16.mxu0 %v3735
        %4704 = vmatpush1.bf16.msra.mxu0 %v3734
        %4705 = vmatprep.subr.bf16.mxu0 %v3739
        %4706 = vmatpush1.bf16.msra.mxu0 %v3738
        %4707 = vmatprep.subr.bf16.mxu0 %v3743
        %4708 = vmatpush1.bf16.msra.mxu0 %v3742
        %4709 = vmatprep.subr.bf16.mxu0 %v3747
        %4710 = vmatpush1.bf16.msra.mxu0 %v3746
        %4711 = vmatprep.subr.bf16.mxu0 %v3751
        %4712 = vmatpush1.bf16.msra.mxu0 %v3750
        %4713 = vmatprep.subr.bf16.mxu0 %v3755
        %4714 = vmatpush1.bf16.msra.mxu0 %v3754
        %4715 = vmatprep.subr.bf16.mxu0 %v3759
        %4716 = vmatpush1.bf16.msra.mxu0 %v3758
        %4717 = vmatprep.mubr.bf16.mxu0 %v4537
        %4718 = vmatmul.mubr.bf16.gmra.mrb[0].mxu0 %v4536
        %v4719 = vpop.f32.mrb[0].mxu0
        %v4720 = vadd.f32 %v4679, %v4719
        %v4721 = vpop.f32.mrb[0].mxu0
        %v4722 = vadd.f32 %v4681, %v4721
        %v4723 = vpop.f32.mrb[0].mxu0
        %v4724 = vpop.f32.mrb[0].mxu0
        %4725 = vdwg.mxu0
        %4726 = vmatprep.subr.bf16.mxu0 %v3763
        %4727 = vmatpush1.bf16.msra.mxu0 %v3762
        %4728 = vmatprep.subr.bf16.mxu0 %v3767
        %4729 = vmatpush1.bf16.msra.mxu0 %v3766
        %4730 = vmatprep.subr.bf16.mxu0 %v3771
        %4731 = vmatpush1.bf16.msra.mxu0 %v3770
        %4732 = vmatprep.subr.bf16.mxu0 %v3775
        %4733 = vmatpush1.bf16.msra.mxu0 %v3774
        %4734 = vmatprep.subr.bf16.mxu0 %v3779
        %4735 = vmatpush1.bf16.msra.mxu0 %v3778
        %4736 = vmatprep.subr.bf16.mxu0 %v3783
        %4737 = vmatpush1.bf16.msra.mxu0 %v3782
        %4738 = vmatprep.subr.bf16.mxu0 %v3787
        %4739 = vmatpush1.bf16.msra.mxu0 %v3786
        %4740 = vmatprep.subr.bf16.mxu0 %v3791
        %4741 = vmatpush1.bf16.msra.mxu0 %v3790
        %4742 = vmatprep.subr.bf16.mxu0 %v3795
        %4743 = vmatpush1.bf16.msra.mxu0 %v3794
        %4744 = vmatprep.subr.bf16.mxu0 %v3799
        %4745 = vmatpush1.bf16.msra.mxu0 %v3798
        %4746 = vmatprep.subr.bf16.mxu0 %v3803
        %4747 = vmatpush1.bf16.msra.mxu0 %v3802
        %4748 = vmatprep.subr.bf16.mxu0 %v3807
        %4749 = vmatpush1.bf16.msra.mxu0 %v3806
        %4750 = vmatprep.subr.bf16.mxu0 %v3811
        %4751 = vmatpush1.bf16.msra.mxu0 %v3810
        %4752 = vmatprep.subr.bf16.mxu0 %v3815
        %4753 = vmatpush1.bf16.msra.mxu0 %v3814
        %4754 = vmatprep.subr.bf16.mxu0 %v3819
        %4755 = vmatpush1.bf16.msra.mxu0 %v3818
        %4756 = vmatprep.subr.bf16.mxu0 %v3823
        %4757 = vmatpush1.bf16.msra.mxu0 %v3822
        %4758 = vmatprep.mubr.bf16.mxu0 %v4539
        %4759 = vmatmul.mubr.bf16.gmra.mrb[0].mxu0 %v4538
        %v4760 = vpop.f32.mrb[0].mxu0
        %v4761 = vadd.f32 %v4720, %v4760
        %v4762 = vpop.f32.mrb[0].mxu0
        %v4763 = vadd.f32 %v4722, %v4762
        %v4764 = vpop.f32.mrb[0].mxu0
        %v4765 = vpop.f32.mrb[0].mxu0
        %4766 = vdwg.mxu0
        %4767 = vmatprep.subr.bf16.mxu0 %v3827
        %4768 = vmatpush1.bf16.msra.mxu0 %v3826
        %4769 = vmatprep.subr.bf16.mxu0 %v3831
        %4770 = vmatpush1.bf16.msra.mxu0 %v3830
        %4771 = vmatprep.subr.bf16.mxu0 %v3835
        %4772 = vmatpush1.bf16.msra.mxu0 %v3834
        %4773 = vmatprep.subr.bf16.mxu0 %v3839
        %4774 = vmatpush1.bf16.msra.mxu0 %v3838
        %4775 = vmatprep.subr.bf16.mxu0 %v3843
        %4776 = vmatpush1.bf16.msra.mxu0 %v3842
        %4777 = vmatprep.subr.bf16.mxu0 %v3847
        %4778 = vmatpush1.bf16.msra.mxu0 %v3846
        %4779 = vmatprep.subr.bf16.mxu0 %v3851
        %4780 = vmatpush1.bf16.msra.mxu0 %v3850
        %4781 = vmatprep.subr.bf16.mxu0 %v3855
        %4782 = vmatpush1.bf16.msra.mxu0 %v3854
        %4783 = vmatprep.subr.bf16.mxu0 %v3859
        %4784 = vmatpush1.bf16.msra.mxu0 %v3858
        %4785 = vmatprep.subr.bf16.mxu0 %v3863
        %4786 = vmatpush1.bf16.msra.mxu0 %v3862
        %4787 = vmatprep.subr.bf16.mxu0 %v3867
        %4788 = vmatpush1.bf16.msra.mxu0 %v3866
        %4789 = vmatprep.subr.bf16.mxu0 %v3871
        %4790 = vmatpush1.bf16.msra.mxu0 %v3870
        %4791 = vmatprep.subr.bf16.mxu0 %v3875
        %4792 = vmatpush1.bf16.msra.mxu0 %v3874
        %4793 = vmatprep.subr.bf16.mxu0 %v3879
        %4794 = vmatpush1.bf16.msra.mxu0 %v3878
        %4795 = vmatprep.subr.bf16.mxu0 %v3883
        %4796 = vmatpush1.bf16.msra.mxu0 %v3882
        %4797 = vmatprep.subr.bf16.mxu0 %v3887
        %4798 = vmatpush1.bf16.msra.mxu0 %v3886
        %4799 = vmatprep.mubr.bf16.mxu0 %v4541
        %4800 = vmatmul.mubr.bf16.gmra.mrb[0].mxu0 %v4540
        %v4801 = vpop.f32.mrb[0].mxu0
        %v4802 = vadd.f32 %v4761, %v4801
        %v4803 = vpop.f32.mrb[0].mxu0
        %v4804 = vadd.f32 %v4763, %v4803
        %v4805 = vpop.f32.mrb[0].mxu0
        %v4806 = vpop.f32.mrb[0].mxu0
        %4807 = vdwg.mxu0
        %4808 = vmatprep.subr.bf16.mxu0 %v3891
        %4809 = vmatpush1.bf16.msra.mxu0 %v3890
        %4810 = vmatprep.subr.bf16.mxu0 %v3895
        %4811 = vmatpush1.bf16.msra.mxu0 %v3894
        %4812 = vmatprep.subr.bf16.mxu0 %v3899
        %4813 = vmatpush1.bf16.msra.mxu0 %v3898
        %4814 = vmatprep.subr.bf16.mxu0 %v3903
        %4815 = vmatpush1.bf16.msra.mxu0 %v3902
        %4816 = vmatprep.subr.bf16.mxu0 %v3907
        %4817 = vmatpush1.bf16.msra.mxu0 %v3906
        %4818 = vmatprep.subr.bf16.mxu0 %v3911
        %4819 = vmatpush1.bf16.msra.mxu0 %v3910
        %4820 = vmatprep.subr.bf16.mxu0 %v3915
        %4821 = vmatpush1.bf16.msra.mxu0 %v3914
        %4822 = vmatprep.subr.bf16.mxu0 %v3919
        %4823 = vmatpush1.bf16.msra.mxu0 %v3918
        %4824 = vmatprep.subr.bf16.mxu0 %v3923
        %4825 = vmatpush1.bf16.msra.mxu0 %v3922
        %4826 = vmatprep.subr.bf16.mxu0 %v3927
        %4827 = vmatpush1.bf16.msra.mxu0 %v3926
        %4828 = vmatprep.subr.bf16.mxu0 %v3931
        %4829 = vmatpush1.bf16.msra.mxu0 %v3930
        %4830 = vmatprep.subr.bf16.mxu0 %v3935
        %4831 = vmatpush1.bf16.msra.mxu0 %v3934
        %4832 = vmatprep.subr.bf16.mxu0 %v3939
        %4833 = vmatpush1.bf16.msra.mxu0 %v3938
        %4834 = vmatprep.subr.bf16.mxu0 %v3943
        %4835 = vmatpush1.bf16.msra.mxu0 %v3942
        %4836 = vmatprep.subr.bf16.mxu0 %v3947
        %4837 = vmatpush1.bf16.msra.mxu0 %v3946
        %4838 = vmatprep.subr.bf16.mxu0 %v3951
        %4839 = vmatpush1.bf16.msra.mxu0 %v3950
        %4840 = vmatprep.mubr.bf16.mxu0 %v4543
        %4841 = vmatmul.mubr.bf16.gmra.mrb[0].mxu0 %v4542
        %v4842 = vpop.f32.mrb[0].mxu0
        %v4843 = vadd.f32 %v4802, %v4842
        %v4844 = vpop.f32.mrb[0].mxu0
        %v4845 = vadd.f32 %v4804, %v4844
        %v4846 = vpop.f32.mrb[0].mxu0
        %v4847 = vpop.f32.mrb[0].mxu0
        %4848 = vdwg.mxu0
        %4849 = vmatprep.subr.bf16.mxu0 %v3955
        %4850 = vmatpush1.bf16.msra.mxu0 %v3954
        %4851 = vmatprep.subr.bf16.mxu0 %v3959
        %4852 = vmatpush1.bf16.msra.mxu0 %v3958
        %4853 = vmatprep.subr.bf16.mxu0 %v3963
        %4854 = vmatpush1.bf16.msra.mxu0 %v3962
        %4855 = vmatprep.subr.bf16.mxu0 %v3967
        %4856 = vmatpush1.bf16.msra.mxu0 %v3966
        %4857 = vmatprep.subr.bf16.mxu0 %v3971
        %4858 = vmatpush1.bf16.msra.mxu0 %v3970
        %4859 = vmatprep.subr.bf16.mxu0 %v3975
        %4860 = vmatpush1.bf16.msra.mxu0 %v3974
        %4861 = vmatprep.subr.bf16.mxu0 %v3979
        %4862 = vmatpush1.bf16.msra.mxu0 %v3978
        %4863 = vmatprep.subr.bf16.mxu0 %v3983
        %4864 = vmatpush1.bf16.msra.mxu0 %v3982
        %4865 = vmatprep.subr.bf16.mxu0 %v3987
        %4866 = vmatpush1.bf16.msra.mxu0 %v3986
        %4867 = vmatprep.subr.bf16.mxu0 %v3991
        %4868 = vmatpush1.bf16.msra.mxu0 %v3990
        %4869 = vmatprep.subr.bf16.mxu0 %v3995
        %4870 = vmatpush1.bf16.msra.mxu0 %v3994
        %4871 = vmatprep.subr.bf16.mxu0 %v3999
        %4872 = vmatpush1.bf16.msra.mxu0 %v3998
        %4873 = vmatprep.subr.bf16.mxu0 %v4003
        %4874 = vmatpush1.bf16.msra.mxu0 %v4002
        %4875 = vmatprep.subr.bf16.mxu0 %v4007
        %4876 = vmatpush1.bf16.msra.mxu0 %v4006
        %4877 = vmatprep.subr.bf16.mxu0 %v4011
        %4878 = vmatpush1.bf16.msra.mxu0 %v4010
        %4879 = vmatprep.subr.bf16.mxu0 %v4015
        %4880 = vmatpush1.bf16.msra.mxu0 %v4014
        %4881 = vmatprep.mubr.bf16.mxu0 %v4545
        %4882 = vmatmul.mubr.bf16.gmra.mrb[0].mxu0 %v4544
        %v4883 = vpop.f32.mrb[0].mxu0
        %v4884 = vadd.f32 %v4843, %v4883
        %v4885 = vpop.f32.mrb[0].mxu0
        %v4886 = vadd.f32 %v4845, %v4885
        %v4887 = vpop.f32.mrb[0].mxu0
        %v4888 = vpop.f32.mrb[0].mxu0
        %4889 = vdwg.mxu0
        %4890 = vmatprep.subr.bf16.mxu0 %v4019
        %4891 = vmatpush1.bf16.msra.mxu0 %v4018
        %4892 = vmatprep.subr.bf16.mxu0 %v4023
        %4893 = vmatpush1.bf16.msra.mxu0 %v4022
        %4894 = vmatprep.subr.bf16.mxu0 %v4027
        %4895 = vmatpush1.bf16.msra.mxu0 %v4026
        %4896 = vmatprep.subr.bf16.mxu0 %v4031
        %4897 = vmatpush1.bf16.msra.mxu0 %v4030
        %4898 = vmatprep.subr.bf16.mxu0 %v4035
        %4899 = vmatpush1.bf16.msra.mxu0 %v4034
        %4900 = vmatprep.subr.bf16.mxu0 %v4039
        %4901 = vmatpush1.bf16.msra.mxu0 %v4038
        %4902 = vmatprep.subr.bf16.mxu0 %v4043
        %4903 = vmatpush1.bf16.msra.mxu0 %v4042
        %4904 = vmatprep.subr.bf16.mxu0 %v4047
        %4905 = vmatpush1.bf16.msra.mxu0 %v4046
        %4906 = vmatprep.subr.bf16.mxu0 %v4051
        %4907 = vmatpush1.bf16.msra.mxu0 %v4050
        %4908 = vmatprep.subr.bf16.mxu0 %v4055
        %4909 = vmatpush1.bf16.msra.mxu0 %v4054
        %4910 = vmatprep.subr.bf16.mxu0 %v4059
        %4911 = vmatpush1.bf16.msra.mxu0 %v4058
        %4912 = vmatprep.subr.bf16.mxu0 %v4063
        %4913 = vmatpush1.bf16.msra.mxu0 %v4062
        %4914 = vmatprep.subr.bf16.mxu0 %v4067
        %4915 = vmatpush1.bf16.msra.mxu0 %v4066
        %4916 = vmatprep.subr.bf16.mxu0 %v4071
        %4917 = vmatpush1.bf16.msra.mxu0 %v4070
        %4918 = vmatprep.subr.bf16.mxu0 %v4075
        %4919 = vmatpush1.bf16.msra.mxu0 %v4074
        %4920 = vmatprep.subr.bf16.mxu0 %v4079
        %4921 = vmatpush1.bf16.msra.mxu0 %v4078
        %4922 = vmatprep.mubr.bf16.mxu0 %v4547
        %4923 = vmatmul.mubr.bf16.gmra.mrb[0].mxu0 %v4546
        %v4924 = vpop.f32.mrb[0].mxu0
        %v4925 = vadd.f32 %v4884, %v4924
        %v4926 = vpop.f32.mrb[0].mxu0
        %v4927 = vadd.f32 %v4886, %v4926
        %v4928 = vpop.f32.mrb[0].mxu0
        %v4929 = vpop.f32.mrb[0].mxu0
        %4930 = vdwg.mxu0
        %4931 = vmatprep.subr.bf16.mxu0 %v4083
        %4932 = vmatpush1.bf16.msra.mxu0 %v4082
        %4933 = vmatprep.subr.bf16.mxu0 %v4087
        %4934 = vmatpush1.bf16.msra.mxu0 %v4086
        %4935 = vmatprep.subr.bf16.mxu0 %v4091
        %4936 = vmatpush1.bf16.msra.mxu0 %v4090
        %4937 = vmatprep.subr.bf16.mxu0 %v4095
        %4938 = vmatpush1.bf16.msra.mxu0 %v4094
        %4939 = vmatprep.subr.bf16.mxu0 %v4099
        %4940 = vmatpush1.bf16.msra.mxu0 %v4098
        %4941 = vmatprep.subr.bf16.mxu0 %v4103
        %4942 = vmatpush1.bf16.msra.mxu0 %v4102
        %4943 = vmatprep.subr.bf16.mxu0 %v4107
        %4944 = vmatpush1.bf16.msra.mxu0 %v4106
        %4945 = vmatprep.subr.bf16.mxu0 %v4111
        %4946 = vmatpush1.bf16.msra.mxu0 %v4110
        %4947 = vmatprep.subr.bf16.mxu0 %v4115
        %4948 = vmatpush1.bf16.msra.mxu0 %v4114
        %4949 = vmatprep.subr.bf16.mxu0 %v4119
        %4950 = vmatpush1.bf16.msra.mxu0 %v4118
        %4951 = vmatprep.subr.bf16.mxu0 %v4123
        %4952 = vmatpush1.bf16.msra.mxu0 %v4122
        %4953 = vmatprep.subr.bf16.mxu0 %v4127
        %4954 = vmatpush1.bf16.msra.mxu0 %v4126
        %4955 = vmatprep.subr.bf16.mxu0 %v4131
        %4956 = vmatpush1.bf16.msra.mxu0 %v4130
        %4957 = vmatprep.subr.bf16.mxu0 %v4135
        %4958 = vmatpush1.bf16.msra.mxu0 %v4134
        %4959 = vmatprep.subr.bf16.mxu0 %v4139
        %4960 = vmatpush1.bf16.msra.mxu0 %v4138
        %4961 = vmatprep.subr.bf16.mxu0 %v4143
        %4962 = vmatpush1.bf16.msra.mxu0 %v4142
        %4963 = vmatprep.mubr.bf16.mxu0 %v4549
        %4964 = vmatmul.mubr.bf16.gmra.mrb[0].mxu0 %v4548
        %v4965 = vpop.f32.mrb[0].mxu0
        %v4966 = vadd.f32 %v4925, %v4965
        %v4967 = vpop.f32.mrb[0].mxu0
        %v4968 = vadd.f32 %v4927, %v4967
        %v4969 = vpop.f32.mrb[0].mxu0
        %v4970 = vpop.f32.mrb[0].mxu0
        %4971 = vdwg.mxu0
        %4972 = vmatprep.subr.bf16.mxu0 %v4147
        %4973 = vmatpush1.bf16.msra.mxu0 %v4146
        %4974 = vmatprep.subr.bf16.mxu0 %v4151
        %4975 = vmatpush1.bf16.msra.mxu0 %v4150
        %4976 = vmatprep.subr.bf16.mxu0 %v4155
        %4977 = vmatpush1.bf16.msra.mxu0 %v4154
        %4978 = vmatprep.subr.bf16.mxu0 %v4159
        %4979 = vmatpush1.bf16.msra.mxu0 %v4158
        %4980 = vmatprep.subr.bf16.mxu0 %v4163
        %4981 = vmatpush1.bf16.msra.mxu0 %v4162
        %4982 = vmatprep.subr.bf16.mxu0 %v4167
        %4983 = vmatpush1.bf16.msra.mxu0 %v4166
        %4984 = vmatprep.subr.bf16.mxu0 %v4171
        %4985 = vmatpush1.bf16.msra.mxu0 %v4170
        %4986 = vmatprep.subr.bf16.mxu0 %v4175
        %4987 = vmatpush1.bf16.msra.mxu0 %v4174
        %4988 = vmatprep.subr.bf16.mxu0 %v4179
        %4989 = vmatpush1.bf16.msra.mxu0 %v4178
        %4990 = vmatprep.subr.bf16.mxu0 %v4183
        %4991 = vmatpush1.bf16.msra.mxu0 %v4182
        %4992 = vmatprep.subr.bf16.mxu0 %v4187
        %4993 = vmatpush1.bf16.msra.mxu0 %v4186
        %4994 = vmatprep.subr.bf16.mxu0 %v4191
        %4995 = vmatpush1.bf16.msra.mxu0 %v4190
        %4996 = vmatprep.subr.bf16.mxu0 %v4195
        %4997 = vmatpush1.bf16.msra.mxu0 %v4194
        %4998 = vmatprep.subr.bf16.mxu0 %v4199
        %4999 = vmatpush1.bf16.msra.mxu0 %v4198
        %5000 = vmatprep.subr.bf16.mxu0 %v4203
        %5001 = vmatpush1.bf16.msra.mxu0 %v4202
        %5002 = vmatprep.subr.bf16.mxu0 %v4207
        %5003 = vmatpush1.bf16.msra.mxu0 %v4206
        %5004 = vmatprep.mubr.bf16.mxu0 %v4551
        %5005 = vmatmul.mubr.bf16.gmra.mrb[0].mxu0 %v4550
        %v5006 = vpop.f32.mrb[0].mxu0
        %v5007 = vadd.f32 %v4966, %v5006
        %v5008 = vpop.f32.mrb[0].mxu0
        %v5009 = vadd.f32 %v4968, %v5008
        %v5010 = vpop.f32.mrb[0].mxu0
        %v5011 = vpop.f32.mrb[0].mxu0
        %5012 = vdwg.mxu0
        %5013 = vmatprep.subr.bf16.mxu0 %v4211
        %5014 = vmatpush1.bf16.msra.mxu0 %v4210
        %5015 = vmatprep.subr.bf16.mxu0 %v4215
        %5016 = vmatpush1.bf16.msra.mxu0 %v4214
        %5017 = vmatprep.subr.bf16.mxu0 %v4219
        %5018 = vmatpush1.bf16.msra.mxu0 %v4218
        %5019 = vmatprep.subr.bf16.mxu0 %v4223
        %5020 = vmatpush1.bf16.msra.mxu0 %v4222
        %5021 = vmatprep.subr.bf16.mxu0 %v4227
        %5022 = vmatpush1.bf16.msra.mxu0 %v4226
        %5023 = vmatprep.subr.bf16.mxu0 %v4231
        %5024 = vmatpush1.bf16.msra.mxu0 %v4230
        %5025 = vmatprep.subr.bf16.mxu0 %v4235
        %5026 = vmatpush1.bf16.msra.mxu0 %v4234
        %5027 = vmatprep.subr.bf16.mxu0 %v4239
        %5028 = vmatpush1.bf16.msra.mxu0 %v4238
        %5029 = vmatprep.subr.bf16.mxu0 %v4243
        %5030 = vmatpush1.bf16.msra.mxu0 %v4242
        %5031 = vmatprep.subr.bf16.mxu0 %v4247
        %5032 = vmatpush1.bf16.msra.mxu0 %v4246
        %5033 = vmatprep.subr.bf16.mxu0 %v4251
        %5034 = vmatpush1.bf16.msra.mxu0 %v4250
        %5035 = vmatprep.subr.bf16.mxu0 %v4255
        %5036 = vmatpush1.bf16.msra.mxu0 %v4254
        %5037 = vmatprep.subr.bf16.mxu0 %v4259
        %5038 = vmatpush1.bf16.msra.mxu0 %v4258
        %5039 = vmatprep.subr.bf16.mxu0 %v4263
        %5040 = vmatpush1.bf16.msra.mxu0 %v4262
        %5041 = vmatprep.subr.bf16.mxu0 %v4267
        %5042 = vmatpush1.bf16.msra.mxu0 %v4266
        %5043 = vmatprep.subr.bf16.mxu0 %v4271
        %5044 = vmatpush1.bf16.msra.mxu0 %v4270
        %5045 = vmatprep.mubr.bf16.mxu0 %v4553
        %5046 = vmatmul.mubr.bf16.gmra.mrb[0].mxu0 %v4552
        %v5047 = vpop.f32.mrb[0].mxu0
        %v5048 = vadd.f32 %v5007, %v5047
        %v5049 = vpop.f32.mrb[0].mxu0
        %v5050 = vadd.f32 %v5009, %v5049
        %v5051 = vpop.f32.mrb[0].mxu0
        %v5052 = vpop.f32.mrb[0].mxu0
        %5053 = vdwg.mxu0
        %5054 = vmatprep.subr.bf16.mxu0 %v4275
        %5055 = vmatpush1.bf16.msra.mxu0 %v4274
        %5056 = vmatprep.subr.bf16.mxu0 %v4279
        %5057 = vmatpush1.bf16.msra.mxu0 %v4278
        %5058 = vmatprep.subr.bf16.mxu0 %v4283
        %5059 = vmatpush1.bf16.msra.mxu0 %v4282
        %5060 = vmatprep.subr.bf16.mxu0 %v4287
        %5061 = vmatpush1.bf16.msra.mxu0 %v4286
        %5062 = vmatprep.subr.bf16.mxu0 %v4291
        %5063 = vmatpush1.bf16.msra.mxu0 %v4290
        %5064 = vmatprep.subr.bf16.mxu0 %v4295
        %5065 = vmatpush1.bf16.msra.mxu0 %v4294
        %5066 = vmatprep.subr.bf16.mxu0 %v4299
        %5067 = vmatpush1.bf16.msra.mxu0 %v4298
        %5068 = vmatprep.subr.bf16.mxu0 %v4303
        %5069 = vmatpush1.bf16.msra.mxu0 %v4302
        %5070 = vmatprep.subr.bf16.mxu0 %v4307
        %5071 = vmatpush1.bf16.msra.mxu0 %v4306
        %5072 = vmatprep.subr.bf16.mxu0 %v4311
        %5073 = vmatpush1.bf16.msra.mxu0 %v4310
        %5074 = vmatprep.subr.bf16.mxu0 %v4315
        %5075 = vmatpush1.bf16.msra.mxu0 %v4314
        %5076 = vmatprep.subr.bf16.mxu0 %v4319
        %5077 = vmatpush1.bf16.msra.mxu0 %v4318
        %5078 = vmatprep.subr.bf16.mxu0 %v4323
        %5079 = vmatpush1.bf16.msra.mxu0 %v4322
        %5080 = vmatprep.subr.bf16.mxu0 %v4327
        %5081 = vmatpush1.bf16.msra.mxu0 %v4326
        %5082 = vmatprep.subr.bf16.mxu0 %v4331
        %5083 = vmatpush1.bf16.msra.mxu0 %v4330
        %5084 = vmatprep.subr.bf16.mxu0 %v4335
        %5085 = vmatpush1.bf16.msra.mxu0 %v4334
        %5086 = vmatprep.mubr.bf16.mxu0 %v4555
        %5087 = vmatmul.mubr.bf16.gmra.mrb[0].mxu0 %v4554
        %v5088 = vpop.f32.mrb[0].mxu0
        %v5089 = vadd.f32 %v5048, %v5088
        %v5090 = vpop.f32.mrb[0].mxu0
        %v5091 = vadd.f32 %v5050, %v5090
        %v5092 = vpop.f32.mrb[0].mxu0
        %v5093 = vpop.f32.mrb[0].mxu0
        %5094 = vdwg.mxu0
        %5095 = vmatprep.subr.bf16.mxu0 %v4339
        %5096 = vmatpush1.bf16.msra.mxu0 %v4338
        %5097 = vmatprep.subr.bf16.mxu0 %v4343
        %5098 = vmatpush1.bf16.msra.mxu0 %v4342
        %5099 = vmatprep.subr.bf16.mxu0 %v4347
        %5100 = vmatpush1.bf16.msra.mxu0 %v4346
        %5101 = vmatprep.subr.bf16.mxu0 %v4351
        %5102 = vmatpush1.bf16.msra.mxu0 %v4350
        %5103 = vmatprep.subr.bf16.mxu0 %v4355
        %5104 = vmatpush1.bf16.msra.mxu0 %v4354
        %5105 = vmatprep.subr.bf16.mxu0 %v4359
        %5106 = vmatpush1.bf16.msra.mxu0 %v4358
        %5107 = vmatprep.subr.bf16.mxu0 %v4363
        %5108 = vmatpush1.bf16.msra.mxu0 %v4362
        %5109 = vmatprep.subr.bf16.mxu0 %v4367
        %5110 = vmatpush1.bf16.msra.mxu0 %v4366
        %5111 = vmatprep.subr.bf16.mxu0 %v4371
        %5112 = vmatpush1.bf16.msra.mxu0 %v4370
        %5113 = vmatprep.subr.bf16.mxu0 %v4375
        %5114 = vmatpush1.bf16.msra.mxu0 %v4374
        %5115 = vmatprep.subr.bf16.mxu0 %v4379
        %5116 = vmatpush1.bf16.msra.mxu0 %v4378
        %5117 = vmatprep.subr.bf16.mxu0 %v4383
        %5118 = vmatpush1.bf16.msra.mxu0 %v4382
        %5119 = vmatprep.subr.bf16.mxu0 %v4387
        %5120 = vmatpush1.bf16.msra.mxu0 %v4386
        %5121 = vmatprep.subr.bf16.mxu0 %v4391
        %5122 = vmatpush1.bf16.msra.mxu0 %v4390
        %5123 = vmatprep.subr.bf16.mxu0 %v4395
        %5124 = vmatpush1.bf16.msra.mxu0 %v4394
        %5125 = vmatprep.subr.bf16.mxu0 %v4399
        %5126 = vmatpush1.bf16.msra.mxu0 %v4398
        %5127 = vmatprep.mubr.bf16.mxu0 %v4557
        %5128 = vmatmul.mubr.bf16.gmra.mrb[0].mxu0 %v4556
        %v5129 = vpop.f32.mrb[0].mxu0
        %v5130 = vadd.f32 %v5089, %v5129
        %v5131 = vpop.f32.mrb[0].mxu0
        %v5132 = vadd.f32 %v5091, %v5131
        %v5133 = vpop.f32.mrb[0].mxu0
        %v5134 = vpop.f32.mrb[0].mxu0
        %5135 = vdwg.mxu0
        %5136 = vmatprep.subr.bf16.mxu0 %v4403
        %5137 = vmatpush1.bf16.msra.mxu0 %v4402
        %5138 = vmatprep.subr.bf16.mxu0 %v4407
        %5139 = vmatpush1.bf16.msra.mxu0 %v4406
        %5140 = vmatprep.subr.bf16.mxu0 %v4411
        %5141 = vmatpush1.bf16.msra.mxu0 %v4410
        %5142 = vmatprep.subr.bf16.mxu0 %v4415
        %5143 = vmatpush1.bf16.msra.mxu0 %v4414
        %5144 = vmatprep.subr.bf16.mxu0 %v4419
        %5145 = vmatpush1.bf16.msra.mxu0 %v4418
        %5146 = vmatprep.subr.bf16.mxu0 %v4423
        %5147 = vmatpush1.bf16.msra.mxu0 %v4422
        %5148 = vmatprep.subr.bf16.mxu0 %v4427
        %5149 = vmatpush1.bf16.msra.mxu0 %v4426
        %5150 = vmatprep.subr.bf16.mxu0 %v4431
        %5151 = vmatpush1.bf16.msra.mxu0 %v4430
        %5152 = vmatprep.subr.bf16.mxu0 %v4435
        %5153 = vmatpush1.bf16.msra.mxu0 %v4434
        %5154 = vmatprep.subr.bf16.mxu0 %v4439
        %5155 = vmatpush1.bf16.msra.mxu0 %v4438
        %5156 = vmatprep.subr.bf16.mxu0 %v4443
        %5157 = vmatpush1.bf16.msra.mxu0 %v4442
        %5158 = vmatprep.subr.bf16.mxu0 %v4447
        %5159 = vmatpush1.bf16.msra.mxu0 %v4446
        %5160 = vmatprep.subr.bf16.mxu0 %v4451
        %5161 = vmatpush1.bf16.msra.mxu0 %v4450
        %5162 = vmatprep.subr.bf16.mxu0 %v4455
        %5163 = vmatpush1.bf16.msra.mxu0 %v4454
        %5164 = vmatprep.subr.bf16.mxu0 %v4459
        %5165 = vmatpush1.bf16.msra.mxu0 %v4458
        %5166 = vmatprep.subr.bf16.mxu0 %v4463
        %5167 = vmatpush1.bf16.msra.mxu0 %v4462
        %5168 = vmatprep.mubr.bf16.mxu0 %v4559
        %5169 = vmatmul.mubr.bf16.gmra.mrb[0].mxu0 %v4558
        %v5170 = vpop.f32.mrb[0].mxu0
        %v5171 = vadd.f32 %v5130, %v5170
        %v5172 = vpop.f32.mrb[0].mxu0
        %v5173 = vadd.f32 %v5132, %v5172
        %v5174 = vpop.f32.mrb[0].mxu0
        %v5175 = vpop.f32.mrb[0].mxu0
        %5176 = vdwg.mxu0
        %5177 = vmatprep.subr.bf16.mxu0 %v4467
        %5178 = vmatpush1.bf16.msra.mxu0 %v4466
        %5179 = vmatprep.subr.bf16.mxu0 %v4471
        %5180 = vmatpush1.bf16.msra.mxu0 %v4470
        %5181 = vmatprep.subr.bf16.mxu0 %v4475
        %5182 = vmatpush1.bf16.msra.mxu0 %v4474
        %5183 = vmatprep.subr.bf16.mxu0 %v4479
        %5184 = vmatpush1.bf16.msra.mxu0 %v4478
        %5185 = vmatprep.subr.bf16.mxu0 %v4483
        %5186 = vmatpush1.bf16.msra.mxu0 %v4482
        %5187 = vmatprep.subr.bf16.mxu0 %v4487
        %5188 = vmatpush1.bf16.msra.mxu0 %v4486
        %5189 = vmatprep.subr.bf16.mxu0 %v4491
        %5190 = vmatpush1.bf16.msra.mxu0 %v4490
        %5191 = vmatprep.subr.bf16.mxu0 %v4495
        %5192 = vmatpush1.bf16.msra.mxu0 %v4494
        %5193 = vmatprep.subr.bf16.mxu0 %v4499
        %5194 = vmatpush1.bf16.msra.mxu0 %v4498
        %5195 = vmatprep.subr.bf16.mxu0 %v4503
        %5196 = vmatpush1.bf16.msra.mxu0 %v4502
        %5197 = vmatprep.subr.bf16.mxu0 %v4507
        %5198 = vmatpush1.bf16.msra.mxu0 %v4506
        %5199 = vmatprep.subr.bf16.mxu0 %v4511
        %5200 = vmatpush1.bf16.msra.mxu0 %v4510
        %5201 = vmatprep.subr.bf16.mxu0 %v4515
        %5202 = vmatpush1.bf16.msra.mxu0 %v4514
        %5203 = vmatprep.subr.bf16.mxu0 %v4519
        %5204 = vmatpush1.bf16.msra.mxu0 %v4518
        %5205 = vmatprep.subr.bf16.mxu0 %v4523
        %5206 = vmatpush1.bf16.msra.mxu0 %v4522
        %5207 = vmatprep.subr.bf16.mxu0 %v4527
        %5208 = vmatpush1.bf16.msra.mxu0 %v4526
        %5209 = vmatprep.mubr.bf16.mxu0 %v4561
        %5210 = vmatmul.mubr.bf16.gmra.mrb[0].mxu0 %v4560
        %v5211 = vpop.f32.mrb[0].mxu0
        %v5212 = vadd.f32 %v5171, %v5211
        %v5213 = vpop.f32.mrb[0].mxu0
        %v5214 = vadd.f32 %v5173, %v5213
        %v5215 = vpop.f32.mrb[0].mxu0
        %v5216 = vpop.f32.mrb[0].mxu0
        %5217 = vdwg.mxu0
        %5218 = vmatprep.subr.bf16.mxu0 %v3509
        %5219 = vmatpush1.bf16.msra.mxu0 %v3508
        %5220 = vmatprep.subr.bf16.mxu0 %v3513
        %5221 = vmatpush1.bf16.msra.mxu0 %v3512
        %5222 = vmatprep.subr.bf16.mxu0 %v3517
        %5223 = vmatpush1.bf16.msra.mxu0 %v3516
        %5224 = vmatprep.subr.bf16.mxu0 %v3521
        %5225 = vmatpush1.bf16.msra.mxu0 %v3520
        %5226 = vmatprep.subr.bf16.mxu0 %v3525
        %5227 = vmatpush1.bf16.msra.mxu0 %v3524
        %5228 = vmatprep.subr.bf16.mxu0 %v3529
        %5229 = vmatpush1.bf16.msra.mxu0 %v3528
        %5230 = vmatprep.subr.bf16.mxu0 %v3533
        %5231 = vmatpush1.bf16.msra.mxu0 %v3532
        %5232 = vmatprep.subr.bf16.mxu0 %v3537
        %5233 = vmatpush1.bf16.msra.mxu0 %v3536
        %5234 = vmatprep.subr.bf16.mxu0 %v3541
        %5235 = vmatpush1.bf16.msra.mxu0 %v3540
        %5236 = vmatprep.subr.bf16.mxu0 %v3545
        %5237 = vmatpush1.bf16.msra.mxu0 %v3544
        %5238 = vmatprep.subr.bf16.mxu0 %v3549
        %5239 = vmatpush1.bf16.msra.mxu0 %v3548
        %5240 = vmatprep.subr.bf16.mxu0 %v3553
        %5241 = vmatpush1.bf16.msra.mxu0 %v3552
        %5242 = vmatprep.subr.bf16.mxu0 %v3557
        %5243 = vmatpush1.bf16.msra.mxu0 %v3556
        %5244 = vmatprep.subr.bf16.mxu0 %v3561
        %5245 = vmatpush1.bf16.msra.mxu0 %v3560
        %5246 = vmatprep.subr.bf16.mxu0 %v3565
        %5247 = vmatpush1.bf16.msra.mxu0 %v3564
        %5248 = vmatprep.subr.bf16.mxu0 %v3569
        %5249 = vmatpush1.bf16.msra.mxu0 %v3568
        %5250 = vmatprep.mubr.bf16.mxu0 %v4531
        %5251 = vmatmul.mubr.bf16.gmra.mrb[0].mxu0 %v4530
        %v5252 = vpop.f32.mrb[0].mxu0
        %v5253 = vadd.f32 0.0, %v5252
        %v5254 = vpop.f32.mrb[0].mxu0
        %v5255 = vadd.f32 0.0, %v5254
        %v5256 = vpop.f32.mrb[0].mxu0
        %v5257 = vpop.f32.mrb[0].mxu0
        %5258 = vdwg.mxu0
        %5259 = vmatprep.subr.bf16.mxu0 %v3573
        %5260 = vmatpush1.bf16.msra.mxu0 %v3572
        %5261 = vmatprep.subr.bf16.mxu0 %v3577
        %5262 = vmatpush1.bf16.msra.mxu0 %v3576
        %5263 = vmatprep.subr.bf16.mxu0 %v3581
        %5264 = vmatpush1.bf16.msra.mxu0 %v3580
        %5265 = vmatprep.subr.bf16.mxu0 %v3585
        %5266 = vmatpush1.bf16.msra.mxu0 %v3584
        %5267 = vmatprep.subr.bf16.mxu0 %v3589
        %5268 = vmatpush1.bf16.msra.mxu0 %v3588
        %5269 = vmatprep.subr.bf16.mxu0 %v3593
        %5270 = vmatpush1.bf16.msra.mxu0 %v3592
        %5271 = vmatprep.subr.bf16.mxu0 %v3597
        %5272 = vmatpush1.bf16.msra.mxu0 %v3596
        %5273 = vmatprep.subr.bf16.mxu0 %v3601
        %5274 = vmatpush1.bf16.msra.mxu0 %v3600
        %5275 = vmatprep.subr.bf16.mxu0 %v3605
        %5276 = vmatpush1.bf16.msra.mxu0 %v3604
        %5277 = vmatprep.subr.bf16.mxu0 %v3609
        %5278 = vmatpush1.bf16.msra.mxu0 %v3608
        %5279 = vmatprep.subr.bf16.mxu0 %v3613
        %5280 = vmatpush1.bf16.msra.mxu0 %v3612
        %5281 = vmatprep.subr.bf16.mxu0 %v3617
        %5282 = vmatpush1.bf16.msra.mxu0 %v3616
        %5283 = vmatprep.subr.bf16.mxu0 %v3621
        %5284 = vmatpush1.bf16.msra.mxu0 %v3620
        %5285 = vmatprep.subr.bf16.mxu0 %v3625
        %5286 = vmatpush1.bf16.msra.mxu0 %v3624
        %5287 = vmatprep.subr.bf16.mxu0 %v3629
        %5288 = vmatpush1.bf16.msra.mxu0 %v3628
        %5289 = vmatprep.subr.bf16.mxu0 %v3633
        %5290 = vmatpush1.bf16.msra.mxu0 %v3632
        %5291 = vmatprep.mubr.bf16.mxu0 %v4533
        %5292 = vmatmul.mubr.bf16.gmra.mrb[0].mxu0 %v4532
        %v5293 = vpop.f32.mrb[0].mxu0
        %v5294 = vadd.f32 %v5253, %v5293
        %v5295 = vpop.f32.mrb[0].mxu0
        %v5296 = vadd.f32 %v5255, %v5295
        %v5297 = vpop.f32.mrb[0].mxu0
        %v5298 = vpop.f32.mrb[0].mxu0
        %5299 = vdwg.mxu0
        %5300 = vmatprep.subr.bf16.mxu0 %v3637
        %5301 = vmatpush1.bf16.msra.mxu0 %v3636
        %5302 = vmatprep.subr.bf16.mxu0 %v3641
        %5303 = vmatpush1.bf16.msra.mxu0 %v3640
        %5304 = vmatprep.subr.bf16.mxu0 %v3645
        %5305 = vmatpush1.bf16.msra.mxu0 %v3644
        %5306 = vmatprep.subr.bf16.mxu0 %v3649
        %5307 = vmatpush1.bf16.msra.mxu0 %v3648
        %5308 = vmatprep.subr.bf16.mxu0 %v3653
        %5309 = vmatpush1.bf16.msra.mxu0 %v3652
        %5310 = vmatprep.subr.bf16.mxu0 %v3657
        %5311 = vmatpush1.bf16.msra.mxu0 %v3656
        %5312 = vmatprep.subr.bf16.mxu0 %v3661
        %5313 = vmatpush1.bf16.msra.mxu0 %v3660
        %5314 = vmatprep.subr.bf16.mxu0 %v3665
        %5315 = vmatpush1.bf16.msra.mxu0 %v3664
        %5316 = vmatprep.subr.bf16.mxu0 %v3669
        %5317 = vmatpush1.bf16.msra.mxu0 %v3668
        %5318 = vmatprep.subr.bf16.mxu0 %v3673
        %5319 = vmatpush1.bf16.msra.mxu0 %v3672
        %5320 = vmatprep.subr.bf16.mxu0 %v3677
        %5321 = vmatpush1.bf16.msra.mxu0 %v3676
        %5322 = vmatprep.subr.bf16.mxu0 %v3681
        %5323 = vmatpush1.bf16.msra.mxu0 %v3680
        %5324 = vmatprep.subr.bf16.mxu0 %v3685
        %5325 = vmatpush1.bf16.msra.mxu0 %v3684
        %5326 = vmatprep.subr.bf16.mxu0 %v3689
        %5327 = vmatpush1.bf16.msra.mxu0 %v3688
        %5328 = vmatprep.subr.bf16.mxu0 %v3693
        %5329 = vmatpush1.bf16.msra.mxu0 %v3692
        %5330 = vmatprep.subr.bf16.mxu0 %v3697
        %5331 = vmatpush1.bf16.msra.mxu0 %v3696
        %5332 = vmatprep.mubr.bf16.mxu0 %v4535
        %5333 = vmatmul.mubr.bf16.gmra.mrb[0].mxu0 %v4534
        %v5334 = vpop.f32.mrb[0].mxu0
        %v5335 = vadd.f32 %v5294, %v5334
        %v5336 = vpop.f32.mrb[0].mxu0
        %v5337 = vadd.f32 %v5296, %v5336
        %v5338 = vpop.f32.mrb[0].mxu0
        %v5339 = vpop.f32.mrb[0].mxu0
        %5340 = vdwg.mxu0
        %5341 = vmatprep.subr.bf16.mxu0 %v3701
        %5342 = vmatpush1.bf16.msra.mxu0 %v3700
        %5343 = vmatprep.subr.bf16.mxu0 %v3705
        %5344 = vmatpush1.bf16.msra.mxu0 %v3704
        %5345 = vmatprep.subr.bf16.mxu0 %v3709
        %5346 = vmatpush1.bf16.msra.mxu0 %v3708
        %5347 = vmatprep.subr.bf16.mxu0 %v3713
        %5348 = vmatpush1.bf16.msra.mxu0 %v3712
        %5349 = vmatprep.subr.bf16.mxu0 %v3717
        %5350 = vmatpush1.bf16.msra.mxu0 %v3716
        %5351 = vmatprep.subr.bf16.mxu0 %v3721
        %5352 = vmatpush1.bf16.msra.mxu0 %v3720
        %5353 = vmatprep.subr.bf16.mxu0 %v3725
        %5354 = vmatpush1.bf16.msra.mxu0 %v3724
        %5355 = vmatprep.subr.bf16.mxu0 %v3729
        %5356 = vmatpush1.bf16.msra.mxu0 %v3728
        %5357 = vmatprep.subr.bf16.mxu0 %v3733
        %5358 = vmatpush1.bf16.msra.mxu0 %v3732
        %5359 = vmatprep.subr.bf16.mxu0 %v3737
        %5360 = vmatpush1.bf16.msra.mxu0 %v3736
        %5361 = vmatprep.subr.bf16.mxu0 %v3741
        %5362 = vmatpush1.bf16.msra.mxu0 %v3740
        %5363 = vmatprep.subr.bf16.mxu0 %v3745
        %5364 = vmatpush1.bf16.msra.mxu0 %v3744
        %5365 = vmatprep.subr.bf16.mxu0 %v3749
        %5366 = vmatpush1.bf16.msra.mxu0 %v3748
        %5367 = vmatprep.subr.bf16.mxu0 %v3753
        %5368 = vmatpush1.bf16.msra.mxu0 %v3752
        %5369 = vmatprep.subr.bf16.mxu0 %v3757
        %5370 = vmatpush1.bf16.msra.mxu0 %v3756
        %5371 = vmatprep.subr.bf16.mxu0 %v3761
        %5372 = vmatpush1.bf16.msra.mxu0 %v3760
        %5373 = vmatprep.mubr.bf16.mxu0 %v4537
        %5374 = vmatmul.mubr.bf16.gmra.mrb[0].mxu0 %v4536
        %v5375 = vpop.f32.mrb[0].mxu0
        %v5376 = vadd.f32 %v5335, %v5375
        %v5377 = vpop.f32.mrb[0].mxu0
        %v5378 = vadd.f32 %v5337, %v5377
        %v5379 = vpop.f32.mrb[0].mxu0
        %v5380 = vpop.f32.mrb[0].mxu0
        %5381 = vdwg.mxu0
        %5382 = vmatprep.subr.bf16.mxu0 %v3765
        %5383 = vmatpush1.bf16.msra.mxu0 %v3764
        %5384 = vmatprep.subr.bf16.mxu0 %v3769
        %5385 = vmatpush1.bf16.msra.mxu0 %v3768
        %5386 = vmatprep.subr.bf16.mxu0 %v3773
        %5387 = vmatpush1.bf16.msra.mxu0 %v3772
        %5388 = vmatprep.subr.bf16.mxu0 %v3777
        %5389 = vmatpush1.bf16.msra.mxu0 %v3776
        %5390 = vmatprep.subr.bf16.mxu0 %v3781
        %5391 = vmatpush1.bf16.msra.mxu0 %v3780
        %5392 = vmatprep.subr.bf16.mxu0 %v3785
        %5393 = vmatpush1.bf16.msra.mxu0 %v3784
        %5394 = vmatprep.subr.bf16.mxu0 %v3789
        %5395 = vmatpush1.bf16.msra.mxu0 %v3788
        %5396 = vmatprep.subr.bf16.mxu0 %v3793
        %5397 = vmatpush1.bf16.msra.mxu0 %v3792
        %5398 = vmatprep.subr.bf16.mxu0 %v3797
        %5399 = vmatpush1.bf16.msra.mxu0 %v3796
        %5400 = vmatprep.subr.bf16.mxu0 %v3801
        %5401 = vmatpush1.bf16.msra.mxu0 %v3800
        %5402 = vmatprep.subr.bf16.mxu0 %v3805
        %5403 = vmatpush1.bf16.msra.mxu0 %v3804
        %5404 = vmatprep.subr.bf16.mxu0 %v3809
        %5405 = vmatpush1.bf16.msra.mxu0 %v3808
        %5406 = vmatprep.subr.bf16.mxu0 %v3813
        %5407 = vmatpush1.bf16.msra.mxu0 %v3812
        %5408 = vmatprep.subr.bf16.mxu0 %v3817
        %5409 = vmatpush1.bf16.msra.mxu0 %v3816
        %5410 = vmatprep.subr.bf16.mxu0 %v3821
        %5411 = vmatpush1.bf16.msra.mxu0 %v3820
        %5412 = vmatprep.subr.bf16.mxu0 %v3825
        %5413 = vmatpush1.bf16.msra.mxu0 %v3824
        %5414 = vmatprep.mubr.bf16.mxu0 %v4539
        %5415 = vmatmul.mubr.bf16.gmra.mrb[0].mxu0 %v4538
        %v5416 = vpop.f32.mrb[0].mxu0
        %v5417 = vadd.f32 %v5376, %v5416
        %v5418 = vpop.f32.mrb[0].mxu0
        %v5419 = vadd.f32 %v5378, %v5418
        %v5420 = vpop.f32.mrb[0].mxu0
        %v5421 = vpop.f32.mrb[0].mxu0
        %5422 = vdwg.mxu0
        %5423 = vmatprep.subr.bf16.mxu0 %v3829
        %5424 = vmatpush1.bf16.msra.mxu0 %v3828
        %5425 = vmatprep.subr.bf16.mxu0 %v3833
        %5426 = vmatpush1.bf16.msra.mxu0 %v3832
        %5427 = vmatprep.subr.bf16.mxu0 %v3837
        %5428 = vmatpush1.bf16.msra.mxu0 %v3836
        %5429 = vmatprep.subr.bf16.mxu0 %v3841
        %5430 = vmatpush1.bf16.msra.mxu0 %v3840
        %5431 = vmatprep.subr.bf16.mxu0 %v3845
        %5432 = vmatpush1.bf16.msra.mxu0 %v3844
        %5433 = vmatprep.subr.bf16.mxu0 %v3849
        %5434 = vmatpush1.bf16.msra.mxu0 %v3848
        %5435 = vmatprep.subr.bf16.mxu0 %v3853
        %5436 = vmatpush1.bf16.msra.mxu0 %v3852
        %5437 = vmatprep.subr.bf16.mxu0 %v3857
        %5438 = vmatpush1.bf16.msra.mxu0 %v3856
        %5439 = vmatprep.subr.bf16.mxu0 %v3861
        %5440 = vmatpush1.bf16.msra.mxu0 %v3860
        %5441 = vmatprep.subr.bf16.mxu0 %v3865
        %5442 = vmatpush1.bf16.msra.mxu0 %v3864
        %5443 = vmatprep.subr.bf16.mxu0 %v3869
        %5444 = vmatpush1.bf16.msra.mxu0 %v3868
        %5445 = vmatprep.subr.bf16.mxu0 %v3873
        %5446 = vmatpush1.bf16.msra.mxu0 %v3872
        %5447 = vmatprep.subr.bf16.mxu0 %v3877
        %5448 = vmatpush1.bf16.msra.mxu0 %v3876
        %5449 = vmatprep.subr.bf16.mxu0 %v3881
        %5450 = vmatpush1.bf16.msra.mxu0 %v3880
        %5451 = vmatprep.subr.bf16.mxu0 %v3885
        %5452 = vmatpush1.bf16.msra.mxu0 %v3884
        %5453 = vmatprep.subr.bf16.mxu0 %v3889
        %5454 = vmatpush1.bf16.msra.mxu0 %v3888
        %5455 = vmatprep.mubr.bf16.mxu0 %v4541
        %5456 = vmatmul.mubr.bf16.gmra.mrb[0].mxu0 %v4540
        %v5457 = vpop.f32.mrb[0].mxu0
        %v5458 = vadd.f32 %v5417, %v5457
        %v5459 = vpop.f32.mrb[0].mxu0
        %v5460 = vadd.f32 %v5419, %v5459
        %v5461 = vpop.f32.mrb[0].mxu0
        %v5462 = vpop.f32.mrb[0].mxu0
        %5463 = vdwg.mxu0
        %5464 = vmatprep.subr.bf16.mxu0 %v3893
        %5465 = vmatpush1.bf16.msra.mxu0 %v3892
        %5466 = vmatprep.subr.bf16.mxu0 %v3897
        %5467 = vmatpush1.bf16.msra.mxu0 %v3896
        %5468 = vmatprep.subr.bf16.mxu0 %v3901
        %5469 = vmatpush1.bf16.msra.mxu0 %v3900
        %5470 = vmatprep.subr.bf16.mxu0 %v3905
        %5471 = vmatpush1.bf16.msra.mxu0 %v3904
        %5472 = vmatprep.subr.bf16.mxu0 %v3909
        %5473 = vmatpush1.bf16.msra.mxu0 %v3908
        %5474 = vmatprep.subr.bf16.mxu0 %v3913
        %5475 = vmatpush1.bf16.msra.mxu0 %v3912
        %5476 = vmatprep.subr.bf16.mxu0 %v3917
        %5477 = vmatpush1.bf16.msra.mxu0 %v3916
        %5478 = vmatprep.subr.bf16.mxu0 %v3921
        %5479 = vmatpush1.bf16.msra.mxu0 %v3920
        %5480 = vmatprep.subr.bf16.mxu0 %v3925
        %5481 = vmatpush1.bf16.msra.mxu0 %v3924
        %5482 = vmatprep.subr.bf16.mxu0 %v3929
        %5483 = vmatpush1.bf16.msra.mxu0 %v3928
        %5484 = vmatprep.subr.bf16.mxu0 %v3933
        %5485 = vmatpush1.bf16.msra.mxu0 %v3932
        %5486 = vmatprep.subr.bf16.mxu0 %v3937
        %5487 = vmatpush1.bf16.msra.mxu0 %v3936
        %5488 = vmatprep.subr.bf16.mxu0 %v3941
        %5489 = vmatpush1.bf16.msra.mxu0 %v3940
        %5490 = vmatprep.subr.bf16.mxu0 %v3945
        %5491 = vmatpush1.bf16.msra.mxu0 %v3944
        %5492 = vmatprep.subr.bf16.mxu0 %v3949
        %5493 = vmatpush1.bf16.msra.mxu0 %v3948
        %5494 = vmatprep.subr.bf16.mxu0 %v3953
        %5495 = vmatpush1.bf16.msra.mxu0 %v3952
        %5496 = vmatprep.mubr.bf16.mxu0 %v4543
        %5497 = vmatmul.mubr.bf16.gmra.mrb[0].mxu0 %v4542
        %v5498 = vpop.f32.mrb[0].mxu0
        %v5499 = vadd.f32 %v5458, %v5498
        %v5500 = vpop.f32.mrb[0].mxu0
        %v5501 = vadd.f32 %v5460, %v5500
        %v5502 = vpop.f32.mrb[0].mxu0
        %v5503 = vpop.f32.mrb[0].mxu0
        %5504 = vdwg.mxu0
        %5505 = vmatprep.subr.bf16.mxu0 %v3957
        %5506 = vmatpush1.bf16.msra.mxu0 %v3956
        %5507 = vmatprep.subr.bf16.mxu0 %v3961
        %5508 = vmatpush1.bf16.msra.mxu0 %v3960
        %5509 = vmatprep.subr.bf16.mxu0 %v3965
        %5510 = vmatpush1.bf16.msra.mxu0 %v3964
        %5511 = vmatprep.subr.bf16.mxu0 %v3969
        %5512 = vmatpush1.bf16.msra.mxu0 %v3968
        %5513 = vmatprep.subr.bf16.mxu0 %v3973
        %5514 = vmatpush1.bf16.msra.mxu0 %v3972
        %5515 = vmatprep.subr.bf16.mxu0 %v3977
        %5516 = vmatpush1.bf16.msra.mxu0 %v3976
        %5517 = vmatprep.subr.bf16.mxu0 %v3981
        %5518 = vmatpush1.bf16.msra.mxu0 %v3980
        %5519 = vmatprep.subr.bf16.mxu0 %v3985
        %5520 = vmatpush1.bf16.msra.mxu0 %v3984
        %5521 = vmatprep.subr.bf16.mxu0 %v3989
        %5522 = vmatpush1.bf16.msra.mxu0 %v3988
        %5523 = vmatprep.subr.bf16.mxu0 %v3993
        %5524 = vmatpush1.bf16.msra.mxu0 %v3992
        %5525 = vmatprep.subr.bf16.mxu0 %v3997
        %5526 = vmatpush1.bf16.msra.mxu0 %v3996
        %5527 = vmatprep.subr.bf16.mxu0 %v4001
        %5528 = vmatpush1.bf16.msra.mxu0 %v4000
        %5529 = vmatprep.subr.bf16.mxu0 %v4005
        %5530 = vmatpush1.bf16.msra.mxu0 %v4004
        %5531 = vmatprep.subr.bf16.mxu0 %v4009
        %5532 = vmatpush1.bf16.msra.mxu0 %v4008
        %5533 = vmatprep.subr.bf16.mxu0 %v4013
        %5534 = vmatpush1.bf16.msra.mxu0 %v4012
        %5535 = vmatprep.subr.bf16.mxu0 %v4017
        %5536 = vmatpush1.bf16.msra.mxu0 %v4016
        %5537 = vmatprep.mubr.bf16.mxu0 %v4545
        %5538 = vmatmul.mubr.bf16.gmra.mrb[0].mxu0 %v4544
        %v5539 = vpop.f32.mrb[0].mxu0
        %v5540 = vadd.f32 %v5499, %v5539
        %v5541 = vpop.f32.mrb[0].mxu0
        %v5542 = vadd.f32 %v5501, %v5541
        %v5543 = vpop.f32.mrb[0].mxu0
        %v5544 = vpop.f32.mrb[0].mxu0
        %5545 = vdwg.mxu0
        %5546 = vmatprep.subr.bf16.mxu0 %v4021
        %5547 = vmatpush1.bf16.msra.mxu0 %v4020
        %5548 = vmatprep.subr.bf16.mxu0 %v4025
        %5549 = vmatpush1.bf16.msra.mxu0 %v4024
        %5550 = vmatprep.subr.bf16.mxu0 %v4029
        %5551 = vmatpush1.bf16.msra.mxu0 %v4028
        %5552 = vmatprep.subr.bf16.mxu0 %v4033
        %5553 = vmatpush1.bf16.msra.mxu0 %v4032
        %5554 = vmatprep.subr.bf16.mxu0 %v4037
        %5555 = vmatpush1.bf16.msra.mxu0 %v4036
        %5556 = vmatprep.subr.bf16.mxu0 %v4041
        %5557 = vmatpush1.bf16.msra.mxu0 %v4040
        %5558 = vmatprep.subr.bf16.mxu0 %v4045
        %5559 = vmatpush1.bf16.msra.mxu0 %v4044
        %5560 = vmatprep.subr.bf16.mxu0 %v4049
        %5561 = vmatpush1.bf16.msra.mxu0 %v4048
        %5562 = vmatprep.subr.bf16.mxu0 %v4053
        %5563 = vmatpush1.bf16.msra.mxu0 %v4052
        %5564 = vmatprep.subr.bf16.mxu0 %v4057
        %5565 = vmatpush1.bf16.msra.mxu0 %v4056
        %5566 = vmatprep.subr.bf16.mxu0 %v4061
        %5567 = vmatpush1.bf16.msra.mxu0 %v4060
        %5568 = vmatprep.subr.bf16.mxu0 %v4065
        %5569 = vmatpush1.bf16.msra.mxu0 %v4064
        %5570 = vmatprep.subr.bf16.mxu0 %v4069
        %5571 = vmatpush1.bf16.msra.mxu0 %v4068
        %5572 = vmatprep.subr.bf16.mxu0 %v4073
        %5573 = vmatpush1.bf16.msra.mxu0 %v4072
        %5574 = vmatprep.subr.bf16.mxu0 %v4077
        %5575 = vmatpush1.bf16.msra.mxu0 %v4076
        %5576 = vmatprep.subr.bf16.mxu0 %v4081
        %5577 = vmatpush1.bf16.msra.mxu0 %v4080
        %5578 = vmatprep.mubr.bf16.mxu0 %v4547
        %5579 = vmatmul.mubr.bf16.gmra.mrb[0].mxu0 %v4546
        %v5580 = vpop.f32.mrb[0].mxu0
        %v5581 = vadd.f32 %v5540, %v5580
        %v5582 = vpop.f32.mrb[0].mxu0
        %v5583 = vadd.f32 %v5542, %v5582
        %v5584 = vpop.f32.mrb[0].mxu0
        %v5585 = vpop.f32.mrb[0].mxu0
        %5586 = vdwg.mxu0
        %5587 = vmatprep.subr.bf16.mxu0 %v4085
        %5588 = vmatpush1.bf16.msra.mxu0 %v4084
        %5589 = vmatprep.subr.bf16.mxu0 %v4089
        %5590 = vmatpush1.bf16.msra.mxu0 %v4088
        %5591 = vmatprep.subr.bf16.mxu0 %v4093
        %5592 = vmatpush1.bf16.msra.mxu0 %v4092
        %5593 = vmatprep.subr.bf16.mxu0 %v4097
        %5594 = vmatpush1.bf16.msra.mxu0 %v4096
        %5595 = vmatprep.subr.bf16.mxu0 %v4101
        %5596 = vmatpush1.bf16.msra.mxu0 %v4100
        %5597 = vmatprep.subr.bf16.mxu0 %v4105
        %5598 = vmatpush1.bf16.msra.mxu0 %v4104
        %5599 = vmatprep.subr.bf16.mxu0 %v4109
        %5600 = vmatpush1.bf16.msra.mxu0 %v4108
        %5601 = vmatprep.subr.bf16.mxu0 %v4113
        %5602 = vmatpush1.bf16.msra.mxu0 %v4112
        %5603 = vmatprep.subr.bf16.mxu0 %v4117
        %5604 = vmatpush1.bf16.msra.mxu0 %v4116
        %5605 = vmatprep.subr.bf16.mxu0 %v4121
        %5606 = vmatpush1.bf16.msra.mxu0 %v4120
        %5607 = vmatprep.subr.bf16.mxu0 %v4125
        %5608 = vmatpush1.bf16.msra.mxu0 %v4124
        %5609 = vmatprep.subr.bf16.mxu0 %v4129
        %5610 = vmatpush1.bf16.msra.mxu0 %v4128
        %5611 = vmatprep.subr.bf16.mxu0 %v4133
        %5612 = vmatpush1.bf16.msra.mxu0 %v4132
        %5613 = vmatprep.subr.bf16.mxu0 %v4137
        %5614 = vmatpush1.bf16.msra.mxu0 %v4136
        %5615 = vmatprep.subr.bf16.mxu0 %v4141
        %5616 = vmatpush1.bf16.msra.mxu0 %v4140
        %5617 = vmatprep.subr.bf16.mxu0 %v4145
        %5618 = vmatpush1.bf16.msra.mxu0 %v4144
        %5619 = vmatprep.mubr.bf16.mxu0 %v4549
        %5620 = vmatmul.mubr.bf16.gmra.mrb[0].mxu0 %v4548
        %v5621 = vpop.f32.mrb[0].mxu0
        %v5622 = vadd.f32 %v5581, %v5621
        %v5623 = vpop.f32.mrb[0].mxu0
        %v5624 = vadd.f32 %v5583, %v5623
        %v5625 = vpop.f32.mrb[0].mxu0
        %v5626 = vpop.f32.mrb[0].mxu0
        %5627 = vdwg.mxu0
        %5628 = vmatprep.subr.bf16.mxu0 %v4149
        %5629 = vmatpush1.bf16.msra.mxu0 %v4148
        %5630 = vmatprep.subr.bf16.mxu0 %v4153
        %5631 = vmatpush1.bf16.msra.mxu0 %v4152
        %5632 = vmatprep.subr.bf16.mxu0 %v4157
        %5633 = vmatpush1.bf16.msra.mxu0 %v4156
        %5634 = vmatprep.subr.bf16.mxu0 %v4161
        %5635 = vmatpush1.bf16.msra.mxu0 %v4160
        %5636 = vmatprep.subr.bf16.mxu0 %v4165
        %5637 = vmatpush1.bf16.msra.mxu0 %v4164
        %5638 = vmatprep.subr.bf16.mxu0 %v4169
        %5639 = vmatpush1.bf16.msra.mxu0 %v4168
        %5640 = vmatprep.subr.bf16.mxu0 %v4173
        %5641 = vmatpush1.bf16.msra.mxu0 %v4172
        %5642 = vmatprep.subr.bf16.mxu0 %v4177
        %5643 = vmatpush1.bf16.msra.mxu0 %v4176
        %5644 = vmatprep.subr.bf16.mxu0 %v4181
        %5645 = vmatpush1.bf16.msra.mxu0 %v4180
        %5646 = vmatprep.subr.bf16.mxu0 %v4185
        %5647 = vmatpush1.bf16.msra.mxu0 %v4184
        %5648 = vmatprep.subr.bf16.mxu0 %v4189
        %5649 = vmatpush1.bf16.msra.mxu0 %v4188
        %5650 = vmatprep.subr.bf16.mxu0 %v4193
        %5651 = vmatpush1.bf16.msra.mxu0 %v4192
        %5652 = vmatprep.subr.bf16.mxu0 %v4197
        %5653 = vmatpush1.bf16.msra.mxu0 %v4196
        %5654 = vmatprep.subr.bf16.mxu0 %v4201
        %5655 = vmatpush1.bf16.msra.mxu0 %v4200
        %5656 = vmatprep.subr.bf16.mxu0 %v4205
        %5657 = vmatpush1.bf16.msra.mxu0 %v4204
        %5658 = vmatprep.subr.bf16.mxu0 %v4209
        %5659 = vmatpush1.bf16.msra.mxu0 %v4208
        %5660 = vmatprep.mubr.bf16.mxu0 %v4551
        %5661 = vmatmul.mubr.bf16.gmra.mrb[0].mxu0 %v4550
        %v5662 = vpop.f32.mrb[0].mxu0
        %v5663 = vadd.f32 %v5622, %v5662
        %v5664 = vpop.f32.mrb[0].mxu0
        %v5665 = vadd.f32 %v5624, %v5664
        %v5666 = vpop.f32.mrb[0].mxu0
        %v5667 = vpop.f32.mrb[0].mxu0
        %5668 = vdwg.mxu0
        %5669 = vmatprep.subr.bf16.mxu0 %v4213
        %5670 = vmatpush1.bf16.msra.mxu0 %v4212
        %5671 = vmatprep.subr.bf16.mxu0 %v4217
        %5672 = vmatpush1.bf16.msra.mxu0 %v4216
        %5673 = vmatprep.subr.bf16.mxu0 %v4221
        %5674 = vmatpush1.bf16.msra.mxu0 %v4220
        %5675 = vmatprep.subr.bf16.mxu0 %v4225
        %5676 = vmatpush1.bf16.msra.mxu0 %v4224
        %5677 = vmatprep.subr.bf16.mxu0 %v4229
        %5678 = vmatpush1.bf16.msra.mxu0 %v4228
        %5679 = vmatprep.subr.bf16.mxu0 %v4233
        %5680 = vmatpush1.bf16.msra.mxu0 %v4232
        %5681 = vmatprep.subr.bf16.mxu0 %v4237
        %5682 = vmatpush1.bf16.msra.mxu0 %v4236
        %5683 = vmatprep.subr.bf16.mxu0 %v4241
        %5684 = vmatpush1.bf16.msra.mxu0 %v4240
        %5685 = vmatprep.subr.bf16.mxu0 %v4245
        %5686 = vmatpush1.bf16.msra.mxu0 %v4244
        %5687 = vmatprep.subr.bf16.mxu0 %v4249
        %5688 = vmatpush1.bf16.msra.mxu0 %v4248
        %5689 = vmatprep.subr.bf16.mxu0 %v4253
        %5690 = vmatpush1.bf16.msra.mxu0 %v4252
        %5691 = vmatprep.subr.bf16.mxu0 %v4257
        %5692 = vmatpush1.bf16.msra.mxu0 %v4256
        %5693 = vmatprep.subr.bf16.mxu0 %v4261
        %5694 = vmatpush1.bf16.msra.mxu0 %v4260
        %5695 = vmatprep.subr.bf16.mxu0 %v4265
        %5696 = vmatpush1.bf16.msra.mxu0 %v4264
        %5697 = vmatprep.subr.bf16.mxu0 %v4269
        %5698 = vmatpush1.bf16.msra.mxu0 %v4268
        %5699 = vmatprep.subr.bf16.mxu0 %v4273
        %5700 = vmatpush1.bf16.msra.mxu0 %v4272
        %5701 = vmatprep.mubr.bf16.mxu0 %v4553
        %5702 = vmatmul.mubr.bf16.gmra.mrb[0].mxu0 %v4552
        %v5703 = vpop.f32.mrb[0].mxu0
        %v5704 = vadd.f32 %v5663, %v5703
        %v5705 = vpop.f32.mrb[0].mxu0
        %v5706 = vadd.f32 %v5665, %v5705
        %v5707 = vpop.f32.mrb[0].mxu0
        %v5708 = vpop.f32.mrb[0].mxu0
        %5709 = vdwg.mxu0
        %5710 = vmatprep.subr.bf16.mxu0 %v4277
        %5711 = vmatpush1.bf16.msra.mxu0 %v4276
        %5712 = vmatprep.subr.bf16.mxu0 %v4281
        %5713 = vmatpush1.bf16.msra.mxu0 %v4280
        %5714 = vmatprep.subr.bf16.mxu0 %v4285
        %5715 = vmatpush1.bf16.msra.mxu0 %v4284
        %5716 = vmatprep.subr.bf16.mxu0 %v4289
        %5717 = vmatpush1.bf16.msra.mxu0 %v4288
        %5718 = vmatprep.subr.bf16.mxu0 %v4293
        %5719 = vmatpush1.bf16.msra.mxu0 %v4292
        %5720 = vmatprep.subr.bf16.mxu0 %v4297
        %5721 = vmatpush1.bf16.msra.mxu0 %v4296
        %5722 = vmatprep.subr.bf16.mxu0 %v4301
        %5723 = vmatpush1.bf16.msra.mxu0 %v4300
        %5724 = vmatprep.subr.bf16.mxu0 %v4305
        %5725 = vmatpush1.bf16.msra.mxu0 %v4304
        %5726 = vmatprep.subr.bf16.mxu0 %v4309
        %5727 = vmatpush1.bf16.msra.mxu0 %v4308
        %5728 = vmatprep.subr.bf16.mxu0 %v4313
        %5729 = vmatpush1.bf16.msra.mxu0 %v4312
        %5730 = vmatprep.subr.bf16.mxu0 %v4317
        %5731 = vmatpush1.bf16.msra.mxu0 %v4316
        %5732 = vmatprep.subr.bf16.mxu0 %v4321
        %5733 = vmatpush1.bf16.msra.mxu0 %v4320
        %5734 = vmatprep.subr.bf16.mxu0 %v4325
        %5735 = vmatpush1.bf16.msra.mxu0 %v4324
        %5736 = vmatprep.subr.bf16.mxu0 %v4329
        %5737 = vmatpush1.bf16.msra.mxu0 %v4328
        %5738 = vmatprep.subr.bf16.mxu0 %v4333
        %5739 = vmatpush1.bf16.msra.mxu0 %v4332
        %5740 = vmatprep.subr.bf16.mxu0 %v4337
        %5741 = vmatpush1.bf16.msra.mxu0 %v4336
        %5742 = vmatprep.mubr.bf16.mxu0 %v4555
        %5743 = vmatmul.mubr.bf16.gmra.mrb[0].mxu0 %v4554
        %v5744 = vpop.f32.mrb[0].mxu0
        %v5745 = vadd.f32 %v5704, %v5744
        %v5746 = vpop.f32.mrb[0].mxu0
        %v5747 = vadd.f32 %v5706, %v5746
        %v5748 = vpop.f32.mrb[0].mxu0
        %v5749 = vpop.f32.mrb[0].mxu0
        %5750 = vdwg.mxu0
        %5751 = vmatprep.subr.bf16.mxu0 %v4341
        %5752 = vmatpush1.bf16.msra.mxu0 %v4340
        %5753 = vmatprep.subr.bf16.mxu0 %v4345
        %5754 = vmatpush1.bf16.msra.mxu0 %v4344
        %5755 = vmatprep.subr.bf16.mxu0 %v4349
        %5756 = vmatpush1.bf16.msra.mxu0 %v4348
        %5757 = vmatprep.subr.bf16.mxu0 %v4353
        %5758 = vmatpush1.bf16.msra.mxu0 %v4352
        %5759 = vmatprep.subr.bf16.mxu0 %v4357
        %5760 = vmatpush1.bf16.msra.mxu0 %v4356
        %5761 = vmatprep.subr.bf16.mxu0 %v4361
        %5762 = vmatpush1.bf16.msra.mxu0 %v4360
        %5763 = vmatprep.subr.bf16.mxu0 %v4365
        %5764 = vmatpush1.bf16.msra.mxu0 %v4364
        %5765 = vmatprep.subr.bf16.mxu0 %v4369
        %5766 = vmatpush1.bf16.msra.mxu0 %v4368
        %5767 = vmatprep.subr.bf16.mxu0 %v4373
        %5768 = vmatpush1.bf16.msra.mxu0 %v4372
        %5769 = vmatprep.subr.bf16.mxu0 %v4377
        %5770 = vmatpush1.bf16.msra.mxu0 %v4376
        %5771 = vmatprep.subr.bf16.mxu0 %v4381
        %5772 = vmatpush1.bf16.msra.mxu0 %v4380
        %5773 = vmatprep.subr.bf16.mxu0 %v4385
        %5774 = vmatpush1.bf16.msra.mxu0 %v4384
        %5775 = vmatprep.subr.bf16.mxu0 %v4389
        %5776 = vmatpush1.bf16.msra.mxu0 %v4388
        %5777 = vmatprep.subr.bf16.mxu0 %v4393
        %5778 = vmatpush1.bf16.msra.mxu0 %v4392
        %5779 = vmatprep.subr.bf16.mxu0 %v4397
        %5780 = vmatpush1.bf16.msra.mxu0 %v4396
        %5781 = vmatprep.subr.bf16.mxu0 %v4401
        %5782 = vmatpush1.bf16.msra.mxu0 %v4400
        %5783 = vmatprep.mubr.bf16.mxu0 %v4557
        %5784 = vmatmul.mubr.bf16.gmra.mrb[0].mxu0 %v4556
        %v5785 = vpop.f32.mrb[0].mxu0
        %v5786 = vadd.f32 %v5745, %v5785
        %v5787 = vpop.f32.mrb[0].mxu0
        %v5788 = vadd.f32 %v5747, %v5787
        %v5789 = vpop.f32.mrb[0].mxu0
        %v5790 = vpop.f32.mrb[0].mxu0
        %5791 = vdwg.mxu0
        %5792 = vmatprep.subr.bf16.mxu0 %v4405
        %5793 = vmatpush1.bf16.msra.mxu0 %v4404
        %5794 = vmatprep.subr.bf16.mxu0 %v4409
        %5795 = vmatpush1.bf16.msra.mxu0 %v4408
        %5796 = vmatprep.subr.bf16.mxu0 %v4413
        %5797 = vmatpush1.bf16.msra.mxu0 %v4412
        %5798 = vmatprep.subr.bf16.mxu0 %v4417
        %5799 = vmatpush1.bf16.msra.mxu0 %v4416
        %5800 = vmatprep.subr.bf16.mxu0 %v4421
        %5801 = vmatpush1.bf16.msra.mxu0 %v4420
        %5802 = vmatprep.subr.bf16.mxu0 %v4425
        %5803 = vmatpush1.bf16.msra.mxu0 %v4424
        %5804 = vmatprep.subr.bf16.mxu0 %v4429
        %5805 = vmatpush1.bf16.msra.mxu0 %v4428
        %5806 = vmatprep.subr.bf16.mxu0 %v4433
        %5807 = vmatpush1.bf16.msra.mxu0 %v4432
        %5808 = vmatprep.subr.bf16.mxu0 %v4437
        %5809 = vmatpush1.bf16.msra.mxu0 %v4436
        %5810 = vmatprep.subr.bf16.mxu0 %v4441
        %5811 = vmatpush1.bf16.msra.mxu0 %v4440
        %5812 = vmatprep.subr.bf16.mxu0 %v4445
        %5813 = vmatpush1.bf16.msra.mxu0 %v4444
        %5814 = vmatprep.subr.bf16.mxu0 %v4449
        %5815 = vmatpush1.bf16.msra.mxu0 %v4448
        %5816 = vmatprep.subr.bf16.mxu0 %v4453
        %5817 = vmatpush1.bf16.msra.mxu0 %v4452
        %5818 = vmatprep.subr.bf16.mxu0 %v4457
        %5819 = vmatpush1.bf16.msra.mxu0 %v4456
        %5820 = vmatprep.subr.bf16.mxu0 %v4461
        %5821 = vmatpush1.bf16.msra.mxu0 %v4460
        %5822 = vmatprep.subr.bf16.mxu0 %v4465
        %5823 = vmatpush1.bf16.msra.mxu0 %v4464
        %5824 = vmatprep.mubr.bf16.mxu0 %v4559
        %5825 = vmatmul.mubr.bf16.gmra.mrb[0].mxu0 %v4558
        %v5826 = vpop.f32.mrb[0].mxu0
        %v5827 = vadd.f32 %v5786, %v5826
        %v5828 = vpop.f32.mrb[0].mxu0
        %v5829 = vadd.f32 %v5788, %v5828
        %v5830 = vpop.f32.mrb[0].mxu0
        %v5831 = vpop.f32.mrb[0].mxu0
        %5832 = vdwg.mxu0
        %5833 = vmatprep.subr.bf16.mxu0 %v4469
        %5834 = vmatpush1.bf16.msra.mxu0 %v4468
        %5835 = vmatprep.subr.bf16.mxu0 %v4473
        %5836 = vmatpush1.bf16.msra.mxu0 %v4472
        %5837 = vmatprep.subr.bf16.mxu0 %v4477
        %5838 = vmatpush1.bf16.msra.mxu0 %v4476
        %5839 = vmatprep.subr.bf16.mxu0 %v4481
        %5840 = vmatpush1.bf16.msra.mxu0 %v4480
        %5841 = vmatprep.subr.bf16.mxu0 %v4485
        %5842 = vmatpush1.bf16.msra.mxu0 %v4484
        %5843 = vmatprep.subr.bf16.mxu0 %v4489
        %5844 = vmatpush1.bf16.msra.mxu0 %v4488
        %5845 = vmatprep.subr.bf16.mxu0 %v4493
        %5846 = vmatpush1.bf16.msra.mxu0 %v4492
        %5847 = vmatprep.subr.bf16.mxu0 %v4497
        %5848 = vmatpush1.bf16.msra.mxu0 %v4496
        %5849 = vmatprep.subr.bf16.mxu0 %v4501
        %5850 = vmatpush1.bf16.msra.mxu0 %v4500
        %5851 = vmatprep.subr.bf16.mxu0 %v4505
        %5852 = vmatpush1.bf16.msra.mxu0 %v4504
        %5853 = vmatprep.subr.bf16.mxu0 %v4509
        %5854 = vmatpush1.bf16.msra.mxu0 %v4508
        %5855 = vmatprep.subr.bf16.mxu0 %v4513
        %5856 = vmatpush1.bf16.msra.mxu0 %v4512
        %5857 = vmatprep.subr.bf16.mxu0 %v4517
        %5858 = vmatpush1.bf16.msra.mxu0 %v4516
        %5859 = vmatprep.subr.bf16.mxu0 %v4521
        %5860 = vmatpush1.bf16.msra.mxu0 %v4520
        %5861 = vmatprep.subr.bf16.mxu0 %v4525
        %5862 = vmatpush1.bf16.msra.mxu0 %v4524
        %5863 = vmatprep.subr.bf16.mxu0 %v4529
        %5864 = vmatpush1.bf16.msra.mxu0 %v4528
        %5865 = vmatprep.mubr.bf16.mxu0 %v4561
        %5866 = vmatmul.mubr.bf16.gmra.mrb[0].mxu0 %v4560
        %v5867 = vpop.f32.mrb[0].mxu0
        %v5868 = vadd.f32 %v5827, %v5867
        %v5869 = vpop.f32.mrb[0].mxu0
        %v5870 = vadd.f32 %v5829, %v5869
        %v5871 = vpop.f32.mrb[0].mxu0
        %v5872 = vpop.f32.mrb[0].mxu0
        %5873 = vdwg.mxu0
        %v5874 = vld [vmem:[%s539] sm:$0xf]
        %v5876 = vlaneseq
        %v5877 = vshrl.u32 %v5876, 7
        %v5878 = vsub.s32 0, %v5877
        %v5879 = vrot.slane %v5874, %v5878
        %v5880 = vlaneseq
        %v5881 = vshrl.u32 %v5880, 7
        %v5882 = vsub.s32 1, %v5881
        %v5883 = vrot.slane %v5874, %v5882
        %v5884 = vlaneseq
        %v5885 = vshrl.u32 %v5884, 7
        %v5886 = vsub.s32 2, %v5885
        %v5887 = vrot.slane %v5874, %v5886
        %v5888 = vlaneseq
        %v5889 = vshrl.u32 %v5888, 7
        %v5890 = vsub.s32 3, %v5889
        %v5891 = vrot.slane %v5874, %v5890
        %v5896 = vmul.f32 %v5212, %v5879
        %v5897 = vmul.f32 %v5214, %v5883
        %v5898 = vmul.f32 %v5868, %v5887
        %v5899 = vmul.f32 %v5870, %v5891
        %v5900 = vld [vmem:[%s548] sm:$0xf]
        %v5902 = vlaneseq
        %v5903 = vshrl.u32 %v5902, 7
        %v5904 = vsub.s32 0, %v5903
        %v5905 = vrot.slane %v5900, %v5904
        %v5906 = vlaneseq
        %v5907 = vshrl.u32 %v5906, 7
        %v5908 = vsub.s32 1, %v5907
        %v5909 = vrot.slane %v5900, %v5908
        %v5910 = vlaneseq
        %v5911 = vshrl.u32 %v5910, 7
        %v5912 = vsub.s32 2, %v5911
        %v5913 = vrot.slane %v5900, %v5912
        %v5914 = vlaneseq
        %v5915 = vshrl.u32 %v5914, 7
        %v5916 = vsub.s32 3, %v5915
        %v5917 = vrot.slane %v5900, %v5916
        %v5922 = vadd.f32 %v5896, %v5905
        %v5923 = vadd.f32 %v5897, %v5909
        %v5924 = vadd.f32 %v5898, %v5913
        %v5925 = vadd.f32 %v5899, %v5917
        %v5926 = vmax.f32 %v5922, 0.0
        %v5927 = vmax.f32 %v5923, 0.0
        %v5928 = vmax.f32 %v5924, 0.0
        %v5929 = vmax.f32 %v5925, 0.0
        %v5930 = vpack.c.bf16 %v5926, %v5926
        %v5931 = vpack.c.bf16 %v5927, %v5927
        %v5932 = vpack.c.bf16 %v5928, %v5928
        %v5933 = vpack.c.bf16 %v5929, %v5929
        %v5934 = vld [vmem:[%s557] sm:$0xf]
        %v5935 = vld [vmem:[%s557 + $0x4] sm:$0xf]
        %v5936 = vld [vmem:[%s557 + $0x8] sm:$0xf]
        %v5937 = vld [vmem:[%s557 + $0xc] sm:$0xf]
        %v5938 = vld [vmem:[%s557 + $0x10] sm:$0xf]
        %v5939 = vld [vmem:[%s557 + $0x14] sm:$0xf]
        %v5940 = vld [vmem:[%s557 + $0x18] sm:$0xf]
        %v5941 = vld [vmem:[%s557 + $0x1c] sm:$0xf]
        %v5942 = vld [vmem:[%s557 + $0x20] sm:$0xf]
        %v5943 = vld [vmem:[%s557 + $0x24] sm:$0xf]
        %v5944 = vld [vmem:[%s557 + $0x28] sm:$0xf]
        %v5945 = vld [vmem:[%s557 + $0x2c] sm:$0xf]
        %v5946 = vld [vmem:[%s557 + $0x30] sm:$0xf]
        %v5947 = vld [vmem:[%s557 + $0x34] sm:$0xf]
        %v5948 = vld [vmem:[%s557 + $0x38] sm:$0xf]
        %v5949 = vld [vmem:[%s557 + $0x3c] sm:$0xf]
        %v5950 = vld [vmem:[%s557 + $0x40] sm:$0xf]
        %v5951 = vld [vmem:[%s557 + $0x44] sm:$0xf]
        %v5952 = vld [vmem:[%s557 + $0x48] sm:$0xf]
        %v5953 = vld [vmem:[%s557 + $0x4c] sm:$0xf]
        %v5954 = vld [vmem:[%s557 + $0x50] sm:$0xf]
        %v5955 = vld [vmem:[%s557 + $0x54] sm:$0xf]
        %v5956 = vld [vmem:[%s557 + $0x58] sm:$0xf]
        %v5957 = vld [vmem:[%s557 + $0x5c] sm:$0xf]
        %v5958 = vld [vmem:[%s557 + $0x60] sm:$0xf]
        %v5959 = vld [vmem:[%s557 + $0x64] sm:$0xf]
        %v5960 = vld [vmem:[%s557 + $0x68] sm:$0xf]
        %v5961 = vld [vmem:[%s557 + $0x6c] sm:$0xf]
        %v5962 = vld [vmem:[%s557 + $0x70] sm:$0xf]
        %v5963 = vld [vmem:[%s557 + $0x74] sm:$0xf]
        %v5964 = vld [vmem:[%s557 + $0x78] sm:$0xf]
        %v5965 = vld [vmem:[%s557 + $0x7c] sm:$0xf]
        %v5966 = vld [vmem:[%s557 + $0x80] sm:$0xf]
        %v5967 = vld [vmem:[%s557 + $0x84] sm:$0xf]
        %v5968 = vld [vmem:[%s557 + $0x88] sm:$0xf]
        %v5969 = vld [vmem:[%s557 + $0x8c] sm:$0xf]
        %v5970 = vld [vmem:[%s557 + $0x90] sm:$0xf]
        %v5971 = vld [vmem:[%s557 + $0x94] sm:$0xf]
        %v5972 = vld [vmem:[%s557 + $0x98] sm:$0xf]
        %v5973 = vld [vmem:[%s557 + $0x9c] sm:$0xf]
        %v5974 = vld [vmem:[%s557 + $0xa0] sm:$0xf]
        %v5975 = vld [vmem:[%s557 + $0xa4] sm:$0xf]
        %v5976 = vld [vmem:[%s557 + $0xa8] sm:$0xf]
        %v5977 = vld [vmem:[%s557 + $0xac] sm:$0xf]
        %v5978 = vld [vmem:[%s557 + $0xb0] sm:$0xf]
        %v5979 = vld [vmem:[%s557 + $0xb4] sm:$0xf]
        %v5980 = vld [vmem:[%s557 + $0xb8] sm:$0xf]
        %v5981 = vld [vmem:[%s557 + $0xbc] sm:$0xf]
        %v5982 = vld [vmem:[%s557 + $0xc0] sm:$0xf]
        %v5983 = vld [vmem:[%s557 + $0xc4] sm:$0xf]
        %v5984 = vld [vmem:[%s557 + $0xc8] sm:$0xf]
        %v5985 = vld [vmem:[%s557 + $0xcc] sm:$0xf]
        %v5986 = vld [vmem:[%s557 + $0xd0] sm:$0xf]
        %v5987 = vld [vmem:[%s557 + $0xd4] sm:$0xf]
        %v5988 = vld [vmem:[%s557 + $0xd8] sm:$0xf]
        %v5989 = vld [vmem:[%s557 + $0xdc] sm:$0xf]
        %v5990 = vld [vmem:[%s557 + $0xe0] sm:$0xf]
        %v5991 = vld [vmem:[%s557 + $0xe4] sm:$0xf]
        %v5992 = vld [vmem:[%s557 + $0xe8] sm:$0xf]
        %v5993 = vld [vmem:[%s557 + $0xec] sm:$0xf]
        %v5994 = vld [vmem:[%s557 + $0xf0] sm:$0xf]
        %v5995 = vld [vmem:[%s557 + $0xf4] sm:$0xf]
        %v5996 = vld [vmem:[%s557 + $0xf8] sm:$0xf]
        %v5997 = vld [vmem:[%s557 + $0xfc] sm:$0xf]
        %v6062 = vunpack.c.l.b16 %v5934
        %v6063 = vunpack.c.l.b16 %v5935
        %v6064 = vunpack.c.l.b16 %v5936
        %v6065 = vunpack.c.l.b16 %v5937
        %v6066 = vunpack.c.l.b16 %v5938
        %v6067 = vunpack.c.l.b16 %v5939
        %v6068 = vunpack.c.l.b16 %v5940
        %v6069 = vunpack.c.l.b16 %v5941
        %v6070 = vunpack.c.l.b16 %v5942
        %v6071 = vunpack.c.l.b16 %v5943
        %v6072 = vunpack.c.l.b16 %v5944
        %v6073 = vunpack.c.l.b16 %v5945
        %v6074 = vunpack.c.l.b16 %v5946
        %v6075 = vunpack.c.l.b16 %v5947
        %v6076 = vunpack.c.l.b16 %v5948
        %v6077 = vunpack.c.l.b16 %v5949
        %v6078 = vunpack.c.l.b16 %v5950
        %v6079 = vunpack.c.l.b16 %v5951
        %v6080 = vunpack.c.l.b16 %v5952
        %v6081 = vunpack.c.l.b16 %v5953
        %v6082 = vunpack.c.l.b16 %v5954
        %v6083 = vunpack.c.l.b16 %v5955
        %v6084 = vunpack.c.l.b16 %v5956
        %v6085 = vunpack.c.l.b16 %v5957
        %v6086 = vunpack.c.l.b16 %v5958
        %v6087 = vunpack.c.l.b16 %v5959
        %v6088 = vunpack.c.l.b16 %v5960
        %v6089 = vunpack.c.l.b16 %v5961
        %v6090 = vunpack.c.l.b16 %v5962
        %v6091 = vunpack.c.l.b16 %v5963
        %v6092 = vunpack.c.l.b16 %v5964
        %v6093 = vunpack.c.l.b16 %v5965
        %v6094 = vunpack.c.l.b16 %v5966
        %v6095 = vunpack.c.l.b16 %v5967
        %v6096 = vunpack.c.l.b16 %v5968
        %v6097 = vunpack.c.l.b16 %v5969
        %v6098 = vunpack.c.l.b16 %v5970
        %v6099 = vunpack.c.l.b16 %v5971
        %v6100 = vunpack.c.l.b16 %v5972
        %v6101 = vunpack.c.l.b16 %v5973
        %v6102 = vunpack.c.l.b16 %v5974
        %v6103 = vunpack.c.l.b16 %v5975
        %v6104 = vunpack.c.l.b16 %v5976
        %v6105 = vunpack.c.l.b16 %v5977
        %v6106 = vunpack.c.l.b16 %v5978
        %v6107 = vunpack.c.l.b16 %v5979
        %v6108 = vunpack.c.l.b16 %v5980
        %v6109 = vunpack.c.l.b16 %v5981
        %v6110 = vunpack.c.l.b16 %v5982
        %v6111 = vunpack.c.l.b16 %v5983
        %v6112 = vunpack.c.l.b16 %v5984
        %v6113 = vunpack.c.l.b16 %v5985
        %v6114 = vunpack.c.l.b16 %v5986
        %v6115 = vunpack.c.l.b16 %v5987
        %v6116 = vunpack.c.l.b16 %v5988
        %v6117 = vunpack.c.l.b16 %v5989
        %v6118 = vunpack.c.l.b16 %v5990
        %v6119 = vunpack.c.l.b16 %v5991
        %v6120 = vunpack.c.l.b16 %v5992
        %v6121 = vunpack.c.l.b16 %v5993
        %v6122 = vunpack.c.l.b16 %v5994
        %v6123 = vunpack.c.l.b16 %v5995
        %v6124 = vunpack.c.l.b16 %v5996
        %v6125 = vunpack.c.l.b16 %v5997
        %v6126 = vpack.c.b16 %v6063, %v6062
        %v6127 = vpack.c.b16 %v6065, %v6064
        %v6128 = vpack.c.b16 %v6067, %v6066
        %v6129 = vpack.c.b16 %v6069, %v6068
        %v6130 = vpack.c.b16 %v6071, %v6070
        %v6131 = vpack.c.b16 %v6073, %v6072
        %v6132 = vpack.c.b16 %v6075, %v6074
        %v6133 = vpack.c.b16 %v6077, %v6076
        %v6134 = vpack.c.b16 %v6079, %v6078
        %v6135 = vpack.c.b16 %v6081, %v6080
        %v6136 = vpack.c.b16 %v6083, %v6082
        %v6137 = vpack.c.b16 %v6085, %v6084
        %v6138 = vpack.c.b16 %v6087, %v6086
        %v6139 = vpack.c.b16 %v6089, %v6088
        %v6140 = vpack.c.b16 %v6091, %v6090
        %v6141 = vpack.c.b16 %v6093, %v6092
        %v6142 = vpack.c.b16 %v6095, %v6094
        %v6143 = vpack.c.b16 %v6097, %v6096
        %v6144 = vpack.c.b16 %v6099, %v6098
        %v6145 = vpack.c.b16 %v6101, %v6100
        %v6146 = vpack.c.b16 %v6103, %v6102
        %v6147 = vpack.c.b16 %v6105, %v6104
        %v6148 = vpack.c.b16 %v6107, %v6106
        %v6149 = vpack.c.b16 %v6109, %v6108
        %v6150 = vpack.c.b16 %v6111, %v6110
        %v6151 = vpack.c.b16 %v6113, %v6112
        %v6152 = vpack.c.b16 %v6115, %v6114
        %v6153 = vpack.c.b16 %v6117, %v6116
        %v6154 = vpack.c.b16 %v6119, %v6118
        %v6155 = vpack.c.b16 %v6121, %v6120
        %v6156 = vpack.c.b16 %v6123, %v6122
        %v6157 = vpack.c.b16 %v6125, %v6124
        %6190 = vmatprep.subr.bf16.mxu0 0
        %6191 = vmatpush1.bf16.msra.mxu0 %v6126
        %6192 = vmatprep.subr.bf16.mxu0 0
        %6193 = vmatpush1.bf16.msra.mxu0 %v6127
        %6194 = vmatprep.subr.bf16.mxu0 0
        %6195 = vmatpush1.bf16.msra.mxu0 %v6128
        %6196 = vmatprep.subr.bf16.mxu0 0
        %6197 = vmatpush1.bf16.msra.mxu0 %v6129
        %6198 = vmatprep.subr.bf16.mxu0 0
        %6199 = vmatpush1.bf16.msra.mxu0 %v6130
        %6200 = vmatprep.subr.bf16.mxu0 0
        %6201 = vmatpush1.bf16.msra.mxu0 %v6131
        %6202 = vmatprep.subr.bf16.mxu0 0
        %6203 = vmatpush1.bf16.msra.mxu0 %v6132
        %6204 = vmatprep.subr.bf16.mxu0 0
        %6205 = vmatpush1.bf16.msra.mxu0 %v6133
        %6206 = vmatprep.subr.bf16.mxu0 0
        %6207 = vmatpush1.bf16.msra.mxu0 %v6134
        %6208 = vmatprep.subr.bf16.mxu0 0
        %6209 = vmatpush1.bf16.msra.mxu0 %v6135
        %6210 = vmatprep.subr.bf16.mxu0 0
        %6211 = vmatpush1.bf16.msra.mxu0 %v6136
        %6212 = vmatprep.subr.bf16.mxu0 0
        %6213 = vmatpush1.bf16.msra.mxu0 %v6137
        %6214 = vmatprep.subr.bf16.mxu0 0
        %6215 = vmatpush1.bf16.msra.mxu0 %v6138
        %6216 = vmatprep.subr.bf16.mxu0 0
        %6217 = vmatpush1.bf16.msra.mxu0 %v6139
        %6218 = vmatprep.subr.bf16.mxu0 0
        %6219 = vmatpush1.bf16.msra.mxu0 %v6140
        %6220 = vmatprep.subr.bf16.mxu0 0
        %6221 = vmatpush1.bf16.msra.mxu0 %v6141
        %6222 = vmatprep.mubr.bf16.mxu0 %v5931
        %6223 = vmatmul.mubr.bf16.gmra.mrb[0].mxu0 %v5930
        %v6224 = vpop.f32.mrb[0].mxu0
        %v6225 = vadd.f32 0.0, %v6224
        %v6226 = vpop.f32.mrb[0].mxu0
        %v6227 = vpop.f32.mrb[0].mxu0
        %v6228 = vpop.f32.mrb[0].mxu0
        %6229 = vdwg.mxu0
        %6230 = vmatprep.subr.bf16.mxu0 0
        %6231 = vmatpush1.bf16.msra.mxu0 %v6142
        %6232 = vmatprep.subr.bf16.mxu0 0
        %6233 = vmatpush1.bf16.msra.mxu0 %v6143
        %6234 = vmatprep.subr.bf16.mxu0 0
        %6235 = vmatpush1.bf16.msra.mxu0 %v6144
        %6236 = vmatprep.subr.bf16.mxu0 0
        %6237 = vmatpush1.bf16.msra.mxu0 %v6145
        %6238 = vmatprep.subr.bf16.mxu0 0
        %6239 = vmatpush1.bf16.msra.mxu0 %v6146
        %6240 = vmatprep.subr.bf16.mxu0 0
        %6241 = vmatpush1.bf16.msra.mxu0 %v6147
        %6242 = vmatprep.subr.bf16.mxu0 0
        %6243 = vmatpush1.bf16.msra.mxu0 %v6148
        %6244 = vmatprep.subr.bf16.mxu0 0
        %6245 = vmatpush1.bf16.msra.mxu0 %v6149
        %6246 = vmatprep.subr.bf16.mxu0 0
        %6247 = vmatpush1.bf16.msra.mxu0 %v6150
        %6248 = vmatprep.subr.bf16.mxu0 0
        %6249 = vmatpush1.bf16.msra.mxu0 %v6151
        %6250 = vmatprep.subr.bf16.mxu0 0
        %6251 = vmatpush1.bf16.msra.mxu0 %v6152
        %6252 = vmatprep.subr.bf16.mxu0 0
        %6253 = vmatpush1.bf16.msra.mxu0 %v6153
        %6254 = vmatprep.subr.bf16.mxu0 0
        %6255 = vmatpush1.bf16.msra.mxu0 %v6154
        %6256 = vmatprep.subr.bf16.mxu0 0
        %6257 = vmatpush1.bf16.msra.mxu0 %v6155
        %6258 = vmatprep.subr.bf16.mxu0 0
        %6259 = vmatpush1.bf16.msra.mxu0 %v6156
        %6260 = vmatprep.subr.bf16.mxu0 0
        %6261 = vmatpush1.bf16.msra.mxu0 %v6157
        %6262 = vmatprep.mubr.bf16.mxu0 %v5933
        %6263 = vmatmul.mubr.bf16.gmra.mrb[0].mxu0 %v5932
        %v6264 = vpop.f32.mrb[0].mxu0
        %v6265 = vadd.f32 %v6225, %v6264
        %v6266 = vpop.f32.mrb[0].mxu0
        %v6267 = vpop.f32.mrb[0].mxu0
        %v6268 = vpop.f32.mrb[0].mxu0
        %6269 = vdwg.mxu0
        %6270 = vst [vmem:[%s619] sm:$0x3] %v6265
        %p6271 = scmp.lt.s32.totalorder %s27, 1
        %s6272 = scalar_select %p6271, %s27, 1
        %s6273 = smul.addr %s6272, 2
        %s6274 = scalar_lea.vmem %s12, %s6273
        // Predicated region
        $region109: #{nasnet_a_card_classifier.1} parent=67 // pred_check
          %p6275 = pneg %p317
        $region110: #{nasnet_a_card_classifier.1} parent=67 // pred_check_branch
          %6277 = sbr.rel (%p6275) target = $region112
        $region111: #{nasnet_a_card_classifier.1} parent=67 // pred_region
          _
        $region112: #{nasnet_a_card_classifier.1} parent=67 // pred_fallthru
          _
      $region68: #{nasnet_a_card_classifier.1} parent=5 // pred_fallthru
        _
      %p6278 = scmp.le.s32.totalorder 2, %s22
      // Predicated region
      $region113: #{nasnet_a_card_classifier.1} parent=5 // pred_check
        %p6279 = pneg %p6278
      $region114: #{nasnet_a_card_classifier.1} parent=5 // pred_check_branch
        %6281 = sbr.rel (%p6279) target = $region116
      $region115: #{nasnet_a_card_classifier.1} parent=5 // pred_region
        %s6282 = ssub.s32 %s22, 2
        // Predicated region
        $region117: #{nasnet_a_card_classifier.1} parent=115 // pred_check
          %p6283 = pneg %p323
        $region118: #{nasnet_a_card_classifier.1} parent=115 // pred_check_branch
          %6285 = sbr.rel (%p6283) target = $region120
        $region119: #{nasnet_a_card_classifier.1} parent=115 // pred_region
          %p6286 = scmp.lt.s32.totalorder %s28, 1
          %s6287 = scalar_select %p6286, %s28, 1
          %s6288 = smul.addr %s6287, 2
          %s6289 = scalar_lea.vmem %s12, %s6288
        $region120: #{nasnet_a_card_classifier.1} parent=115 // pred_fallthru
          _
      $region116: #{nasnet_a_card_classifier.1} parent=5 // pred_fallthru
        _
    $region6: #{nasnet_a_card_classifier.1} parent=1 // loop_footer
      %s26 = sadd.s32 1, %s22
    $region7: #{nasnet_a_card_classifier.1} parent=1 // loop_footer_branch
      %21 = sbr.rel target = $region3
    $region8: #{nasnet_a_card_classifier.1} parent=1 // loop_exit
      _
    %6290 = vsyncpa [#allocation3], 1
    %s6291 = scalar_lea.sflag [#allocation3], 1
    %6292 = vsyncpa %s6291, 1
    %6293 = vsyncpa [#allocation5], 1
    %6294 = vsyncpa [#allocation8], 1
    %6295 = vsyncpa [#allocation11], 1

</llo_original>
